<compile_context>
chip_gen: v5e
topology: v5e:2x2
jax: 0.10.0
libtpu: 0.0.40
codegen_flags: <defaults>
</compile_context>

<pallas_src>
import functools

import jax
import jax.numpy as jnp
from jax.experimental import pallas as pl
from jax.experimental.pallas import tpu as pltpu

GNN_DIM = 300            # gnn_output_size
PROJ_DIM = 300           # project_table output
HID_DIM = 4 * PROJ_DIM   # 1200, dim_reduction width
BERT_DIM = 768
REG_HID = 1024
LN_EPS = 1e-5

# Rows of LHS presented to the MXU per grid step (TB * N).  256 fills the
# v6e/v7x 2x256^2 arrays; v5e (4x128^2) is already saturated at 128.
_TARGET_ROWS = 256


def _leaky_relu(x, slope=0.2):
    return jnp.where(x > 0, x, slope * x)


# ---------------------------------------------------------------------------
# Pallas kernel (one grid step = TB items, all their nodes stacked as rows):
#   project_table -> folded dim_reduction -> tanh -> per-item max over nodes
# ---------------------------------------------------------------------------
def _matching_kernel(
    n_nodes,      # python int (closure): nodes per item
    creps_ref,    # [TB*N, 300]   bf16  GNN node representations (all items)
    qn_ref,       # [TB*N, 300]   bf16  query embedding broadcast per node
    qpart_ref,    # [TB, 1, 1200] f32   hoisted  q @ (W2 - W3)
    wpt_ref,      # [300, 300]    bf16  project_table Linear weight
    bpt_ref,      # [1, 300]      f32
    g_ref,        # [1, 300]      f32   LayerNorm gamma
    be_ref,       # [1, 300]      f32   LayerNorm beta
    wd13_ref,     # [300, 1200]   bf16  W1 + W3   (dim_reduction fold)
    wd4_ref,      # [300, 1200]   bf16  W4
    bdr_ref,      # [1, 1200]     f32
    gnn_ref,      # [TB, 1200]    f32   output: per-item gnn_rep
):
    f32 = jnp.float32
    bf16 = jnp.bfloat16
    rows = creps_ref.shape[0]
    tb = rows // n_nodes

    # project_table: Linear(300, 300) + LayerNorm(300), on all TB*N node rows
    # at once (fills the MXU M dimension).
    t = jnp.dot(creps_ref[...], wpt_ref[...], preferred_element_type=f32) + bpt_ref[...]
    mu = jnp.mean(t, axis=-1, keepdims=True)
    var = jnp.mean((t - mu) * (t - mu), axis=-1, keepdims=True)
    t = (t - mu) * jax.lax.rsqrt(var + LN_EPS) * g_ref[...] + be_ref[...]

    # dim_reduction(concat(t, q, t-q, t*q)) folded:
    #   h = t @ (W1+W3) + (t*q) @ W4 + [q @ (W2-W3)] + b
    # The q-side matmul is hoisted to the wrapper (qpart_ref).
    tq = t * qn_ref[...]                                        # f32 (qn upcast)
    h = (
        jnp.dot(t.astype(bf16), wd13_ref[...], preferred_element_type=f32)
        + jnp.dot(tq.astype(bf16), wd4_ref[...], preferred_element_type=f32)
        + bdr_ref[...]
    )                                                           # [TB*N, 1200]

    # Split the leading dim back per item (layout-free: n_nodes == 8 == f32
    # sublane tile), add the per-item hoisted q term, tanh, node max.
    h = jnp.reshape(h, (tb, n_nodes, HID_DIM))
    h = jnp.tanh(h + qpart_ref[...])
    gnn_ref[...] = jnp.max(h, axis=1)                           # torch.max(hidden, 0)[0]


def _weight_spec(shape, single_buffer):
    index_map = lambda i: (0,) * len(shape)   # constant -> VMEM-resident weight
    if single_buffer:
        # Second pipeline buffer never carries new data for a constant index
        # map; single-buffer to halve weight VMEM (v7x headroom).
        return pl.BlockSpec(shape, index_map, pipeline_mode=pl.Buffered(1))
    return pl.BlockSpec(shape, index_map)


# ---------------------------------------------------------------------------
# Wrapper: one pallas_call for a whole batch of items + batched XLA head.
# ---------------------------------------------------------------------------
def matching_head(creps, q_emb, bert_rep, kp, *, tb=None):
    """creps: [B, N, 300] f32, q_emb: [B, 1, 300] f32, bert_rep: [B, 768] f32."""
    B, N, _ = creps.shape
    bf16, f32 = jnp.bfloat16, jnp.float32

    if tb is None:
        tb = max(1, min(B, _TARGET_ROWS // N))
    grid = (B + tb - 1) // tb
    bp = grid * tb                                             # padded batch

    # Hoisted batched XLA matmuls (B rows instead of per-item M=1 mat-vecs).
    q2 = q_emb.reshape(B, GNN_DIM)
    q_part = jnp.dot(q2.astype(bf16), kp["w_d2m3"],
                     preferred_element_type=f32).reshape(B, 1, HID_DIM)
    bert_bias = (
        jnp.dot(bert_rep.astype(bf16), kp["w_ra"], preferred_element_type=f32)
        + kp["b_r1"]
    )                                                          # [B, 1024]

    # Per-node streams for the kernel, pre-cast to bf16, leading dims collapsed.
    creps_flat = creps.astype(bf16).reshape(B * N, GNN_DIM)
    qn_flat = jnp.broadcast_to(q_emb, (B, N, GNN_DIM)).astype(bf16).reshape(B * N, GNN_DIM)

    pad = bp - B
    if pad:
        creps_flat = jnp.pad(creps_flat, ((0, pad * N), (0, 0)))
        qn_flat = jnp.pad(qn_flat, ((0, pad * N), (0, 0)))
        q_part = jnp.pad(q_part, ((0, pad), (0, 0), (0, 0)))

    kernel = functools.partial(_matching_kernel, N)

    def call(single_buffer_weights):
        in_specs = [
            pl.BlockSpec((tb * N, GNN_DIM), lambda i: (i, 0)),    # creps
            pl.BlockSpec((tb * N, GNN_DIM), lambda i: (i, 0)),    # q per node
            pl.BlockSpec((tb, 1, HID_DIM), lambda i: (i, 0, 0)),  # hoisted q@(W2-W3)
            _weight_spec(kp["w_pt"].shape, single_buffer_weights),
            _weight_spec(kp["b_pt"].shape, single_buffer_weights),
            _weight_spec(kp["ln_g"].shape, single_buffer_weights),
            _weight_spec(kp["ln_b"].shape, single_buffer_weights),
            _weight_spec(kp["w_d13"].shape, single_buffer_weights),
            _weight_spec(kp["w_d4"].shape, single_buffer_weights),
            _weight_spec(kp["b_dr"].shape, single_buffer_weights),
        ]
        return pl.pallas_call(
            kernel,
            out_shape=jax.ShapeDtypeStruct((bp, HID_DIM), jnp.float32),
            grid_spec=pltpu.PrefetchScalarGridSpec(
                num_scalar_prefetch=0,
                grid=(grid,),
                in_specs=in_specs,
                out_specs=pl.BlockSpec((tb, HID_DIM), lambda i: (i, 0)),
            ),
            compiler_params=pltpu.CompilerParams(
                dimension_semantics=("parallel",),      # megacore: shard batch blocks
                vmem_limit_bytes=32 * 1024 * 1024,
            ),
        )(
            creps_flat, qn_flat, q_part,
            kp["w_pt"], kp["b_pt"], kp["ln_g"], kp["ln_b"],
            kp["w_d13"], kp["w_d4"], kp["b_dr"],
        )

    if hasattr(pl, "Buffered"):
        try:
            gnn_pad = call(True)
        except Exception:
            # pl.Buffered(1) not supported by this JAX/Mosaic build: fall back
            # to default double-buffered weights (~1.7 MB extra VMEM, harmless).
            gnn_pad = call(False)
    else:
        gnn_pad = call(False)

    gnn_rep = gnn_pad[:B]                                      # [B, 1200] f32

    # Hoisted regression head: Dropout(eval) -> Linear -> LeakyReLU -> Linear,
    # as batched XLA matmuls (bert-side term precomputed above).
    pre = jnp.dot(gnn_rep.astype(bf16), kp["w_rb"], preferred_element_type=f32) + bert_bias
    act = _leaky_relu(pre, 0.2)
    score = jnp.dot(act, kp["w_r2"]) + kp["b_r2"]              # [B, 1]
    return score


# ---------------------------------------------------------------------------
# GATEncoder stand-in (glue, plain JAX): 4 dense-adjacency GAT layers.
# TODO(synk): GATEncoder definition is not in the provided module; this is a
#             plausible single-head dense GAT approximation, not a port.
# ---------------------------------------------------------------------------
def gat_encoder(adj, feats, gat_params):
    h = feats
    for (W, a_l, a_r) in gat_params:
        z = h @ W                                      # [N, H]
        e = _leaky_relu(z @ a_l + (z @ a_r).T, 0.2)    # [N, N]
        e = jnp.where(adj > 0, e, -1e9)
        alpha = jax.nn.softmax(e, axis=-1)
        h = _leaky_relu(alpha @ z, 0.2)
    return h


# ---------------------------------------------------------------------------
# References.
# ---------------------------------------------------------------------------
def matching_head_ref(creps, q_emb, bert_rep, kp):
    """Plain-JAX mirror of the kernel + hoisted-head arithmetic (same bf16 casts)."""
    bf16, f32 = jnp.bfloat16, jnp.float32
    B, N, _ = creps.shape
    gnns = []
    for b in range(B):
        t = jnp.dot(creps[b].astype(bf16), kp["w_pt"], preferred_element_type=f32) + kp["b_pt"]
        mu = jnp.mean(t, -1, keepdims=True)
        var = jnp.mean((t - mu) ** 2, -1, keepdims=True)
        t = (t - mu) * jax.lax.rsqrt(var + LN_EPS) * kp["ln_g"] + kp["ln_b"]
        qn = jnp.broadcast_to(q_emb[b], t.shape).astype(bf16)
        tq = t * qn
        qpart = jnp.dot(q_emb[b].astype(bf16), kp["w_d2m3"], preferred_element_type=f32)
        h = (
            jnp.dot(t.astype(bf16), kp["w_d13"], preferred_element_type=f32)
            + jnp.dot(tq.astype(bf16), kp["w_d4"], preferred_element_type=f32)
            + qpart + kp["b_dr"]
        )
        h = jnp.tanh(h)
        gnns.append(jnp.max(h, axis=0))
    gnn_rep = jnp.stack(gnns)                                  # [B, 1200]
    bert_bias = (
        jnp.dot(bert_rep.astype(bf16), kp["w_ra"], preferred_element_type=f32) + kp["b_r1"]
    )
    pre = jnp.dot(gnn_rep.astype(bf16), kp["w_rb"], preferred_element_type=f32) + bert_bias
    act = _leaky_relu(pre, 0.2)
    return jnp.dot(act, kp["w_r2"]) + kp["b_r2"]


def matching_head_f32_ref(creps, q_emb, bert_rep, m):
    """Original (unfolded, full-f32) MatchingModel head semantics."""
    outs = []
    for b in range(creps.shape[0]):
        t = creps[b] @ m["w_pt"] + m["b_pt"]
        mu = jnp.mean(t, -1, keepdims=True)
        var = jnp.mean((t - mu) ** 2, -1, keepdims=True)
        t = (t - mu) / jnp.sqrt(var + LN_EPS) * m["ln_g"] + m["ln_b"]
        q = jnp.broadcast_to(q_emb[b], t.shape)
        hidden = jnp.concatenate([t, q, t - q, t * q], axis=1)
        w_dr = jnp.concatenate([m["w_d1"], m["w_d2"], m["w_d3"], m["w_d4"]], axis=0)
        h = jnp.tanh(hidden @ w_dr + m["b_dr"])
        gnn_rep = jnp.max(h, axis=0, keepdims=True)
        rep = jnp.concatenate([bert_rep[b:b + 1], gnn_rep], axis=1)
        w_r1 = jnp.concatenate([m["w_ra"], m["w_rb"]], axis=0)
        act = _leaky_relu(rep @ w_r1 + m["b_r1"], 0.2)
        outs.append((act @ m["w_r2"] + m["b_r2"])[0])
    return jnp.stack(outs)


# ---------------------------------------------------------------------------
# Parameter construction.
# ---------------------------------------------------------------------------
def init_params(key):
    ks = jax.random.split(key, 12)
    s = 0.05
    master = {
        "w_pt": jax.random.normal(ks[0], (PROJ_DIM, PROJ_DIM), jnp.float32) * s,
        "b_pt": jnp.zeros((1, PROJ_DIM), jnp.float32),
        "ln_g": jnp.ones((1, PROJ_DIM), jnp.float32),
        "ln_b": jnp.zeros((1, PROJ_DIM), jnp.float32),
        "w_d1": jax.random.normal(ks[1], (PROJ_DIM, HID_DIM), jnp.float32) * s,
        "w_d2": jax.random.normal(ks[2], (PROJ_DIM, HID_DIM), jnp.float32) * s,
        "w_d3": jax.random.normal(ks[3], (PROJ_DIM, HID_DIM), jnp.float32) * s,
        "w_d4": jax.random.normal(ks[4], (PROJ_DIM, HID_DIM), jnp.float32) * s,
        "b_dr": jnp.zeros((1, HID_DIM), jnp.float32),
        "w_ra": jax.random.normal(ks[5], (BERT_DIM, REG_HID), jnp.float32) * s,
        "w_rb": jax.random.normal(ks[6], (HID_DIM, REG_HID), jnp.float32) * s,
        "b_r1": jnp.zeros((1, REG_HID), jnp.float32),
        "w_r2": jax.random.normal(ks[7], (REG_HID, 1), jnp.float32) * s,
        "b_r2": jnp.zeros((1, 1), jnp.float32),
    }
    gat_params = []
    gk = jax.random.split(ks[8], 4)
    for i in range(4):
        wk, lk, rk = jax.random.split(gk[i], 3)
        gat_params.append(
            (
                jax.random.normal(wk, (GNN_DIM, GNN_DIM), jnp.float32) * s,
                jax.random.normal(lk, (GNN_DIM, 1), jnp.float32) * s,
                jax.random.normal(rk, (GNN_DIM, 1), jnp.float32) * s,
            )
        )
    return master, gat_params


def make_kernel_params(m):
    """Fold dim_reduction blocks and cast streamed weights to bf16."""
    bf16 = jnp.bfloat16
    return {
        # kernel-resident weights
        "w_pt": m["w_pt"].astype(bf16),
        "b_pt": m["b_pt"], "ln_g": m["ln_g"], "ln_b": m["ln_b"],
        "w_d13": (m["w_d1"] + m["w_d3"]).astype(bf16),
        "w_d4": m["w_d4"].astype(bf16),
        "b_dr": m["b_dr"],
        # wrapper-side weights (hoisted batched XLA matmuls)
        "w_d2m3": (m["w_d2"] - m["w_d3"]).astype(bf16),
        "w_ra": m["w_ra"].astype(bf16),
        "w_rb": m["w_rb"].astype(bf16),
        "b_r1": m["b_r1"],
        "w_r2": m["w_r2"],
        "b_r2": m["b_r2"],
    }


if __name__ == "__main__":
    key = jax.random.PRNGKey(0)
    k_par, k_tf, k_qf, k_bert, k_adj = jax.random.split(key, 5)

    B = 2          # candidate tables scored per pallas_call
    N_NODES = 8    # nodes per graph (fixed within the batch)
    # TODO(synk): if node counts vary and creps is padded to a fixed N, pad
    #             rows must be masked (e.g. to -inf before the node max).

    master, gat_params = init_params(k_par)
    kparams = make_kernel_params(master)

    # Inputs implied by forward(): per-item table node features, query
    # embedding, dense adjacency, and the (external) BERT pooled representation.
    # TODO(synk): BertTokenizer/BertModel are external pretrained modules; the
    # pooled 768-d output is taken as an input instead of being recomputed.
    t_feat = jax.random.normal(k_tf, (B, N_NODES, GNN_DIM), jnp.float32)
    q_feat = jax.random.normal(k_qf, (B, 1, GNN_DIM), jnp.float32)
    bert_rep = jax.random.normal(k_bert, (B, BERT_DIM), jnp.float32)
    adj = (jax.random.uniform(k_adj, (B, N_NODES, N_NODES)) < 0.5).astype(jnp.float32)
    adj = jnp.maximum(adj, jnp.eye(N_NODES, dtype=jnp.float32))  # self-loops

    # GNN (glue, plain JAX), vmapped over the batch
    creps = jax.vmap(lambda a, f: gat_encoder(a, f, gat_params))(adj, t_feat)

    # Batch-blocked Pallas head + hoisted batched regression
    scores = matching_head(creps, q_feat, bert_rep, kparams)
    scores = jax.block_until_ready(scores)
    assert scores.shape == (B, 1)

    # Tight check against a plain-JAX mirror of the kernel arithmetic
    ref_bf16 = matching_head_ref(creps, q_feat, bert_rep, kparams)
    assert jnp.allclose(scores, ref_bf16, atol=2e-2, rtol=2e-2), (scores, ref_bf16)

    # Loose sanity check against the original unfolded f32 semantics
    ref_f32 = matching_head_f32_ref(creps, q_feat, bert_rep, master)
    assert jnp.allclose(scores, ref_f32, atol=0.15, rtol=0.15), (scores, ref_f32)

    print("KERNEL_OK")
</pallas_src>

<mosaic_0001>
module attributes {stable_mosaic.version = 11 : i64} {
  func.func @_matching_kernel(%arg0: i32, %arg1: memref<16x300xbf16, #tpu.memory_space<vmem>>, %arg2: memref<16x300xbf16, #tpu.memory_space<vmem>>, %arg3: memref<2x1x1200xf32, #tpu.memory_space<vmem>>, %arg4: memref<300x300xbf16, #tpu.memory_space<vmem>>, %arg5: memref<1x300xf32, #tpu.memory_space<vmem>>, %arg6: memref<1x300xf32, #tpu.memory_space<vmem>>, %arg7: memref<1x300xf32, #tpu.memory_space<vmem>>, %arg8: memref<300x1200xbf16, #tpu.memory_space<vmem>>, %arg9: memref<300x1200xbf16, #tpu.memory_space<vmem>>, %arg10: memref<1x1200xf32, #tpu.memory_space<vmem>>, %arg11: memref<2x1200xf32, #tpu.memory_space<vmem>>) attributes {dimension_semantics = [#tpu.dimension_semantics<parallel>], iteration_bounds = array<i64: 1>, scalar_prefetch = 0 : i64, scratch_operands = 0 : i64, tpu.core_type = #tpu.core_type<tc>, window_params = [{transform_indices = @transform_0, window_bounds = array<i64: 16, 300>}, {transform_indices = @transform_1, window_bounds = array<i64: 16, 300>}, {transform_indices = @transform_2, window_bounds = array<i64: 2, 1, 1200>}, {pipeline_mode = #tpu.pipeline_mode<synchronous>, transform_indices = @transform_3, window_bounds = array<i64: 300, 300>}, {pipeline_mode = #tpu.pipeline_mode<synchronous>, transform_indices = @transform_4, window_bounds = array<i64: 1, 300>}, {pipeline_mode = #tpu.pipeline_mode<synchronous>, transform_indices = @transform_5, window_bounds = array<i64: 1, 300>}, {pipeline_mode = #tpu.pipeline_mode<synchronous>, transform_indices = @transform_6, window_bounds = array<i64: 1, 300>}, {pipeline_mode = #tpu.pipeline_mode<synchronous>, transform_indices = @transform_7, window_bounds = array<i64: 300, 1200>}, {pipeline_mode = #tpu.pipeline_mode<synchronous>, transform_indices = @transform_8, window_bounds = array<i64: 300, 1200>}, {pipeline_mode = #tpu.pipeline_mode<synchronous>, transform_indices = @transform_9, window_bounds = array<i64: 1, 1200>}, {transform_indices = @transform_10, window_bounds = array<i64: 2, 1200>}]} {
    %c0 = arith.constant 0 : index
    %c0_0 = arith.constant 0 : index
    %0 = vector.load %arg1[%c0, %c0_0] : memref<16x300xbf16, #tpu.memory_space<vmem>>, vector<16x300xbf16>
    %c0_1 = arith.constant 0 : index
    %c0_2 = arith.constant 0 : index
    %1 = vector.load %arg4[%c0_1, %c0_2] : memref<300x300xbf16, #tpu.memory_space<vmem>>, vector<300x300xbf16>
    %cst = arith.constant dense<0.000000e+00> : vector<16x300xf32>
    %2 = tpu.matmul %0, %1, %cst {dimension_numbers = #tpu.dot_dimension_numbers<[1], [0], [0], [1], [0, 0, 1, 1], [], []>} : vector<16x300xbf16>, vector<300x300xbf16>, vector<16x300xf32> -> vector<16x300xf32>
    %c0_3 = arith.constant 0 : index
    %c0_4 = arith.constant 0 : index
    %3 = vector.load %arg5[%c0_3, %c0_4] : memref<1x300xf32, #tpu.memory_space<vmem>>, vector<1x300xf32>
    %4 = vector.broadcast %3 : vector<1x300xf32> to vector<16x300xf32>
    %5 = arith.addf %2, %4 : vector<16x300xf32>
    %cst_5 = arith.constant dense<0.000000e+00> : vector<16xf32>
    %6 = vector.multi_reduction <add>, %5, %cst_5 [1] : vector<16x300xf32> to vector<16xf32>
    %7 = vector.shape_cast %6 : vector<16xf32> to vector<16x1xf32>
    %cst_6 = arith.constant 3.000000e+02 : f32
    %8 = vector.broadcast %cst_6 : f32 to vector<16x1xf32>
    %9 = arith.divf %7, %8 : vector<16x1xf32>
    %10 = vector.broadcast %9 : vector<16x1xf32> to vector<16x300xf32>
    %11 = arith.subf %5, %10 : vector<16x300xf32>
    %12 = vector.broadcast %9 : vector<16x1xf32> to vector<16x300xf32>
    %13 = arith.subf %5, %12 : vector<16x300xf32>
    %14 = arith.mulf %11, %13 : vector<16x300xf32>
    %cst_7 = arith.constant dense<0.000000e+00> : vector<16xf32>
    %15 = vector.multi_reduction <add>, %14, %cst_7 [1] : vector<16x300xf32> to vector<16xf32>
    %16 = vector.shape_cast %15 : vector<16xf32> to vector<16x1xf32>
    %cst_8 = arith.constant 3.000000e+02 : f32
    %17 = vector.broadcast %cst_8 : f32 to vector<16x1xf32>
    %18 = arith.divf %16, %17 : vector<16x1xf32>
    %19 = vector.broadcast %9 : vector<16x1xf32> to vector<16x300xf32>
    %20 = arith.subf %5, %19 : vector<16x300xf32>
    %cst_9 = arith.constant 9.99999974E-6 : f32
    %21 = vector.broadcast %cst_9 : f32 to vector<16x1xf32>
    %22 = arith.addf %18, %21 : vector<16x1xf32>
    %23 = math.rsqrt %22 : vector<16x1xf32>
    %24 = vector.broadcast %23 : vector<16x1xf32> to vector<16x300xf32>
    %25 = arith.mulf %20, %24 : vector<16x300xf32>
    %c0_10 = arith.constant 0 : index
    %c0_11 = arith.constant 0 : index
    %26 = vector.load %arg6[%c0_10, %c0_11] : memref<1x300xf32, #tpu.memory_space<vmem>>, vector<1x300xf32>
    %27 = vector.broadcast %26 : vector<1x300xf32> to vector<16x300xf32>
    %28 = arith.mulf %25, %27 : vector<16x300xf32>
    %c0_12 = arith.constant 0 : index
    %c0_13 = arith.constant 0 : index
    %29 = vector.load %arg7[%c0_12, %c0_13] : memref<1x300xf32, #tpu.memory_space<vmem>>, vector<1x300xf32>
    %30 = vector.broadcast %29 : vector<1x300xf32> to vector<16x300xf32>
    %31 = arith.addf %28, %30 : vector<16x300xf32>
    %c0_14 = arith.constant 0 : index
    %c0_15 = arith.constant 0 : index
    %32 = vector.load %arg2[%c0_14, %c0_15] : memref<16x300xbf16, #tpu.memory_space<vmem>>, vector<16x300xbf16>
    %33 = arith.extf %32 : vector<16x300xbf16> to vector<16x300xf32>
    %34 = arith.mulf %31, %33 : vector<16x300xf32>
    %35 = arith.truncf %31 : vector<16x300xf32> to vector<16x300xbf16>
    %c0_16 = arith.constant 0 : index
    %c0_17 = arith.constant 0 : index
    %36 = vector.load %arg8[%c0_16, %c0_17] : memref<300x1200xbf16, #tpu.memory_space<vmem>>, vector<300x1200xbf16>
    %cst_18 = arith.constant dense<0.000000e+00> : vector<16x1200xf32>
    %37 = tpu.matmul %35, %36, %cst_18 {dimension_numbers = #tpu.dot_dimension_numbers<[1], [0], [0], [1], [0, 0, 1, 1], [], []>} : vector<16x300xbf16>, vector<300x1200xbf16>, vector<16x1200xf32> -> vector<16x1200xf32>
    %38 = arith.truncf %34 : vector<16x300xf32> to vector<16x300xbf16>
    %c0_19 = arith.constant 0 : index
    %c0_20 = arith.constant 0 : index
    %39 = vector.load %arg9[%c0_19, %c0_20] : memref<300x1200xbf16, #tpu.memory_space<vmem>>, vector<300x1200xbf16>
    %cst_21 = arith.constant dense<0.000000e+00> : vector<16x1200xf32>
    %40 = tpu.matmul %38, %39, %cst_21 {dimension_numbers = #tpu.dot_dimension_numbers<[1], [0], [0], [1], [0, 0, 1, 1], [], []>} : vector<16x300xbf16>, vector<300x1200xbf16>, vector<16x1200xf32> -> vector<16x1200xf32>
    %41 = arith.addf %37, %40 : vector<16x1200xf32>
    %c0_22 = arith.constant 0 : index
    %c0_23 = arith.constant 0 : index
    %42 = vector.load %arg10[%c0_22, %c0_23] : memref<1x1200xf32, #tpu.memory_space<vmem>>, vector<1x1200xf32>
    %43 = vector.broadcast %42 : vector<1x1200xf32> to vector<16x1200xf32>
    %44 = arith.addf %41, %43 : vector<16x1200xf32>
    %45 = vector.shape_cast %44 : vector<16x1200xf32> to vector<2x8x1200xf32>
    %c0_24 = arith.constant 0 : index
    %c0_25 = arith.constant 0 : index
    %c0_26 = arith.constant 0 : index
    %46 = vector.load %arg3[%c0_24, %c0_25, %c0_26] : memref<2x1x1200xf32, #tpu.memory_space<vmem>>, vector<2x1x1200xf32>
    %47 = vector.broadcast %46 : vector<2x1x1200xf32> to vector<2x8x1200xf32>
    %48 = arith.addf %45, %47 : vector<2x8x1200xf32>
    %49 = math.tanh %48 : vector<2x8x1200xf32>
    %cst_27 = arith.constant dense<0xFF800000> : vector<2x1200xf32>
    %50 = vector.multi_reduction <maximumf>, %49, %cst_27 [1] : vector<2x8x1200xf32> to vector<2x1200xf32>
    %c0_28 = arith.constant 0 : index
    %c0_29 = arith.constant 0 : index
    %51 = vector.load %arg11[%c0_28, %c0_29] : memref<2x1200xf32, #tpu.memory_space<vmem>>, vector<2x1200xf32>
    tpu.vector_store %arg11[%c0_28, %c0_29], %50 {strides = array<i32>} : memref<2x1200xf32, #tpu.memory_space<vmem>>, vector<2x1200xf32>,
    return
  }
  func.func @transform_0(%arg0: i32) -> (i32, i32) {
    %c0_i32 = arith.constant 0 : i32
    %c0_i32_0 = arith.constant 0 : i32
    return %arg0, %c0_i32 : i32, i32
  }
  func.func @transform_1(%arg0: i32) -> (i32, i32) {
    %c0_i32 = arith.constant 0 : i32
    %c0_i32_0 = arith.constant 0 : i32
    return %arg0, %c0_i32 : i32, i32
  }
  func.func @transform_2(%arg0: i32) -> (i32, i32, i32) {
    %c0_i32 = arith.constant 0 : i32
    %c0_i32_0 = arith.constant 0 : i32
    %c0_i32_1 = arith.constant 0 : i32
    return %arg0, %c0_i32, %c0_i32_0 : i32, i32, i32
  }
  func.func @transform_3(%arg0: i32) -> (i32, i32) {
    %c0_i32 = arith.constant 0 : i32
    %c0_i32_0 = arith.constant 0 : i32
    %c0_i32_1 = arith.constant 0 : i32
    return %c0_i32, %c0_i32_0 : i32, i32
  }
  func.func @transform_4(%arg0: i32) -> (i32, i32) {
    %c0_i32 = arith.constant 0 : i32
    %c0_i32_0 = arith.constant 0 : i32
    %c0_i32_1 = arith.constant 0 : i32
    return %c0_i32, %c0_i32_0 : i32, i32
  }
  func.func @transform_5(%arg0: i32) -> (i32, i32) {
    %c0_i32 = arith.constant 0 : i32
    %c0_i32_0 = arith.constant 0 : i32
    %c0_i32_1 = arith.constant 0 : i32
    return %c0_i32, %c0_i32_0 : i32, i32
  }
  func.func @transform_6(%arg0: i32) -> (i32, i32) {
    %c0_i32 = arith.constant 0 : i32
    %c0_i32_0 = arith.constant 0 : i32
    %c0_i32_1 = arith.constant 0 : i32
    return %c0_i32, %c0_i32_0 : i32, i32
  }
  func.func @transform_7(%arg0: i32) -> (i32, i32) {
    %c0_i32 = arith.constant 0 : i32
    %c0_i32_0 = arith.constant 0 : i32
    %c0_i32_1 = arith.constant 0 : i32
    return %c0_i32, %c0_i32_0 : i32, i32
  }
  func.func @transform_8(%arg0: i32) -> (i32, i32) {
    %c0_i32 = arith.constant 0 : i32
    %c0_i32_0 = arith.constant 0 : i32
    %c0_i32_1 = arith.constant 0 : i32
    return %c0_i32, %c0_i32_0 : i32, i32
  }
  func.func @transform_9(%arg0: i32) -> (i32, i32) {
    %c0_i32 = arith.constant 0 : i32
    %c0_i32_0 = arith.constant 0 : i32
    %c0_i32_1 = arith.constant 0 : i32
    return %c0_i32, %c0_i32_0 : i32, i32
  }
  func.func @transform_10(%arg0: i32) -> (i32, i32) {
    %c0_i32 = arith.constant 0 : i32
    %c0_i32_0 = arith.constant 0 : i32
    return %arg0, %c0_i32 : i32, i32
  }
}

module attributes {stable_mosaic.version = 11 : i64} {
  func.func @_matching_kernel(%arg0: i32, %arg1: memref<16x300xbf16, #tpu.memory_space<vmem>>, %arg2: memref<16x300xbf16, #tpu.memory_space<vmem>>, %arg3: memref<2x1x1200xf32, #tpu.memory_space<vmem>>, %arg4: memref<300x300xbf16, #tpu.memory_space<vmem>>, %arg5: memref<1x300xf32, #tpu.memory_space<vmem>>, %arg6: memref<1x300xf32, #tpu.memory_space<vmem>>, %arg7: memref<1x300xf32, #tpu.memory_space<vmem>>, %arg8: memref<300x1200xbf16, #tpu.memory_space<vmem>>, %arg9: memref<300x1200xbf16, #tpu.memory_space<vmem>>, %arg10: memref<1x1200xf32, #tpu.memory_space<vmem>>, %arg11: memref<2x1200xf32, #tpu.memory_space<vmem>>) attributes {dimension_semantics = [#tpu.dimension_semantics<parallel>], iteration_bounds = array<i64: 1>, scalar_prefetch = 0 : i64, scratch_operands = 0 : i64, tpu.core_type = #tpu.core_type<tc>, window_params = [{transform_indices = @transform_0, window_bounds = array<i64: 16, 300>}, {transform_indices = @transform_1, window_bounds = array<i64: 16, 300>}, {transform_indices = @transform_2, window_bounds = array<i64: 2, 1, 1200>}, {pipeline_mode = #tpu.pipeline_mode<synchronous>, transform_indices = @transform_3, window_bounds = array<i64: 300, 300>}, {pipeline_mode = #tpu.pipeline_mode<synchronous>, transform_indices = @transform_4, window_bounds = array<i64: 1, 300>}, {pipeline_mode = #tpu.pipeline_mode<synchronous>, transform_indices = @transform_5, window_bounds = array<i64: 1, 300>}, {pipeline_mode = #tpu.pipeline_mode<synchronous>, transform_indices = @transform_6, window_bounds = array<i64: 1, 300>}, {pipeline_mode = #tpu.pipeline_mode<synchronous>, transform_indices = @transform_7, window_bounds = array<i64: 300, 1200>}, {pipeline_mode = #tpu.pipeline_mode<synchronous>, transform_indices = @transform_8, window_bounds = array<i64: 300, 1200>}, {pipeline_mode = #tpu.pipeline_mode<synchronous>, transform_indices = @transform_9, window_bounds = array<i64: 1, 1200>}, {transform_indices = @transform_10, window_bounds = array<i64: 2, 1200>}]} {
    %c0 = arith.constant 0 : index
    %c0_0 = arith.constant 0 : index
    %0 = vector.load %arg1[%c0, %c0_0] : memref<16x300xbf16, #tpu.memory_space<vmem>>, vector<16x300xbf16>
    %c0_1 = arith.constant 0 : index
    %c0_2 = arith.constant 0 : index
    %1 = vector.load %arg4[%c0_1, %c0_2] : memref<300x300xbf16, #tpu.memory_space<vmem>>, vector<300x300xbf16>
    %cst = arith.constant dense<0.000000e+00> : vector<16x300xf32>
    %2 = tpu.matmul %0, %1, %cst {dimension_numbers = #tpu.dot_dimension_numbers<[1], [0], [0], [1], [0, 0, 1, 1], [], []>} : vector<16x300xbf16>, vector<300x300xbf16>, vector<16x300xf32> -> vector<16x300xf32>
    %c0_3 = arith.constant 0 : index
    %c0_4 = arith.constant 0 : index
    %3 = vector.load %arg5[%c0_3, %c0_4] : memref<1x300xf32, #tpu.memory_space<vmem>>, vector<1x300xf32>
    %4 = vector.broadcast %3 : vector<1x300xf32> to vector<16x300xf32>
    %5 = arith.addf %2, %4 : vector<16x300xf32>
    %cst_5 = arith.constant dense<0.000000e+00> : vector<16xf32>
    %6 = vector.multi_reduction <add>, %5, %cst_5 [1] : vector<16x300xf32> to vector<16xf32>
    %7 = vector.shape_cast %6 : vector<16xf32> to vector<16x1xf32>
    %cst_6 = arith.constant 3.000000e+02 : f32
    %8 = vector.broadcast %cst_6 : f32 to vector<16x1xf32>
    %9 = arith.divf %7, %8 : vector<16x1xf32>
    %10 = vector.broadcast %9 : vector<16x1xf32> to vector<16x300xf32>
    %11 = arith.subf %5, %10 : vector<16x300xf32>
    %12 = vector.broadcast %9 : vector<16x1xf32> to vector<16x300xf32>
    %13 = arith.subf %5, %12 : vector<16x300xf32>
    %14 = arith.mulf %11, %13 : vector<16x300xf32>
    %cst_7 = arith.constant dense<0.000000e+00> : vector<16xf32>
    %15 = vector.multi_reduction <add>, %14, %cst_7 [1] : vector<16x300xf32> to vector<16xf32>
    %16 = vector.shape_cast %15 : vector<16xf32> to vector<16x1xf32>
    %cst_8 = arith.constant 3.000000e+02 : f32
    %17 = vector.broadcast %cst_8 : f32 to vector<16x1xf32>
    %18 = arith.divf %16, %17 : vector<16x1xf32>
    %19 = vector.broadcast %9 : vector<16x1xf32> to vector<16x300xf32>
    %20 = arith.subf %5, %19 : vector<16x300xf32>
    %cst_9 = arith.constant 9.99999974E-6 : f32
    %21 = vector.broadcast %cst_9 : f32 to vector<16x1xf32>
    %22 = arith.addf %18, %21 : vector<16x1xf32>
    %23 = math.rsqrt %22 : vector<16x1xf32>
    %24 = vector.broadcast %23 : vector<16x1xf32> to vector<16x300xf32>
    %25 = arith.mulf %20, %24 : vector<16x300xf32>
    %c0_10 = arith.constant 0 : index
    %c0_11 = arith.constant 0 : index
    %26 = vector.load %arg6[%c0_10, %c0_11] : memref<1x300xf32, #tpu.memory_space<vmem>>, vector<1x300xf32>
    %27 = vector.broadcast %26 : vector<1x300xf32> to vector<16x300xf32>
    %28 = arith.mulf %25, %27 : vector<16x300xf32>
    %c0_12 = arith.constant 0 : index
    %c0_13 = arith.constant 0 : index
    %29 = vector.load %arg7[%c0_12, %c0_13] : memref<1x300xf32, #tpu.memory_space<vmem>>, vector<1x300xf32>
    %30 = vector.broadcast %29 : vector<1x300xf32> to vector<16x300xf32>
    %31 = arith.addf %28, %30 : vector<16x300xf32>
    %c0_14 = arith.constant 0 : index
    %c0_15 = arith.constant 0 : index
    %32 = vector.load %arg2[%c0_14, %c0_15] : memref<16x300xbf16, #tpu.memory_space<vmem>>, vector<16x300xbf16>
    %33 = arith.extf %32 : vector<16x300xbf16> to vector<16x300xf32>
    %34 = arith.mulf %31, %33 : vector<16x300xf32>
    %35 = arith.truncf %31 : vector<16x300xf32> to vector<16x300xbf16>
    %c0_16 = arith.constant 0 : index
    %c0_17 = arith.constant 0 : index
    %36 = vector.load %arg8[%c0_16, %c0_17] : memref<300x1200xbf16, #tpu.memory_space<vmem>>, vector<300x1200xbf16>
    %cst_18 = arith.constant dense<0.000000e+00> : vector<16x1200xf32>
    %37 = tpu.matmul %35, %36, %cst_18 {dimension_numbers = #tpu.dot_dimension_numbers<[1], [0], [0], [1], [0, 0, 1, 1], [], []>} : vector<16x300xbf16>, vector<300x1200xbf16>, vector<16x1200xf32> -> vector<16x1200xf32>
    %38 = arith.truncf %34 : vector<16x300xf32> to vector<16x300xbf16>
    %c0_19 = arith.constant 0 : index
    %c0_20 = arith.constant 0 : index
    %39 = vector.load %arg9[%c0_19, %c0_20] : memref<300x1200xbf16, #tpu.memory_space<vmem>>, vector<300x1200xbf16>
    %cst_21 = arith.constant dense<0.000000e+00> : vector<16x1200xf32>
    %40 = tpu.matmul %38, %39, %cst_21 {dimension_numbers = #tpu.dot_dimension_numbers<[1], [0], [0], [1], [0, 0, 1, 1], [], []>} : vector<16x300xbf16>, vector<300x1200xbf16>, vector<16x1200xf32> -> vector<16x1200xf32>
    %41 = arith.addf %37, %40 : vector<16x1200xf32>
    %c0_22 = arith.constant 0 : index
    %c0_23 = arith.constant 0 : index
    %42 = vector.load %arg10[%c0_22, %c0_23] : memref<1x1200xf32, #tpu.memory_space<vmem>>, vector<1x1200xf32>
    %43 = vector.broadcast %42 : vector<1x1200xf32> to vector<16x1200xf32>
    %44 = arith.addf %41, %43 : vector<16x1200xf32>
    %45 = vector.shape_cast %44 : vector<16x1200xf32> to vector<2x8x1200xf32>
    %c0_24 = arith.constant 0 : index
    %c0_25 = arith.constant 0 : index
    %c0_26 = arith.constant 0 : index
    %46 = vector.load %arg3[%c0_24, %c0_25, %c0_26] : memref<2x1x1200xf32, #tpu.memory_space<vmem>>, vector<2x1x1200xf32>
    %47 = vector.broadcast %46 : vector<2x1x1200xf32> to vector<2x8x1200xf32>
    %48 = arith.addf %45, %47 : vector<2x8x1200xf32>
    %49 = math.tanh %48 : vector<2x8x1200xf32>
    %cst_27 = arith.constant dense<0xFF800000> : vector<2x1200xf32>
    %50 = vector.multi_reduction <maximumf>, %49, %cst_27 [1] : vector<2x8x1200xf32> to vector<2x1200xf32>
    %c0_28 = arith.constant 0 : index
    %c0_29 = arith.constant 0 : index
    %51 = vector.load %arg11[%c0_28, %c0_29] : memref<2x1200xf32, #tpu.memory_space<vmem>>, vector<2x1200xf32>
    tpu.vector_store %arg11[%c0_28, %c0_29], %50 {strides = array<i32>} : memref<2x1200xf32, #tpu.memory_space<vmem>>, vector<2x1200xf32>,
    return
  }
  func.func @transform_0(%arg0: i32) -> (i32, i32) {
    %c0_i32 = arith.constant 0 : i32
    %c0_i32_0 = arith.constant 0 : i32
    return %arg0, %c0_i32 : i32, i32
  }
  func.func @transform_1(%arg0: i32) -> (i32, i32) {
    %c0_i32 = arith.constant 0 : i32
    %c0_i32_0 = arith.constant 0 : i32
    return %arg0, %c0_i32 : i32, i32
  }
  func.func @transform_2(%arg0: i32) -> (i32, i32, i32) {
    %c0_i32 = arith.constant 0 : i32
    %c0_i32_0 = arith.constant 0 : i32
    %c0_i32_1 = arith.constant 0 : i32
    return %arg0, %c0_i32, %c0_i32_0 : i32, i32, i32
  }
  func.func @transform_3(%arg0: i32) -> (i32, i32) {
    %c0_i32 = arith.constant 0 : i32
    %c0_i32_0 = arith.constant 0 : i32
    %c0_i32_1 = arith.constant 0 : i32
    return %c0_i32, %c0_i32_0 : i32, i32
  }
  func.func @transform_4(%arg0: i32) -> (i32, i32) {
    %c0_i32 = arith.constant 0 : i32
    %c0_i32_0 = arith.constant 0 : i32
    %c0_i32_1 = arith.constant 0 : i32
    return %c0_i32, %c0_i32_0 : i32, i32
  }
  func.func @transform_5(%arg0: i32) -> (i32, i32) {
    %c0_i32 = arith.constant 0 : i32
    %c0_i32_0 = arith.constant 0 : i32
    %c0_i32_1 = arith.constant 0 : i32
    return %c0_i32, %c0_i32_0 : i32, i32
  }
  func.func @transform_6(%arg0: i32) -> (i32, i32) {
    %c0_i32 = arith.constant 0 : i32
    %c0_i32_0 = arith.constant 0 : i32
    %c0_i32_1 = arith.constant 0 : i32
    return %c0_i32, %c0_i32_0 : i32, i32
  }
  func.func @transform_7(%arg0: i32) -> (i32, i32) {
    %c0_i32 = arith.constant 0 : i32
    %c0_i32_0 = arith.constant 0 : i32
    %c0_i32_1 = arith.constant 0 : i32
    return %c0_i32, %c0_i32_0 : i32, i32
  }
  func.func @transform_8(%arg0: i32) -> (i32, i32) {
    %c0_i32 = arith.constant 0 : i32
    %c0_i32_0 = arith.constant 0 : i32
    %c0_i32_1 = arith.constant 0 : i32
    return %c0_i32, %c0_i32_0 : i32, i32
  }
  func.func @transform_9(%arg0: i32) -> (i32, i32) {
    %c0_i32 = arith.constant 0 : i32
    %c0_i32_0 = arith.constant 0 : i32
    %c0_i32_1 = arith.constant 0 : i32
    return %c0_i32, %c0_i32_0 : i32, i32
  }
  func.func @transform_10(%arg0: i32) -> (i32, i32) {
    %c0_i32 = arith.constant 0 : i32
    %c0_i32_0 = arith.constant 0 : i32
    return %arg0, %c0_i32 : i32, i32
  }
}

</mosaic_0001>

<llo_original>
// kernel: tpu_custom_call.1
$region0: #{tpu_custom_call.1}
  #allocation0 [shape = 'u32[]', space=smem, size = 0x4, offset = 0x4, fixed_abs, tag = 'smem constant byte address 0x4 - core index']
  #allocation1 [shape = 'u32[72,128]{1,0:T(1,128)}', space=vmem, size = 0x9000, scoped, tag = 'internal scratch']
  %s0 = inlined_call_operand.hbm [shape: bf16[16,300], index: 0, kind: input, shape index: {}]
  %s1 = inlined_call_operand.hbm [shape: bf16[16,300], index: 1, kind: input, shape index: {}]
  %s2 = inlined_call_operand.hbm [shape: f32[2,1,1200], index: 2, kind: input, shape index: {}]
  %s3 = inlined_call_operand.hbm [shape: bf16[300,300], index: 3, kind: input, shape index: {}]
  %s4 = inlined_call_operand.vmem [shape: f32[1,300], index: 4, kind: input, shape index: {}]
  %s5 = inlined_call_operand.hbm [shape: f32[1,300], index: 5, kind: input, shape index: {}]
  %s6 = inlined_call_operand.hbm [shape: f32[1,300], index: 6, kind: input, shape index: {}]
  %s7 = inlined_call_operand.hbm [shape: bf16[300,1200], index: 7, kind: input, shape index: {}]
  %s8 = inlined_call_operand.hbm [shape: bf16[300,1200], index: 8, kind: input, shape index: {}]
  %s9 = inlined_call_operand.hbm [shape: f32[1,1200], index: 9, kind: input, shape index: {}]
  %s10 = inlined_call_operand.hbm [shape: f32[2,1200], index: 10, kind: output, shape index: {}]
  %s11 = sld [smem:[#allocation0]]
  $region86: #{tpu_custom_call.1} parent=0
    _
  %s13 = ssub.s32 1, %s11
  %s14 = scalar_select 0, %s13, %s11
  $region1: #{tpu_custom_call.1} parent=0
    #allocation2 [shape = 'u8[12288]{0}', space=vmem, size = 0x3000, scoped, tag = 'input window, operand 0, single buffered']
    #allocation3 [shape = 's32[1]{0}', space=sflag, size = 0x4, scoped, tag = 'scoped memory for tpu_custom_call.1']
    #allocation4 [shape = 's32[1]{0}', space=sflag, size = 0x4, scoped, tag = 'scoped memory for tpu_custom_call.1']
    #allocation5 [shape = 'u8[12288]{0}', space=vmem, size = 0x3000, scoped, tag = 'input window, operand 1, single buffered']
    #allocation6 [shape = 's32[1]{0}', space=sflag, size = 0x4, scoped, tag = 'scoped memory for tpu_custom_call.1']
    #allocation7 [shape = 'u8[10240]{0}', space=vmem, size = 0x2800, scoped, tag = 'input window, operand 2, single buffered']
    #allocation8 [shape = 'u8[233472]{0}', space=vmem, size = 0x39000, scoped, tag = 'input window, operand 3, single buffered']
    #allocation9 [shape = 's32[1]{0}', space=sflag, size = 0x4, scoped, tag = 'scoped memory for tpu_custom_call.1']
    #allocation10 [shape = 'u8[1536]{0}', space=vmem, size = 0x800, scoped, tag = 'input window, operand 5, single buffered']
    #allocation11 [shape = 'u8[1536]{0}', space=vmem, size = 0x800, scoped, tag = 'input window, operand 6, single buffered']
    #allocation12 [shape = 's32[1]{0}', space=sflag, size = 0x4, scoped, tag = 'scoped memory for tpu_custom_call.1']
    #allocation13 [shape = 'u8[778240]{0}', space=vmem, size = 0xbe000, scoped, tag = 'input window, operand 7, single buffered']
    #allocation14 [shape = 'u8[778240]{0}', space=vmem, size = 0xbe000, scoped, tag = 'input window, operand 8, single buffered']
    #allocation15 [shape = 's32[1]{0}', space=sflag, size = 0x4, scoped, tag = 'scoped memory for tpu_custom_call.1']
    #allocation16 [shape = 'u8[5120]{0}', space=vmem, size = 0x1400, scoped, tag = 'input window, operand 9, single buffered']
    #allocation17 [shape = 'u8[10240]{0}', space=vmem, size = 0x2800, scoped, tag = 'output window, operand 0, single buffered']
    %15 = vsyncpa [#allocation3], 0
    %16 = vsyncpa [#allocation6], 0
    %17 = vsyncpa [#allocation9], 0
    %18 = vsyncpa [#allocation12], 0
    %19 = vsyncpa [#allocation15], 0
    %20 = vsyncpa [#allocation4], 0
    // Predicated region
    $region2: #{tpu_custom_call.1} parent=1 // pred_check
      _
    $region3: #{tpu_custom_call.1} parent=1 // pred_check_branch
      %22 = sbr.rel (0) target = $region5
    $region4: #{tpu_custom_call.1} parent=1 // pred_region
      %24 = vsyncadd [#allocation3], 0
      %s25 = sshll.u32 %s0, 4
      %s26 = int_to_ptr.hbm [resolvable:$true] %s25
      %s27 = sshll.u32 [#allocation2], 4
      %s28 = int_to_ptr.vmem [resolvable:$true] %s27
      %33 = dma.hbm_to_vmem [thread:$0]  %s26, 384, %s28, [#allocation3], 192, 192, 12
    $region5: #{tpu_custom_call.1} parent=1 // pred_fallthru
      _
    // Predicated region
    $region6: #{tpu_custom_call.1} parent=1 // pred_check
      _
    $region7: #{tpu_custom_call.1} parent=1 // pred_check_branch
      %35 = sbr.rel (0) target = $region9
    $region8: #{tpu_custom_call.1} parent=1 // pred_region
      %37 = vsyncadd [#allocation6], 0
      %s38 = sshll.u32 %s1, 4
      %s39 = int_to_ptr.hbm [resolvable:$true] %s38
      %s40 = sshll.u32 [#allocation5], 4
      %s41 = int_to_ptr.vmem [resolvable:$true] %s40
      %46 = dma.hbm_to_vmem [thread:$0]  %s39, 384, %s41, [#allocation6], 192, 192, 12
    $region9: #{tpu_custom_call.1} parent=1 // pred_fallthru
      _
    // Predicated region
    $region10: #{tpu_custom_call.1} parent=1 // pred_check
      _
    $region11: #{tpu_custom_call.1} parent=1 // pred_check_branch
      %48 = sbr.rel (0) target = $region13
    $region12: #{tpu_custom_call.1} parent=1 // pred_region
      %50 = vsyncadd [#allocation6], 0
      %s51 = sshll.u32 %s2, 4
      %s52 = int_to_ptr.hbm [resolvable:$true] %s51
      %s53 = sshll.u32 [#allocation7], 4
      %s54 = int_to_ptr.vmem [resolvable:$true] %s53
      %59 = dma.hbm_to_vmem [thread:$0]  %s52, 320, %s54, [#allocation6], 160, 160, 10
    $region13: #{tpu_custom_call.1} parent=1 // pred_fallthru
      _
    // Predicated region
    $region14: #{tpu_custom_call.1} parent=1 // pred_check
      _
    $region15: #{tpu_custom_call.1} parent=1 // pred_check_branch
      %61 = sbr.rel (0) target = $region17
    $region16: #{tpu_custom_call.1} parent=1 // pred_region
      %63 = vsyncadd [#allocation9], 0
      %s64 = sshll.u32 %s3, 4
      %s65 = int_to_ptr.hbm [resolvable:$true] %s64
      %s66 = sshll.u32 [#allocation8], 4
      %s67 = int_to_ptr.vmem [resolvable:$true] %s66
      %72 = dma.hbm_to_vmem [thread:$0]  %s65, 7296, %s67, [#allocation9], 192, 192, 12
    $region17: #{tpu_custom_call.1} parent=1 // pred_fallthru
      _
    // Predicated region
    $region18: #{tpu_custom_call.1} parent=1 // pred_check
      _
    $region19: #{tpu_custom_call.1} parent=1 // pred_check_branch
      %74 = sbr.rel (0) target = $region21
    $region20: #{tpu_custom_call.1} parent=1 // pred_region
      _
    $region21: #{tpu_custom_call.1} parent=1 // pred_fallthru
      _
    // Predicated region
    $region22: #{tpu_custom_call.1} parent=1 // pred_check
      _
    $region23: #{tpu_custom_call.1} parent=1 // pred_check_branch
      %76 = sbr.rel (0) target = $region25
    $region24: #{tpu_custom_call.1} parent=1 // pred_region
      %78 = vsyncadd [#allocation9], 0
      %s80 = sshll.u32 %s5, 4
      %s81 = int_to_ptr.hbm [resolvable:$true] %s80
      %s82 = sshll.u32 [#allocation10], 4
      %s83 = int_to_ptr.vmem [resolvable:$true] %s82
      %85 = dma.hbm_to_vmem [thread:$0]  %s81, 48, %s83, [#allocation9]
    $region25: #{tpu_custom_call.1} parent=1 // pred_fallthru
      _
    // Predicated region
    $region26: #{tpu_custom_call.1} parent=1 // pred_check
      _
    $region27: #{tpu_custom_call.1} parent=1 // pred_check_branch
      %87 = sbr.rel (0) target = $region29
    $region28: #{tpu_custom_call.1} parent=1 // pred_region
      %89 = vsyncadd [#allocation12], 0
      %s91 = sshll.u32 %s6, 4
      %s92 = int_to_ptr.hbm [resolvable:$true] %s91
      %s93 = sshll.u32 [#allocation11], 4
      %s94 = int_to_ptr.vmem [resolvable:$true] %s93
      %96 = dma.hbm_to_vmem [thread:$0]  %s92, 48, %s94, [#allocation12]
    $region29: #{tpu_custom_call.1} parent=1 // pred_fallthru
      _
    // Predicated region
    $region30: #{tpu_custom_call.1} parent=1 // pred_check
      _
    $region31: #{tpu_custom_call.1} parent=1 // pred_check_branch
      %98 = sbr.rel (0) target = $region33
    $region32: #{tpu_custom_call.1} parent=1 // pred_region
      %100 = vsyncadd [#allocation12], 0
      %s101 = sshll.u32 %s7, 4
      %s102 = int_to_ptr.hbm [resolvable:$true] %s101
      %s103 = sshll.u32 [#allocation13], 4
      %s104 = int_to_ptr.vmem [resolvable:$true] %s103
      %109 = dma.hbm_to_vmem [thread:$0]  %s102, 24320, %s104, [#allocation12], 640, 640, 40
    $region33: #{tpu_custom_call.1} parent=1 // pred_fallthru
      _
    // Predicated region
    $region34: #{tpu_custom_call.1} parent=1 // pred_check
      _
    $region35: #{tpu_custom_call.1} parent=1 // pred_check_branch
      %111 = sbr.rel (0) target = $region37
    $region36: #{tpu_custom_call.1} parent=1 // pred_region
      %113 = vsyncadd [#allocation15], 0
      %s114 = sshll.u32 %s8, 4
      %s115 = int_to_ptr.hbm [resolvable:$true] %s114
      %s116 = sshll.u32 [#allocation14], 4
      %s117 = int_to_ptr.vmem [resolvable:$true] %s116
      %122 = dma.hbm_to_vmem [thread:$0]  %s115, 24320, %s117, [#allocation15], 640, 640, 40
    $region37: #{tpu_custom_call.1} parent=1 // pred_fallthru
      _
    // Predicated region
    $region38: #{tpu_custom_call.1} parent=1 // pred_check
      _
    $region39: #{tpu_custom_call.1} parent=1 // pred_check_branch
      %124 = sbr.rel (0) target = $region41
    $region40: #{tpu_custom_call.1} parent=1 // pred_region
      %126 = vsyncadd [#allocation15], 0
      %s128 = sshll.u32 %s9, 4
      %s129 = int_to_ptr.hbm [resolvable:$true] %s128
      %s130 = sshll.u32 [#allocation16], 4
      %s131 = int_to_ptr.vmem [resolvable:$true] %s130
      %133 = dma.hbm_to_vmem [thread:$0]  %s129, 160, %s131, [#allocation15]
    $region41: #{tpu_custom_call.1} parent=1 // pred_fallthru
      _
    // Predicated region
    $region42: #{tpu_custom_call.1} parent=1 // pred_check
      _
    $region43: #{tpu_custom_call.1} parent=1 // pred_check_branch
      %135 = sbr.rel (0) target = $region45
    $region44: #{tpu_custom_call.1} parent=1 // pred_region
      %137 = dma.done [#allocation3], 384
    $region45: #{tpu_custom_call.1} parent=1 // pred_fallthru
      _
    // Predicated region
    $region46: #{tpu_custom_call.1} parent=1 // pred_check
      _
    $region47: #{tpu_custom_call.1} parent=1 // pred_check_branch
      %139 = sbr.rel (0) target = $region49
    $region48: #{tpu_custom_call.1} parent=1 // pred_region
      %141 = dma.done [#allocation6], 384
    $region49: #{tpu_custom_call.1} parent=1 // pred_fallthru
      _
    // Predicated region
    $region50: #{tpu_custom_call.1} parent=1 // pred_check
      _
    $region51: #{tpu_custom_call.1} parent=1 // pred_check_branch
      %143 = sbr.rel (0) target = $region53
    $region52: #{tpu_custom_call.1} parent=1 // pred_region
      %145 = dma.done [#allocation6], 320
    $region53: #{tpu_custom_call.1} parent=1 // pred_fallthru
      _
    // Predicated region
    $region54: #{tpu_custom_call.1} parent=1 // pred_check
      _
    $region55: #{tpu_custom_call.1} parent=1 // pred_check_branch
      %147 = sbr.rel (0) target = $region57
    $region56: #{tpu_custom_call.1} parent=1 // pred_region
      %149 = dma.done [#allocation9], 7296
    $region57: #{tpu_custom_call.1} parent=1 // pred_fallthru
      _
    // Predicated region
    $region58: #{tpu_custom_call.1} parent=1 // pred_check
      _
    $region59: #{tpu_custom_call.1} parent=1 // pred_check_branch
      %151 = sbr.rel (0) target = $region61
    $region60: #{tpu_custom_call.1} parent=1 // pred_region
      %153 = dma.done [#allocation9], 48
    $region61: #{tpu_custom_call.1} parent=1 // pred_fallthru
      _
    // Predicated region
    $region62: #{tpu_custom_call.1} parent=1 // pred_check
      _
    $region63: #{tpu_custom_call.1} parent=1 // pred_check_branch
      %155 = sbr.rel (0) target = $region65
    $region64: #{tpu_custom_call.1} parent=1 // pred_region
      %157 = dma.done [#allocation12], 48
    $region65: #{tpu_custom_call.1} parent=1 // pred_fallthru
      _
    // Predicated region
    $region66: #{tpu_custom_call.1} parent=1 // pred_check
      _
    $region67: #{tpu_custom_call.1} parent=1 // pred_check_branch
      %159 = sbr.rel (0) target = $region69
    $region68: #{tpu_custom_call.1} parent=1 // pred_region
      %161 = dma.done [#allocation12], 24320
    $region69: #{tpu_custom_call.1} parent=1 // pred_fallthru
      _
    // Predicated region
    $region70: #{tpu_custom_call.1} parent=1 // pred_check
      _
    $region71: #{tpu_custom_call.1} parent=1 // pred_check_branch
      %163 = sbr.rel (0) target = $region73
    $region72: #{tpu_custom_call.1} parent=1 // pred_region
      %165 = dma.done [#allocation15], 24320
    $region73: #{tpu_custom_call.1} parent=1 // pred_fallthru
      _
    // Predicated region
    $region74: #{tpu_custom_call.1} parent=1 // pred_check
      _
    $region75: #{tpu_custom_call.1} parent=1 // pred_check_branch
      %167 = sbr.rel (0) target = $region77
    $region76: #{tpu_custom_call.1} parent=1 // pred_region
      %169 = dma.done [#allocation15], 160
    $region77: #{tpu_custom_call.1} parent=1 // pred_fallthru
      _
    %v171 = vld [vmem:[#allocation2] sm:$0xff]
    %v172 = vld [vmem:[#allocation2 + $0x8] sm:$0xf]
    %v173 = vld [vmem:[#allocation2 + $0xc] sm:$0xff]
    %v174 = vld [vmem:[#allocation2 + $0x14] sm:$0xf]
    %v175 = vld [vmem:[#allocation8] sm:$0xff]
    %v176 = vld [vmem:[#allocation8 + $0x8] sm:$0xf]
    %v177 = vld [vmem:[#allocation8 + $0xc] sm:$0xff]
    %v178 = vld [vmem:[#allocation8 + $0x14] sm:$0xf]
    %v179 = vld [vmem:[#allocation8 + $0x18] sm:$0xff]
    %v180 = vld [vmem:[#allocation8 + $0x20] sm:$0xf]
    %v181 = vld [vmem:[#allocation8 + $0x24] sm:$0xff]
    %v182 = vld [vmem:[#allocation8 + $0x2c] sm:$0xf]
    %v183 = vld [vmem:[#allocation8 + $0x30] sm:$0xff]
    %v184 = vld [vmem:[#allocation8 + $0x38] sm:$0xf]
    %v185 = vld [vmem:[#allocation8 + $0x3c] sm:$0xff]
    %v186 = vld [vmem:[#allocation8 + $0x44] sm:$0xf]
    %v187 = vld [vmem:[#allocation8 + $0x48] sm:$0xff]
    %v188 = vld [vmem:[#allocation8 + $0x50] sm:$0xf]
    %v189 = vld [vmem:[#allocation8 + $0x54] sm:$0xff]
    %v190 = vld [vmem:[#allocation8 + $0x5c] sm:$0xf]
    %v191 = vld [vmem:[#allocation8 + $0x60] sm:$0xff]
    %v192 = vld [vmem:[#allocation8 + $0x68] sm:$0xf]
    %v193 = vld [vmem:[#allocation8 + $0x6c] sm:$0xff]
    %v194 = vld [vmem:[#allocation8 + $0x74] sm:$0xf]
    %v195 = vld [vmem:[#allocation8 + $0x78] sm:$0xff]
    %v196 = vld [vmem:[#allocation8 + $0x80] sm:$0xf]
    %v197 = vld [vmem:[#allocation8 + $0x84] sm:$0xff]
    %v198 = vld [vmem:[#allocation8 + $0x8c] sm:$0xf]
    %v199 = vld [vmem:[#allocation8 + $0x90] sm:$0xff]
    %v200 = vld [vmem:[#allocation8 + $0x98] sm:$0xf]
    %v201 = vld [vmem:[#allocation8 + $0x9c] sm:$0xff]
    %v202 = vld [vmem:[#allocation8 + $0xa4] sm:$0xf]
    %v203 = vld [vmem:[#allocation8 + $0xa8] sm:$0xff]
    %v204 = vld [vmem:[#allocation8 + $0xb0] sm:$0xf]
    %v205 = vld [vmem:[#allocation8 + $0xb4] sm:$0xff]
    %v206 = vld [vmem:[#allocation8 + $0xbc] sm:$0xf]
    %v207 = vld [vmem:[#allocation8 + $0xc0] sm:$0xff]
    %v208 = vld [vmem:[#allocation8 + $0xc8] sm:$0xf]
    %v209 = vld [vmem:[#allocation8 + $0xcc] sm:$0xff]
    %v210 = vld [vmem:[#allocation8 + $0xd4] sm:$0xf]
    %v211 = vld [vmem:[#allocation8 + $0xd8] sm:$0xff]
    %v212 = vld [vmem:[#allocation8 + $0xe0] sm:$0xf]
    %v213 = vld [vmem:[#allocation8 + $0xe4] sm:$0xff]
    %v214 = vld [vmem:[#allocation8 + $0xec] sm:$0xf]
    %v215 = vld [vmem:[#allocation8 + $0xf0] sm:$0xff]
    %v216 = vld [vmem:[#allocation8 + $0xf8] sm:$0xf]
    %v217 = vld [vmem:[#allocation8 + $0xfc] sm:$0xff]
    %v218 = vld [vmem:[#allocation8 + $0x104] sm:$0xf]
    %v219 = vld [vmem:[#allocation8 + $0x108] sm:$0xff]
    %v220 = vld [vmem:[#allocation8 + $0x110] sm:$0xf]
    %v221 = vld [vmem:[#allocation8 + $0x114] sm:$0xff]
    %v222 = vld [vmem:[#allocation8 + $0x11c] sm:$0xf]
    %v223 = vld [vmem:[#allocation8 + $0x120] sm:$0xff]
    %v224 = vld [vmem:[#allocation8 + $0x128] sm:$0xf]
    %v225 = vld [vmem:[#allocation8 + $0x12c] sm:$0xff]
    %v226 = vld [vmem:[#allocation8 + $0x134] sm:$0xf]
    %v227 = vld [vmem:[#allocation8 + $0x138] sm:$0xff]
    %v228 = vld [vmem:[#allocation8 + $0x140] sm:$0xf]
    %v229 = vld [vmem:[#allocation8 + $0x144] sm:$0xff]
    %v230 = vld [vmem:[#allocation8 + $0x14c] sm:$0xf]
    %v231 = vld [vmem:[#allocation8 + $0x150] sm:$0xff]
    %v232 = vld [vmem:[#allocation8 + $0x158] sm:$0xf]
    %v233 = vld [vmem:[#allocation8 + $0x15c] sm:$0xff]
    %v234 = vld [vmem:[#allocation8 + $0x164] sm:$0xf]
    %v235 = vld [vmem:[#allocation8 + $0x168] sm:$0xff]
    %v236 = vld [vmem:[#allocation8 + $0x170] sm:$0xf]
    %v237 = vld [vmem:[#allocation8 + $0x174] sm:$0xff]
    %v238 = vld [vmem:[#allocation8 + $0x17c] sm:$0xf]
    %v239 = vld [vmem:[#allocation8 + $0x180] sm:$0xff]
    %v240 = vld [vmem:[#allocation8 + $0x188] sm:$0xf]
    %v241 = vld [vmem:[#allocation8 + $0x18c] sm:$0xff]
    %v242 = vld [vmem:[#allocation8 + $0x194] sm:$0xf]
    %v243 = vld [vmem:[#allocation8 + $0x198] sm:$0xff]
    %v244 = vld [vmem:[#allocation8 + $0x1a0] sm:$0xf]
    %v245 = vld [vmem:[#allocation8 + $0x1a4] sm:$0xff]
    %v246 = vld [vmem:[#allocation8 + $0x1ac] sm:$0xf]
    %v247 = vld [vmem:[#allocation8 + $0x1b0] sm:$0xff]
    %v248 = vld [vmem:[#allocation8 + $0x1b8] sm:$0xf]
    %v249 = vld [vmem:[#allocation8 + $0x1bc] sm:$0x33]
    %v250 = vld [vmem:[#allocation8 + $0x1c4] sm:$0x3]
    %v251 = vld [vmem:[%s4] sm:$0x7]
    %v253 = vperm.slane %v251, 0
    %v254 = vperm.slane %v251, 1
    %v255 = vperm.slane %v251, 2
    %v263 = vunpack.c.l.b16 %v171
    %v264 = vunpack.c.h.b16 %v171
    %v265 = vunpack.c.l.b16 %v172
    %v266 = vunpack.c.l.b16 %v173
    %v267 = vunpack.c.h.b16 %v173
    %v268 = vunpack.c.l.b16 %v174
    %v269 = vpack.c.b16 %v266, %v263
    %v270 = vpack.c.b16 %v267, %v264
    %v271 = vpack.c.b16 %v268, %v265
    %v350 = vunpack.c.l.b16 %v175
    %v351 = vunpack.c.h.b16 %v175
    %v352 = vunpack.c.l.b16 %v176
    %v353 = vunpack.c.l.b16 %v177
    %v354 = vunpack.c.h.b16 %v177
    %v355 = vunpack.c.l.b16 %v178
    %v356 = vunpack.c.l.b16 %v179
    %v357 = vunpack.c.h.b16 %v179
    %v358 = vunpack.c.l.b16 %v180
    %v359 = vunpack.c.l.b16 %v181
    %v360 = vunpack.c.h.b16 %v181
    %v361 = vunpack.c.l.b16 %v182
    %v362 = vunpack.c.l.b16 %v183
    %v363 = vunpack.c.h.b16 %v183
    %v364 = vunpack.c.l.b16 %v184
    %v365 = vunpack.c.l.b16 %v185
    %v366 = vunpack.c.h.b16 %v185
    %v367 = vunpack.c.l.b16 %v186
    %v368 = vunpack.c.l.b16 %v187
    %v369 = vunpack.c.h.b16 %v187
    %v370 = vunpack.c.l.b16 %v188
    %v371 = vunpack.c.l.b16 %v189
    %v372 = vunpack.c.h.b16 %v189
    %v373 = vunpack.c.l.b16 %v190
    %v374 = vunpack.c.l.b16 %v191
    %v375 = vunpack.c.h.b16 %v191
    %v376 = vunpack.c.l.b16 %v192
    %v377 = vunpack.c.l.b16 %v193
    %v378 = vunpack.c.h.b16 %v193
    %v379 = vunpack.c.l.b16 %v194
    %v380 = vunpack.c.l.b16 %v195
    %v381 = vunpack.c.h.b16 %v195
    %v382 = vunpack.c.l.b16 %v196
    %v383 = vunpack.c.l.b16 %v197
    %v384 = vunpack.c.h.b16 %v197
    %v385 = vunpack.c.l.b16 %v198
    %v386 = vunpack.c.l.b16 %v199
    %v387 = vunpack.c.h.b16 %v199
    %v388 = vunpack.c.l.b16 %v200
    %v389 = vunpack.c.l.b16 %v201
    %v390 = vunpack.c.h.b16 %v201
    %v391 = vunpack.c.l.b16 %v202
    %v392 = vunpack.c.l.b16 %v203
    %v393 = vunpack.c.h.b16 %v203
    %v394 = vunpack.c.l.b16 %v204
    %v395 = vunpack.c.l.b16 %v205
    %v396 = vunpack.c.h.b16 %v205
    %v397 = vunpack.c.l.b16 %v206
    %v398 = vunpack.c.l.b16 %v207
    %v399 = vunpack.c.h.b16 %v207
    %v400 = vunpack.c.l.b16 %v208
    %v401 = vunpack.c.l.b16 %v209
    %v402 = vunpack.c.h.b16 %v209
    %v403 = vunpack.c.l.b16 %v210
    %v404 = vunpack.c.l.b16 %v211
    %v405 = vunpack.c.h.b16 %v211
    %v406 = vunpack.c.l.b16 %v212
    %v407 = vunpack.c.l.b16 %v213
    %v408 = vunpack.c.h.b16 %v213
    %v409 = vunpack.c.l.b16 %v214
    %v410 = vunpack.c.l.b16 %v215
    %v411 = vunpack.c.h.b16 %v215
    %v412 = vunpack.c.l.b16 %v216
    %v413 = vunpack.c.l.b16 %v217
    %v414 = vunpack.c.h.b16 %v217
    %v415 = vunpack.c.l.b16 %v218
    %v416 = vunpack.c.l.b16 %v219
    %v417 = vunpack.c.h.b16 %v219
    %v418 = vunpack.c.l.b16 %v220
    %v419 = vunpack.c.l.b16 %v221
    %v420 = vunpack.c.h.b16 %v221
    %v421 = vunpack.c.l.b16 %v222
    %v422 = vunpack.c.l.b16 %v223
    %v423 = vunpack.c.h.b16 %v223
    %v424 = vunpack.c.l.b16 %v224
    %v425 = vunpack.c.l.b16 %v225
    %v426 = vunpack.c.h.b16 %v225
    %v427 = vunpack.c.l.b16 %v226
    %v428 = vunpack.c.l.b16 %v227
    %v429 = vunpack.c.h.b16 %v227
    %v430 = vunpack.c.l.b16 %v228
    %v431 = vunpack.c.l.b16 %v229
    %v432 = vunpack.c.h.b16 %v229
    %v433 = vunpack.c.l.b16 %v230
    %v434 = vunpack.c.l.b16 %v231
    %v435 = vunpack.c.h.b16 %v231
    %v436 = vunpack.c.l.b16 %v232
    %v437 = vunpack.c.l.b16 %v233
    %v438 = vunpack.c.h.b16 %v233
    %v439 = vunpack.c.l.b16 %v234
    %v440 = vunpack.c.l.b16 %v235
    %v441 = vunpack.c.h.b16 %v235
    %v442 = vunpack.c.l.b16 %v236
    %v443 = vunpack.c.l.b16 %v237
    %v444 = vunpack.c.h.b16 %v237
    %v445 = vunpack.c.l.b16 %v238
    %v446 = vunpack.c.l.b16 %v239
    %v447 = vunpack.c.h.b16 %v239
    %v448 = vunpack.c.l.b16 %v240
    %v449 = vunpack.c.l.b16 %v241
    %v450 = vunpack.c.h.b16 %v241
    %v451 = vunpack.c.l.b16 %v242
    %v452 = vunpack.c.l.b16 %v243
    %v453 = vunpack.c.h.b16 %v243
    %v454 = vunpack.c.l.b16 %v244
    %v455 = vunpack.c.l.b16 %v245
    %v456 = vunpack.c.h.b16 %v245
    %v457 = vunpack.c.l.b16 %v246
    %v458 = vunpack.c.l.b16 %v247
    %v459 = vunpack.c.h.b16 %v247
    %v460 = vunpack.c.l.b16 %v248
    %v461 = vunpack.c.l.b16 %v249
    %v462 = vunpack.c.h.b16 %v249
    %v463 = vunpack.c.l.b16 %v250
    %v464 = vpack.c.b16 %v353, %v350
    %v465 = vpack.c.b16 %v354, %v351
    %v466 = vpack.c.b16 %v355, %v352
    %v467 = vpack.c.b16 %v359, %v356
    %v468 = vpack.c.b16 %v360, %v357
    %v469 = vpack.c.b16 %v361, %v358
    %v470 = vpack.c.b16 %v365, %v362
    %v471 = vpack.c.b16 %v366, %v363
    %v472 = vpack.c.b16 %v367, %v364
    %v473 = vpack.c.b16 %v371, %v368
    %v474 = vpack.c.b16 %v372, %v369
    %v475 = vpack.c.b16 %v373, %v370
    %v476 = vpack.c.b16 %v377, %v374
    %v477 = vpack.c.b16 %v378, %v375
    %v478 = vpack.c.b16 %v379, %v376
    %v479 = vpack.c.b16 %v383, %v380
    %v480 = vpack.c.b16 %v384, %v381
    %v481 = vpack.c.b16 %v385, %v382
    %v482 = vpack.c.b16 %v389, %v386
    %v483 = vpack.c.b16 %v390, %v387
    %v484 = vpack.c.b16 %v391, %v388
    %v485 = vpack.c.b16 %v395, %v392
    %v486 = vpack.c.b16 %v396, %v393
    %v487 = vpack.c.b16 %v397, %v394
    %v488 = vpack.c.b16 %v401, %v398
    %v489 = vpack.c.b16 %v402, %v399
    %v490 = vpack.c.b16 %v403, %v400
    %v491 = vpack.c.b16 %v407, %v404
    %v492 = vpack.c.b16 %v408, %v405
    %v493 = vpack.c.b16 %v409, %v406
    %v494 = vpack.c.b16 %v413, %v410
    %v495 = vpack.c.b16 %v414, %v411
    %v496 = vpack.c.b16 %v415, %v412
    %v497 = vpack.c.b16 %v419, %v416
    %v498 = vpack.c.b16 %v420, %v417
    %v499 = vpack.c.b16 %v421, %v418
    %v500 = vpack.c.b16 %v425, %v422
    %v501 = vpack.c.b16 %v426, %v423
    %v502 = vpack.c.b16 %v427, %v424
    %v503 = vpack.c.b16 %v431, %v428
    %v504 = vpack.c.b16 %v432, %v429
    %v505 = vpack.c.b16 %v433, %v430
    %v506 = vpack.c.b16 %v437, %v434
    %v507 = vpack.c.b16 %v438, %v435
    %v508 = vpack.c.b16 %v439, %v436
    %v509 = vpack.c.b16 %v443, %v440
    %v510 = vpack.c.b16 %v444, %v441
    %v511 = vpack.c.b16 %v445, %v442
    %v512 = vpack.c.b16 %v449, %v446
    %v513 = vpack.c.b16 %v450, %v447
    %v514 = vpack.c.b16 %v451, %v448
    %v515 = vpack.c.b16 %v455, %v452
    %v516 = vpack.c.b16 %v456, %v453
    %v517 = vpack.c.b16 %v457, %v454
    %v518 = vpack.c.b16 %v461, %v458
    %v519 = vpack.c.b16 %v462, %v459
    %v520 = vpack.c.b16 %v463, %v460
    %vm575 = vcmask 359424
    %v577 = vsel %vm575, %v271, 0
    %vm579 = vcmask 1045504
    %v581 = vsel %vm579, %v518, 0
    %v584 = vsel %vm579, %v519, 0
    %v587 = vsel %vm579, %v520, 0
    %589 = vmatpush.bf16.msra.mxu0 %v485
    %590 = vmatpush.bf16.msra.mxu0 %v482
    %591 = vmatpush.bf16.msra.mxu0 %v479
    %592 = vmatpush.bf16.msra.mxu0 %v476
    %593 = vmatpush.bf16.msra.mxu0 %v473
    %594 = vmatpush.bf16.msra.mxu0 %v470
    %595 = vmatpush.bf16.msra.mxu0 %v467
    %596 = vmatpush.bf16.msra.mxu0 %v464
    %597 = vmatmul.bf16.gmra.mxu0 %v269
    %v598 = vpop.f32.mrf.mxu0
    %v599 = vadd.f32 %v253, %v598
    %v600 = vpop.f32.mrf.mxu0
    %v601 = vadd.f32 %v253, %v600
    %602 = vdwg.mxu0
    %603 = vmatpush.bf16.msra.mxu0 %v509
    %604 = vmatpush.bf16.msra.mxu0 %v506
    %605 = vmatpush.bf16.msra.mxu0 %v503
    %606 = vmatpush.bf16.msra.mxu0 %v500
    %607 = vmatpush.bf16.msra.mxu0 %v497
    %608 = vmatpush.bf16.msra.mxu0 %v494
    %609 = vmatpush.bf16.msra.mxu0 %v491
    %610 = vmatpush.bf16.msra.mxu0 %v488
    %611 = vmatmul.bf16.gmra.mxu0 %v270
    %v612 = vpop.f32.mrf.mxu0
    %v613 = vadd.f32 %v599, %v612
    %v614 = vpop.f32.mrf.mxu0
    %v615 = vadd.f32 %v601, %v614
    %616 = vdwg.mxu0
    %617 = vmatpush.bf16.msra.mxu0 0
    %618 = vmatpush.bf16.msra.mxu0 0
    %619 = vmatpush.bf16.msra.mxu0 0
    %620 = vmatpush.bf16.msra.mxu0 0
    %621 = vmatpush.bf16.msra.mxu0 0
    %622 = vmatpush.bf16.msra.mxu0 %v581
    %623 = vmatpush.bf16.msra.mxu0 %v515
    %624 = vmatpush.bf16.msra.mxu0 %v512
    %625 = vmatmul.bf16.gmra.mxu0 %v577
    %v626 = vpop.f32.mrf.mxu0
    %v627 = vadd.f32 %v613, %v626
    %v628 = vpop.f32.mrf.mxu0
    %v629 = vadd.f32 %v615, %v628
    %630 = vdwg.mxu0
    %631 = vmatpush.bf16.msra.mxu0 %v486
    %632 = vmatpush.bf16.msra.mxu0 %v483
    %633 = vmatpush.bf16.msra.mxu0 %v480
    %634 = vmatpush.bf16.msra.mxu0 %v477
    %635 = vmatpush.bf16.msra.mxu0 %v474
    %636 = vmatpush.bf16.msra.mxu0 %v471
    %637 = vmatpush.bf16.msra.mxu0 %v468
    %638 = vmatpush.bf16.msra.mxu0 %v465
    %639 = vmatmul.bf16.gmra.mxu0 %v269
    %v640 = vpop.f32.mrf.mxu0
    %v641 = vadd.f32 %v254, %v640
    %v642 = vpop.f32.mrf.mxu0
    %v643 = vadd.f32 %v254, %v642
    %644 = vdwg.mxu0
    %645 = vmatpush.bf16.msra.mxu0 %v510
    %646 = vmatpush.bf16.msra.mxu0 %v507
    %647 = vmatpush.bf16.msra.mxu0 %v504
    %648 = vmatpush.bf16.msra.mxu0 %v501
    %649 = vmatpush.bf16.msra.mxu0 %v498
    %650 = vmatpush.bf16.msra.mxu0 %v495
    %651 = vmatpush.bf16.msra.mxu0 %v492
    %652 = vmatpush.bf16.msra.mxu0 %v489
    %653 = vmatmul.bf16.gmra.mxu0 %v270
    %v654 = vpop.f32.mrf.mxu0
    %v655 = vadd.f32 %v641, %v654
    %v656 = vpop.f32.mrf.mxu0
    %v657 = vadd.f32 %v643, %v656
    %658 = vdwg.mxu0
    %659 = vmatpush.bf16.msra.mxu0 0
    %660 = vmatpush.bf16.msra.mxu0 0
    %661 = vmatpush.bf16.msra.mxu0 0
    %662 = vmatpush.bf16.msra.mxu0 0
    %663 = vmatpush.bf16.msra.mxu0 0
    %664 = vmatpush.bf16.msra.mxu0 %v584
    %665 = vmatpush.bf16.msra.mxu0 %v516
    %666 = vmatpush.bf16.msra.mxu0 %v513
    %667 = vmatmul.bf16.gmra.mxu0 %v577
    %v668 = vpop.f32.mrf.mxu0
    %v669 = vadd.f32 %v655, %v668
    %v670 = vpop.f32.mrf.mxu0
    %v671 = vadd.f32 %v657, %v670
    %672 = vdwg.mxu0
    %673 = vmatpush.bf16.msra.mxu0 %v487
    %674 = vmatpush.bf16.msra.mxu0 %v484
    %675 = vmatpush.bf16.msra.mxu0 %v481
    %676 = vmatpush.bf16.msra.mxu0 %v478
    %677 = vmatpush.bf16.msra.mxu0 %v475
    %678 = vmatpush.bf16.msra.mxu0 %v472
    %679 = vmatpush.bf16.msra.mxu0 %v469
    %680 = vmatpush.bf16.msra.mxu0 %v466
    %681 = vmatmul.bf16.gmra.mxu0 %v269
    %v682 = vpop.f32.mrf.mxu0
    %v683 = vadd.f32 %v255, %v682
    %v684 = vpop.f32.mrf.mxu0
    %v685 = vadd.f32 %v255, %v684
    %686 = vdwg.mxu0
    %687 = vmatpush.bf16.msra.mxu0 %v511
    %688 = vmatpush.bf16.msra.mxu0 %v508
    %689 = vmatpush.bf16.msra.mxu0 %v505
    %690 = vmatpush.bf16.msra.mxu0 %v502
    %691 = vmatpush.bf16.msra.mxu0 %v499
    %692 = vmatpush.bf16.msra.mxu0 %v496
    %693 = vmatpush.bf16.msra.mxu0 %v493
    %694 = vmatpush.bf16.msra.mxu0 %v490
    %695 = vmatmul.bf16.gmra.mxu0 %v270
    %v696 = vpop.f32.mrf.mxu0
    %v697 = vadd.f32 %v683, %v696
    %v698 = vpop.f32.mrf.mxu0
    %v699 = vadd.f32 %v685, %v698
    %700 = vdwg.mxu0
    %701 = vmatpush.bf16.msra.mxu0 0
    %702 = vmatpush.bf16.msra.mxu0 0
    %703 = vmatpush.bf16.msra.mxu0 0
    %704 = vmatpush.bf16.msra.mxu0 0
    %705 = vmatpush.bf16.msra.mxu0 0
    %706 = vmatpush.bf16.msra.mxu0 %v587
    %707 = vmatpush.bf16.msra.mxu0 %v517
    %708 = vmatpush.bf16.msra.mxu0 %v514
    %709 = vmatmul.bf16.gmra.mxu0 %v577
    %v710 = vpop.f32.mrf.mxu0
    %v711 = vadd.f32 %v697, %v710
    %v712 = vpop.f32.mrf.mxu0
    %v713 = vadd.f32 %v699, %v712
    %714 = vdwg.mxu0
    %v715 = vadd.f32 %v627, %v669
    %v716 = vsel %vm575, %v711, 0.0
    %v717 = vadd.f32 %v715, %v716
    %718 = vadd.xlane.f32.xlu0 %v717
    %v719 = vpop.xlane.xlu0 %718
    %v720 = vadd.f32 %v629, %v671
    %v721 = vsel %vm575, %v713, 0.0
    %v722 = vadd.f32 %v720, %v721
    %723 = vadd.xlane.f32.xlu0 %v722
    %v724 = vpop.xlane.xlu0 %723
    %v725 = vrcp.pop 300.0
    %v726 = vmul.f32 300.0, %v725
    %v727 = vsub.f32 1.0, %v726
    %v728 = vmul.f32 %v725, %v727
    %v729 = vadd.f32 %v725, %v728
    %vm730 = vweird.f32 %v725
    %v731 = vsel %vm730, %v725, %v729
    %v732 = vmul.f32 %v719, %v731
    %v733 = vmul.f32 %v724, %v731
    %v734 = vsub.f32 %v627, %v732
    %v735 = vsub.f32 %v669, %v732
    %v736 = vsub.f32 %v711, %v732
    %v737 = vsub.f32 %v629, %v733
    %v738 = vsub.f32 %v671, %v733
    %v739 = vsub.f32 %v713, %v733
    %v740 = vmul.f32 %v734, %v734
    %v741 = vmul.f32 %v735, %v735
    %v742 = vmul.f32 %v736, %v736
    %v743 = vmul.f32 %v737, %v737
    %v744 = vmul.f32 %v738, %v738
    %v745 = vmul.f32 %v739, %v739
    %v746 = vadd.f32 %v740, %v741
    %v747 = vsel %vm575, %v742, 0.0
    %v748 = vadd.f32 %v746, %v747
    %749 = vadd.xlane.f32.xlu0 %v748
    %v750 = vpop.xlane.xlu0 %749
    %v751 = vadd.f32 %v743, %v744
    %v752 = vsel %vm575, %v745, 0.0
    %v753 = vadd.f32 %v751, %v752
    %754 = vadd.xlane.f32.xlu0 %v753
    %v755 = vpop.xlane.xlu0 %754
    %v756 = vmul.f32 %v750, %v731
    %v757 = vmul.f32 %v755, %v731
    %v758 = vadd.f32 %v756, 1e-05
    %v759 = vadd.f32 %v757, 1e-05
    %v760 = vrsqrt.pop %v758
    %v761 = vmul.f32 %v760, %v758
    %v762 = vmul.f32 %v761, %v760
    %v763 = vmul.f32 0.5, %v762
    %v764 = vsub.f32 1.5, %v763
    %v765 = vmul.f32 %v760, %v764
    %vm766 = vweird.f32 %v758
    %vm767 = vweird.f32 %v760
    %vm768 = vmor %vm766, %vm767
    %v769 = vsel %vm768, %v760, %v765
    %v770 = vrsqrt.pop %v759
    %v771 = vmul.f32 %v770, %v759
    %v772 = vmul.f32 %v771, %v770
    %v773 = vmul.f32 0.5, %v772
    %v774 = vsub.f32 1.5, %v773
    %v775 = vmul.f32 %v770, %v774
    %vm776 = vweird.f32 %v759
    %vm777 = vweird.f32 %v770
    %vm778 = vmor %vm776, %vm777
    %v779 = vsel %vm778, %v770, %v775
    %v780 = vmul.f32 %v734, %v769
    %v781 = vmul.f32 %v735, %v769
    %v782 = vmul.f32 %v736, %v769
    %v783 = vmul.f32 %v737, %v779
    %v784 = vmul.f32 %v738, %v779
    %v785 = vmul.f32 %v739, %v779
    %v786 = vld [vmem:[#allocation10] sm:$0x7]
    %v788 = vperm.slane %v786, 0
    %v789 = vperm.slane %v786, 1
    %v790 = vperm.slane %v786, 2
    %v794 = vmul.f32 %v780, %v788
    %v795 = vmul.f32 %v781, %v789
    %v796 = vmul.f32 %v782, %v790
    %v797 = vmul.f32 %v783, %v788
    %v798 = vmul.f32 %v784, %v789
    %v799 = vmul.f32 %v785, %v790
    %v800 = vld [vmem:[#allocation11] sm:$0x7]
    %v802 = vperm.slane %v800, 0
    %v803 = vperm.slane %v800, 1
    %v804 = vperm.slane %v800, 2
    %v808 = vadd.f32 %v794, %v802
    %v809 = vadd.f32 %v795, %v803
    %v810 = vadd.f32 %v796, %v804
    %v811 = vadd.f32 %v797, %v802
    %v812 = vadd.f32 %v798, %v803
    %v813 = vadd.f32 %v799, %v804
    %v814 = vld [vmem:[#allocation5] sm:$0xff]
    %v815 = vld [vmem:[#allocation5 + $0x8] sm:$0xf]
    %v816 = vld [vmem:[#allocation5 + $0xc] sm:$0xff]
    %v817 = vld [vmem:[#allocation5 + $0x14] sm:$0xf]
    %v818 = vunpack.c.l.bf16 %v814
    %v819 = vunpack.c.h.bf16 %v814
    %v820 = vunpack.c.l.bf16 %v815
    %v821 = vunpack.c.l.bf16 %v816
    %v822 = vunpack.c.h.bf16 %v816
    %v823 = vunpack.c.l.bf16 %v817
    %v824 = vmul.f32 %v808, %v818
    %v825 = vmul.f32 %v809, %v819
    %v826 = vmul.f32 %v810, %v820
    %v827 = vmul.f32 %v811, %v821
    %v828 = vmul.f32 %v812, %v822
    %v829 = vmul.f32 %v813, %v823
    %v830 = vpack.c.bf16 %v811, %v808
    %v831 = vpack.c.bf16 %v812, %v809
    %v832 = vpack.c.bf16 %v813, %v810
    %v833 = vld [vmem:[#allocation13] sm:$0xff]
    %v834 = vld [vmem:[#allocation13 + $0x8] sm:$0xff]
    %v835 = vld [vmem:[#allocation13 + $0x10] sm:$0xff]
    %v836 = vld [vmem:[#allocation13 + $0x18] sm:$0xff]
    %v837 = vld [vmem:[#allocation13 + $0x20] sm:$0xff]
    %v838 = vld [vmem:[#allocation13 + $0x28] sm:$0xff]
    %v839 = vld [vmem:[#allocation13 + $0x30] sm:$0xff]
    %v840 = vld [vmem:[#allocation13 + $0x38] sm:$0xff]
    %v841 = vld [vmem:[#allocation13 + $0x40] sm:$0xff]
    %v842 = vld [vmem:[#allocation13 + $0x48] sm:$0xff]
    %v843 = vld [vmem:[#allocation13 + $0x50] sm:$0xff]
    %v844 = vld [vmem:[#allocation13 + $0x58] sm:$0xff]
    %v845 = vld [vmem:[#allocation13 + $0x60] sm:$0xff]
    %v846 = vld [vmem:[#allocation13 + $0x68] sm:$0xff]
    %v847 = vld [vmem:[#allocation13 + $0x70] sm:$0xff]
    %v848 = vld [vmem:[#allocation13 + $0x78] sm:$0xff]
    %v849 = vld [vmem:[#allocation13 + $0x80] sm:$0xff]
    %v850 = vld [vmem:[#allocation13 + $0x88] sm:$0xff]
    %v851 = vld [vmem:[#allocation13 + $0x90] sm:$0xff]
    %v852 = vld [vmem:[#allocation13 + $0x98] sm:$0xff]
    %v853 = vld [vmem:[#allocation13 + $0xa0] sm:$0xff]
    %v854 = vld [vmem:[#allocation13 + $0xa8] sm:$0xff]
    %v855 = vld [vmem:[#allocation13 + $0xb0] sm:$0xff]
    %v856 = vld [vmem:[#allocation13 + $0xb8] sm:$0xff]
    %v857 = vld [vmem:[#allocation13 + $0xc0] sm:$0xff]
    %v858 = vld [vmem:[#allocation13 + $0xc8] sm:$0xff]
    %v859 = vld [vmem:[#allocation13 + $0xd0] sm:$0xff]
    %v860 = vld [vmem:[#allocation13 + $0xd8] sm:$0xff]
    %v861 = vld [vmem:[#allocation13 + $0xe0] sm:$0xff]
    %v862 = vld [vmem:[#allocation13 + $0xe8] sm:$0xff]
    %v863 = vld [vmem:[#allocation13 + $0xf0] sm:$0xff]
    %v864 = vld [vmem:[#allocation13 + $0xf8] sm:$0xff]
    %v865 = vld [vmem:[#allocation13 + $0x100] sm:$0xff]
    %v866 = vld [vmem:[#allocation13 + $0x108] sm:$0xff]
    %v867 = vld [vmem:[#allocation13 + $0x110] sm:$0xff]
    %v868 = vld [vmem:[#allocation13 + $0x118] sm:$0xff]
    %v869 = vld [vmem:[#allocation13 + $0x120] sm:$0xff]
    %v870 = vld [vmem:[#allocation13 + $0x128] sm:$0xff]
    %v871 = vld [vmem:[#allocation13 + $0x130] sm:$0xff]
    %v872 = vld [vmem:[#allocation13 + $0x138] sm:$0xff]
    %v873 = vld [vmem:[#allocation13 + $0x140] sm:$0xff]
    %v874 = vld [vmem:[#allocation13 + $0x148] sm:$0xff]
    %v875 = vld [vmem:[#allocation13 + $0x150] sm:$0xff]
    %v876 = vld [vmem:[#allocation13 + $0x158] sm:$0xff]
    %v877 = vld [vmem:[#allocation13 + $0x160] sm:$0xff]
    %v878 = vld [vmem:[#allocation13 + $0x168] sm:$0xff]
    %v879 = vld [vmem:[#allocation13 + $0x170] sm:$0xff]
    %v880 = vld [vmem:[#allocation13 + $0x178] sm:$0xff]
    %v881 = vld [vmem:[#allocation13 + $0x180] sm:$0xff]
    %v882 = vld [vmem:[#allocation13 + $0x188] sm:$0xff]
    %v883 = vld [vmem:[#allocation13 + $0x190] sm:$0xff]
    %v884 = vld [vmem:[#allocation13 + $0x198] sm:$0xff]
    %v885 = vld [vmem:[#allocation13 + $0x1a0] sm:$0xff]
    %v886 = vld [vmem:[#allocation13 + $0x1a8] sm:$0xff]
    %v887 = vld [vmem:[#allocation13 + $0x1b0] sm:$0xff]
    %v888 = vld [vmem:[#allocation13 + $0x1b8] sm:$0xff]
    %v889 = vld [vmem:[#allocation13 + $0x1c0] sm:$0xff]
    %v890 = vld [vmem:[#allocation13 + $0x1c8] sm:$0xff]
    %v891 = vld [vmem:[#allocation13 + $0x1d0] sm:$0xff]
    %v892 = vld [vmem:[#allocation13 + $0x1d8] sm:$0xff]
    %v893 = vld [vmem:[#allocation13 + $0x1e0] sm:$0xff]
    %v894 = vld [vmem:[#allocation13 + $0x1e8] sm:$0xff]
    %v895 = vld [vmem:[#allocation13 + $0x1f0] sm:$0xff]
    %v896 = vld [vmem:[#allocation13 + $0x1f8] sm:$0xff]
    %v897 = vld [vmem:[#allocation13 + $0x200] sm:$0xff]
    %v898 = vld [vmem:[#allocation13 + $0x208] sm:$0xff]
    %v899 = vld [vmem:[#allocation13 + $0x210] sm:$0xff]
    %v900 = vld [vmem:[#allocation13 + $0x218] sm:$0xff]
    %v901 = vld [vmem:[#allocation13 + $0x220] sm:$0xff]
    %v902 = vld [vmem:[#allocation13 + $0x228] sm:$0xff]
    %v903 = vld [vmem:[#allocation13 + $0x230] sm:$0xff]
    %v904 = vld [vmem:[#allocation13 + $0x238] sm:$0xff]
    %v905 = vld [vmem:[#allocation13 + $0x240] sm:$0xff]
    %v906 = vld [vmem:[#allocation13 + $0x248] sm:$0xff]
    %v907 = vld [vmem:[#allocation13 + $0x250] sm:$0xff]
    %v908 = vld [vmem:[#allocation13 + $0x258] sm:$0xff]
    %v909 = vld [vmem:[#allocation13 + $0x260] sm:$0xff]
    %v910 = vld [vmem:[#allocation13 + $0x268] sm:$0xff]
    %v911 = vld [vmem:[#allocation13 + $0x270] sm:$0xff]
    %v912 = vld [vmem:[#allocation13 + $0x278] sm:$0xff]
    %v913 = vld [vmem:[#allocation13 + $0x280] sm:$0xff]
    %v914 = vld [vmem:[#allocation13 + $0x288] sm:$0xff]
    %v915 = vld [vmem:[#allocation13 + $0x290] sm:$0xff]
    %v916 = vld [vmem:[#allocation13 + $0x298] sm:$0xff]
    %v917 = vld [vmem:[#allocation13 + $0x2a0] sm:$0xff]
    %v918 = vld [vmem:[#allocation13 + $0x2a8] sm:$0xff]
    %v919 = vld [vmem:[#allocation13 + $0x2b0] sm:$0xff]
    %v920 = vld [vmem:[#allocation13 + $0x2b8] sm:$0xff]
    %v921 = vld [vmem:[#allocation13 + $0x2c0] sm:$0xff]
    %v922 = vld [vmem:[#allocation13 + $0x2c8] sm:$0xff]
    %v923 = vld [vmem:[#allocation13 + $0x2d0] sm:$0xff]
    %v924 = vld [vmem:[#allocation13 + $0x2d8] sm:$0xff]
    %v925 = vld [vmem:[#allocation13 + $0x2e0] sm:$0xff]
    %v926 = vld [vmem:[#allocation13 + $0x2e8] sm:$0xff]
    %v927 = vld [vmem:[#allocation13 + $0x2f0] sm:$0xff]
    %v928 = vld [vmem:[#allocation13 + $0x2f8] sm:$0xff]
    %v929 = vld [vmem:[#allocation13 + $0x300] sm:$0xff]
    %v930 = vld [vmem:[#allocation13 + $0x308] sm:$0xff]
    %v931 = vld [vmem:[#allocation13 + $0x310] sm:$0xff]
    %v932 = vld [vmem:[#allocation13 + $0x318] sm:$0xff]
    %v933 = vld [vmem:[#allocation13 + $0x320] sm:$0xff]
    %v934 = vld [vmem:[#allocation13 + $0x328] sm:$0xff]
    %v935 = vld [vmem:[#allocation13 + $0x330] sm:$0xff]
    %v936 = vld [vmem:[#allocation13 + $0x338] sm:$0xff]
    %v937 = vld [vmem:[#allocation13 + $0x340] sm:$0xff]
    %v938 = vld [vmem:[#allocation13 + $0x348] sm:$0xff]
    %v939 = vld [vmem:[#allocation13 + $0x350] sm:$0xff]
    %v940 = vld [vmem:[#allocation13 + $0x358] sm:$0xff]
    %v941 = vld [vmem:[#allocation13 + $0x360] sm:$0xff]
    %v942 = vld [vmem:[#allocation13 + $0x368] sm:$0xff]
    %v943 = vld [vmem:[#allocation13 + $0x370] sm:$0xff]
    %v944 = vld [vmem:[#allocation13 + $0x378] sm:$0xff]
    %v945 = vld [vmem:[#allocation13 + $0x380] sm:$0xff]
    %v946 = vld [vmem:[#allocation13 + $0x388] sm:$0xff]
    %v947 = vld [vmem:[#allocation13 + $0x390] sm:$0xff]
    %v948 = vld [vmem:[#allocation13 + $0x398] sm:$0xff]
    %v949 = vld [vmem:[#allocation13 + $0x3a0] sm:$0xff]
    %v950 = vld [vmem:[#allocation13 + $0x3a8] sm:$0xff]
    %v951 = vld [vmem:[#allocation13 + $0x3b0] sm:$0xff]
    %v952 = vld [vmem:[#allocation13 + $0x3b8] sm:$0xff]
    %v953 = vld [vmem:[#allocation13 + $0x3c0] sm:$0xff]
    %v954 = vld [vmem:[#allocation13 + $0x3c8] sm:$0xff]
    %v955 = vld [vmem:[#allocation13 + $0x3d0] sm:$0xff]
    %v956 = vld [vmem:[#allocation13 + $0x3d8] sm:$0xff]
    %v957 = vld [vmem:[#allocation13 + $0x3e0] sm:$0xff]
    %v958 = vld [vmem:[#allocation13 + $0x3e8] sm:$0xff]
    %v959 = vld [vmem:[#allocation13 + $0x3f0] sm:$0xff]
    %v960 = vld [vmem:[#allocation13 + $0x3f8] sm:$0xff]
    %v961 = vld [vmem:[#allocation13 + $0x400] sm:$0xff]
    %v962 = vld [vmem:[#allocation13 + $0x408] sm:$0xff]
    %v963 = vld [vmem:[#allocation13 + $0x410] sm:$0xff]
    %v964 = vld [vmem:[#allocation13 + $0x418] sm:$0xff]
    %v965 = vld [vmem:[#allocation13 + $0x420] sm:$0xff]
    %v966 = vld [vmem:[#allocation13 + $0x428] sm:$0xff]
    %v967 = vld [vmem:[#allocation13 + $0x430] sm:$0xff]
    %v968 = vld [vmem:[#allocation13 + $0x438] sm:$0xff]
    %v969 = vld [vmem:[#allocation13 + $0x440] sm:$0xff]
    %v970 = vld [vmem:[#allocation13 + $0x448] sm:$0xff]
    %v971 = vld [vmem:[#allocation13 + $0x450] sm:$0xff]
    %v972 = vld [vmem:[#allocation13 + $0x458] sm:$0xff]
    %v973 = vld [vmem:[#allocation13 + $0x460] sm:$0xff]
    %v974 = vld [vmem:[#allocation13 + $0x468] sm:$0xff]
    %v975 = vld [vmem:[#allocation13 + $0x470] sm:$0xff]
    %v976 = vld [vmem:[#allocation13 + $0x478] sm:$0xff]
    %v977 = vld [vmem:[#allocation13 + $0x480] sm:$0xff]
    %v978 = vld [vmem:[#allocation13 + $0x488] sm:$0xff]
    %v979 = vld [vmem:[#allocation13 + $0x490] sm:$0xff]
    %v980 = vld [vmem:[#allocation13 + $0x498] sm:$0xff]
    %v981 = vld [vmem:[#allocation13 + $0x4a0] sm:$0xff]
    %v982 = vld [vmem:[#allocation13 + $0x4a8] sm:$0xff]
    %v983 = vld [vmem:[#allocation13 + $0x4b0] sm:$0xff]
    %v984 = vld [vmem:[#allocation13 + $0x4b8] sm:$0xff]
    %v985 = vld [vmem:[#allocation13 + $0x4c0] sm:$0xff]
    %v986 = vld [vmem:[#allocation13 + $0x4c8] sm:$0xff]
    %v987 = vld [vmem:[#allocation13 + $0x4d0] sm:$0xff]
    %v988 = vld [vmem:[#allocation13 + $0x4d8] sm:$0xff]
    %v989 = vld [vmem:[#allocation13 + $0x4e0] sm:$0xff]
    %v990 = vld [vmem:[#allocation13 + $0x4e8] sm:$0xff]
    %v991 = vld [vmem:[#allocation13 + $0x4f0] sm:$0xff]
    %v992 = vld [vmem:[#allocation13 + $0x4f8] sm:$0xff]
    %v993 = vld [vmem:[#allocation13 + $0x500] sm:$0xff]
    %v994 = vld [vmem:[#allocation13 + $0x508] sm:$0xff]
    %v995 = vld [vmem:[#allocation13 + $0x510] sm:$0xff]
    %v996 = vld [vmem:[#allocation13 + $0x518] sm:$0xff]
    %v997 = vld [vmem:[#allocation13 + $0x520] sm:$0xff]
    %v998 = vld [vmem:[#allocation13 + $0x528] sm:$0xff]
    %v999 = vld [vmem:[#allocation13 + $0x530] sm:$0xff]
    %v1000 = vld [vmem:[#allocation13 + $0x538] sm:$0xff]
    %v1001 = vld [vmem:[#allocation13 + $0x540] sm:$0xff]
    %v1002 = vld [vmem:[#allocation13 + $0x548] sm:$0xff]
    %v1003 = vld [vmem:[#allocation13 + $0x550] sm:$0xff]
    %v1004 = vld [vmem:[#allocation13 + $0x558] sm:$0xff]
    %v1005 = vld [vmem:[#allocation13 + $0x560] sm:$0xff]
    %v1006 = vld [vmem:[#allocation13 + $0x568] sm:$0xff]
    %v1007 = vld [vmem:[#allocation13 + $0x570] sm:$0xff]
    %v1008 = vld [vmem:[#allocation13 + $0x578] sm:$0xff]
    %v1009 = vld [vmem:[#allocation13 + $0x580] sm:$0xff]
    %v1010 = vld [vmem:[#allocation13 + $0x588] sm:$0xff]
    %v1011 = vld [vmem:[#allocation13 + $0x590] sm:$0xff]
    %v1012 = vld [vmem:[#allocation13 + $0x598] sm:$0xff]
    %v1013 = vld [vmem:[#allocation13 + $0x5a0] sm:$0xff]
    %v1014 = vld [vmem:[#allocation13 + $0x5a8] sm:$0xff]
    %v1015 = vld [vmem:[#allocation13 + $0x5b0] sm:$0xff]
    %v1016 = vld [vmem:[#allocation13 + $0x5b8] sm:$0xff]
    %v1017 = vld [vmem:[#allocation13 + $0x5c0] sm:$0xff]
    %v1018 = vld [vmem:[#allocation13 + $0x5c8] sm:$0x33]
    %v1019 = vld [vmem:[#allocation13 + $0x5d0] sm:$0x33]
    %v1020 = vld [vmem:[#allocation13 + $0x5d8] sm:$0x33]
    %v1021 = vld [vmem:[#allocation13 + $0x5e0] sm:$0x33]
    %v1022 = vld [vmem:[#allocation13 + $0x5e8] sm:$0x33]
    %v1023 = vpack.c.bf16 %v827, %v824
    %v1024 = vpack.c.bf16 %v828, %v825
    %v1025 = vpack.c.bf16 %v829, %v826
    %v1026 = vld [vmem:[#allocation14] sm:$0xff]
    %v1027 = vld [vmem:[#allocation14 + $0x8] sm:$0xff]
    %v1028 = vld [vmem:[#allocation14 + $0x10] sm:$0xff]
    %v1029 = vld [vmem:[#allocation14 + $0x18] sm:$0xff]
    %v1030 = vld [vmem:[#allocation14 + $0x20] sm:$0xff]
    %v1031 = vld [vmem:[#allocation14 + $0x28] sm:$0xff]
    %v1032 = vld [vmem:[#allocation14 + $0x30] sm:$0xff]
    %v1033 = vld [vmem:[#allocation14 + $0x38] sm:$0xff]
    %v1034 = vld [vmem:[#allocation14 + $0x40] sm:$0xff]
    %v1035 = vld [vmem:[#allocation14 + $0x48] sm:$0xff]
    %v1036 = vld [vmem:[#allocation14 + $0x50] sm:$0xff]
    %v1037 = vld [vmem:[#allocation14 + $0x58] sm:$0xff]
    %v1038 = vld [vmem:[#allocation14 + $0x60] sm:$0xff]
    %v1039 = vld [vmem:[#allocation14 + $0x68] sm:$0xff]
    %v1040 = vld [vmem:[#allocation14 + $0x70] sm:$0xff]
    %v1041 = vld [vmem:[#allocation14 + $0x78] sm:$0xff]
    %v1042 = vld [vmem:[#allocation14 + $0x80] sm:$0xff]
    %v1043 = vld [vmem:[#allocation14 + $0x88] sm:$0xff]
    %v1044 = vld [vmem:[#allocation14 + $0x90] sm:$0xff]
    %v1045 = vld [vmem:[#allocation14 + $0x98] sm:$0xff]
    %v1046 = vld [vmem:[#allocation14 + $0xa0] sm:$0xff]
    %v1047 = vld [vmem:[#allocation14 + $0xa8] sm:$0xff]
    %v1048 = vld [vmem:[#allocation14 + $0xb0] sm:$0xff]
    %v1049 = vld [vmem:[#allocation14 + $0xb8] sm:$0xff]
    %v1050 = vld [vmem:[#allocation14 + $0xc0] sm:$0xff]
    %v1051 = vld [vmem:[#allocation14 + $0xc8] sm:$0xff]
    %v1052 = vld [vmem:[#allocation14 + $0xd0] sm:$0xff]
    %v1053 = vld [vmem:[#allocation14 + $0xd8] sm:$0xff]
    %v1054 = vld [vmem:[#allocation14 + $0xe0] sm:$0xff]
    %v1055 = vld [vmem:[#allocation14 + $0xe8] sm:$0xff]
    %v1056 = vld [vmem:[#allocation14 + $0xf0] sm:$0xff]
    %v1057 = vld [vmem:[#allocation14 + $0xf8] sm:$0xff]
    %v1058 = vld [vmem:[#allocation14 + $0x100] sm:$0xff]
    %v1059 = vld [vmem:[#allocation14 + $0x108] sm:$0xff]
    %v1060 = vld [vmem:[#allocation14 + $0x110] sm:$0xff]
    %v1061 = vld [vmem:[#allocation14 + $0x118] sm:$0xff]
    %v1062 = vld [vmem:[#allocation14 + $0x120] sm:$0xff]
    %v1063 = vld [vmem:[#allocation14 + $0x128] sm:$0xff]
    %v1064 = vld [vmem:[#allocation14 + $0x130] sm:$0xff]
    %v1065 = vld [vmem:[#allocation14 + $0x138] sm:$0xff]
    %v1066 = vld [vmem:[#allocation14 + $0x140] sm:$0xff]
    %v1067 = vld [vmem:[#allocation14 + $0x148] sm:$0xff]
    %v1068 = vld [vmem:[#allocation14 + $0x150] sm:$0xff]
    %v1069 = vld [vmem:[#allocation14 + $0x158] sm:$0xff]
    %v1070 = vld [vmem:[#allocation14 + $0x160] sm:$0xff]
    %v1071 = vld [vmem:[#allocation14 + $0x168] sm:$0xff]
    %v1072 = vld [vmem:[#allocation14 + $0x170] sm:$0xff]
    %v1073 = vld [vmem:[#allocation14 + $0x178] sm:$0xff]
    %v1074 = vld [vmem:[#allocation14 + $0x180] sm:$0xff]
    %v1075 = vld [vmem:[#allocation14 + $0x188] sm:$0xff]
    %v1076 = vld [vmem:[#allocation14 + $0x190] sm:$0xff]
    %v1077 = vld [vmem:[#allocation14 + $0x198] sm:$0xff]
    %v1078 = vld [vmem:[#allocation14 + $0x1a0] sm:$0xff]
    %v1079 = vld [vmem:[#allocation14 + $0x1a8] sm:$0xff]
    %v1080 = vld [vmem:[#allocation14 + $0x1b0] sm:$0xff]
    %v1081 = vld [vmem:[#allocation14 + $0x1b8] sm:$0xff]
    %v1082 = vld [vmem:[#allocation14 + $0x1c0] sm:$0xff]
    %v1083 = vld [vmem:[#allocation14 + $0x1c8] sm:$0xff]
    %v1084 = vld [vmem:[#allocation14 + $0x1d0] sm:$0xff]
    %v1085 = vld [vmem:[#allocation14 + $0x1d8] sm:$0xff]
    %v1086 = vld [vmem:[#allocation14 + $0x1e0] sm:$0xff]
    %v1087 = vld [vmem:[#allocation14 + $0x1e8] sm:$0xff]
    %v1088 = vld [vmem:[#allocation14 + $0x1f0] sm:$0xff]
    %v1089 = vld [vmem:[#allocation14 + $0x1f8] sm:$0xff]
    %v1090 = vld [vmem:[#allocation14 + $0x200] sm:$0xff]
    %v1091 = vld [vmem:[#allocation14 + $0x208] sm:$0xff]
    %v1092 = vld [vmem:[#allocation14 + $0x210] sm:$0xff]
    %v1093 = vld [vmem:[#allocation14 + $0x218] sm:$0xff]
    %v1094 = vld [vmem:[#allocation14 + $0x220] sm:$0xff]
    %v1095 = vld [vmem:[#allocation14 + $0x228] sm:$0xff]
    %v1096 = vld [vmem:[#allocation14 + $0x230] sm:$0xff]
    %v1097 = vld [vmem:[#allocation14 + $0x238] sm:$0xff]
    %v1098 = vld [vmem:[#allocation14 + $0x240] sm:$0xff]
    %v1099 = vld [vmem:[#allocation14 + $0x248] sm:$0xff]
    %v1100 = vld [vmem:[#allocation14 + $0x250] sm:$0xff]
    %v1101 = vld [vmem:[#allocation14 + $0x258] sm:$0xff]
    %v1102 = vld [vmem:[#allocation14 + $0x260] sm:$0xff]
    %v1103 = vld [vmem:[#allocation14 + $0x268] sm:$0xff]
    %v1104 = vld [vmem:[#allocation14 + $0x270] sm:$0xff]
    %v1105 = vld [vmem:[#allocation14 + $0x278] sm:$0xff]
    %v1106 = vld [vmem:[#allocation14 + $0x280] sm:$0xff]
    %v1107 = vld [vmem:[#allocation14 + $0x288] sm:$0xff]
    %v1108 = vld [vmem:[#allocation14 + $0x290] sm:$0xff]
    %v1109 = vld [vmem:[#allocation14 + $0x298] sm:$0xff]
    %v1110 = vld [vmem:[#allocation14 + $0x2a0] sm:$0xff]
    %v1111 = vld [vmem:[#allocation14 + $0x2a8] sm:$0xff]
    %v1112 = vld [vmem:[#allocation14 + $0x2b0] sm:$0xff]
    %v1113 = vld [vmem:[#allocation14 + $0x2b8] sm:$0xff]
    %v1114 = vld [vmem:[#allocation14 + $0x2c0] sm:$0xff]
    %v1115 = vld [vmem:[#allocation14 + $0x2c8] sm:$0xff]
    %v1116 = vld [vmem:[#allocation14 + $0x2d0] sm:$0xff]
    %v1117 = vld [vmem:[#allocation14 + $0x2d8] sm:$0xff]
    %v1118 = vld [vmem:[#allocation14 + $0x2e0] sm:$0xff]
    %v1119 = vld [vmem:[#allocation14 + $0x2e8] sm:$0xff]
    %v1120 = vld [vmem:[#allocation14 + $0x2f0] sm:$0xff]
    %v1121 = vld [vmem:[#allocation14 + $0x2f8] sm:$0xff]
    %v1122 = vld [vmem:[#allocation14 + $0x300] sm:$0xff]
    %v1123 = vld [vmem:[#allocation14 + $0x308] sm:$0xff]
    %v1124 = vld [vmem:[#allocation14 + $0x310] sm:$0xff]
    %v1125 = vld [vmem:[#allocation14 + $0x318] sm:$0xff]
    %v1126 = vld [vmem:[#allocation14 + $0x320] sm:$0xff]
    %v1127 = vld [vmem:[#allocation14 + $0x328] sm:$0xff]
    %v1128 = vld [vmem:[#allocation14 + $0x330] sm:$0xff]
    %v1129 = vld [vmem:[#allocation14 + $0x338] sm:$0xff]
    %v1130 = vld [vmem:[#allocation14 + $0x340] sm:$0xff]
    %v1131 = vld [vmem:[#allocation14 + $0x348] sm:$0xff]
    %v1132 = vld [vmem:[#allocation14 + $0x350] sm:$0xff]
    %v1133 = vld [vmem:[#allocation14 + $0x358] sm:$0xff]
    %v1134 = vld [vmem:[#allocation14 + $0x360] sm:$0xff]
    %v1135 = vld [vmem:[#allocation14 + $0x368] sm:$0xff]
    %v1136 = vld [vmem:[#allocation14 + $0x370] sm:$0xff]
    %v1137 = vld [vmem:[#allocation14 + $0x378] sm:$0xff]
    %v1138 = vld [vmem:[#allocation14 + $0x380] sm:$0xff]
    %v1139 = vld [vmem:[#allocation14 + $0x388] sm:$0xff]
    %v1140 = vld [vmem:[#allocation14 + $0x390] sm:$0xff]
    %v1141 = vld [vmem:[#allocation14 + $0x398] sm:$0xff]
    %v1142 = vld [vmem:[#allocation14 + $0x3a0] sm:$0xff]
    %v1143 = vld [vmem:[#allocation14 + $0x3a8] sm:$0xff]
    %v1144 = vld [vmem:[#allocation14 + $0x3b0] sm:$0xff]
    %v1145 = vld [vmem:[#allocation14 + $0x3b8] sm:$0xff]
    %v1146 = vld [vmem:[#allocation14 + $0x3c0] sm:$0xff]
    %v1147 = vld [vmem:[#allocation14 + $0x3c8] sm:$0xff]
    %v1148 = vld [vmem:[#allocation14 + $0x3d0] sm:$0xff]
    %v1149 = vld [vmem:[#allocation14 + $0x3d8] sm:$0xff]
    %v1150 = vld [vmem:[#allocation14 + $0x3e0] sm:$0xff]
    %v1151 = vld [vmem:[#allocation14 + $0x3e8] sm:$0xff]
    %v1152 = vld [vmem:[#allocation14 + $0x3f0] sm:$0xff]
    %v1153 = vld [vmem:[#allocation14 + $0x3f8] sm:$0xff]
    %v1154 = vld [vmem:[#allocation14 + $0x400] sm:$0xff]
    %v1155 = vld [vmem:[#allocation14 + $0x408] sm:$0xff]
    %v1156 = vld [vmem:[#allocation14 + $0x410] sm:$0xff]
    %v1157 = vld [vmem:[#allocation14 + $0x418] sm:$0xff]
    %v1158 = vld [vmem:[#allocation14 + $0x420] sm:$0xff]
    %v1159 = vld [vmem:[#allocation14 + $0x428] sm:$0xff]
    %v1160 = vld [vmem:[#allocation14 + $0x430] sm:$0xff]
    %v1161 = vld [vmem:[#allocation14 + $0x438] sm:$0xff]
    %v1162 = vld [vmem:[#allocation14 + $0x440] sm:$0xff]
    %v1163 = vld [vmem:[#allocation14 + $0x448] sm:$0xff]
    %v1164 = vld [vmem:[#allocation14 + $0x450] sm:$0xff]
    %v1165 = vld [vmem:[#allocation14 + $0x458] sm:$0xff]
    %v1166 = vld [vmem:[#allocation14 + $0x460] sm:$0xff]
    %v1167 = vld [vmem:[#allocation14 + $0x468] sm:$0xff]
    %v1168 = vld [vmem:[#allocation14 + $0x470] sm:$0xff]
    %v1169 = vld [vmem:[#allocation14 + $0x478] sm:$0xff]
    %v1170 = vld [vmem:[#allocation14 + $0x480] sm:$0xff]
    %v1171 = vld [vmem:[#allocation14 + $0x488] sm:$0xff]
    %v1172 = vld [vmem:[#allocation14 + $0x490] sm:$0xff]
    %v1173 = vld [vmem:[#allocation14 + $0x498] sm:$0xff]
    %v1174 = vld [vmem:[#allocation14 + $0x4a0] sm:$0xff]
    %v1175 = vld [vmem:[#allocation14 + $0x4a8] sm:$0xff]
    %v1176 = vld [vmem:[#allocation14 + $0x4b0] sm:$0xff]
    %v1177 = vld [vmem:[#allocation14 + $0x4b8] sm:$0xff]
    %v1178 = vld [vmem:[#allocation14 + $0x4c0] sm:$0xff]
    %v1179 = vld [vmem:[#allocation14 + $0x4c8] sm:$0xff]
    %v1180 = vld [vmem:[#allocation14 + $0x4d0] sm:$0xff]
    %v1181 = vld [vmem:[#allocation14 + $0x4d8] sm:$0xff]
    %v1182 = vld [vmem:[#allocation14 + $0x4e0] sm:$0xff]
    %v1183 = vld [vmem:[#allocation14 + $0x4e8] sm:$0xff]
    %v1184 = vld [vmem:[#allocation14 + $0x4f0] sm:$0xff]
    %v1185 = vld [vmem:[#allocation14 + $0x4f8] sm:$0xff]
    %v1186 = vld [vmem:[#allocation14 + $0x500] sm:$0xff]
    %v1187 = vld [vmem:[#allocation14 + $0x508] sm:$0xff]
    %v1188 = vld [vmem:[#allocation14 + $0x510] sm:$0xff]
    %v1189 = vld [vmem:[#allocation14 + $0x518] sm:$0xff]
    %v1190 = vld [vmem:[#allocation14 + $0x520] sm:$0xff]
    %v1191 = vld [vmem:[#allocation14 + $0x528] sm:$0xff]
    %v1192 = vld [vmem:[#allocation14 + $0x530] sm:$0xff]
    %v1193 = vld [vmem:[#allocation14 + $0x538] sm:$0xff]
    %v1194 = vld [vmem:[#allocation14 + $0x540] sm:$0xff]
    %v1195 = vld [vmem:[#allocation14 + $0x548] sm:$0xff]
    %v1196 = vld [vmem:[#allocation14 + $0x550] sm:$0xff]
    %v1197 = vld [vmem:[#allocation14 + $0x558] sm:$0xff]
    %v1198 = vld [vmem:[#allocation14 + $0x560] sm:$0xff]
    %v1199 = vld [vmem:[#allocation14 + $0x568] sm:$0xff]
    %v1200 = vld [vmem:[#allocation14 + $0x570] sm:$0xff]
    %v1201 = vld [vmem:[#allocation14 + $0x578] sm:$0xff]
    %v1202 = vld [vmem:[#allocation14 + $0x580] sm:$0xff]
    %v1203 = vld [vmem:[#allocation14 + $0x588] sm:$0xff]
    %v1204 = vld [vmem:[#allocation14 + $0x590] sm:$0xff]
    %v1205 = vld [vmem:[#allocation14 + $0x598] sm:$0xff]
    %v1206 = vld [vmem:[#allocation14 + $0x5a0] sm:$0xff]
    %v1207 = vld [vmem:[#allocation14 + $0x5a8] sm:$0xff]
    %v1208 = vld [vmem:[#allocation14 + $0x5b0] sm:$0xff]
    %v1209 = vld [vmem:[#allocation14 + $0x5b8] sm:$0xff]
    %v1210 = vld [vmem:[#allocation14 + $0x5c0] sm:$0xff]
    %v1211 = vld [vmem:[#allocation14 + $0x5c8] sm:$0x33]
    %v1212 = vld [vmem:[#allocation14 + $0x5d0] sm:$0x33]
    %v1213 = vld [vmem:[#allocation14 + $0x5d8] sm:$0x33]
    %v1214 = vld [vmem:[#allocation14 + $0x5e0] sm:$0x33]
    %v1215 = vld [vmem:[#allocation14 + $0x5e8] sm:$0x33]
    %v1406 = vunpack.c.l.b16 %v1026
    %v1407 = vunpack.c.h.b16 %v1026
    %v1408 = vunpack.c.l.b16 %v1027
    %v1409 = vunpack.c.h.b16 %v1027
    %v1410 = vunpack.c.l.b16 %v1028
    %v1411 = vunpack.c.h.b16 %v1028
    %v1412 = vunpack.c.l.b16 %v1029
    %v1413 = vunpack.c.h.b16 %v1029
    %v1414 = vunpack.c.l.b16 %v1030
    %v1415 = vunpack.c.h.b16 %v1030
    %v1416 = vunpack.c.l.b16 %v1031
    %v1417 = vunpack.c.h.b16 %v1031
    %v1418 = vunpack.c.l.b16 %v1032
    %v1419 = vunpack.c.h.b16 %v1032
    %v1420 = vunpack.c.l.b16 %v1033
    %v1421 = vunpack.c.h.b16 %v1033
    %v1422 = vunpack.c.l.b16 %v1034
    %v1423 = vunpack.c.h.b16 %v1034
    %v1424 = vunpack.c.l.b16 %v1035
    %v1425 = vunpack.c.h.b16 %v1035
    %v1426 = vunpack.c.l.b16 %v1036
    %v1427 = vunpack.c.h.b16 %v1036
    %v1428 = vunpack.c.l.b16 %v1037
    %v1429 = vunpack.c.h.b16 %v1037
    %v1430 = vunpack.c.l.b16 %v1038
    %v1431 = vunpack.c.h.b16 %v1038
    %v1432 = vunpack.c.l.b16 %v1039
    %v1433 = vunpack.c.h.b16 %v1039
    %v1434 = vunpack.c.l.b16 %v1040
    %v1435 = vunpack.c.h.b16 %v1040
    %v1436 = vunpack.c.l.b16 %v1041
    %v1437 = vunpack.c.h.b16 %v1041
    %v1438 = vunpack.c.l.b16 %v1042
    %v1439 = vunpack.c.h.b16 %v1042
    %v1440 = vunpack.c.l.b16 %v1043
    %v1441 = vunpack.c.h.b16 %v1043
    %v1442 = vunpack.c.l.b16 %v1044
    %v1443 = vunpack.c.h.b16 %v1044
    %v1444 = vunpack.c.l.b16 %v1045
    %v1445 = vunpack.c.h.b16 %v1045
    %v1446 = vunpack.c.l.b16 %v1046
    %v1447 = vunpack.c.h.b16 %v1046
    %v1448 = vunpack.c.l.b16 %v1047
    %v1449 = vunpack.c.h.b16 %v1047
    %v1450 = vunpack.c.l.b16 %v1048
    %v1451 = vunpack.c.h.b16 %v1048
    %v1452 = vunpack.c.l.b16 %v1049
    %v1453 = vunpack.c.h.b16 %v1049
    %v1454 = vunpack.c.l.b16 %v1050
    %v1455 = vunpack.c.h.b16 %v1050
    %v1456 = vunpack.c.l.b16 %v1051
    %v1457 = vunpack.c.h.b16 %v1051
    %v1458 = vunpack.c.l.b16 %v1052
    %v1459 = vunpack.c.h.b16 %v1052
    %v1460 = vunpack.c.l.b16 %v1053
    %v1461 = vunpack.c.h.b16 %v1053
    %v1462 = vunpack.c.l.b16 %v1054
    %v1463 = vunpack.c.h.b16 %v1054
    %v1464 = vunpack.c.l.b16 %v1055
    %v1465 = vunpack.c.h.b16 %v1055
    %v1466 = vunpack.c.l.b16 %v1056
    %v1467 = vunpack.c.h.b16 %v1056
    %v1468 = vunpack.c.l.b16 %v1057
    %v1469 = vunpack.c.h.b16 %v1057
    %v1470 = vunpack.c.l.b16 %v1058
    %v1471 = vunpack.c.h.b16 %v1058
    %v1472 = vunpack.c.l.b16 %v1059
    %v1473 = vunpack.c.h.b16 %v1059
    %v1474 = vunpack.c.l.b16 %v1060
    %v1475 = vunpack.c.h.b16 %v1060
    %v1476 = vunpack.c.l.b16 %v1061
    %v1477 = vunpack.c.h.b16 %v1061
    %v1478 = vunpack.c.l.b16 %v1062
    %v1479 = vunpack.c.h.b16 %v1062
    %v1480 = vunpack.c.l.b16 %v1063
    %v1481 = vunpack.c.h.b16 %v1063
    %v1482 = vunpack.c.l.b16 %v1064
    %v1483 = vunpack.c.h.b16 %v1064
    %v1484 = vunpack.c.l.b16 %v1065
    %v1485 = vunpack.c.h.b16 %v1065
    %v1486 = vunpack.c.l.b16 %v1066
    %v1487 = vunpack.c.h.b16 %v1066
    %v1488 = vunpack.c.l.b16 %v1067
    %v1489 = vunpack.c.h.b16 %v1067
    %v1490 = vunpack.c.l.b16 %v1068
    %v1491 = vunpack.c.h.b16 %v1068
    %v1492 = vunpack.c.l.b16 %v1069
    %v1493 = vunpack.c.h.b16 %v1069
    %v1494 = vunpack.c.l.b16 %v1070
    %v1495 = vunpack.c.h.b16 %v1070
    %v1496 = vunpack.c.l.b16 %v1071
    %v1497 = vunpack.c.h.b16 %v1071
    %v1498 = vunpack.c.l.b16 %v1072
    %v1499 = vunpack.c.h.b16 %v1072
    %v1500 = vunpack.c.l.b16 %v1073
    %v1501 = vunpack.c.h.b16 %v1073
    %v1502 = vunpack.c.l.b16 %v1074
    %v1503 = vunpack.c.h.b16 %v1074
    %v1504 = vunpack.c.l.b16 %v1075
    %v1505 = vunpack.c.h.b16 %v1075
    %v1506 = vunpack.c.l.b16 %v1076
    %v1507 = vunpack.c.h.b16 %v1076
    %v1508 = vunpack.c.l.b16 %v1077
    %v1509 = vunpack.c.h.b16 %v1077
    %v1510 = vunpack.c.l.b16 %v1078
    %v1511 = vunpack.c.h.b16 %v1078
    %v1512 = vunpack.c.l.b16 %v1079
    %v1513 = vunpack.c.h.b16 %v1079
    %v1514 = vunpack.c.l.b16 %v1080
    %v1515 = vunpack.c.h.b16 %v1080
    %v1516 = vunpack.c.l.b16 %v1081
    %v1517 = vunpack.c.h.b16 %v1081
    %v1518 = vunpack.c.l.b16 %v1082
    %v1519 = vunpack.c.h.b16 %v1082
    %v1520 = vunpack.c.l.b16 %v1083
    %v1521 = vunpack.c.h.b16 %v1083
    %v1522 = vunpack.c.l.b16 %v1084
    %v1523 = vunpack.c.h.b16 %v1084
    %v1524 = vunpack.c.l.b16 %v1085
    %v1525 = vunpack.c.h.b16 %v1085
    %v1526 = vunpack.c.l.b16 %v1086
    %v1527 = vunpack.c.h.b16 %v1086
    %v1528 = vunpack.c.l.b16 %v1087
    %v1529 = vunpack.c.h.b16 %v1087
    %v1530 = vunpack.c.l.b16 %v1088
    %v1531 = vunpack.c.h.b16 %v1088
    %v1532 = vunpack.c.l.b16 %v1089
    %v1533 = vunpack.c.h.b16 %v1089
    %v1534 = vunpack.c.l.b16 %v1090
    %v1535 = vunpack.c.h.b16 %v1090
    %v1536 = vunpack.c.l.b16 %v1091
    %v1537 = vunpack.c.h.b16 %v1091
    %v1538 = vunpack.c.l.b16 %v1092
    %v1539 = vunpack.c.h.b16 %v1092
    %v1540 = vunpack.c.l.b16 %v1093
    %v1541 = vunpack.c.h.b16 %v1093
    %v1542 = vunpack.c.l.b16 %v1094
    %v1543 = vunpack.c.h.b16 %v1094
    %v1544 = vunpack.c.l.b16 %v1095
    %v1545 = vunpack.c.h.b16 %v1095
    %v1546 = vunpack.c.l.b16 %v1096
    %v1547 = vunpack.c.h.b16 %v1096
    %v1548 = vunpack.c.l.b16 %v1097
    %v1549 = vunpack.c.h.b16 %v1097
    %v1550 = vunpack.c.l.b16 %v1098
    %v1551 = vunpack.c.h.b16 %v1098
    %v1552 = vunpack.c.l.b16 %v1099
    %v1553 = vunpack.c.h.b16 %v1099
    %v1554 = vunpack.c.l.b16 %v1100
    %v1555 = vunpack.c.h.b16 %v1100
    %v1556 = vunpack.c.l.b16 %v1101
    %v1557 = vunpack.c.h.b16 %v1101
    %v1558 = vunpack.c.l.b16 %v1102
    %v1559 = vunpack.c.h.b16 %v1102
    %v1560 = vunpack.c.l.b16 %v1103
    %v1561 = vunpack.c.h.b16 %v1103
    %v1562 = vunpack.c.l.b16 %v1104
    %v1563 = vunpack.c.h.b16 %v1104
    %v1564 = vunpack.c.l.b16 %v1105
    %v1565 = vunpack.c.h.b16 %v1105
    %v1566 = vunpack.c.l.b16 %v1106
    %v1567 = vunpack.c.h.b16 %v1106
    %v1568 = vunpack.c.l.b16 %v1107
    %v1569 = vunpack.c.h.b16 %v1107
    %v1570 = vunpack.c.l.b16 %v1108
    %v1571 = vunpack.c.h.b16 %v1108
    %v1572 = vunpack.c.l.b16 %v1109
    %v1573 = vunpack.c.h.b16 %v1109
    %v1574 = vunpack.c.l.b16 %v1110
    %v1575 = vunpack.c.h.b16 %v1110
    %v1576 = vunpack.c.l.b16 %v1111
    %v1577 = vunpack.c.h.b16 %v1111
    %v1578 = vunpack.c.l.b16 %v1112
    %v1579 = vunpack.c.h.b16 %v1112
    %v1580 = vunpack.c.l.b16 %v1113
    %v1581 = vunpack.c.h.b16 %v1113
    %v1582 = vunpack.c.l.b16 %v1114
    %v1583 = vunpack.c.h.b16 %v1114
    %v1584 = vunpack.c.l.b16 %v1115
    %v1585 = vunpack.c.h.b16 %v1115
    %v1586 = vunpack.c.l.b16 %v1116
    %v1587 = vunpack.c.h.b16 %v1116
    %v1588 = vunpack.c.l.b16 %v1117
    %v1589 = vunpack.c.h.b16 %v1117
    %v1590 = vunpack.c.l.b16 %v1118
    %v1591 = vunpack.c.h.b16 %v1118
    %v1592 = vunpack.c.l.b16 %v1119
    %v1593 = vunpack.c.h.b16 %v1119
    %v1594 = vunpack.c.l.b16 %v1120
    %v1595 = vunpack.c.h.b16 %v1120
    %v1596 = vunpack.c.l.b16 %v1121
    %v1597 = vunpack.c.h.b16 %v1121
    %v1598 = vunpack.c.l.b16 %v1122
    %v1599 = vunpack.c.h.b16 %v1122
    %v1600 = vunpack.c.l.b16 %v1123
    %v1601 = vunpack.c.h.b16 %v1123
    %v1602 = vunpack.c.l.b16 %v1124
    %v1603 = vunpack.c.h.b16 %v1124
    %v1604 = vunpack.c.l.b16 %v1125
    %v1605 = vunpack.c.h.b16 %v1125
    %v1606 = vunpack.c.l.b16 %v1126
    %v1607 = vunpack.c.h.b16 %v1126
    %v1608 = vunpack.c.l.b16 %v1127
    %v1609 = vunpack.c.h.b16 %v1127
    %v1610 = vunpack.c.l.b16 %v1128
    %v1611 = vunpack.c.h.b16 %v1128
    %v1612 = vunpack.c.l.b16 %v1129
    %v1613 = vunpack.c.h.b16 %v1129
    %v1614 = vunpack.c.l.b16 %v1130
    %v1615 = vunpack.c.h.b16 %v1130
    %v1616 = vunpack.c.l.b16 %v1131
    %v1617 = vunpack.c.h.b16 %v1131
    %v1618 = vunpack.c.l.b16 %v1132
    %v1619 = vunpack.c.h.b16 %v1132
    %v1620 = vunpack.c.l.b16 %v1133
    %v1621 = vunpack.c.h.b16 %v1133
    %v1622 = vunpack.c.l.b16 %v1134
    %v1623 = vunpack.c.h.b16 %v1134
    %v1624 = vunpack.c.l.b16 %v1135
    %v1625 = vunpack.c.h.b16 %v1135
    %v1626 = vunpack.c.l.b16 %v1136
    %v1627 = vunpack.c.h.b16 %v1136
    %v1628 = vunpack.c.l.b16 %v1137
    %v1629 = vunpack.c.h.b16 %v1137
    %v1630 = vunpack.c.l.b16 %v1138
    %v1631 = vunpack.c.h.b16 %v1138
    %v1632 = vunpack.c.l.b16 %v1139
    %v1633 = vunpack.c.h.b16 %v1139
    %v1634 = vunpack.c.l.b16 %v1140
    %v1635 = vunpack.c.h.b16 %v1140
    %v1636 = vunpack.c.l.b16 %v1141
    %v1637 = vunpack.c.h.b16 %v1141
    %v1638 = vunpack.c.l.b16 %v1142
    %v1639 = vunpack.c.h.b16 %v1142
    %v1640 = vunpack.c.l.b16 %v1143
    %v1641 = vunpack.c.h.b16 %v1143
    %v1642 = vunpack.c.l.b16 %v1144
    %v1643 = vunpack.c.h.b16 %v1144
    %v1644 = vunpack.c.l.b16 %v1145
    %v1645 = vunpack.c.h.b16 %v1145
    %v1646 = vunpack.c.l.b16 %v1146
    %v1647 = vunpack.c.h.b16 %v1146
    %v1648 = vunpack.c.l.b16 %v1147
    %v1649 = vunpack.c.h.b16 %v1147
    %v1650 = vunpack.c.l.b16 %v1148
    %v1651 = vunpack.c.h.b16 %v1148
    %v1652 = vunpack.c.l.b16 %v1149
    %v1653 = vunpack.c.h.b16 %v1149
    %v1654 = vunpack.c.l.b16 %v1150
    %v1655 = vunpack.c.h.b16 %v1150
    %v1656 = vunpack.c.l.b16 %v1151
    %v1657 = vunpack.c.h.b16 %v1151
    %v1658 = vunpack.c.l.b16 %v1152
    %v1659 = vunpack.c.h.b16 %v1152
    %v1660 = vunpack.c.l.b16 %v1153
    %v1661 = vunpack.c.h.b16 %v1153
    %v1662 = vunpack.c.l.b16 %v1154
    %v1663 = vunpack.c.h.b16 %v1154
    %v1664 = vunpack.c.l.b16 %v1155
    %v1665 = vunpack.c.h.b16 %v1155
    %v1666 = vunpack.c.l.b16 %v1156
    %v1667 = vunpack.c.h.b16 %v1156
    %v1668 = vunpack.c.l.b16 %v1157
    %v1669 = vunpack.c.h.b16 %v1157
    %v1670 = vunpack.c.l.b16 %v1158
    %v1671 = vunpack.c.h.b16 %v1158
    %v1672 = vunpack.c.l.b16 %v1159
    %v1673 = vunpack.c.h.b16 %v1159
    %v1674 = vunpack.c.l.b16 %v1160
    %v1675 = vunpack.c.h.b16 %v1160
    %v1676 = vunpack.c.l.b16 %v1161
    %v1677 = vunpack.c.h.b16 %v1161
    %v1678 = vunpack.c.l.b16 %v1162
    %v1679 = vunpack.c.h.b16 %v1162
    %v1680 = vunpack.c.l.b16 %v1163
    %v1681 = vunpack.c.h.b16 %v1163
    %v1682 = vunpack.c.l.b16 %v1164
    %v1683 = vunpack.c.h.b16 %v1164
    %v1684 = vunpack.c.l.b16 %v1165
    %v1685 = vunpack.c.h.b16 %v1165
    %v1686 = vunpack.c.l.b16 %v1166
    %v1687 = vunpack.c.h.b16 %v1166
    %v1688 = vunpack.c.l.b16 %v1167
    %v1689 = vunpack.c.h.b16 %v1167
    %v1690 = vunpack.c.l.b16 %v1168
    %v1691 = vunpack.c.h.b16 %v1168
    %v1692 = vunpack.c.l.b16 %v1169
    %v1693 = vunpack.c.h.b16 %v1169
    %v1694 = vunpack.c.l.b16 %v1170
    %v1695 = vunpack.c.h.b16 %v1170
    %v1696 = vunpack.c.l.b16 %v1171
    %v1697 = vunpack.c.h.b16 %v1171
    %v1698 = vunpack.c.l.b16 %v1172
    %v1699 = vunpack.c.h.b16 %v1172
    %v1700 = vunpack.c.l.b16 %v1173
    %v1701 = vunpack.c.h.b16 %v1173
    %v1702 = vunpack.c.l.b16 %v1174
    %v1703 = vunpack.c.h.b16 %v1174
    %v1704 = vunpack.c.l.b16 %v1175
    %v1705 = vunpack.c.h.b16 %v1175
    %v1706 = vunpack.c.l.b16 %v1176
    %v1707 = vunpack.c.h.b16 %v1176
    %v1708 = vunpack.c.l.b16 %v1177
    %v1709 = vunpack.c.h.b16 %v1177
    %v1710 = vunpack.c.l.b16 %v1178
    %v1711 = vunpack.c.h.b16 %v1178
    %v1712 = vunpack.c.l.b16 %v1179
    %v1713 = vunpack.c.h.b16 %v1179
    %v1714 = vunpack.c.l.b16 %v1180
    %v1715 = vunpack.c.h.b16 %v1180
    %v1716 = vunpack.c.l.b16 %v1181
    %v1717 = vunpack.c.h.b16 %v1181
    %v1718 = vunpack.c.l.b16 %v1182
    %v1719 = vunpack.c.h.b16 %v1182
    %v1720 = vunpack.c.l.b16 %v1183
    %v1721 = vunpack.c.h.b16 %v1183
    %v1722 = vunpack.c.l.b16 %v1184
    %v1723 = vunpack.c.h.b16 %v1184
    %v1724 = vunpack.c.l.b16 %v1185
    %v1725 = vunpack.c.h.b16 %v1185
    %v1726 = vunpack.c.l.b16 %v1186
    %v1727 = vunpack.c.h.b16 %v1186
    %v1728 = vunpack.c.l.b16 %v1187
    %v1729 = vunpack.c.h.b16 %v1187
    %v1730 = vunpack.c.l.b16 %v1188
    %v1731 = vunpack.c.h.b16 %v1188
    %v1732 = vunpack.c.l.b16 %v1189
    %v1733 = vunpack.c.h.b16 %v1189
    %v1734 = vunpack.c.l.b16 %v1190
    %v1735 = vunpack.c.h.b16 %v1190
    %v1736 = vunpack.c.l.b16 %v1191
    %v1737 = vunpack.c.h.b16 %v1191
    %v1738 = vunpack.c.l.b16 %v1192
    %v1739 = vunpack.c.h.b16 %v1192
    %v1740 = vunpack.c.l.b16 %v1193
    %v1741 = vunpack.c.h.b16 %v1193
    %v1742 = vunpack.c.l.b16 %v1194
    %v1743 = vunpack.c.h.b16 %v1194
    %v1744 = vunpack.c.l.b16 %v1195
    %v1745 = vunpack.c.h.b16 %v1195
    %v1746 = vunpack.c.l.b16 %v1196
    %v1747 = vunpack.c.h.b16 %v1196
    %v1748 = vunpack.c.l.b16 %v1197
    %v1749 = vunpack.c.h.b16 %v1197
    %v1750 = vunpack.c.l.b16 %v1198
    %v1751 = vunpack.c.h.b16 %v1198
    %v1752 = vunpack.c.l.b16 %v1199
    %v1753 = vunpack.c.h.b16 %v1199
    %v1754 = vunpack.c.l.b16 %v1200
    %v1755 = vunpack.c.h.b16 %v1200
    %v1756 = vunpack.c.l.b16 %v1201
    %v1757 = vunpack.c.h.b16 %v1201
    %v1758 = vunpack.c.l.b16 %v1202
    %v1759 = vunpack.c.h.b16 %v1202
    %v1760 = vunpack.c.l.b16 %v1203
    %v1761 = vunpack.c.h.b16 %v1203
    %v1762 = vunpack.c.l.b16 %v1204
    %v1763 = vunpack.c.h.b16 %v1204
    %v1764 = vunpack.c.l.b16 %v1205
    %v1765 = vunpack.c.h.b16 %v1205
    %v1766 = vunpack.c.l.b16 %v1206
    %v1767 = vunpack.c.h.b16 %v1206
    %v1768 = vunpack.c.l.b16 %v1207
    %v1769 = vunpack.c.h.b16 %v1207
    %v1770 = vunpack.c.l.b16 %v1208
    %v1771 = vunpack.c.h.b16 %v1208
    %v1772 = vunpack.c.l.b16 %v1209
    %v1773 = vunpack.c.h.b16 %v1209
    %v1774 = vunpack.c.l.b16 %v1210
    %v1775 = vunpack.c.h.b16 %v1210
    %v1776 = vunpack.c.l.b16 %v1211
    %v1777 = vunpack.c.h.b16 %v1211
    %v1778 = vunpack.c.l.b16 %v1212
    %v1779 = vunpack.c.h.b16 %v1212
    %v1780 = vunpack.c.l.b16 %v1213
    %v1781 = vunpack.c.h.b16 %v1213
    %v1782 = vunpack.c.l.b16 %v1214
    %v1783 = vunpack.c.h.b16 %v1214
    %v1784 = vunpack.c.l.b16 %v1215
    %v1785 = vunpack.c.h.b16 %v1215
    %v1786 = vpack.c.b16 %v1416, %v1406
    %v1787 = vpack.c.b16 %v1417, %v1407
    %v1788 = vpack.c.b16 %v1418, %v1408
    %v1789 = vpack.c.b16 %v1419, %v1409
    %v1790 = vpack.c.b16 %v1420, %v1410
    %v1791 = vpack.c.b16 %v1421, %v1411
    %v1792 = vpack.c.b16 %v1422, %v1412
    %v1793 = vpack.c.b16 %v1423, %v1413
    %v1794 = vpack.c.b16 %v1424, %v1414
    %v1795 = vpack.c.b16 %v1425, %v1415
    %v1796 = vpack.c.b16 %v1436, %v1426
    %v1797 = vpack.c.b16 %v1437, %v1427
    %v1798 = vpack.c.b16 %v1438, %v1428
    %v1799 = vpack.c.b16 %v1439, %v1429
    %v1800 = vpack.c.b16 %v1440, %v1430
    %v1801 = vpack.c.b16 %v1441, %v1431
    %v1802 = vpack.c.b16 %v1442, %v1432
    %v1803 = vpack.c.b16 %v1443, %v1433
    %v1804 = vpack.c.b16 %v1444, %v1434
    %v1805 = vpack.c.b16 %v1445, %v1435
    %v1806 = vpack.c.b16 %v1456, %v1446
    %v1807 = vpack.c.b16 %v1457, %v1447
    %v1808 = vpack.c.b16 %v1458, %v1448
    %v1809 = vpack.c.b16 %v1459, %v1449
    %v1810 = vpack.c.b16 %v1460, %v1450
    %v1811 = vpack.c.b16 %v1461, %v1451
    %v1812 = vpack.c.b16 %v1462, %v1452
    %v1813 = vpack.c.b16 %v1463, %v1453
    %v1814 = vpack.c.b16 %v1464, %v1454
    %v1815 = vpack.c.b16 %v1465, %v1455
    %v1816 = vpack.c.b16 %v1476, %v1466
    %v1817 = vpack.c.b16 %v1477, %v1467
    %v1818 = vpack.c.b16 %v1478, %v1468
    %v1819 = vpack.c.b16 %v1479, %v1469
    %v1820 = vpack.c.b16 %v1480, %v1470
    %v1821 = vpack.c.b16 %v1481, %v1471
    %v1822 = vpack.c.b16 %v1482, %v1472
    %v1823 = vpack.c.b16 %v1483, %v1473
    %v1824 = vpack.c.b16 %v1484, %v1474
    %v1825 = vpack.c.b16 %v1485, %v1475
    %v1826 = vpack.c.b16 %v1496, %v1486
    %v1827 = vpack.c.b16 %v1497, %v1487
    %v1828 = vpack.c.b16 %v1498, %v1488
    %v1829 = vpack.c.b16 %v1499, %v1489
    %v1830 = vpack.c.b16 %v1500, %v1490
    %v1831 = vpack.c.b16 %v1501, %v1491
    %v1832 = vpack.c.b16 %v1502, %v1492
    %v1833 = vpack.c.b16 %v1503, %v1493
    %v1834 = vpack.c.b16 %v1504, %v1494
    %v1835 = vpack.c.b16 %v1505, %v1495
    %v1836 = vpack.c.b16 %v1516, %v1506
    %v1837 = vpack.c.b16 %v1517, %v1507
    %v1838 = vpack.c.b16 %v1518, %v1508
    %v1839 = vpack.c.b16 %v1519, %v1509
    %v1840 = vpack.c.b16 %v1520, %v1510
    %v1841 = vpack.c.b16 %v1521, %v1511
    %v1842 = vpack.c.b16 %v1522, %v1512
    %v1843 = vpack.c.b16 %v1523, %v1513
    %v1844 = vpack.c.b16 %v1524, %v1514
    %v1845 = vpack.c.b16 %v1525, %v1515
    %v1846 = vpack.c.b16 %v1536, %v1526
    %v1847 = vpack.c.b16 %v1537, %v1527
    %v1848 = vpack.c.b16 %v1538, %v1528
    %v1849 = vpack.c.b16 %v1539, %v1529
    %v1850 = vpack.c.b16 %v1540, %v1530
    %v1851 = vpack.c.b16 %v1541, %v1531
    %v1852 = vpack.c.b16 %v1542, %v1532
    %v1853 = vpack.c.b16 %v1543, %v1533
    %v1854 = vpack.c.b16 %v1544, %v1534
    %v1855 = vpack.c.b16 %v1545, %v1535
    %v1856 = vpack.c.b16 %v1556, %v1546
    %v1857 = vpack.c.b16 %v1557, %v1547
    %v1858 = vpack.c.b16 %v1558, %v1548
    %v1859 = vpack.c.b16 %v1559, %v1549
    %v1860 = vpack.c.b16 %v1560, %v1550
    %v1861 = vpack.c.b16 %v1561, %v1551
    %v1862 = vpack.c.b16 %v1562, %v1552
    %v1863 = vpack.c.b16 %v1563, %v1553
    %v1864 = vpack.c.b16 %v1564, %v1554
    %v1865 = vpack.c.b16 %v1565, %v1555
    %v1866 = vpack.c.b16 %v1576, %v1566
    %v1867 = vpack.c.b16 %v1577, %v1567
    %v1868 = vpack.c.b16 %v1578, %v1568
    %v1869 = vpack.c.b16 %v1579, %v1569
    %v1870 = vpack.c.b16 %v1580, %v1570
    %v1871 = vpack.c.b16 %v1581, %v1571
    %v1872 = vpack.c.b16 %v1582, %v1572
    %v1873 = vpack.c.b16 %v1583, %v1573
    %v1874 = vpack.c.b16 %v1584, %v1574
    %v1875 = vpack.c.b16 %v1585, %v1575
    %v1876 = vpack.c.b16 %v1596, %v1586
    %v1877 = vpack.c.b16 %v1597, %v1587
    %v1878 = vpack.c.b16 %v1598, %v1588
    %v1879 = vpack.c.b16 %v1599, %v1589
    %v1880 = vpack.c.b16 %v1600, %v1590
    %v1881 = vpack.c.b16 %v1601, %v1591
    %v1882 = vpack.c.b16 %v1602, %v1592
    %v1883 = vpack.c.b16 %v1603, %v1593
    %v1884 = vpack.c.b16 %v1604, %v1594
    %v1885 = vpack.c.b16 %v1605, %v1595
    %v1886 = vpack.c.b16 %v1616, %v1606
    %v1887 = vpack.c.b16 %v1617, %v1607
    %v1888 = vpack.c.b16 %v1618, %v1608
    %v1889 = vpack.c.b16 %v1619, %v1609
    %v1890 = vpack.c.b16 %v1620, %v1610
    %v1891 = vpack.c.b16 %v1621, %v1611
    %v1892 = vpack.c.b16 %v1622, %v1612
    %v1893 = vpack.c.b16 %v1623, %v1613
    %v1894 = vpack.c.b16 %v1624, %v1614
    %v1895 = vpack.c.b16 %v1625, %v1615
    %v1896 = vpack.c.b16 %v1636, %v1626
    %v1897 = vpack.c.b16 %v1637, %v1627
    %v1898 = vpack.c.b16 %v1638, %v1628
    %v1899 = vpack.c.b16 %v1639, %v1629
    %v1900 = vpack.c.b16 %v1640, %v1630
    %v1901 = vpack.c.b16 %v1641, %v1631
    %v1902 = vpack.c.b16 %v1642, %v1632
    %v1903 = vpack.c.b16 %v1643, %v1633
    %v1904 = vpack.c.b16 %v1644, %v1634
    %v1905 = vpack.c.b16 %v1645, %v1635
    %v1906 = vpack.c.b16 %v1656, %v1646
    %v1907 = vpack.c.b16 %v1657, %v1647
    %v1908 = vpack.c.b16 %v1658, %v1648
    %v1909 = vpack.c.b16 %v1659, %v1649
    %v1910 = vpack.c.b16 %v1660, %v1650
    %v1911 = vpack.c.b16 %v1661, %v1651
    %v1912 = vpack.c.b16 %v1662, %v1652
    %v1913 = vpack.c.b16 %v1663, %v1653
    %v1914 = vpack.c.b16 %v1664, %v1654
    %v1915 = vpack.c.b16 %v1665, %v1655
    %v1916 = vpack.c.b16 %v1676, %v1666
    %v1917 = vpack.c.b16 %v1677, %v1667
    %v1918 = vpack.c.b16 %v1678, %v1668
    %v1919 = vpack.c.b16 %v1679, %v1669
    %v1920 = vpack.c.b16 %v1680, %v1670
    %v1921 = vpack.c.b16 %v1681, %v1671
    %v1922 = vpack.c.b16 %v1682, %v1672
    %v1923 = vpack.c.b16 %v1683, %v1673
    %v1924 = vpack.c.b16 %v1684, %v1674
    %v1925 = vpack.c.b16 %v1685, %v1675
    %v1926 = vpack.c.b16 %v1696, %v1686
    %v1927 = vpack.c.b16 %v1697, %v1687
    %v1928 = vpack.c.b16 %v1698, %v1688
    %v1929 = vpack.c.b16 %v1699, %v1689
    %v1930 = vpack.c.b16 %v1700, %v1690
    %v1931 = vpack.c.b16 %v1701, %v1691
    %v1932 = vpack.c.b16 %v1702, %v1692
    %v1933 = vpack.c.b16 %v1703, %v1693
    %v1934 = vpack.c.b16 %v1704, %v1694
    %v1935 = vpack.c.b16 %v1705, %v1695
    %v1936 = vpack.c.b16 %v1716, %v1706
    %v1937 = vpack.c.b16 %v1717, %v1707
    %v1938 = vpack.c.b16 %v1718, %v1708
    %v1939 = vpack.c.b16 %v1719, %v1709
    %v1940 = vpack.c.b16 %v1720, %v1710
    %v1941 = vpack.c.b16 %v1721, %v1711
    %v1942 = vpack.c.b16 %v1722, %v1712
    %v1943 = vpack.c.b16 %v1723, %v1713
    %v1944 = vpack.c.b16 %v1724, %v1714
    %v1945 = vpack.c.b16 %v1725, %v1715
    %v1946 = vpack.c.b16 %v1736, %v1726
    %v1947 = vpack.c.b16 %v1737, %v1727
    %v1948 = vpack.c.b16 %v1738, %v1728
    %v1949 = vpack.c.b16 %v1739, %v1729
    %v1950 = vpack.c.b16 %v1740, %v1730
    %v1951 = vpack.c.b16 %v1741, %v1731
    %v1952 = vpack.c.b16 %v1742, %v1732
    %v1953 = vpack.c.b16 %v1743, %v1733
    %v1954 = vpack.c.b16 %v1744, %v1734
    %v1955 = vpack.c.b16 %v1745, %v1735
    %v1956 = vpack.c.b16 %v1756, %v1746
    %v1957 = vpack.c.b16 %v1757, %v1747
    %v1958 = vpack.c.b16 %v1758, %v1748
    %v1959 = vpack.c.b16 %v1759, %v1749
    %v1960 = vpack.c.b16 %v1760, %v1750
    %v1961 = vpack.c.b16 %v1761, %v1751
    %v1962 = vpack.c.b16 %v1762, %v1752
    %v1963 = vpack.c.b16 %v1763, %v1753
    %v1964 = vpack.c.b16 %v1764, %v1754
    %v1965 = vpack.c.b16 %v1765, %v1755
    %v1966 = vpack.c.b16 %v1776, %v1766
    %v1967 = vpack.c.b16 %v1777, %v1767
    %v1968 = vpack.c.b16 %v1778, %v1768
    %v1969 = vpack.c.b16 %v1779, %v1769
    %v1970 = vpack.c.b16 %v1780, %v1770
    %v1971 = vpack.c.b16 %v1781, %v1771
    %v1972 = vpack.c.b16 %v1782, %v1772
    %v1973 = vpack.c.b16 %v1783, %v1773
    %v1974 = vpack.c.b16 %v1784, %v1774
    %v1975 = vpack.c.b16 %v1785, %v1775
    %v2157 = vsel %vm575, %v1025, 0
    %v2160 = vsel %vm579, %v1966, 0
    %v2163 = vsel %vm579, %v1967, 0
    %v2166 = vsel %vm579, %v1968, 0
    %v2169 = vsel %vm579, %v1969, 0
    %v2172 = vsel %vm579, %v1970, 0
    %v2175 = vsel %vm579, %v1971, 0
    %v2178 = vsel %vm579, %v1972, 0
    %v2181 = vsel %vm579, %v1973, 0
    %v2184 = vsel %vm579, %v1974, 0
    %v2187 = vsel %vm579, %v1975, 0
    %2189 = vmatpush.bf16.msra.mxu0 %v1856
    %2190 = vmatpush.bf16.msra.mxu0 %v1846
    %2191 = vmatpush.bf16.msra.mxu0 %v1836
    %2192 = vmatpush.bf16.msra.mxu0 %v1826
    %2193 = vmatpush.bf16.msra.mxu0 %v1816
    %2194 = vmatpush.bf16.msra.mxu0 %v1806
    %2195 = vmatpush.bf16.msra.mxu0 %v1796
    %2196 = vmatpush.bf16.msra.mxu0 %v1786
    %2197 = vmatmul.bf16.gmra.mxu0 %v1023
    %v2198 = vpop.f32.mrf.mxu0
    %v2199 = vadd.f32 0.0, %v2198
    %v2200 = vpop.f32.mrf.mxu0
    %v2201 = vadd.f32 0.0, %v2200
    %2202 = vdwg.mxu0
    %2203 = vmatpush.bf16.msra.mxu0 %v1936
    %2204 = vmatpush.bf16.msra.mxu0 %v1926
    %2205 = vmatpush.bf16.msra.mxu0 %v1916
    %2206 = vmatpush.bf16.msra.mxu0 %v1906
    %2207 = vmatpush.bf16.msra.mxu0 %v1896
    %2208 = vmatpush.bf16.msra.mxu0 %v1886
    %2209 = vmatpush.bf16.msra.mxu0 %v1876
    %2210 = vmatpush.bf16.msra.mxu0 %v1866
    %2211 = vmatmul.bf16.gmra.mxu0 %v1024
    %v2212 = vpop.f32.mrf.mxu0
    %v2213 = vadd.f32 %v2199, %v2212
    %v2214 = vpop.f32.mrf.mxu0
    %v2215 = vadd.f32 %v2201, %v2214
    %2216 = vdwg.mxu0
    %2217 = vmatpush.bf16.msra.mxu0 0
    %2218 = vmatpush.bf16.msra.mxu0 0
    %2219 = vmatpush.bf16.msra.mxu0 0
    %2220 = vmatpush.bf16.msra.mxu0 0
    %2221 = vmatpush.bf16.msra.mxu0 0
    %2222 = vmatpush.bf16.msra.mxu0 %v2160
    %2223 = vmatpush.bf16.msra.mxu0 %v1956
    %2224 = vmatpush.bf16.msra.mxu0 %v1946
    %2225 = vmatmul.bf16.gmra.mxu0 %v2157
    %v2226 = vpop.f32.mrf.mxu0
    %v2227 = vadd.f32 %v2213, %v2226
    %v2228 = vpop.f32.mrf.mxu0
    %v2229 = vadd.f32 %v2215, %v2228
    %2230 = vdwg.mxu0
    %2231 = vmatpush.bf16.msra.mxu0 %v1857
    %2232 = vmatpush.bf16.msra.mxu0 %v1847
    %2233 = vmatpush.bf16.msra.mxu0 %v1837
    %2234 = vmatpush.bf16.msra.mxu0 %v1827
    %2235 = vmatpush.bf16.msra.mxu0 %v1817
    %2236 = vmatpush.bf16.msra.mxu0 %v1807
    %2237 = vmatpush.bf16.msra.mxu0 %v1797
    %2238 = vmatpush.bf16.msra.mxu0 %v1787
    %2239 = vmatmul.bf16.gmra.mxu0 %v1023
    %v2240 = vpop.f32.mrf.mxu0
    %v2241 = vadd.f32 0.0, %v2240
    %v2242 = vpop.f32.mrf.mxu0
    %v2243 = vadd.f32 0.0, %v2242
    %2244 = vdwg.mxu0
    %2245 = vmatpush.bf16.msra.mxu0 %v1937
    %2246 = vmatpush.bf16.msra.mxu0 %v1927
    %2247 = vmatpush.bf16.msra.mxu0 %v1917
    %2248 = vmatpush.bf16.msra.mxu0 %v1907
    %2249 = vmatpush.bf16.msra.mxu0 %v1897
    %2250 = vmatpush.bf16.msra.mxu0 %v1887
    %2251 = vmatpush.bf16.msra.mxu0 %v1877
    %2252 = vmatpush.bf16.msra.mxu0 %v1867
    %2253 = vmatmul.bf16.gmra.mxu0 %v1024
    %v2254 = vpop.f32.mrf.mxu0
    %v2255 = vadd.f32 %v2241, %v2254
    %v2256 = vpop.f32.mrf.mxu0
    %v2257 = vadd.f32 %v2243, %v2256
    %2258 = vdwg.mxu0
    %2259 = vmatpush.bf16.msra.mxu0 0
    %2260 = vmatpush.bf16.msra.mxu0 0
    %2261 = vmatpush.bf16.msra.mxu0 0
    %2262 = vmatpush.bf16.msra.mxu0 0
    %2263 = vmatpush.bf16.msra.mxu0 0
    %2264 = vmatpush.bf16.msra.mxu0 %v2163
    %2265 = vmatpush.bf16.msra.mxu0 %v1957
    %2266 = vmatpush.bf16.msra.mxu0 %v1947
    %2267 = vmatmul.bf16.gmra.mxu0 %v2157
    %v2268 = vpop.f32.mrf.mxu0
    %v2269 = vadd.f32 %v2255, %v2268
    %v2270 = vpop.f32.mrf.mxu0
    %v2271 = vadd.f32 %v2257, %v2270
    %2272 = vdwg.mxu0
    %2273 = vmatpush.bf16.msra.mxu0 %v1858
    %2274 = vmatpush.bf16.msra.mxu0 %v1848
    %2275 = vmatpush.bf16.msra.mxu0 %v1838
    %2276 = vmatpush.bf16.msra.mxu0 %v1828
    %2277 = vmatpush.bf16.msra.mxu0 %v1818
    %2278 = vmatpush.bf16.msra.mxu0 %v1808
    %2279 = vmatpush.bf16.msra.mxu0 %v1798
    %2280 = vmatpush.bf16.msra.mxu0 %v1788
    %2281 = vmatmul.bf16.gmra.mxu0 %v1023
    %v2282 = vpop.f32.mrf.mxu0
    %v2283 = vadd.f32 0.0, %v2282
    %v2284 = vpop.f32.mrf.mxu0
    %v2285 = vadd.f32 0.0, %v2284
    %2286 = vdwg.mxu0
    %2287 = vmatpush.bf16.msra.mxu0 %v1938
    %2288 = vmatpush.bf16.msra.mxu0 %v1928
    %2289 = vmatpush.bf16.msra.mxu0 %v1918
    %2290 = vmatpush.bf16.msra.mxu0 %v1908
    %2291 = vmatpush.bf16.msra.mxu0 %v1898
    %2292 = vmatpush.bf16.msra.mxu0 %v1888
    %2293 = vmatpush.bf16.msra.mxu0 %v1878
    %2294 = vmatpush.bf16.msra.mxu0 %v1868
    %2295 = vmatmul.bf16.gmra.mxu0 %v1024
    %v2296 = vpop.f32.mrf.mxu0
    %v2297 = vadd.f32 %v2283, %v2296
    %v2298 = vpop.f32.mrf.mxu0
    %v2299 = vadd.f32 %v2285, %v2298
    %2300 = vdwg.mxu0
    %2301 = vmatpush.bf16.msra.mxu0 0
    %2302 = vmatpush.bf16.msra.mxu0 0
    %2303 = vmatpush.bf16.msra.mxu0 0
    %2304 = vmatpush.bf16.msra.mxu0 0
    %2305 = vmatpush.bf16.msra.mxu0 0
    %2306 = vmatpush.bf16.msra.mxu0 %v2166
    %2307 = vmatpush.bf16.msra.mxu0 %v1958
    %2308 = vmatpush.bf16.msra.mxu0 %v1948
    %2309 = vmatmul.bf16.gmra.mxu0 %v2157
    %v2310 = vpop.f32.mrf.mxu0
    %v2311 = vadd.f32 %v2297, %v2310
    %v2312 = vpop.f32.mrf.mxu0
    %v2313 = vadd.f32 %v2299, %v2312
    %2314 = vdwg.mxu0
    %2315 = vmatpush.bf16.msra.mxu0 %v1859
    %2316 = vmatpush.bf16.msra.mxu0 %v1849
    %2317 = vmatpush.bf16.msra.mxu0 %v1839
    %2318 = vmatpush.bf16.msra.mxu0 %v1829
    %2319 = vmatpush.bf16.msra.mxu0 %v1819
    %2320 = vmatpush.bf16.msra.mxu0 %v1809
    %2321 = vmatpush.bf16.msra.mxu0 %v1799
    %2322 = vmatpush.bf16.msra.mxu0 %v1789
    %2323 = vmatmul.bf16.gmra.mxu0 %v1023
    %v2324 = vpop.f32.mrf.mxu0
    %v2325 = vadd.f32 0.0, %v2324
    %v2326 = vpop.f32.mrf.mxu0
    %v2327 = vadd.f32 0.0, %v2326
    %2328 = vdwg.mxu0
    %2329 = vmatpush.bf16.msra.mxu0 %v1939
    %2330 = vmatpush.bf16.msra.mxu0 %v1929
    %2331 = vmatpush.bf16.msra.mxu0 %v1919
    %2332 = vmatpush.bf16.msra.mxu0 %v1909
    %2333 = vmatpush.bf16.msra.mxu0 %v1899
    %2334 = vmatpush.bf16.msra.mxu0 %v1889
    %2335 = vmatpush.bf16.msra.mxu0 %v1879
    %2336 = vmatpush.bf16.msra.mxu0 %v1869
    %2337 = vmatmul.bf16.gmra.mxu0 %v1024
    %v2338 = vpop.f32.mrf.mxu0
    %v2339 = vadd.f32 %v2325, %v2338
    %v2340 = vpop.f32.mrf.mxu0
    %v2341 = vadd.f32 %v2327, %v2340
    %2342 = vdwg.mxu0
    %2343 = vmatpush.bf16.msra.mxu0 0
    %2344 = vmatpush.bf16.msra.mxu0 0
    %2345 = vmatpush.bf16.msra.mxu0 0
    %2346 = vmatpush.bf16.msra.mxu0 0
    %2347 = vmatpush.bf16.msra.mxu0 0
    %2348 = vmatpush.bf16.msra.mxu0 %v2169
    %2349 = vmatpush.bf16.msra.mxu0 %v1959
    %2350 = vmatpush.bf16.msra.mxu0 %v1949
    %2351 = vmatmul.bf16.gmra.mxu0 %v2157
    %v2352 = vpop.f32.mrf.mxu0
    %v2353 = vadd.f32 %v2339, %v2352
    %v2354 = vpop.f32.mrf.mxu0
    %v2355 = vadd.f32 %v2341, %v2354
    %2356 = vdwg.mxu0
    %2357 = vmatpush.bf16.msra.mxu0 %v1860
    %2358 = vmatpush.bf16.msra.mxu0 %v1850
    %2359 = vmatpush.bf16.msra.mxu0 %v1840
    %2360 = vmatpush.bf16.msra.mxu0 %v1830
    %2361 = vmatpush.bf16.msra.mxu0 %v1820
    %2362 = vmatpush.bf16.msra.mxu0 %v1810
    %2363 = vmatpush.bf16.msra.mxu0 %v1800
    %2364 = vmatpush.bf16.msra.mxu0 %v1790
    %2365 = vmatmul.bf16.gmra.mxu0 %v1023
    %v2366 = vpop.f32.mrf.mxu0
    %v2367 = vadd.f32 0.0, %v2366
    %v2368 = vpop.f32.mrf.mxu0
    %v2369 = vadd.f32 0.0, %v2368
    %2370 = vdwg.mxu0
    %2371 = vmatpush.bf16.msra.mxu0 %v1940
    %2372 = vmatpush.bf16.msra.mxu0 %v1930
    %2373 = vmatpush.bf16.msra.mxu0 %v1920
    %2374 = vmatpush.bf16.msra.mxu0 %v1910
    %2375 = vmatpush.bf16.msra.mxu0 %v1900
    %2376 = vmatpush.bf16.msra.mxu0 %v1890
    %2377 = vmatpush.bf16.msra.mxu0 %v1880
    %2378 = vmatpush.bf16.msra.mxu0 %v1870
    %2379 = vmatmul.bf16.gmra.mxu0 %v1024
    %v2380 = vpop.f32.mrf.mxu0
    %v2381 = vadd.f32 %v2367, %v2380
    %v2382 = vpop.f32.mrf.mxu0
    %v2383 = vadd.f32 %v2369, %v2382
    %2384 = vdwg.mxu0
    %2385 = vmatpush.bf16.msra.mxu0 0
    %2386 = vmatpush.bf16.msra.mxu0 0
    %2387 = vmatpush.bf16.msra.mxu0 0
    %2388 = vmatpush.bf16.msra.mxu0 0
    %2389 = vmatpush.bf16.msra.mxu0 0
    %2390 = vmatpush.bf16.msra.mxu0 %v2172
    %2391 = vmatpush.bf16.msra.mxu0 %v1960
    %2392 = vmatpush.bf16.msra.mxu0 %v1950
    %2393 = vmatmul.bf16.gmra.mxu0 %v2157
    %v2394 = vpop.f32.mrf.mxu0
    %v2395 = vadd.f32 %v2381, %v2394
    %v2396 = vpop.f32.mrf.mxu0
    %v2397 = vadd.f32 %v2383, %v2396
    %2398 = vdwg.mxu0
    %2399 = vmatpush.bf16.msra.mxu0 %v1861
    %2400 = vmatpush.bf16.msra.mxu0 %v1851
    %2401 = vmatpush.bf16.msra.mxu0 %v1841
    %2402 = vmatpush.bf16.msra.mxu0 %v1831
    %2403 = vmatpush.bf16.msra.mxu0 %v1821
    %2404 = vmatpush.bf16.msra.mxu0 %v1811
    %2405 = vmatpush.bf16.msra.mxu0 %v1801
    %2406 = vmatpush.bf16.msra.mxu0 %v1791
    %2407 = vmatmul.bf16.gmra.mxu0 %v1023
    %v2408 = vpop.f32.mrf.mxu0
    %v2409 = vadd.f32 0.0, %v2408
    %v2410 = vpop.f32.mrf.mxu0
    %v2411 = vadd.f32 0.0, %v2410
    %2412 = vdwg.mxu0
    %2413 = vmatpush.bf16.msra.mxu0 %v1941
    %2414 = vmatpush.bf16.msra.mxu0 %v1931
    %2415 = vmatpush.bf16.msra.mxu0 %v1921
    %2416 = vmatpush.bf16.msra.mxu0 %v1911
    %2417 = vmatpush.bf16.msra.mxu0 %v1901
    %2418 = vmatpush.bf16.msra.mxu0 %v1891
    %2419 = vmatpush.bf16.msra.mxu0 %v1881
    %2420 = vmatpush.bf16.msra.mxu0 %v1871
    %2421 = vmatmul.bf16.gmra.mxu0 %v1024
    %v2422 = vpop.f32.mrf.mxu0
    %v2423 = vadd.f32 %v2409, %v2422
    %v2424 = vpop.f32.mrf.mxu0
    %v2425 = vadd.f32 %v2411, %v2424
    %2426 = vdwg.mxu0
    %2427 = vmatpush.bf16.msra.mxu0 0
    %2428 = vmatpush.bf16.msra.mxu0 0
    %2429 = vmatpush.bf16.msra.mxu0 0
    %2430 = vmatpush.bf16.msra.mxu0 0
    %2431 = vmatpush.bf16.msra.mxu0 0
    %2432 = vmatpush.bf16.msra.mxu0 %v2175
    %2433 = vmatpush.bf16.msra.mxu0 %v1961
    %2434 = vmatpush.bf16.msra.mxu0 %v1951
    %2435 = vmatmul.bf16.gmra.mxu0 %v2157
    %v2436 = vpop.f32.mrf.mxu0
    %v2437 = vadd.f32 %v2423, %v2436
    %v2438 = vpop.f32.mrf.mxu0
    %v2439 = vadd.f32 %v2425, %v2438
    %2440 = vdwg.mxu0
    %2441 = vmatpush.bf16.msra.mxu0 %v1862
    %2442 = vmatpush.bf16.msra.mxu0 %v1852
    %2443 = vmatpush.bf16.msra.mxu0 %v1842
    %2444 = vmatpush.bf16.msra.mxu0 %v1832
    %2445 = vmatpush.bf16.msra.mxu0 %v1822
    %2446 = vmatpush.bf16.msra.mxu0 %v1812
    %2447 = vmatpush.bf16.msra.mxu0 %v1802
    %2448 = vmatpush.bf16.msra.mxu0 %v1792
    %2449 = vmatmul.bf16.gmra.mxu0 %v1023
    %v2450 = vpop.f32.mrf.mxu0
    %v2451 = vadd.f32 0.0, %v2450
    %v2452 = vpop.f32.mrf.mxu0
    %v2453 = vadd.f32 0.0, %v2452
    %2454 = vdwg.mxu0
    %2455 = vmatpush.bf16.msra.mxu0 %v1942
    %2456 = vmatpush.bf16.msra.mxu0 %v1932
    %2457 = vmatpush.bf16.msra.mxu0 %v1922
    %2458 = vmatpush.bf16.msra.mxu0 %v1912
    %2459 = vmatpush.bf16.msra.mxu0 %v1902
    %2460 = vmatpush.bf16.msra.mxu0 %v1892
    %2461 = vmatpush.bf16.msra.mxu0 %v1882
    %2462 = vmatpush.bf16.msra.mxu0 %v1872
    %2463 = vmatmul.bf16.gmra.mxu0 %v1024
    %v2464 = vpop.f32.mrf.mxu0
    %v2465 = vadd.f32 %v2451, %v2464
    %v2466 = vpop.f32.mrf.mxu0
    %v2467 = vadd.f32 %v2453, %v2466
    %2468 = vdwg.mxu0
    %2469 = vmatpush.bf16.msra.mxu0 0
    %2470 = vmatpush.bf16.msra.mxu0 0
    %2471 = vmatpush.bf16.msra.mxu0 0
    %2472 = vmatpush.bf16.msra.mxu0 0
    %2473 = vmatpush.bf16.msra.mxu0 0
    %2474 = vmatpush.bf16.msra.mxu0 %v2178
    %2475 = vmatpush.bf16.msra.mxu0 %v1962
    %2476 = vmatpush.bf16.msra.mxu0 %v1952
    %2477 = vmatmul.bf16.gmra.mxu0 %v2157
    %v2478 = vpop.f32.mrf.mxu0
    %v2479 = vadd.f32 %v2465, %v2478
    %v2480 = vpop.f32.mrf.mxu0
    %v2481 = vadd.f32 %v2467, %v2480
    %2482 = vdwg.mxu0
    %2483 = vmatpush.bf16.msra.mxu0 %v1863
    %2484 = vmatpush.bf16.msra.mxu0 %v1853
    %2485 = vmatpush.bf16.msra.mxu0 %v1843
    %2486 = vmatpush.bf16.msra.mxu0 %v1833
    %2487 = vmatpush.bf16.msra.mxu0 %v1823
    %2488 = vmatpush.bf16.msra.mxu0 %v1813
    %2489 = vmatpush.bf16.msra.mxu0 %v1803
    %2490 = vmatpush.bf16.msra.mxu0 %v1793
    %2491 = vmatmul.bf16.gmra.mxu0 %v1023
    %v2492 = vpop.f32.mrf.mxu0
    %v2493 = vadd.f32 0.0, %v2492
    %v2494 = vpop.f32.mrf.mxu0
    %v2495 = vadd.f32 0.0, %v2494
    %2496 = vdwg.mxu0
    %2497 = vmatpush.bf16.msra.mxu0 %v1943
    %2498 = vmatpush.bf16.msra.mxu0 %v1933
    %2499 = vmatpush.bf16.msra.mxu0 %v1923
    %2500 = vmatpush.bf16.msra.mxu0 %v1913
    %2501 = vmatpush.bf16.msra.mxu0 %v1903
    %2502 = vmatpush.bf16.msra.mxu0 %v1893
    %2503 = vmatpush.bf16.msra.mxu0 %v1883
    %2504 = vmatpush.bf16.msra.mxu0 %v1873
    %2505 = vmatmul.bf16.gmra.mxu0 %v1024
    %v2506 = vpop.f32.mrf.mxu0
    %v2507 = vadd.f32 %v2493, %v2506
    %v2508 = vpop.f32.mrf.mxu0
    %v2509 = vadd.f32 %v2495, %v2508
    %2510 = vdwg.mxu0
    %2511 = vmatpush.bf16.msra.mxu0 0
    %2512 = vmatpush.bf16.msra.mxu0 0
    %2513 = vmatpush.bf16.msra.mxu0 0
    %2514 = vmatpush.bf16.msra.mxu0 0
    %2515 = vmatpush.bf16.msra.mxu0 0
    %2516 = vmatpush.bf16.msra.mxu0 %v2181
    %2517 = vmatpush.bf16.msra.mxu0 %v1963
    %2518 = vmatpush.bf16.msra.mxu0 %v1953
    %2519 = vmatmul.bf16.gmra.mxu0 %v2157
    %v2520 = vpop.f32.mrf.mxu0
    %v2521 = vadd.f32 %v2507, %v2520
    %v2522 = vpop.f32.mrf.mxu0
    %v2523 = vadd.f32 %v2509, %v2522
    %2524 = vdwg.mxu0
    %2525 = vmatpush.bf16.msra.mxu0 %v1864
    %2526 = vmatpush.bf16.msra.mxu0 %v1854
    %2527 = vmatpush.bf16.msra.mxu0 %v1844
    %2528 = vmatpush.bf16.msra.mxu0 %v1834
    %2529 = vmatpush.bf16.msra.mxu0 %v1824
    %2530 = vmatpush.bf16.msra.mxu0 %v1814
    %2531 = vmatpush.bf16.msra.mxu0 %v1804
    %2532 = vmatpush.bf16.msra.mxu0 %v1794
    %2533 = vmatmul.bf16.gmra.mxu0 %v1023
    %v2534 = vpop.f32.mrf.mxu0
    %v2535 = vadd.f32 0.0, %v2534
    %v2536 = vpop.f32.mrf.mxu0
    %v2537 = vadd.f32 0.0, %v2536
    %2538 = vdwg.mxu0
    %2539 = vmatpush.bf16.msra.mxu0 %v1944
    %2540 = vmatpush.bf16.msra.mxu0 %v1934
    %2541 = vmatpush.bf16.msra.mxu0 %v1924
    %2542 = vmatpush.bf16.msra.mxu0 %v1914
    %2543 = vmatpush.bf16.msra.mxu0 %v1904
    %2544 = vmatpush.bf16.msra.mxu0 %v1894
    %2545 = vmatpush.bf16.msra.mxu0 %v1884
    %2546 = vmatpush.bf16.msra.mxu0 %v1874
    %2547 = vmatmul.bf16.gmra.mxu0 %v1024
    %v2548 = vpop.f32.mrf.mxu0
    %v2549 = vadd.f32 %v2535, %v2548
    %v2550 = vpop.f32.mrf.mxu0
    %v2551 = vadd.f32 %v2537, %v2550
    %2552 = vdwg.mxu0
    %2553 = vmatpush.bf16.msra.mxu0 0
    %2554 = vmatpush.bf16.msra.mxu0 0
    %2555 = vmatpush.bf16.msra.mxu0 0
    %2556 = vmatpush.bf16.msra.mxu0 0
    %2557 = vmatpush.bf16.msra.mxu0 0
    %2558 = vmatpush.bf16.msra.mxu0 %v2184
    %2559 = vmatpush.bf16.msra.mxu0 %v1964
    %2560 = vmatpush.bf16.msra.mxu0 %v1954
    %2561 = vmatmul.bf16.gmra.mxu0 %v2157
    %v2562 = vpop.f32.mrf.mxu0
    %v2563 = vadd.f32 %v2549, %v2562
    %v2564 = vpop.f32.mrf.mxu0
    %v2565 = vadd.f32 %v2551, %v2564
    %2566 = vdwg.mxu0
    %2567 = vmatpush.bf16.msra.mxu0 %v1865
    %2568 = vmatpush.bf16.msra.mxu0 %v1855
    %2569 = vmatpush.bf16.msra.mxu0 %v1845
    %2570 = vmatpush.bf16.msra.mxu0 %v1835
    %2571 = vmatpush.bf16.msra.mxu0 %v1825
    %2572 = vmatpush.bf16.msra.mxu0 %v1815
    %2573 = vmatpush.bf16.msra.mxu0 %v1805
    %2574 = vmatpush.bf16.msra.mxu0 %v1795
    %2575 = vmatmul.bf16.gmra.mxu0 %v1023
    %v2576 = vpop.f32.mrf.mxu0
    %v2577 = vadd.f32 0.0, %v2576
    %v2578 = vpop.f32.mrf.mxu0
    %v2579 = vadd.f32 0.0, %v2578
    %2580 = vdwg.mxu0
    %2581 = vmatpush.bf16.msra.mxu0 %v1945
    %2582 = vmatpush.bf16.msra.mxu0 %v1935
    %2583 = vmatpush.bf16.msra.mxu0 %v1925
    %2584 = vmatpush.bf16.msra.mxu0 %v1915
    %2585 = vmatpush.bf16.msra.mxu0 %v1905
    %2586 = vmatpush.bf16.msra.mxu0 %v1895
    %2587 = vmatpush.bf16.msra.mxu0 %v1885
    %2588 = vmatpush.bf16.msra.mxu0 %v1875
    %2589 = vmatmul.bf16.gmra.mxu0 %v1024
    %v2590 = vpop.f32.mrf.mxu0
    %v2591 = vadd.f32 %v2577, %v2590
    %v2592 = vpop.f32.mrf.mxu0
    %v2593 = vadd.f32 %v2579, %v2592
    %2594 = vdwg.mxu0
    %2595 = vmatpush.bf16.msra.mxu0 0
    %2596 = vmatpush.bf16.msra.mxu0 0
    %2597 = vmatpush.bf16.msra.mxu0 0
    %2598 = vmatpush.bf16.msra.mxu0 0
    %2599 = vmatpush.bf16.msra.mxu0 0
    %2600 = vmatpush.bf16.msra.mxu0 %v2187
    %2601 = vmatpush.bf16.msra.mxu0 %v1965
    %2602 = vmatpush.bf16.msra.mxu0 %v1955
    %2603 = vmatmul.bf16.gmra.mxu0 %v2157
    %v2604 = vpop.f32.mrf.mxu0
    %v2605 = vadd.f32 %v2591, %v2604
    %v2606 = vpop.f32.mrf.mxu0
    %v2607 = vadd.f32 %v2593, %v2606
    %2608 = vdwg.mxu0
    %v2799 = vunpack.c.l.b16 %v833
    %v2800 = vunpack.c.h.b16 %v833
    %v2801 = vunpack.c.l.b16 %v834
    %v2802 = vunpack.c.h.b16 %v834
    %v2803 = vunpack.c.l.b16 %v835
    %v2804 = vunpack.c.h.b16 %v835
    %v2805 = vunpack.c.l.b16 %v836
    %v2806 = vunpack.c.h.b16 %v836
    %v2807 = vunpack.c.l.b16 %v837
    %v2808 = vunpack.c.h.b16 %v837
    %v2809 = vunpack.c.l.b16 %v838
    %v2810 = vunpack.c.h.b16 %v838
    %v2811 = vunpack.c.l.b16 %v839
    %v2812 = vunpack.c.h.b16 %v839
    %v2813 = vunpack.c.l.b16 %v840
    %v2814 = vunpack.c.h.b16 %v840
    %v2815 = vunpack.c.l.b16 %v841
    %v2816 = vunpack.c.h.b16 %v841
    %v2817 = vunpack.c.l.b16 %v842
    %v2818 = vunpack.c.h.b16 %v842
    %v2819 = vunpack.c.l.b16 %v843
    %v2820 = vunpack.c.h.b16 %v843
    %v2821 = vunpack.c.l.b16 %v844
    %v2822 = vunpack.c.h.b16 %v844
    %v2823 = vunpack.c.l.b16 %v845
    %v2824 = vunpack.c.h.b16 %v845
    %v2825 = vunpack.c.l.b16 %v846
    %v2826 = vunpack.c.h.b16 %v846
    %v2827 = vunpack.c.l.b16 %v847
    %v2828 = vunpack.c.h.b16 %v847
    %v2829 = vunpack.c.l.b16 %v848
    %v2830 = vunpack.c.h.b16 %v848
    %v2831 = vunpack.c.l.b16 %v849
    %v2832 = vunpack.c.h.b16 %v849
    %v2833 = vunpack.c.l.b16 %v850
    %v2834 = vunpack.c.h.b16 %v850
    %v2835 = vunpack.c.l.b16 %v851
    %v2836 = vunpack.c.h.b16 %v851
    %v2837 = vunpack.c.l.b16 %v852
    %v2838 = vunpack.c.h.b16 %v852
    %v2839 = vunpack.c.l.b16 %v853
    %v2840 = vunpack.c.h.b16 %v853
    %v2841 = vunpack.c.l.b16 %v854
    %v2842 = vunpack.c.h.b16 %v854
    %v2843 = vunpack.c.l.b16 %v855
    %v2844 = vunpack.c.h.b16 %v855
    %v2845 = vunpack.c.l.b16 %v856
    %v2846 = vunpack.c.h.b16 %v856
    %v2847 = vunpack.c.l.b16 %v857
    %v2848 = vunpack.c.h.b16 %v857
    %v2849 = vunpack.c.l.b16 %v858
    %v2850 = vunpack.c.h.b16 %v858
    %v2851 = vunpack.c.l.b16 %v859
    %v2852 = vunpack.c.h.b16 %v859
    %v2853 = vunpack.c.l.b16 %v860
    %v2854 = vunpack.c.h.b16 %v860
    %v2855 = vunpack.c.l.b16 %v861
    %v2856 = vunpack.c.h.b16 %v861
    %v2857 = vunpack.c.l.b16 %v862
    %v2858 = vunpack.c.h.b16 %v862
    %v2859 = vunpack.c.l.b16 %v863
    %v2860 = vunpack.c.h.b16 %v863
    %v2861 = vunpack.c.l.b16 %v864
    %v2862 = vunpack.c.h.b16 %v864
    %v2863 = vunpack.c.l.b16 %v865
    %v2864 = vunpack.c.h.b16 %v865
    %v2865 = vunpack.c.l.b16 %v866
    %v2866 = vunpack.c.h.b16 %v866
    %v2867 = vunpack.c.l.b16 %v867
    %v2868 = vunpack.c.h.b16 %v867
    %v2869 = vunpack.c.l.b16 %v868
    %v2870 = vunpack.c.h.b16 %v868
    %v2871 = vunpack.c.l.b16 %v869
    %v2872 = vunpack.c.h.b16 %v869
    %v2873 = vunpack.c.l.b16 %v870
    %v2874 = vunpack.c.h.b16 %v870
    %v2875 = vunpack.c.l.b16 %v871
    %v2876 = vunpack.c.h.b16 %v871
    %v2877 = vunpack.c.l.b16 %v872
    %v2878 = vunpack.c.h.b16 %v872
    %v2879 = vunpack.c.l.b16 %v873
    %v2880 = vunpack.c.h.b16 %v873
    %v2881 = vunpack.c.l.b16 %v874
    %v2882 = vunpack.c.h.b16 %v874
    %v2883 = vunpack.c.l.b16 %v875
    %v2884 = vunpack.c.h.b16 %v875
    %v2885 = vunpack.c.l.b16 %v876
    %v2886 = vunpack.c.h.b16 %v876
    %v2887 = vunpack.c.l.b16 %v877
    %v2888 = vunpack.c.h.b16 %v877
    %v2889 = vunpack.c.l.b16 %v878
    %v2890 = vunpack.c.h.b16 %v878
    %v2891 = vunpack.c.l.b16 %v879
    %v2892 = vunpack.c.h.b16 %v879
    %v2893 = vunpack.c.l.b16 %v880
    %v2894 = vunpack.c.h.b16 %v880
    %v2895 = vunpack.c.l.b16 %v881
    %v2896 = vunpack.c.h.b16 %v881
    %v2897 = vunpack.c.l.b16 %v882
    %v2898 = vunpack.c.h.b16 %v882
    %v2899 = vunpack.c.l.b16 %v883
    %v2900 = vunpack.c.h.b16 %v883
    %v2901 = vunpack.c.l.b16 %v884
    %v2902 = vunpack.c.h.b16 %v884
    %v2903 = vunpack.c.l.b16 %v885
    %v2904 = vunpack.c.h.b16 %v885
    %v2905 = vunpack.c.l.b16 %v886
    %v2906 = vunpack.c.h.b16 %v886
    %v2907 = vunpack.c.l.b16 %v887
    %v2908 = vunpack.c.h.b16 %v887
    %v2909 = vunpack.c.l.b16 %v888
    %v2910 = vunpack.c.h.b16 %v888
    %v2911 = vunpack.c.l.b16 %v889
    %v2912 = vunpack.c.h.b16 %v889
    %v2913 = vunpack.c.l.b16 %v890
    %v2914 = vunpack.c.h.b16 %v890
    %v2915 = vunpack.c.l.b16 %v891
    %v2916 = vunpack.c.h.b16 %v891
    %v2917 = vunpack.c.l.b16 %v892
    %v2918 = vunpack.c.h.b16 %v892
    %v2919 = vunpack.c.l.b16 %v893
    %v2920 = vunpack.c.h.b16 %v893
    %v2921 = vunpack.c.l.b16 %v894
    %v2922 = vunpack.c.h.b16 %v894
    %v2923 = vunpack.c.l.b16 %v895
    %v2924 = vunpack.c.h.b16 %v895
    %v2925 = vunpack.c.l.b16 %v896
    %v2926 = vunpack.c.h.b16 %v896
    %v2927 = vunpack.c.l.b16 %v897
    %v2928 = vunpack.c.h.b16 %v897
    %v2929 = vunpack.c.l.b16 %v898
    %v2930 = vunpack.c.h.b16 %v898
    %v2931 = vunpack.c.l.b16 %v899
    %v2932 = vunpack.c.h.b16 %v899
    %v2933 = vunpack.c.l.b16 %v900
    %v2934 = vunpack.c.h.b16 %v900
    %v2935 = vunpack.c.l.b16 %v901
    %v2936 = vunpack.c.h.b16 %v901
    %v2937 = vunpack.c.l.b16 %v902
    %v2938 = vunpack.c.h.b16 %v902
    %v2939 = vunpack.c.l.b16 %v903
    %v2940 = vunpack.c.h.b16 %v903
    %v2941 = vunpack.c.l.b16 %v904
    %v2942 = vunpack.c.h.b16 %v904
    %v2943 = vunpack.c.l.b16 %v905
    %v2944 = vunpack.c.h.b16 %v905
    %v2945 = vunpack.c.l.b16 %v906
    %v2946 = vunpack.c.h.b16 %v906
    %v2947 = vunpack.c.l.b16 %v907
    %v2948 = vunpack.c.h.b16 %v907
    %v2949 = vunpack.c.l.b16 %v908
    %v2950 = vunpack.c.h.b16 %v908
    %v2951 = vunpack.c.l.b16 %v909
    %v2952 = vunpack.c.h.b16 %v909
    %v2953 = vunpack.c.l.b16 %v910
    %v2954 = vunpack.c.h.b16 %v910
    %v2955 = vunpack.c.l.b16 %v911
    %v2956 = vunpack.c.h.b16 %v911
    %v2957 = vunpack.c.l.b16 %v912
    %v2958 = vunpack.c.h.b16 %v912
    %v2959 = vunpack.c.l.b16 %v913
    %v2960 = vunpack.c.h.b16 %v913
    %v2961 = vunpack.c.l.b16 %v914
    %v2962 = vunpack.c.h.b16 %v914
    %v2963 = vunpack.c.l.b16 %v915
    %v2964 = vunpack.c.h.b16 %v915
    %v2965 = vunpack.c.l.b16 %v916
    %v2966 = vunpack.c.h.b16 %v916
    %v2967 = vunpack.c.l.b16 %v917
    %v2968 = vunpack.c.h.b16 %v917
    %v2969 = vunpack.c.l.b16 %v918
    %v2970 = vunpack.c.h.b16 %v918
    %v2971 = vunpack.c.l.b16 %v919
    %v2972 = vunpack.c.h.b16 %v919
    %v2973 = vunpack.c.l.b16 %v920
    %v2974 = vunpack.c.h.b16 %v920
    %v2975 = vunpack.c.l.b16 %v921
    %v2976 = vunpack.c.h.b16 %v921
    %v2977 = vunpack.c.l.b16 %v922
    %v2978 = vunpack.c.h.b16 %v922
    %v2979 = vunpack.c.l.b16 %v923
    %v2980 = vunpack.c.h.b16 %v923
    %v2981 = vunpack.c.l.b16 %v924
    %v2982 = vunpack.c.h.b16 %v924
    %v2983 = vunpack.c.l.b16 %v925
    %v2984 = vunpack.c.h.b16 %v925
    %v2985 = vunpack.c.l.b16 %v926
    %v2986 = vunpack.c.h.b16 %v926
    %v2987 = vunpack.c.l.b16 %v927
    %v2988 = vunpack.c.h.b16 %v927
    %v2989 = vunpack.c.l.b16 %v928
    %v2990 = vunpack.c.h.b16 %v928
    %v2991 = vunpack.c.l.b16 %v929
    %v2992 = vunpack.c.h.b16 %v929
    %v2993 = vunpack.c.l.b16 %v930
    %v2994 = vunpack.c.h.b16 %v930
    %v2995 = vunpack.c.l.b16 %v931
    %v2996 = vunpack.c.h.b16 %v931
    %v2997 = vunpack.c.l.b16 %v932
    %v2998 = vunpack.c.h.b16 %v932
    %v2999 = vunpack.c.l.b16 %v933
    %v3000 = vunpack.c.h.b16 %v933
    %v3001 = vunpack.c.l.b16 %v934
    %v3002 = vunpack.c.h.b16 %v934
    %v3003 = vunpack.c.l.b16 %v935
    %v3004 = vunpack.c.h.b16 %v935
    %v3005 = vunpack.c.l.b16 %v936
    %v3006 = vunpack.c.h.b16 %v936
    %v3007 = vunpack.c.l.b16 %v937
    %v3008 = vunpack.c.h.b16 %v937
    %v3009 = vunpack.c.l.b16 %v938
    %v3010 = vunpack.c.h.b16 %v938
    %v3011 = vunpack.c.l.b16 %v939
    %v3012 = vunpack.c.h.b16 %v939
    %v3013 = vunpack.c.l.b16 %v940
    %v3014 = vunpack.c.h.b16 %v940
    %v3015 = vunpack.c.l.b16 %v941
    %v3016 = vunpack.c.h.b16 %v941
    %v3017 = vunpack.c.l.b16 %v942
    %v3018 = vunpack.c.h.b16 %v942
    %v3019 = vunpack.c.l.b16 %v943
    %v3020 = vunpack.c.h.b16 %v943
    %v3021 = vunpack.c.l.b16 %v944
    %v3022 = vunpack.c.h.b16 %v944
    %v3023 = vunpack.c.l.b16 %v945
    %v3024 = vunpack.c.h.b16 %v945
    %v3025 = vunpack.c.l.b16 %v946
    %v3026 = vunpack.c.h.b16 %v946
    %v3027 = vunpack.c.l.b16 %v947
    %v3028 = vunpack.c.h.b16 %v947
    %v3029 = vunpack.c.l.b16 %v948
    %v3030 = vunpack.c.h.b16 %v948
    %v3031 = vunpack.c.l.b16 %v949
    %v3032 = vunpack.c.h.b16 %v949
    %v3033 = vunpack.c.l.b16 %v950
    %v3034 = vunpack.c.h.b16 %v950
    %v3035 = vunpack.c.l.b16 %v951
    %v3036 = vunpack.c.h.b16 %v951
    %v3037 = vunpack.c.l.b16 %v952
    %v3038 = vunpack.c.h.b16 %v952
    %v3039 = vunpack.c.l.b16 %v953
    %v3040 = vunpack.c.h.b16 %v953
    %v3041 = vunpack.c.l.b16 %v954
    %v3042 = vunpack.c.h.b16 %v954
    %v3043 = vunpack.c.l.b16 %v955
    %v3044 = vunpack.c.h.b16 %v955
    %v3045 = vunpack.c.l.b16 %v956
    %v3046 = vunpack.c.h.b16 %v956
    %v3047 = vunpack.c.l.b16 %v957
    %v3048 = vunpack.c.h.b16 %v957
    %v3049 = vunpack.c.l.b16 %v958
    %v3050 = vunpack.c.h.b16 %v958
    %v3051 = vunpack.c.l.b16 %v959
    %v3052 = vunpack.c.h.b16 %v959
    %v3053 = vunpack.c.l.b16 %v960
    %v3054 = vunpack.c.h.b16 %v960
    %v3055 = vunpack.c.l.b16 %v961
    %v3056 = vunpack.c.h.b16 %v961
    %v3057 = vunpack.c.l.b16 %v962
    %v3058 = vunpack.c.h.b16 %v962
    %v3059 = vunpack.c.l.b16 %v963
    %v3060 = vunpack.c.h.b16 %v963
    %v3061 = vunpack.c.l.b16 %v964
    %v3062 = vunpack.c.h.b16 %v964
    %v3063 = vunpack.c.l.b16 %v965
    %v3064 = vunpack.c.h.b16 %v965
    %v3065 = vunpack.c.l.b16 %v966
    %v3066 = vunpack.c.h.b16 %v966
    %v3067 = vunpack.c.l.b16 %v967
    %v3068 = vunpack.c.h.b16 %v967
    %v3069 = vunpack.c.l.b16 %v968
    %v3070 = vunpack.c.h.b16 %v968
    %v3071 = vunpack.c.l.b16 %v969
    %v3072 = vunpack.c.h.b16 %v969
    %v3073 = vunpack.c.l.b16 %v970
    %v3074 = vunpack.c.h.b16 %v970
    %v3075 = vunpack.c.l.b16 %v971
    %v3076 = vunpack.c.h.b16 %v971
    %v3077 = vunpack.c.l.b16 %v972
    %v3078 = vunpack.c.h.b16 %v972
    %v3079 = vunpack.c.l.b16 %v973
    %v3080 = vunpack.c.h.b16 %v973
    %v3081 = vunpack.c.l.b16 %v974
    %v3082 = vunpack.c.h.b16 %v974
    %v3083 = vunpack.c.l.b16 %v975
    %v3084 = vunpack.c.h.b16 %v975
    %v3085 = vunpack.c.l.b16 %v976
    %v3086 = vunpack.c.h.b16 %v976
    %v3087 = vunpack.c.l.b16 %v977
    %v3088 = vunpack.c.h.b16 %v977
    %v3089 = vunpack.c.l.b16 %v978
    %v3090 = vunpack.c.h.b16 %v978
    %v3091 = vunpack.c.l.b16 %v979
    %v3092 = vunpack.c.h.b16 %v979
    %v3093 = vunpack.c.l.b16 %v980
    %v3094 = vunpack.c.h.b16 %v980
    %v3095 = vunpack.c.l.b16 %v981
    %v3096 = vunpack.c.h.b16 %v981
    %v3097 = vunpack.c.l.b16 %v982
    %v3098 = vunpack.c.h.b16 %v982
    %v3099 = vunpack.c.l.b16 %v983
    %v3100 = vunpack.c.h.b16 %v983
    %v3101 = vunpack.c.l.b16 %v984
    %v3102 = vunpack.c.h.b16 %v984
    %v3103 = vunpack.c.l.b16 %v985
    %v3104 = vunpack.c.h.b16 %v985
    %v3105 = vunpack.c.l.b16 %v986
    %v3106 = vunpack.c.h.b16 %v986
    %v3107 = vunpack.c.l.b16 %v987
    %v3108 = vunpack.c.h.b16 %v987
    %v3109 = vunpack.c.l.b16 %v988
    %v3110 = vunpack.c.h.b16 %v988
    %v3111 = vunpack.c.l.b16 %v989
    %v3112 = vunpack.c.h.b16 %v989
    %v3113 = vunpack.c.l.b16 %v990
    %v3114 = vunpack.c.h.b16 %v990
    %v3115 = vunpack.c.l.b16 %v991
    %v3116 = vunpack.c.h.b16 %v991
    %v3117 = vunpack.c.l.b16 %v992
    %v3118 = vunpack.c.h.b16 %v992
    %v3119 = vunpack.c.l.b16 %v993
    %v3120 = vunpack.c.h.b16 %v993
    %v3121 = vunpack.c.l.b16 %v994
    %v3122 = vunpack.c.h.b16 %v994
    %v3123 = vunpack.c.l.b16 %v995
    %v3124 = vunpack.c.h.b16 %v995
    %v3125 = vunpack.c.l.b16 %v996
    %v3126 = vunpack.c.h.b16 %v996
    %v3127 = vunpack.c.l.b16 %v997
    %v3128 = vunpack.c.h.b16 %v997
    %v3129 = vunpack.c.l.b16 %v998
    %v3130 = vunpack.c.h.b16 %v998
    %v3131 = vunpack.c.l.b16 %v999
    %v3132 = vunpack.c.h.b16 %v999
    %v3133 = vunpack.c.l.b16 %v1000
    %v3134 = vunpack.c.h.b16 %v1000
    %v3135 = vunpack.c.l.b16 %v1001
    %v3136 = vunpack.c.h.b16 %v1001
    %v3137 = vunpack.c.l.b16 %v1002
    %v3138 = vunpack.c.h.b16 %v1002
    %v3139 = vunpack.c.l.b16 %v1003
    %v3140 = vunpack.c.h.b16 %v1003
    %v3141 = vunpack.c.l.b16 %v1004
    %v3142 = vunpack.c.h.b16 %v1004
    %v3143 = vunpack.c.l.b16 %v1005
    %v3144 = vunpack.c.h.b16 %v1005
    %v3145 = vunpack.c.l.b16 %v1006
    %v3146 = vunpack.c.h.b16 %v1006
    %v3147 = vunpack.c.l.b16 %v1007
    %v3148 = vunpack.c.h.b16 %v1007
    %v3149 = vunpack.c.l.b16 %v1008
    %v3150 = vunpack.c.h.b16 %v1008
    %v3151 = vunpack.c.l.b16 %v1009
    %v3152 = vunpack.c.h.b16 %v1009
    %v3153 = vunpack.c.l.b16 %v1010
    %v3154 = vunpack.c.h.b16 %v1010
    %v3155 = vunpack.c.l.b16 %v1011
    %v3156 = vunpack.c.h.b16 %v1011
    %v3157 = vunpack.c.l.b16 %v1012
    %v3158 = vunpack.c.h.b16 %v1012
    %v3159 = vunpack.c.l.b16 %v1013
    %v3160 = vunpack.c.h.b16 %v1013
    %v3161 = vunpack.c.l.b16 %v1014
    %v3162 = vunpack.c.h.b16 %v1014
    %v3163 = vunpack.c.l.b16 %v1015
    %v3164 = vunpack.c.h.b16 %v1015
    %v3165 = vunpack.c.l.b16 %v1016
    %v3166 = vunpack.c.h.b16 %v1016
    %v3167 = vunpack.c.l.b16 %v1017
    %v3168 = vunpack.c.h.b16 %v1017
    %v3169 = vunpack.c.l.b16 %v1018
    %v3170 = vunpack.c.h.b16 %v1018
    %v3171 = vunpack.c.l.b16 %v1019
    %v3172 = vunpack.c.h.b16 %v1019
    %v3173 = vunpack.c.l.b16 %v1020
    %v3174 = vunpack.c.h.b16 %v1020
    %v3175 = vunpack.c.l.b16 %v1021
    %v3176 = vunpack.c.h.b16 %v1021
    %v3177 = vunpack.c.l.b16 %v1022
    %v3178 = vunpack.c.h.b16 %v1022
    %v3179 = vpack.c.b16 %v2809, %v2799
    %v3180 = vpack.c.b16 %v2810, %v2800
    %v3181 = vpack.c.b16 %v2811, %v2801
    %v3182 = vpack.c.b16 %v2812, %v2802
    %v3183 = vpack.c.b16 %v2813, %v2803
    %v3184 = vpack.c.b16 %v2814, %v2804
    %v3185 = vpack.c.b16 %v2815, %v2805
    %v3186 = vpack.c.b16 %v2816, %v2806
    %v3187 = vpack.c.b16 %v2817, %v2807
    %v3188 = vpack.c.b16 %v2818, %v2808
    %v3189 = vpack.c.b16 %v2829, %v2819
    %v3190 = vpack.c.b16 %v2830, %v2820
    %v3191 = vpack.c.b16 %v2831, %v2821
    %v3192 = vpack.c.b16 %v2832, %v2822
    %v3193 = vpack.c.b16 %v2833, %v2823
    %v3194 = vpack.c.b16 %v2834, %v2824
    %v3195 = vpack.c.b16 %v2835, %v2825
    %v3196 = vpack.c.b16 %v2836, %v2826
    %v3197 = vpack.c.b16 %v2837, %v2827
    %v3198 = vpack.c.b16 %v2838, %v2828
    %v3199 = vpack.c.b16 %v2849, %v2839
    %v3200 = vpack.c.b16 %v2850, %v2840
    %v3201 = vpack.c.b16 %v2851, %v2841
    %v3202 = vpack.c.b16 %v2852, %v2842
    %v3203 = vpack.c.b16 %v2853, %v2843
    %v3204 = vpack.c.b16 %v2854, %v2844
    %v3205 = vpack.c.b16 %v2855, %v2845
    %v3206 = vpack.c.b16 %v2856, %v2846
    %v3207 = vpack.c.b16 %v2857, %v2847
    %v3208 = vpack.c.b16 %v2858, %v2848
    %v3209 = vpack.c.b16 %v2869, %v2859
    %v3210 = vpack.c.b16 %v2870, %v2860
    %v3211 = vpack.c.b16 %v2871, %v2861
    %v3212 = vpack.c.b16 %v2872, %v2862
    %v3213 = vpack.c.b16 %v2873, %v2863
    %v3214 = vpack.c.b16 %v2874, %v2864
    %v3215 = vpack.c.b16 %v2875, %v2865
    %v3216 = vpack.c.b16 %v2876, %v2866
    %v3217 = vpack.c.b16 %v2877, %v2867
    %v3218 = vpack.c.b16 %v2878, %v2868
    %v3219 = vpack.c.b16 %v2889, %v2879
    %v3220 = vpack.c.b16 %v2890, %v2880
    %v3221 = vpack.c.b16 %v2891, %v2881
    %v3222 = vpack.c.b16 %v2892, %v2882
    %v3223 = vpack.c.b16 %v2893, %v2883
    %v3224 = vpack.c.b16 %v2894, %v2884
    %v3225 = vpack.c.b16 %v2895, %v2885
    %v3226 = vpack.c.b16 %v2896, %v2886
    %v3227 = vpack.c.b16 %v2897, %v2887
    %v3228 = vpack.c.b16 %v2898, %v2888
    %v3229 = vpack.c.b16 %v2909, %v2899
    %v3230 = vpack.c.b16 %v2910, %v2900
    %v3231 = vpack.c.b16 %v2911, %v2901
    %v3232 = vpack.c.b16 %v2912, %v2902
    %v3233 = vpack.c.b16 %v2913, %v2903
    %v3234 = vpack.c.b16 %v2914, %v2904
    %v3235 = vpack.c.b16 %v2915, %v2905
    %v3236 = vpack.c.b16 %v2916, %v2906
    %v3237 = vpack.c.b16 %v2917, %v2907
    %v3238 = vpack.c.b16 %v2918, %v2908
    %v3239 = vpack.c.b16 %v2929, %v2919
    %v3240 = vpack.c.b16 %v2930, %v2920
    %v3241 = vpack.c.b16 %v2931, %v2921
    %v3242 = vpack.c.b16 %v2932, %v2922
    %v3243 = vpack.c.b16 %v2933, %v2923
    %v3244 = vpack.c.b16 %v2934, %v2924
    %v3245 = vpack.c.b16 %v2935, %v2925
    %v3246 = vpack.c.b16 %v2936, %v2926
    %v3247 = vpack.c.b16 %v2937, %v2927
    %v3248 = vpack.c.b16 %v2938, %v2928
    %v3249 = vpack.c.b16 %v2949, %v2939
    %v3250 = vpack.c.b16 %v2950, %v2940
    %v3251 = vpack.c.b16 %v2951, %v2941
    %v3252 = vpack.c.b16 %v2952, %v2942
    %v3253 = vpack.c.b16 %v2953, %v2943
    %v3254 = vpack.c.b16 %v2954, %v2944
    %v3255 = vpack.c.b16 %v2955, %v2945
    %v3256 = vpack.c.b16 %v2956, %v2946
    %v3257 = vpack.c.b16 %v2957, %v2947
    %v3258 = vpack.c.b16 %v2958, %v2948
    %v3259 = vpack.c.b16 %v2969, %v2959
    %v3260 = vpack.c.b16 %v2970, %v2960
    %v3261 = vpack.c.b16 %v2971, %v2961
    %v3262 = vpack.c.b16 %v2972, %v2962
    %v3263 = vpack.c.b16 %v2973, %v2963
    %v3264 = vpack.c.b16 %v2974, %v2964
    %v3265 = vpack.c.b16 %v2975, %v2965
    %v3266 = vpack.c.b16 %v2976, %v2966
    %v3267 = vpack.c.b16 %v2977, %v2967
    %v3268 = vpack.c.b16 %v2978, %v2968
    %v3269 = vpack.c.b16 %v2989, %v2979
    %v3270 = vpack.c.b16 %v2990, %v2980
    %v3271 = vpack.c.b16 %v2991, %v2981
    %v3272 = vpack.c.b16 %v2992, %v2982
    %v3273 = vpack.c.b16 %v2993, %v2983
    %v3274 = vpack.c.b16 %v2994, %v2984
    %v3275 = vpack.c.b16 %v2995, %v2985
    %v3276 = vpack.c.b16 %v2996, %v2986
    %v3277 = vpack.c.b16 %v2997, %v2987
    %v3278 = vpack.c.b16 %v2998, %v2988
    %v3279 = vpack.c.b16 %v3009, %v2999
    %v3280 = vpack.c.b16 %v3010, %v3000
    %v3281 = vpack.c.b16 %v3011, %v3001
    %v3282 = vpack.c.b16 %v3012, %v3002
    %v3283 = vpack.c.b16 %v3013, %v3003
    %v3284 = vpack.c.b16 %v3014, %v3004
    %v3285 = vpack.c.b16 %v3015, %v3005
    %v3286 = vpack.c.b16 %v3016, %v3006
    %v3287 = vpack.c.b16 %v3017, %v3007
    %v3288 = vpack.c.b16 %v3018, %v3008
    %v3289 = vpack.c.b16 %v3029, %v3019
    %v3290 = vpack.c.b16 %v3030, %v3020
    %v3291 = vpack.c.b16 %v3031, %v3021
    %v3292 = vpack.c.b16 %v3032, %v3022
    %v3293 = vpack.c.b16 %v3033, %v3023
    %v3294 = vpack.c.b16 %v3034, %v3024
    %v3295 = vpack.c.b16 %v3035, %v3025
    %v3296 = vpack.c.b16 %v3036, %v3026
    %v3297 = vpack.c.b16 %v3037, %v3027
    %v3298 = vpack.c.b16 %v3038, %v3028
    %v3299 = vpack.c.b16 %v3049, %v3039
    %v3300 = vpack.c.b16 %v3050, %v3040
    %v3301 = vpack.c.b16 %v3051, %v3041
    %v3302 = vpack.c.b16 %v3052, %v3042
    %v3303 = vpack.c.b16 %v3053, %v3043
    %v3304 = vpack.c.b16 %v3054, %v3044
    %v3305 = vpack.c.b16 %v3055, %v3045
    %v3306 = vpack.c.b16 %v3056, %v3046
    %v3307 = vpack.c.b16 %v3057, %v3047
    %v3308 = vpack.c.b16 %v3058, %v3048
    %v3309 = vpack.c.b16 %v3069, %v3059
    %v3310 = vpack.c.b16 %v3070, %v3060
    %v3311 = vpack.c.b16 %v3071, %v3061
    %v3312 = vpack.c.b16 %v3072, %v3062
    %v3313 = vpack.c.b16 %v3073, %v3063
    %v3314 = vpack.c.b16 %v3074, %v3064
    %v3315 = vpack.c.b16 %v3075, %v3065
    %v3316 = vpack.c.b16 %v3076, %v3066
    %v3317 = vpack.c.b16 %v3077, %v3067
    %v3318 = vpack.c.b16 %v3078, %v3068
    %v3319 = vpack.c.b16 %v3089, %v3079
    %v3320 = vpack.c.b16 %v3090, %v3080
    %v3321 = vpack.c.b16 %v3091, %v3081
    %v3322 = vpack.c.b16 %v3092, %v3082
    %v3323 = vpack.c.b16 %v3093, %v3083
    %v3324 = vpack.c.b16 %v3094, %v3084
    %v3325 = vpack.c.b16 %v3095, %v3085
    %v3326 = vpack.c.b16 %v3096, %v3086
    %v3327 = vpack.c.b16 %v3097, %v3087
    %v3328 = vpack.c.b16 %v3098, %v3088
    %v3329 = vpack.c.b16 %v3109, %v3099
    %v3330 = vpack.c.b16 %v3110, %v3100
    %v3331 = vpack.c.b16 %v3111, %v3101
    %v3332 = vpack.c.b16 %v3112, %v3102
    %v3333 = vpack.c.b16 %v3113, %v3103
    %v3334 = vpack.c.b16 %v3114, %v3104
    %v3335 = vpack.c.b16 %v3115, %v3105
    %v3336 = vpack.c.b16 %v3116, %v3106
    %v3337 = vpack.c.b16 %v3117, %v3107
    %v3338 = vpack.c.b16 %v3118, %v3108
    %v3339 = vpack.c.b16 %v3129, %v3119
    %v3340 = vpack.c.b16 %v3130, %v3120
    %v3341 = vpack.c.b16 %v3131, %v3121
    %v3342 = vpack.c.b16 %v3132, %v3122
    %v3343 = vpack.c.b16 %v3133, %v3123
    %v3344 = vpack.c.b16 %v3134, %v3124
    %v3345 = vpack.c.b16 %v3135, %v3125
    %v3346 = vpack.c.b16 %v3136, %v3126
    %v3347 = vpack.c.b16 %v3137, %v3127
    %v3348 = vpack.c.b16 %v3138, %v3128
    %v3349 = vpack.c.b16 %v3149, %v3139
    %v3350 = vpack.c.b16 %v3150, %v3140
    %v3351 = vpack.c.b16 %v3151, %v3141
    %v3352 = vpack.c.b16 %v3152, %v3142
    %v3353 = vpack.c.b16 %v3153, %v3143
    %v3354 = vpack.c.b16 %v3154, %v3144
    %v3355 = vpack.c.b16 %v3155, %v3145
    %v3356 = vpack.c.b16 %v3156, %v3146
    %v3357 = vpack.c.b16 %v3157, %v3147
    %v3358 = vpack.c.b16 %v3158, %v3148
    %v3359 = vpack.c.b16 %v3169, %v3159
    %v3360 = vpack.c.b16 %v3170, %v3160
    %v3361 = vpack.c.b16 %v3171, %v3161
    %v3362 = vpack.c.b16 %v3172, %v3162
    %v3363 = vpack.c.b16 %v3173, %v3163
    %v3364 = vpack.c.b16 %v3174, %v3164
    %v3365 = vpack.c.b16 %v3175, %v3165
    %v3366 = vpack.c.b16 %v3176, %v3166
    %v3367 = vpack.c.b16 %v3177, %v3167
    %v3368 = vpack.c.b16 %v3178, %v3168
    %v3550 = vsel %vm575, %v832, 0
    %v3553 = vsel %vm579, %v3359, 0
    %v3556 = vsel %vm579, %v3360, 0
    %v3559 = vsel %vm579, %v3361, 0
    %v3562 = vsel %vm579, %v3362, 0
    %v3565 = vsel %vm579, %v3363, 0
    %v3568 = vsel %vm579, %v3364, 0
    %v3571 = vsel %vm579, %v3365, 0
    %v3574 = vsel %vm579, %v3366, 0
    %v3577 = vsel %vm579, %v3367, 0
    %v3580 = vsel %vm579, %v3368, 0
    %3582 = vmatpush.bf16.msra.mxu0 %v3249
    %3583 = vmatpush.bf16.msra.mxu0 %v3239
    %3584 = vmatpush.bf16.msra.mxu0 %v3229
    %3585 = vmatpush.bf16.msra.mxu0 %v3219
    %3586 = vmatpush.bf16.msra.mxu0 %v3209
    %3587 = vmatpush.bf16.msra.mxu0 %v3199
    %3588 = vmatpush.bf16.msra.mxu0 %v3189
    %3589 = vmatpush.bf16.msra.mxu0 %v3179
    %3590 = vmatmul.bf16.gmra.mxu0 %v830
    %v3591 = vpop.f32.mrf.mxu0
    %v3592 = vadd.f32 %v2227, %v3591
    %v3593 = vpop.f32.mrf.mxu0
    %v3594 = vadd.f32 %v2229, %v3593
    %3595 = vdwg.mxu0
    %3596 = vmatpush.bf16.msra.mxu0 %v3329
    %3597 = vmatpush.bf16.msra.mxu0 %v3319
    %3598 = vmatpush.bf16.msra.mxu0 %v3309
    %3599 = vmatpush.bf16.msra.mxu0 %v3299
    %3600 = vmatpush.bf16.msra.mxu0 %v3289
    %3601 = vmatpush.bf16.msra.mxu0 %v3279
    %3602 = vmatpush.bf16.msra.mxu0 %v3269
    %3603 = vmatpush.bf16.msra.mxu0 %v3259
    %3604 = vmatmul.bf16.gmra.mxu0 %v831
    %v3605 = vpop.f32.mrf.mxu0
    %v3606 = vadd.f32 %v3592, %v3605
    %v3607 = vpop.f32.mrf.mxu0
    %v3608 = vadd.f32 %v3594, %v3607
    %3609 = vdwg.mxu0
    %3610 = vmatpush.bf16.msra.mxu0 0
    %3611 = vmatpush.bf16.msra.mxu0 0
    %3612 = vmatpush.bf16.msra.mxu0 0
    %3613 = vmatpush.bf16.msra.mxu0 0
    %3614 = vmatpush.bf16.msra.mxu0 0
    %3615 = vmatpush.bf16.msra.mxu0 %v3553
    %3616 = vmatpush.bf16.msra.mxu0 %v3349
    %3617 = vmatpush.bf16.msra.mxu0 %v3339
    %3618 = vmatmul.bf16.gmra.mxu0 %v3550
    %v3619 = vpop.f32.mrf.mxu0
    %v3620 = vadd.f32 %v3606, %v3619
    %v3621 = vpop.f32.mrf.mxu0
    %v3622 = vadd.f32 %v3608, %v3621
    %3623 = vdwg.mxu0
    %3624 = vmatpush.bf16.msra.mxu0 %v3250
    %3625 = vmatpush.bf16.msra.mxu0 %v3240
    %3626 = vmatpush.bf16.msra.mxu0 %v3230
    %3627 = vmatpush.bf16.msra.mxu0 %v3220
    %3628 = vmatpush.bf16.msra.mxu0 %v3210
    %3629 = vmatpush.bf16.msra.mxu0 %v3200
    %3630 = vmatpush.bf16.msra.mxu0 %v3190
    %3631 = vmatpush.bf16.msra.mxu0 %v3180
    %3632 = vmatmul.bf16.gmra.mxu0 %v830
    %v3633 = vpop.f32.mrf.mxu0
    %v3634 = vadd.f32 %v2269, %v3633
    %v3635 = vpop.f32.mrf.mxu0
    %v3636 = vadd.f32 %v2271, %v3635
    %3637 = vdwg.mxu0
    %3638 = vmatpush.bf16.msra.mxu0 %v3330
    %3639 = vmatpush.bf16.msra.mxu0 %v3320
    %3640 = vmatpush.bf16.msra.mxu0 %v3310
    %3641 = vmatpush.bf16.msra.mxu0 %v3300
    %3642 = vmatpush.bf16.msra.mxu0 %v3290
    %3643 = vmatpush.bf16.msra.mxu0 %v3280
    %3644 = vmatpush.bf16.msra.mxu0 %v3270
    %3645 = vmatpush.bf16.msra.mxu0 %v3260
    %3646 = vmatmul.bf16.gmra.mxu0 %v831
    %v3647 = vpop.f32.mrf.mxu0
    %v3648 = vadd.f32 %v3634, %v3647
    %v3649 = vpop.f32.mrf.mxu0
    %v3650 = vadd.f32 %v3636, %v3649
    %3651 = vdwg.mxu0
    %3652 = vmatpush.bf16.msra.mxu0 0
    %3653 = vmatpush.bf16.msra.mxu0 0
    %3654 = vmatpush.bf16.msra.mxu0 0
    %3655 = vmatpush.bf16.msra.mxu0 0
    %3656 = vmatpush.bf16.msra.mxu0 0
    %3657 = vmatpush.bf16.msra.mxu0 %v3556
    %3658 = vmatpush.bf16.msra.mxu0 %v3350
    %3659 = vmatpush.bf16.msra.mxu0 %v3340
    %3660 = vmatmul.bf16.gmra.mxu0 %v3550
    %v3661 = vpop.f32.mrf.mxu0
    %v3662 = vadd.f32 %v3648, %v3661
    %v3663 = vpop.f32.mrf.mxu0
    %v3664 = vadd.f32 %v3650, %v3663
    %3665 = vdwg.mxu0
    %3666 = vmatpush.bf16.msra.mxu0 %v3251
    %3667 = vmatpush.bf16.msra.mxu0 %v3241
    %3668 = vmatpush.bf16.msra.mxu0 %v3231
    %3669 = vmatpush.bf16.msra.mxu0 %v3221
    %3670 = vmatpush.bf16.msra.mxu0 %v3211
    %3671 = vmatpush.bf16.msra.mxu0 %v3201
    %3672 = vmatpush.bf16.msra.mxu0 %v3191
    %3673 = vmatpush.bf16.msra.mxu0 %v3181
    %3674 = vmatmul.bf16.gmra.mxu0 %v830
    %v3675 = vpop.f32.mrf.mxu0
    %v3676 = vadd.f32 %v2311, %v3675
    %v3677 = vpop.f32.mrf.mxu0
    %v3678 = vadd.f32 %v2313, %v3677
    %3679 = vdwg.mxu0
    %3680 = vmatpush.bf16.msra.mxu0 %v3331
    %3681 = vmatpush.bf16.msra.mxu0 %v3321
    %3682 = vmatpush.bf16.msra.mxu0 %v3311
    %3683 = vmatpush.bf16.msra.mxu0 %v3301
    %3684 = vmatpush.bf16.msra.mxu0 %v3291
    %3685 = vmatpush.bf16.msra.mxu0 %v3281
    %3686 = vmatpush.bf16.msra.mxu0 %v3271
    %3687 = vmatpush.bf16.msra.mxu0 %v3261
    %3688 = vmatmul.bf16.gmra.mxu0 %v831
    %v3689 = vpop.f32.mrf.mxu0
    %v3690 = vadd.f32 %v3676, %v3689
    %v3691 = vpop.f32.mrf.mxu0
    %v3692 = vadd.f32 %v3678, %v3691
    %3693 = vdwg.mxu0
    %3694 = vmatpush.bf16.msra.mxu0 0
    %3695 = vmatpush.bf16.msra.mxu0 0
    %3696 = vmatpush.bf16.msra.mxu0 0
    %3697 = vmatpush.bf16.msra.mxu0 0
    %3698 = vmatpush.bf16.msra.mxu0 0
    %3699 = vmatpush.bf16.msra.mxu0 %v3559
    %3700 = vmatpush.bf16.msra.mxu0 %v3351
    %3701 = vmatpush.bf16.msra.mxu0 %v3341
    %3702 = vmatmul.bf16.gmra.mxu0 %v3550
    %v3703 = vpop.f32.mrf.mxu0
    %v3704 = vadd.f32 %v3690, %v3703
    %v3705 = vpop.f32.mrf.mxu0
    %v3706 = vadd.f32 %v3692, %v3705
    %3707 = vdwg.mxu0
    %3708 = vmatpush.bf16.msra.mxu0 %v3252
    %3709 = vmatpush.bf16.msra.mxu0 %v3242
    %3710 = vmatpush.bf16.msra.mxu0 %v3232
    %3711 = vmatpush.bf16.msra.mxu0 %v3222
    %3712 = vmatpush.bf16.msra.mxu0 %v3212
    %3713 = vmatpush.bf16.msra.mxu0 %v3202
    %3714 = vmatpush.bf16.msra.mxu0 %v3192
    %3715 = vmatpush.bf16.msra.mxu0 %v3182
    %3716 = vmatmul.bf16.gmra.mxu0 %v830
    %v3717 = vpop.f32.mrf.mxu0
    %v3718 = vadd.f32 %v2353, %v3717
    %v3719 = vpop.f32.mrf.mxu0
    %v3720 = vadd.f32 %v2355, %v3719
    %3721 = vdwg.mxu0
    %3722 = vmatpush.bf16.msra.mxu0 %v3332
    %3723 = vmatpush.bf16.msra.mxu0 %v3322
    %3724 = vmatpush.bf16.msra.mxu0 %v3312
    %3725 = vmatpush.bf16.msra.mxu0 %v3302
    %3726 = vmatpush.bf16.msra.mxu0 %v3292
    %3727 = vmatpush.bf16.msra.mxu0 %v3282
    %3728 = vmatpush.bf16.msra.mxu0 %v3272
    %3729 = vmatpush.bf16.msra.mxu0 %v3262
    %3730 = vmatmul.bf16.gmra.mxu0 %v831
    %v3731 = vpop.f32.mrf.mxu0
    %v3732 = vadd.f32 %v3718, %v3731
    %v3733 = vpop.f32.mrf.mxu0
    %v3734 = vadd.f32 %v3720, %v3733
    %3735 = vdwg.mxu0
    %3736 = vmatpush.bf16.msra.mxu0 0
    %3737 = vmatpush.bf16.msra.mxu0 0
    %3738 = vmatpush.bf16.msra.mxu0 0
    %3739 = vmatpush.bf16.msra.mxu0 0
    %3740 = vmatpush.bf16.msra.mxu0 0
    %3741 = vmatpush.bf16.msra.mxu0 %v3562
    %3742 = vmatpush.bf16.msra.mxu0 %v3352
    %3743 = vmatpush.bf16.msra.mxu0 %v3342
    %3744 = vmatmul.bf16.gmra.mxu0 %v3550
    %v3745 = vpop.f32.mrf.mxu0
    %v3746 = vadd.f32 %v3732, %v3745
    %v3747 = vpop.f32.mrf.mxu0
    %v3748 = vadd.f32 %v3734, %v3747
    %3749 = vdwg.mxu0
    %3750 = vmatpush.bf16.msra.mxu0 %v3253
    %3751 = vmatpush.bf16.msra.mxu0 %v3243
    %3752 = vmatpush.bf16.msra.mxu0 %v3233
    %3753 = vmatpush.bf16.msra.mxu0 %v3223
    %3754 = vmatpush.bf16.msra.mxu0 %v3213
    %3755 = vmatpush.bf16.msra.mxu0 %v3203
    %3756 = vmatpush.bf16.msra.mxu0 %v3193
    %3757 = vmatpush.bf16.msra.mxu0 %v3183
    %3758 = vmatmul.bf16.gmra.mxu0 %v830
    %v3759 = vpop.f32.mrf.mxu0
    %v3760 = vadd.f32 %v2395, %v3759
    %v3761 = vpop.f32.mrf.mxu0
    %v3762 = vadd.f32 %v2397, %v3761
    %3763 = vdwg.mxu0
    %3764 = vmatpush.bf16.msra.mxu0 %v3333
    %3765 = vmatpush.bf16.msra.mxu0 %v3323
    %3766 = vmatpush.bf16.msra.mxu0 %v3313
    %3767 = vmatpush.bf16.msra.mxu0 %v3303
    %3768 = vmatpush.bf16.msra.mxu0 %v3293
    %3769 = vmatpush.bf16.msra.mxu0 %v3283
    %3770 = vmatpush.bf16.msra.mxu0 %v3273
    %3771 = vmatpush.bf16.msra.mxu0 %v3263
    %3772 = vmatmul.bf16.gmra.mxu0 %v831
    %v3773 = vpop.f32.mrf.mxu0
    %v3774 = vadd.f32 %v3760, %v3773
    %v3775 = vpop.f32.mrf.mxu0
    %v3776 = vadd.f32 %v3762, %v3775
    %3777 = vdwg.mxu0
    %3778 = vmatpush.bf16.msra.mxu0 0
    %3779 = vmatpush.bf16.msra.mxu0 0
    %3780 = vmatpush.bf16.msra.mxu0 0
    %3781 = vmatpush.bf16.msra.mxu0 0
    %3782 = vmatpush.bf16.msra.mxu0 0
    %3783 = vmatpush.bf16.msra.mxu0 %v3565
    %3784 = vmatpush.bf16.msra.mxu0 %v3353
    %3785 = vmatpush.bf16.msra.mxu0 %v3343
    %3786 = vmatmul.bf16.gmra.mxu0 %v3550
    %v3787 = vpop.f32.mrf.mxu0
    %v3788 = vadd.f32 %v3774, %v3787
    %v3789 = vpop.f32.mrf.mxu0
    %v3790 = vadd.f32 %v3776, %v3789
    %3791 = vdwg.mxu0
    %3792 = vmatpush.bf16.msra.mxu0 %v3254
    %3793 = vmatpush.bf16.msra.mxu0 %v3244
    %3794 = vmatpush.bf16.msra.mxu0 %v3234
    %3795 = vmatpush.bf16.msra.mxu0 %v3224
    %3796 = vmatpush.bf16.msra.mxu0 %v3214
    %3797 = vmatpush.bf16.msra.mxu0 %v3204
    %3798 = vmatpush.bf16.msra.mxu0 %v3194
    %3799 = vmatpush.bf16.msra.mxu0 %v3184
    %3800 = vmatmul.bf16.gmra.mxu0 %v830
    %v3801 = vpop.f32.mrf.mxu0
    %v3802 = vadd.f32 %v2437, %v3801
    %v3803 = vpop.f32.mrf.mxu0
    %v3804 = vadd.f32 %v2439, %v3803
    %3805 = vdwg.mxu0
    %3806 = vmatpush.bf16.msra.mxu0 %v3334
    %3807 = vmatpush.bf16.msra.mxu0 %v3324
    %3808 = vmatpush.bf16.msra.mxu0 %v3314
    %3809 = vmatpush.bf16.msra.mxu0 %v3304
    %3810 = vmatpush.bf16.msra.mxu0 %v3294
    %3811 = vmatpush.bf16.msra.mxu0 %v3284
    %3812 = vmatpush.bf16.msra.mxu0 %v3274
    %3813 = vmatpush.bf16.msra.mxu0 %v3264
    %3814 = vmatmul.bf16.gmra.mxu0 %v831
    %v3815 = vpop.f32.mrf.mxu0
    %v3816 = vadd.f32 %v3802, %v3815
    %v3817 = vpop.f32.mrf.mxu0
    %v3818 = vadd.f32 %v3804, %v3817
    %3819 = vdwg.mxu0
    %3820 = vmatpush.bf16.msra.mxu0 0
    %3821 = vmatpush.bf16.msra.mxu0 0
    %3822 = vmatpush.bf16.msra.mxu0 0
    %3823 = vmatpush.bf16.msra.mxu0 0
    %3824 = vmatpush.bf16.msra.mxu0 0
    %3825 = vmatpush.bf16.msra.mxu0 %v3568
    %3826 = vmatpush.bf16.msra.mxu0 %v3354
    %3827 = vmatpush.bf16.msra.mxu0 %v3344
    %3828 = vmatmul.bf16.gmra.mxu0 %v3550
    %v3829 = vpop.f32.mrf.mxu0
    %v3830 = vadd.f32 %v3816, %v3829
    %v3831 = vpop.f32.mrf.mxu0
    %v3832 = vadd.f32 %v3818, %v3831
    %3833 = vdwg.mxu0
    %3834 = vmatpush.bf16.msra.mxu0 %v3255
    %3835 = vmatpush.bf16.msra.mxu0 %v3245
    %3836 = vmatpush.bf16.msra.mxu0 %v3235
    %3837 = vmatpush.bf16.msra.mxu0 %v3225
    %3838 = vmatpush.bf16.msra.mxu0 %v3215
    %3839 = vmatpush.bf16.msra.mxu0 %v3205
    %3840 = vmatpush.bf16.msra.mxu0 %v3195
    %3841 = vmatpush.bf16.msra.mxu0 %v3185
    %3842 = vmatmul.bf16.gmra.mxu0 %v830
    %v3843 = vpop.f32.mrf.mxu0
    %v3844 = vadd.f32 %v2479, %v3843
    %v3845 = vpop.f32.mrf.mxu0
    %v3846 = vadd.f32 %v2481, %v3845
    %3847 = vdwg.mxu0
    %3848 = vmatpush.bf16.msra.mxu0 %v3335
    %3849 = vmatpush.bf16.msra.mxu0 %v3325
    %3850 = vmatpush.bf16.msra.mxu0 %v3315
    %3851 = vmatpush.bf16.msra.mxu0 %v3305
    %3852 = vmatpush.bf16.msra.mxu0 %v3295
    %3853 = vmatpush.bf16.msra.mxu0 %v3285
    %3854 = vmatpush.bf16.msra.mxu0 %v3275
    %3855 = vmatpush.bf16.msra.mxu0 %v3265
    %3856 = vmatmul.bf16.gmra.mxu0 %v831
    %v3857 = vpop.f32.mrf.mxu0
    %v3858 = vadd.f32 %v3844, %v3857
    %v3859 = vpop.f32.mrf.mxu0
    %v3860 = vadd.f32 %v3846, %v3859
    %3861 = vdwg.mxu0
    %3862 = vmatpush.bf16.msra.mxu0 0
    %3863 = vmatpush.bf16.msra.mxu0 0
    %3864 = vmatpush.bf16.msra.mxu0 0
    %3865 = vmatpush.bf16.msra.mxu0 0
    %3866 = vmatpush.bf16.msra.mxu0 0
    %3867 = vmatpush.bf16.msra.mxu0 %v3571
    %3868 = vmatpush.bf16.msra.mxu0 %v3355
    %3869 = vmatpush.bf16.msra.mxu0 %v3345
    %3870 = vmatmul.bf16.gmra.mxu0 %v3550
    %v3871 = vpop.f32.mrf.mxu0
    %v3872 = vadd.f32 %v3858, %v3871
    %v3873 = vpop.f32.mrf.mxu0
    %v3874 = vadd.f32 %v3860, %v3873
    %3875 = vdwg.mxu0
    %3876 = vmatpush.bf16.msra.mxu0 %v3256
    %3877 = vmatpush.bf16.msra.mxu0 %v3246
    %3878 = vmatpush.bf16.msra.mxu0 %v3236
    %3879 = vmatpush.bf16.msra.mxu0 %v3226
    %3880 = vmatpush.bf16.msra.mxu0 %v3216
    %3881 = vmatpush.bf16.msra.mxu0 %v3206
    %3882 = vmatpush.bf16.msra.mxu0 %v3196
    %3883 = vmatpush.bf16.msra.mxu0 %v3186
    %3884 = vmatmul.bf16.gmra.mxu0 %v830
    %v3885 = vpop.f32.mrf.mxu0
    %v3886 = vadd.f32 %v2521, %v3885
    %v3887 = vpop.f32.mrf.mxu0
    %v3888 = vadd.f32 %v2523, %v3887
    %3889 = vdwg.mxu0
    %3890 = vmatpush.bf16.msra.mxu0 %v3336
    %3891 = vmatpush.bf16.msra.mxu0 %v3326
    %3892 = vmatpush.bf16.msra.mxu0 %v3316
    %3893 = vmatpush.bf16.msra.mxu0 %v3306
    %3894 = vmatpush.bf16.msra.mxu0 %v3296
    %3895 = vmatpush.bf16.msra.mxu0 %v3286
    %3896 = vmatpush.bf16.msra.mxu0 %v3276
    %3897 = vmatpush.bf16.msra.mxu0 %v3266
    %3898 = vmatmul.bf16.gmra.mxu0 %v831
    %v3899 = vpop.f32.mrf.mxu0
    %v3900 = vadd.f32 %v3886, %v3899
    %v3901 = vpop.f32.mrf.mxu0
    %v3902 = vadd.f32 %v3888, %v3901
    %3903 = vdwg.mxu0
    %3904 = vmatpush.bf16.msra.mxu0 0
    %3905 = vmatpush.bf16.msra.mxu0 0
    %3906 = vmatpush.bf16.msra.mxu0 0
    %3907 = vmatpush.bf16.msra.mxu0 0
    %3908 = vmatpush.bf16.msra.mxu0 0
    %3909 = vmatpush.bf16.msra.mxu0 %v3574
    %3910 = vmatpush.bf16.msra.mxu0 %v3356
    %3911 = vmatpush.bf16.msra.mxu0 %v3346
    %3912 = vmatmul.bf16.gmra.mxu0 %v3550
    %v3913 = vpop.f32.mrf.mxu0
    %v3914 = vadd.f32 %v3900, %v3913
    %v3915 = vpop.f32.mrf.mxu0
    %v3916 = vadd.f32 %v3902, %v3915
    %3917 = vdwg.mxu0
    %3918 = vmatpush.bf16.msra.mxu0 %v3257
    %3919 = vmatpush.bf16.msra.mxu0 %v3247
    %3920 = vmatpush.bf16.msra.mxu0 %v3237
    %3921 = vmatpush.bf16.msra.mxu0 %v3227
    %3922 = vmatpush.bf16.msra.mxu0 %v3217
    %3923 = vmatpush.bf16.msra.mxu0 %v3207
    %3924 = vmatpush.bf16.msra.mxu0 %v3197
    %3925 = vmatpush.bf16.msra.mxu0 %v3187
    %3926 = vmatmul.bf16.gmra.mxu0 %v830
    %v3927 = vpop.f32.mrf.mxu0
    %v3928 = vadd.f32 %v2563, %v3927
    %v3929 = vpop.f32.mrf.mxu0
    %v3930 = vadd.f32 %v2565, %v3929
    %3931 = vdwg.mxu0
    %3932 = vmatpush.bf16.msra.mxu0 %v3337
    %3933 = vmatpush.bf16.msra.mxu0 %v3327
    %3934 = vmatpush.bf16.msra.mxu0 %v3317
    %3935 = vmatpush.bf16.msra.mxu0 %v3307
    %3936 = vmatpush.bf16.msra.mxu0 %v3297
    %3937 = vmatpush.bf16.msra.mxu0 %v3287
    %3938 = vmatpush.bf16.msra.mxu0 %v3277
    %3939 = vmatpush.bf16.msra.mxu0 %v3267
    %3940 = vmatmul.bf16.gmra.mxu0 %v831
    %v3941 = vpop.f32.mrf.mxu0
    %v3942 = vadd.f32 %v3928, %v3941
    %v3943 = vpop.f32.mrf.mxu0
    %v3944 = vadd.f32 %v3930, %v3943
    %3945 = vdwg.mxu0
    %3946 = vmatpush.bf16.msra.mxu0 0
    %3947 = vmatpush.bf16.msra.mxu0 0
    %3948 = vmatpush.bf16.msra.mxu0 0
    %3949 = vmatpush.bf16.msra.mxu0 0
    %3950 = vmatpush.bf16.msra.mxu0 0
    %3951 = vmatpush.bf16.msra.mxu0 %v3577
    %3952 = vmatpush.bf16.msra.mxu0 %v3357
    %3953 = vmatpush.bf16.msra.mxu0 %v3347
    %3954 = vmatmul.bf16.gmra.mxu0 %v3550
    %v3955 = vpop.f32.mrf.mxu0
    %v3956 = vadd.f32 %v3942, %v3955
    %v3957 = vpop.f32.mrf.mxu0
    %v3958 = vadd.f32 %v3944, %v3957
    %3959 = vdwg.mxu0
    %3960 = vmatpush.bf16.msra.mxu0 %v3258
    %3961 = vmatpush.bf16.msra.mxu0 %v3248
    %3962 = vmatpush.bf16.msra.mxu0 %v3238
    %3963 = vmatpush.bf16.msra.mxu0 %v3228
    %3964 = vmatpush.bf16.msra.mxu0 %v3218
    %3965 = vmatpush.bf16.msra.mxu0 %v3208
    %3966 = vmatpush.bf16.msra.mxu0 %v3198
    %3967 = vmatpush.bf16.msra.mxu0 %v3188
    %3968 = vmatmul.bf16.gmra.mxu0 %v830
    %v3969 = vpop.f32.mrf.mxu0
    %v3970 = vadd.f32 %v2605, %v3969
    %v3971 = vpop.f32.mrf.mxu0
    %v3972 = vadd.f32 %v2607, %v3971
    %3973 = vdwg.mxu0
    %3974 = vmatpush.bf16.msra.mxu0 %v3338
    %3975 = vmatpush.bf16.msra.mxu0 %v3328
    %3976 = vmatpush.bf16.msra.mxu0 %v3318
    %3977 = vmatpush.bf16.msra.mxu0 %v3308
    %3978 = vmatpush.bf16.msra.mxu0 %v3298
    %3979 = vmatpush.bf16.msra.mxu0 %v3288
    %3980 = vmatpush.bf16.msra.mxu0 %v3278
    %3981 = vmatpush.bf16.msra.mxu0 %v3268
    %3982 = vmatmul.bf16.gmra.mxu0 %v831
    %v3983 = vpop.f32.mrf.mxu0
    %v3984 = vadd.f32 %v3970, %v3983
    %v3985 = vpop.f32.mrf.mxu0
    %v3986 = vadd.f32 %v3972, %v3985
    %3987 = vdwg.mxu0
    %3988 = vmatpush.bf16.msra.mxu0 0
    %3989 = vmatpush.bf16.msra.mxu0 0
    %3990 = vmatpush.bf16.msra.mxu0 0
    %3991 = vmatpush.bf16.msra.mxu0 0
    %3992 = vmatpush.bf16.msra.mxu0 0
    %3993 = vmatpush.bf16.msra.mxu0 %v3580
    %3994 = vmatpush.bf16.msra.mxu0 %v3358
    %3995 = vmatpush.bf16.msra.mxu0 %v3348
    %3996 = vmatmul.bf16.gmra.mxu0 %v3550
    %v3997 = vpop.f32.mrf.mxu0
    %v3998 = vadd.f32 %v3984, %v3997
    %v3999 = vpop.f32.mrf.mxu0
    %v4000 = vadd.f32 %v3986, %v3999
    %4001 = vdwg.mxu0
    %v4002 = vld [vmem:[#allocation16] sm:$0xff]
    %v4003 = vld [vmem:[#allocation16 + $0x8] sm:$0x3]
    %v4006 = vperm.slane %v4002, 0
    %v4007 = vperm.slane %v4002, 1
    %v4008 = vperm.slane %v4002, 2
    %v4009 = vperm.slane %v4002, 3
    %v4010 = vperm.slane %v4002, 4
    %v4011 = vperm.slane %v4002, 5
    %v4012 = vperm.slane %v4002, 6
    %v4013 = vperm.slane %v4002, 7
    %v4014 = vperm.slane %v4003, 0
    %v4015 = vperm.slane %v4003, 1
    %v4026 = vadd.f32 %v3620, %v4006
    %v4027 = vadd.f32 %v3662, %v4007
    %v4028 = vadd.f32 %v3704, %v4008
    %v4029 = vadd.f32 %v3746, %v4009
    %v4030 = vadd.f32 %v3788, %v4010
    %v4031 = vadd.f32 %v3830, %v4011
    %v4032 = vadd.f32 %v3872, %v4012
    %v4033 = vadd.f32 %v3914, %v4013
    %v4034 = vadd.f32 %v3956, %v4014
    %v4035 = vadd.f32 %v3998, %v4015
    %v4036 = vadd.f32 %v3622, %v4006
    %v4037 = vadd.f32 %v3664, %v4007
    %v4038 = vadd.f32 %v3706, %v4008
    %v4039 = vadd.f32 %v3748, %v4009
    %v4040 = vadd.f32 %v3790, %v4010
    %v4041 = vadd.f32 %v3832, %v4011
    %v4042 = vadd.f32 %v3874, %v4012
    %v4043 = vadd.f32 %v3916, %v4013
    %v4044 = vadd.f32 %v3958, %v4014
    %v4045 = vadd.f32 %v4000, %v4015
    %v4046 = vld [vmem:[#allocation7] sm:$0xff]
    %v4047 = vld [vmem:[#allocation7 + $0x8] sm:$0x3]
    %v4048 = vld [vmem:[#allocation7 + $0xa] sm:$0xff]
    %v4049 = vld [vmem:[#allocation7 + $0x12] sm:$0x3]
    %v4054 = vperm.slane %v4046, 0
    %v4055 = vperm.slane %v4046, 1
    %v4056 = vperm.slane %v4046, 2
    %v4057 = vperm.slane %v4046, 3
    %v4058 = vperm.slane %v4046, 4
    %v4059 = vperm.slane %v4046, 5
    %v4060 = vperm.slane %v4046, 6
    %v4061 = vperm.slane %v4046, 7
    %v4062 = vperm.slane %v4047, 0
    %v4063 = vperm.slane %v4047, 1
    %v4064 = vperm.slane %v4048, 0
    %v4065 = vperm.slane %v4048, 1
    %v4066 = vperm.slane %v4048, 2
    %v4067 = vperm.slane %v4048, 3
    %v4068 = vperm.slane %v4048, 4
    %v4069 = vperm.slane %v4048, 5
    %v4070 = vperm.slane %v4048, 6
    %v4071 = vperm.slane %v4048, 7
    %v4072 = vperm.slane %v4049, 0
    %v4073 = vperm.slane %v4049, 1
    %v4094 = vadd.f32 %v4026, %v4054
    %v4095 = vadd.f32 %v4027, %v4055
    %v4096 = vadd.f32 %v4028, %v4056
    %v4097 = vadd.f32 %v4029, %v4057
    %v4098 = vadd.f32 %v4030, %v4058
    %v4099 = vadd.f32 %v4031, %v4059
    %v4100 = vadd.f32 %v4032, %v4060
    %v4101 = vadd.f32 %v4033, %v4061
    %v4102 = vadd.f32 %v4034, %v4062
    %v4103 = vadd.f32 %v4035, %v4063
    %v4104 = vadd.f32 %v4036, %v4064
    %v4105 = vadd.f32 %v4037, %v4065
    %v4106 = vadd.f32 %v4038, %v4066
    %v4107 = vadd.f32 %v4039, %v4067
    %v4108 = vadd.f32 %v4040, %v4068
    %v4109 = vadd.f32 %v4041, %v4069
    %v4110 = vadd.f32 %v4042, %v4070
    %v4111 = vadd.f32 %v4043, %v4071
    %v4112 = vadd.f32 %v4044, %v4072
    %v4113 = vadd.f32 %v4045, %v4073
    %v4114 = vtanh.pop %v4094
    %v4115 = vtanh.pop %v4095
    %v4116 = vtanh.pop %v4096
    %v4117 = vtanh.pop %v4097
    %v4118 = vtanh.pop %v4098
    %v4119 = vtanh.pop %v4099
    %v4120 = vtanh.pop %v4100
    %v4121 = vtanh.pop %v4101
    %v4122 = vtanh.pop %v4102
    %v4123 = vtanh.pop %v4103
    %v4124 = vtanh.pop %v4104
    %v4125 = vtanh.pop %v4105
    %v4126 = vtanh.pop %v4106
    %v4127 = vtanh.pop %v4107
    %v4128 = vtanh.pop %v4108
    %v4129 = vtanh.pop %v4109
    %v4130 = vtanh.pop %v4110
    %v4131 = vtanh.pop %v4111
    %v4132 = vtanh.pop %v4112
    %v4133 = vtanh.pop %v4113
    %v4134 = vrot.slane %v4114, 4
    %v4135 = vmax.f32 %v4114, %v4134
    %v4136 = vrot.slane %v4135, 2
    %v4137 = vmax.f32 %v4135, %v4136
    %v4138 = vrot.slane %v4137, 1
    %v4139 = vmax.f32 %v4137, %v4138
    %v4140 = vrot.slane %v4115, 4
    %v4141 = vmax.f32 %v4115, %v4140
    %v4142 = vrot.slane %v4141, 2
    %v4143 = vmax.f32 %v4141, %v4142
    %v4144 = vrot.slane %v4143, 1
    %v4145 = vmax.f32 %v4143, %v4144
    %v4146 = vrot.slane %v4116, 4
    %v4147 = vmax.f32 %v4116, %v4146
    %v4148 = vrot.slane %v4147, 2
    %v4149 = vmax.f32 %v4147, %v4148
    %v4150 = vrot.slane %v4149, 1
    %v4151 = vmax.f32 %v4149, %v4150
    %v4152 = vrot.slane %v4117, 4
    %v4153 = vmax.f32 %v4117, %v4152
    %v4154 = vrot.slane %v4153, 2
    %v4155 = vmax.f32 %v4153, %v4154
    %v4156 = vrot.slane %v4155, 1
    %v4157 = vmax.f32 %v4155, %v4156
    %v4158 = vrot.slane %v4118, 4
    %v4159 = vmax.f32 %v4118, %v4158
    %v4160 = vrot.slane %v4159, 2
    %v4161 = vmax.f32 %v4159, %v4160
    %v4162 = vrot.slane %v4161, 1
    %v4163 = vmax.f32 %v4161, %v4162
    %v4164 = vrot.slane %v4119, 4
    %v4165 = vmax.f32 %v4119, %v4164
    %v4166 = vrot.slane %v4165, 2
    %v4167 = vmax.f32 %v4165, %v4166
    %v4168 = vrot.slane %v4167, 1
    %v4169 = vmax.f32 %v4167, %v4168
    %v4170 = vrot.slane %v4120, 4
    %v4171 = vmax.f32 %v4120, %v4170
    %v4172 = vrot.slane %v4171, 2
    %v4173 = vmax.f32 %v4171, %v4172
    %v4174 = vrot.slane %v4173, 1
    %v4175 = vmax.f32 %v4173, %v4174
    %v4176 = vrot.slane %v4121, 4
    %v4177 = vmax.f32 %v4121, %v4176
    %v4178 = vrot.slane %v4177, 2
    %v4179 = vmax.f32 %v4177, %v4178
    %v4180 = vrot.slane %v4179, 1
    %v4181 = vmax.f32 %v4179, %v4180
    %v4182 = vrot.slane %v4122, 4
    %v4183 = vmax.f32 %v4122, %v4182
    %v4184 = vrot.slane %v4183, 2
    %v4185 = vmax.f32 %v4183, %v4184
    %v4186 = vrot.slane %v4185, 1
    %v4187 = vmax.f32 %v4185, %v4186
    %vm4188 = vcmask 392192
    %v4189 = vsel %vm4188, %v4123, -inf
    %v4190 = vrot.slane %v4189, 4
    %v4191 = vmax.f32 %v4189, %v4190
    %v4192 = vrot.slane %v4191, 2
    %v4193 = vmax.f32 %v4191, %v4192
    %v4194 = vrot.slane %v4193, 1
    %v4195 = vmax.f32 %v4193, %v4194
    %v4196 = vrot.slane %v4124, 4
    %v4197 = vmax.f32 %v4124, %v4196
    %v4198 = vrot.slane %v4197, 2
    %v4199 = vmax.f32 %v4197, %v4198
    %v4200 = vrot.slane %v4199, 1
    %v4201 = vmax.f32 %v4199, %v4200
    %v4202 = vrot.slane %v4125, 4
    %v4203 = vmax.f32 %v4125, %v4202
    %v4204 = vrot.slane %v4203, 2
    %v4205 = vmax.f32 %v4203, %v4204
    %v4206 = vrot.slane %v4205, 1
    %v4207 = vmax.f32 %v4205, %v4206
    %v4208 = vrot.slane %v4126, 4
    %v4209 = vmax.f32 %v4126, %v4208
    %v4210 = vrot.slane %v4209, 2
    %v4211 = vmax.f32 %v4209, %v4210
    %v4212 = vrot.slane %v4211, 1
    %v4213 = vmax.f32 %v4211, %v4212
    %v4214 = vrot.slane %v4127, 4
    %v4215 = vmax.f32 %v4127, %v4214
    %v4216 = vrot.slane %v4215, 2
    %v4217 = vmax.f32 %v4215, %v4216
    %v4218 = vrot.slane %v4217, 1
    %v4219 = vmax.f32 %v4217, %v4218
    %v4220 = vrot.slane %v4128, 4
    %v4221 = vmax.f32 %v4128, %v4220
    %v4222 = vrot.slane %v4221, 2
    %v4223 = vmax.f32 %v4221, %v4222
    %v4224 = vrot.slane %v4223, 1
    %v4225 = vmax.f32 %v4223, %v4224
    %v4226 = vrot.slane %v4129, 4
    %v4227 = vmax.f32 %v4129, %v4226
    %v4228 = vrot.slane %v4227, 2
    %v4229 = vmax.f32 %v4227, %v4228
    %v4230 = vrot.slane %v4229, 1
    %v4231 = vmax.f32 %v4229, %v4230
    %v4232 = vrot.slane %v4130, 4
    %v4233 = vmax.f32 %v4130, %v4232
    %v4234 = vrot.slane %v4233, 2
    %v4235 = vmax.f32 %v4233, %v4234
    %v4236 = vrot.slane %v4235, 1
    %v4237 = vmax.f32 %v4235, %v4236
    %v4238 = vrot.slane %v4131, 4
    %v4239 = vmax.f32 %v4131, %v4238
    %v4240 = vrot.slane %v4239, 2
    %v4241 = vmax.f32 %v4239, %v4240
    %v4242 = vrot.slane %v4241, 1
    %v4243 = vmax.f32 %v4241, %v4242
    %v4244 = vrot.slane %v4132, 4
    %v4245 = vmax.f32 %v4132, %v4244
    %v4246 = vrot.slane %v4245, 2
    %v4247 = vmax.f32 %v4245, %v4246
    %v4248 = vrot.slane %v4247, 1
    %v4249 = vmax.f32 %v4247, %v4248
    %v4250 = vsel %vm4188, %v4133, -inf
    %v4251 = vrot.slane %v4250, 4
    %v4252 = vmax.f32 %v4250, %v4251
    %v4253 = vrot.slane %v4252, 2
    %v4254 = vmax.f32 %v4252, %v4253
    %v4255 = vrot.slane %v4254, 1
    %v4256 = vmax.f32 %v4254, %v4255
    %v4277 = vrot.slane %v4145, 6
    %v4278 = vrot.slane %v4151, 4
    %v4279 = vrot.slane %v4157, 2
    %v4280 = vrot.slane %v4169, 6
    %v4281 = vrot.slane %v4175, 4
    %v4282 = vrot.slane %v4181, 2
    %v4283 = vrot.slane %v4195, 6
    %v4284 = vrot.slane %v4207, 6
    %v4285 = vrot.slane %v4213, 4
    %v4286 = vrot.slane %v4219, 2
    %v4287 = vrot.slane %v4231, 6
    %v4288 = vrot.slane %v4237, 4
    %v4289 = vrot.slane %v4243, 2
    %v4290 = vrot.slane %v4256, 6
    %vm4291 = vcmask 1041408
    %v4292 = vsel %vm4291, %v4139, %v4277
    %vm4293 = vcmask 1045508
    %v4294 = vsel %vm4293, %v4278, %v4279
    %vm4295 = vcmask 1043456
    %v4296 = vsel %vm4295, %v4292, %v4294
    %v4297 = vsel %vm4291, %v4163, %v4280
    %v4298 = vsel %vm4293, %v4281, %v4282
    %v4299 = vsel %vm4295, %v4297, %v4298
    %v4300 = vsel %vm4291, %v4187, %v4283
    %v4301 = vsel %vm4291, %v4201, %v4284
    %v4302 = vsel %vm4293, %v4285, %v4286
    %v4303 = vsel %vm4295, %v4301, %v4302
    %v4304 = vsel %vm4291, %v4225, %v4287
    %v4305 = vsel %vm4293, %v4288, %v4289
    %v4306 = vsel %vm4295, %v4304, %v4305
    %v4307 = vsel %vm4291, %v4249, %v4290
    %vm4308 = vcmask 1044484
    %v4309 = vsel %vm4308, %v4296, %v4296
    %vm4310 = vcmask 1046534
    %v4311 = vsel %vm4310, %v4296, %v4309
    %v4312 = vrot.slane %v4303, 7
    %vm4313 = vcmask 1041409
    %v4314 = vsel %vm4313, %v4312, %v4311
    %vm4315 = vcmask 1043459
    %v4316 = vsel %vm4315, %v4312, %v4314
    %vm4317 = vcmask 1045509
    %v4318 = vsel %vm4317, %v4312, %v4316
    %vm4319 = vcmask 1047559
    %v4320 = vsel %vm4319, %v4312, %v4318
    %v4321 = vsel %vm4308, %v4299, %v4299
    %v4322 = vsel %vm4310, %v4299, %v4321
    %v4323 = vrot.slane %v4306, 7
    %v4324 = vsel %vm4313, %v4323, %v4322
    %v4325 = vsel %vm4315, %v4323, %v4324
    %v4326 = vsel %vm4317, %v4323, %v4325
    %v4327 = vsel %vm4319, %v4323, %v4326
    %v4328 = vsel %vm4308, %v4300, %v4300
    %v4329 = vsel %vm4310, %v4300, %v4328
    %v4330 = vrot.slane %v4307, 7
    %v4331 = vsel %vm4313, %v4330, %v4329
    %v4332 = vsel %vm4315, %v4330, %v4331
    %v4333 = vsel %vm4317, %v4330, %v4332
    %v4334 = vsel %vm4319, %v4330, %v4333
    %4338 = vst [vmem:[#allocation17] sm:$0xff] %v4320
    %4339 = vst [vmem:[#allocation17 + $0x8] sm:$0xff] %v4327
    %vm4340 = vcmask 388098
    %vm4341 = vmor %vm4340, %vm4291
    %4342 = vst.msk [vmem:[#allocation17 + $0x10] sm:$0xf] %vm4341, %v4334
    // Predicated region
    $region78: #{tpu_custom_call.1} parent=1 // pred_check
      _
    $region79: #{tpu_custom_call.1} parent=1 // pred_check_branch
      %4344 = sbr.rel (0) target = $region81
    $region80: #{tpu_custom_call.1} parent=1 // pred_region
      %4346 = vsyncadd [#allocation4], 0
      %s4348 = sshll.u32 [#allocation17], 4
      %s4349 = int_to_ptr.vmem [resolvable:$true] %s4348
      %s4350 = sshll.u32 %s10, 4
      %s4351 = int_to_ptr.hbm [resolvable:$true] %s4350
      %4353 = dma.vmem_to_hbm [thread:$0]  %s4349, 320, %s4351, [#allocation4]
    $region81: #{tpu_custom_call.1} parent=1 // pred_fallthru
      _
    // Predicated region
    $region82: #{tpu_custom_call.1} parent=1 // pred_check
      _
    $region83: #{tpu_custom_call.1} parent=1 // pred_check_branch
      %4355 = sbr.rel (0) target = $region85
    $region84: #{tpu_custom_call.1} parent=1 // pred_region
      %4357 = dma.done [#allocation4], 320
    $region85: #{tpu_custom_call.1} parent=1 // pred_fallthru
      _
    %4358 = vsyncpa [#allocation3], 1
    %4359 = vsyncpa [#allocation6], 1
    %4360 = vsyncpa [#allocation9], 1
    %4361 = vsyncpa [#allocation12], 1
    %4362 = vsyncpa [#allocation15], 1
    %4363 = vsyncpa [#allocation4], 1

// kernel: tpu_custom_call.1
$region0: #{tpu_custom_call.1}
  #allocation0 [shape = 'u32[]', space=smem, size = 0x4, offset = 0x4, fixed_abs, tag = 'smem constant byte address 0x4 - core index']
  #allocation1 [shape = 'u32[72,128]{1,0:T(1,128)}', space=vmem, size = 0x9000, scoped, tag = 'internal scratch']
  %s0 = inlined_call_operand.hbm [shape: bf16[16,300], index: 0, kind: input, shape index: {}]
  %s1 = inlined_call_operand.hbm [shape: bf16[16,300], index: 1, kind: input, shape index: {}]
  %s2 = inlined_call_operand.hbm [shape: f32[2,1,1200], index: 2, kind: input, shape index: {}]
  %s3 = inlined_call_operand.hbm [shape: bf16[300,300], index: 3, kind: input, shape index: {}]
  %s4 = inlined_call_operand.vmem [shape: f32[1,300], index: 4, kind: input, shape index: {}]
  %s5 = inlined_call_operand.hbm [shape: f32[1,300], index: 5, kind: input, shape index: {}]
  %s6 = inlined_call_operand.hbm [shape: f32[1,300], index: 6, kind: input, shape index: {}]
  %s7 = inlined_call_operand.hbm [shape: bf16[300,1200], index: 7, kind: input, shape index: {}]
  %s8 = inlined_call_operand.hbm [shape: bf16[300,1200], index: 8, kind: input, shape index: {}]
  %s9 = inlined_call_operand.hbm [shape: f32[1,1200], index: 9, kind: input, shape index: {}]
  %s10 = inlined_call_operand.hbm [shape: f32[2,1200], index: 10, kind: output, shape index: {}]
  %s11 = sld [smem:[#allocation0]]
  $region86: #{tpu_custom_call.1} parent=0
    _
  %s13 = ssub.s32 1, %s11
  %s14 = scalar_select 0, %s13, %s11
  $region1: #{tpu_custom_call.1} parent=0
    #allocation2 [shape = 'u8[12288]{0}', space=vmem, size = 0x3000, scoped, tag = 'input window, operand 0, single buffered']
    #allocation3 [shape = 's32[1]{0}', space=sflag, size = 0x4, scoped, tag = 'scoped memory for tpu_custom_call.1']
    #allocation4 [shape = 's32[1]{0}', space=sflag, size = 0x4, scoped, tag = 'scoped memory for tpu_custom_call.1']
    #allocation5 [shape = 'u8[12288]{0}', space=vmem, size = 0x3000, scoped, tag = 'input window, operand 1, single buffered']
    #allocation6 [shape = 's32[1]{0}', space=sflag, size = 0x4, scoped, tag = 'scoped memory for tpu_custom_call.1']
    #allocation7 [shape = 'u8[10240]{0}', space=vmem, size = 0x2800, scoped, tag = 'input window, operand 2, single buffered']
    #allocation8 [shape = 'u8[233472]{0}', space=vmem, size = 0x39000, scoped, tag = 'input window, operand 3, single buffered']
    #allocation9 [shape = 's32[1]{0}', space=sflag, size = 0x4, scoped, tag = 'scoped memory for tpu_custom_call.1']
    #allocation10 [shape = 'u8[1536]{0}', space=vmem, size = 0x800, scoped, tag = 'input window, operand 5, single buffered']
    #allocation11 [shape = 'u8[1536]{0}', space=vmem, size = 0x800, scoped, tag = 'input window, operand 6, single buffered']
    #allocation12 [shape = 's32[1]{0}', space=sflag, size = 0x4, scoped, tag = 'scoped memory for tpu_custom_call.1']
    #allocation13 [shape = 'u8[778240]{0}', space=vmem, size = 0xbe000, scoped, tag = 'input window, operand 7, single buffered']
    #allocation14 [shape = 'u8[778240]{0}', space=vmem, size = 0xbe000, scoped, tag = 'input window, operand 8, single buffered']
    #allocation15 [shape = 's32[1]{0}', space=sflag, size = 0x4, scoped, tag = 'scoped memory for tpu_custom_call.1']
    #allocation16 [shape = 'u8[5120]{0}', space=vmem, size = 0x1400, scoped, tag = 'input window, operand 9, single buffered']
    #allocation17 [shape = 'u8[10240]{0}', space=vmem, size = 0x2800, scoped, tag = 'output window, operand 0, single buffered']
    %15 = vsyncpa [#allocation3], 0
    %16 = vsyncpa [#allocation6], 0
    %17 = vsyncpa [#allocation9], 0
    %18 = vsyncpa [#allocation12], 0
    %19 = vsyncpa [#allocation15], 0
    %20 = vsyncpa [#allocation4], 0
    // Predicated region
    $region2: #{tpu_custom_call.1} parent=1 // pred_check
      _
    $region3: #{tpu_custom_call.1} parent=1 // pred_check_branch
      %22 = sbr.rel (0) target = $region5
    $region4: #{tpu_custom_call.1} parent=1 // pred_region
      %24 = vsyncadd [#allocation3], 0
      %s25 = sshll.u32 %s0, 4
      %s26 = int_to_ptr.hbm [resolvable:$true] %s25
      %s27 = sshll.u32 [#allocation2], 4
      %s28 = int_to_ptr.vmem [resolvable:$true] %s27
      %33 = dma.hbm_to_vmem [thread:$0]  %s26, 384, %s28, [#allocation3], 192, 192, 12
    $region5: #{tpu_custom_call.1} parent=1 // pred_fallthru
      _
    // Predicated region
    $region6: #{tpu_custom_call.1} parent=1 // pred_check
      _
    $region7: #{tpu_custom_call.1} parent=1 // pred_check_branch
      %35 = sbr.rel (0) target = $region9
    $region8: #{tpu_custom_call.1} parent=1 // pred_region
      %37 = vsyncadd [#allocation6], 0
      %s38 = sshll.u32 %s1, 4
      %s39 = int_to_ptr.hbm [resolvable:$true] %s38
      %s40 = sshll.u32 [#allocation5], 4
      %s41 = int_to_ptr.vmem [resolvable:$true] %s40
      %46 = dma.hbm_to_vmem [thread:$0]  %s39, 384, %s41, [#allocation6], 192, 192, 12
    $region9: #{tpu_custom_call.1} parent=1 // pred_fallthru
      _
    // Predicated region
    $region10: #{tpu_custom_call.1} parent=1 // pred_check
      _
    $region11: #{tpu_custom_call.1} parent=1 // pred_check_branch
      %48 = sbr.rel (0) target = $region13
    $region12: #{tpu_custom_call.1} parent=1 // pred_region
      %50 = vsyncadd [#allocation6], 0
      %s51 = sshll.u32 %s2, 4
      %s52 = int_to_ptr.hbm [resolvable:$true] %s51
      %s53 = sshll.u32 [#allocation7], 4
      %s54 = int_to_ptr.vmem [resolvable:$true] %s53
      %59 = dma.hbm_to_vmem [thread:$0]  %s52, 320, %s54, [#allocation6], 160, 160, 10
    $region13: #{tpu_custom_call.1} parent=1 // pred_fallthru
      _
    // Predicated region
    $region14: #{tpu_custom_call.1} parent=1 // pred_check
      _
    $region15: #{tpu_custom_call.1} parent=1 // pred_check_branch
      %61 = sbr.rel (0) target = $region17
    $region16: #{tpu_custom_call.1} parent=1 // pred_region
      %63 = vsyncadd [#allocation9], 0
      %s64 = sshll.u32 %s3, 4
      %s65 = int_to_ptr.hbm [resolvable:$true] %s64
      %s66 = sshll.u32 [#allocation8], 4
      %s67 = int_to_ptr.vmem [resolvable:$true] %s66
      %72 = dma.hbm_to_vmem [thread:$0]  %s65, 7296, %s67, [#allocation9], 192, 192, 12
    $region17: #{tpu_custom_call.1} parent=1 // pred_fallthru
      _
    // Predicated region
    $region18: #{tpu_custom_call.1} parent=1 // pred_check
      _
    $region19: #{tpu_custom_call.1} parent=1 // pred_check_branch
      %74 = sbr.rel (0) target = $region21
    $region20: #{tpu_custom_call.1} parent=1 // pred_region
      _
    $region21: #{tpu_custom_call.1} parent=1 // pred_fallthru
      _
    // Predicated region
    $region22: #{tpu_custom_call.1} parent=1 // pred_check
      _
    $region23: #{tpu_custom_call.1} parent=1 // pred_check_branch
      %76 = sbr.rel (0) target = $region25
    $region24: #{tpu_custom_call.1} parent=1 // pred_region
      %78 = vsyncadd [#allocation9], 0
      %s80 = sshll.u32 %s5, 4
      %s81 = int_to_ptr.hbm [resolvable:$true] %s80
      %s82 = sshll.u32 [#allocation10], 4
      %s83 = int_to_ptr.vmem [resolvable:$true] %s82
      %85 = dma.hbm_to_vmem [thread:$0]  %s81, 48, %s83, [#allocation9]
    $region25: #{tpu_custom_call.1} parent=1 // pred_fallthru
      _
    // Predicated region
    $region26: #{tpu_custom_call.1} parent=1 // pred_check
      _
    $region27: #{tpu_custom_call.1} parent=1 // pred_check_branch
      %87 = sbr.rel (0) target = $region29
    $region28: #{tpu_custom_call.1} parent=1 // pred_region
      %89 = vsyncadd [#allocation12], 0
      %s91 = sshll.u32 %s6, 4
      %s92 = int_to_ptr.hbm [resolvable:$true] %s91
      %s93 = sshll.u32 [#allocation11], 4
      %s94 = int_to_ptr.vmem [resolvable:$true] %s93
      %96 = dma.hbm_to_vmem [thread:$0]  %s92, 48, %s94, [#allocation12]
    $region29: #{tpu_custom_call.1} parent=1 // pred_fallthru
      _
    // Predicated region
    $region30: #{tpu_custom_call.1} parent=1 // pred_check
      _
    $region31: #{tpu_custom_call.1} parent=1 // pred_check_branch
      %98 = sbr.rel (0) target = $region33
    $region32: #{tpu_custom_call.1} parent=1 // pred_region
      %100 = vsyncadd [#allocation12], 0
      %s101 = sshll.u32 %s7, 4
      %s102 = int_to_ptr.hbm [resolvable:$true] %s101
      %s103 = sshll.u32 [#allocation13], 4
      %s104 = int_to_ptr.vmem [resolvable:$true] %s103
      %109 = dma.hbm_to_vmem [thread:$0]  %s102, 24320, %s104, [#allocation12], 640, 640, 40
    $region33: #{tpu_custom_call.1} parent=1 // pred_fallthru
      _
    // Predicated region
    $region34: #{tpu_custom_call.1} parent=1 // pred_check
      _
    $region35: #{tpu_custom_call.1} parent=1 // pred_check_branch
      %111 = sbr.rel (0) target = $region37
    $region36: #{tpu_custom_call.1} parent=1 // pred_region
      %113 = vsyncadd [#allocation15], 0
      %s114 = sshll.u32 %s8, 4
      %s115 = int_to_ptr.hbm [resolvable:$true] %s114
      %s116 = sshll.u32 [#allocation14], 4
      %s117 = int_to_ptr.vmem [resolvable:$true] %s116
      %122 = dma.hbm_to_vmem [thread:$0]  %s115, 24320, %s117, [#allocation15], 640, 640, 40
    $region37: #{tpu_custom_call.1} parent=1 // pred_fallthru
      _
    // Predicated region
    $region38: #{tpu_custom_call.1} parent=1 // pred_check
      _
    $region39: #{tpu_custom_call.1} parent=1 // pred_check_branch
      %124 = sbr.rel (0) target = $region41
    $region40: #{tpu_custom_call.1} parent=1 // pred_region
      %126 = vsyncadd [#allocation15], 0
      %s128 = sshll.u32 %s9, 4
      %s129 = int_to_ptr.hbm [resolvable:$true] %s128
      %s130 = sshll.u32 [#allocation16], 4
      %s131 = int_to_ptr.vmem [resolvable:$true] %s130
      %133 = dma.hbm_to_vmem [thread:$0]  %s129, 160, %s131, [#allocation15]
    $region41: #{tpu_custom_call.1} parent=1 // pred_fallthru
      _
    // Predicated region
    $region42: #{tpu_custom_call.1} parent=1 // pred_check
      _
    $region43: #{tpu_custom_call.1} parent=1 // pred_check_branch
      %135 = sbr.rel (0) target = $region45
    $region44: #{tpu_custom_call.1} parent=1 // pred_region
      %137 = dma.done [#allocation3], 384
    $region45: #{tpu_custom_call.1} parent=1 // pred_fallthru
      _
    // Predicated region
    $region46: #{tpu_custom_call.1} parent=1 // pred_check
      _
    $region47: #{tpu_custom_call.1} parent=1 // pred_check_branch
      %139 = sbr.rel (0) target = $region49
    $region48: #{tpu_custom_call.1} parent=1 // pred_region
      %141 = dma.done [#allocation6], 384
    $region49: #{tpu_custom_call.1} parent=1 // pred_fallthru
      _
    // Predicated region
    $region50: #{tpu_custom_call.1} parent=1 // pred_check
      _
    $region51: #{tpu_custom_call.1} parent=1 // pred_check_branch
      %143 = sbr.rel (0) target = $region53
    $region52: #{tpu_custom_call.1} parent=1 // pred_region
      %145 = dma.done [#allocation6], 320
    $region53: #{tpu_custom_call.1} parent=1 // pred_fallthru
      _
    // Predicated region
    $region54: #{tpu_custom_call.1} parent=1 // pred_check
      _
    $region55: #{tpu_custom_call.1} parent=1 // pred_check_branch
      %147 = sbr.rel (0) target = $region57
    $region56: #{tpu_custom_call.1} parent=1 // pred_region
      %149 = dma.done [#allocation9], 7296
    $region57: #{tpu_custom_call.1} parent=1 // pred_fallthru
      _
    // Predicated region
    $region58: #{tpu_custom_call.1} parent=1 // pred_check
      _
    $region59: #{tpu_custom_call.1} parent=1 // pred_check_branch
      %151 = sbr.rel (0) target = $region61
    $region60: #{tpu_custom_call.1} parent=1 // pred_region
      %153 = dma.done [#allocation9], 48
    $region61: #{tpu_custom_call.1} parent=1 // pred_fallthru
      _
    // Predicated region
    $region62: #{tpu_custom_call.1} parent=1 // pred_check
      _
    $region63: #{tpu_custom_call.1} parent=1 // pred_check_branch
      %155 = sbr.rel (0) target = $region65
    $region64: #{tpu_custom_call.1} parent=1 // pred_region
      %157 = dma.done [#allocation12], 48
    $region65: #{tpu_custom_call.1} parent=1 // pred_fallthru
      _
    // Predicated region
    $region66: #{tpu_custom_call.1} parent=1 // pred_check
      _
    $region67: #{tpu_custom_call.1} parent=1 // pred_check_branch
      %159 = sbr.rel (0) target = $region69
    $region68: #{tpu_custom_call.1} parent=1 // pred_region
      %161 = dma.done [#allocation12], 24320
    $region69: #{tpu_custom_call.1} parent=1 // pred_fallthru
      _
    // Predicated region
    $region70: #{tpu_custom_call.1} parent=1 // pred_check
      _
    $region71: #{tpu_custom_call.1} parent=1 // pred_check_branch
      %163 = sbr.rel (0) target = $region73
    $region72: #{tpu_custom_call.1} parent=1 // pred_region
      %165 = dma.done [#allocation15], 24320
    $region73: #{tpu_custom_call.1} parent=1 // pred_fallthru
      _
    // Predicated region
    $region74: #{tpu_custom_call.1} parent=1 // pred_check
      _
    $region75: #{tpu_custom_call.1} parent=1 // pred_check_branch
      %167 = sbr.rel (0) target = $region77
    $region76: #{tpu_custom_call.1} parent=1 // pred_region
      %169 = dma.done [#allocation15], 160
    $region77: #{tpu_custom_call.1} parent=1 // pred_fallthru
      _
    %v171 = vld [vmem:[#allocation2] sm:$0xff]
    %v172 = vld [vmem:[#allocation2 + $0x8] sm:$0xf]
    %v173 = vld [vmem:[#allocation2 + $0xc] sm:$0xff]
    %v174 = vld [vmem:[#allocation2 + $0x14] sm:$0xf]
    %v175 = vld [vmem:[#allocation8] sm:$0xff]
    %v176 = vld [vmem:[#allocation8 + $0x8] sm:$0xf]
    %v177 = vld [vmem:[#allocation8 + $0xc] sm:$0xff]
    %v178 = vld [vmem:[#allocation8 + $0x14] sm:$0xf]
    %v179 = vld [vmem:[#allocation8 + $0x18] sm:$0xff]
    %v180 = vld [vmem:[#allocation8 + $0x20] sm:$0xf]
    %v181 = vld [vmem:[#allocation8 + $0x24] sm:$0xff]
    %v182 = vld [vmem:[#allocation8 + $0x2c] sm:$0xf]
    %v183 = vld [vmem:[#allocation8 + $0x30] sm:$0xff]
    %v184 = vld [vmem:[#allocation8 + $0x38] sm:$0xf]
    %v185 = vld [vmem:[#allocation8 + $0x3c] sm:$0xff]
    %v186 = vld [vmem:[#allocation8 + $0x44] sm:$0xf]
    %v187 = vld [vmem:[#allocation8 + $0x48] sm:$0xff]
    %v188 = vld [vmem:[#allocation8 + $0x50] sm:$0xf]
    %v189 = vld [vmem:[#allocation8 + $0x54] sm:$0xff]
    %v190 = vld [vmem:[#allocation8 + $0x5c] sm:$0xf]
    %v191 = vld [vmem:[#allocation8 + $0x60] sm:$0xff]
    %v192 = vld [vmem:[#allocation8 + $0x68] sm:$0xf]
    %v193 = vld [vmem:[#allocation8 + $0x6c] sm:$0xff]
    %v194 = vld [vmem:[#allocation8 + $0x74] sm:$0xf]
    %v195 = vld [vmem:[#allocation8 + $0x78] sm:$0xff]
    %v196 = vld [vmem:[#allocation8 + $0x80] sm:$0xf]
    %v197 = vld [vmem:[#allocation8 + $0x84] sm:$0xff]
    %v198 = vld [vmem:[#allocation8 + $0x8c] sm:$0xf]
    %v199 = vld [vmem:[#allocation8 + $0x90] sm:$0xff]
    %v200 = vld [vmem:[#allocation8 + $0x98] sm:$0xf]
    %v201 = vld [vmem:[#allocation8 + $0x9c] sm:$0xff]
    %v202 = vld [vmem:[#allocation8 + $0xa4] sm:$0xf]
    %v203 = vld [vmem:[#allocation8 + $0xa8] sm:$0xff]
    %v204 = vld [vmem:[#allocation8 + $0xb0] sm:$0xf]
    %v205 = vld [vmem:[#allocation8 + $0xb4] sm:$0xff]
    %v206 = vld [vmem:[#allocation8 + $0xbc] sm:$0xf]
    %v207 = vld [vmem:[#allocation8 + $0xc0] sm:$0xff]
    %v208 = vld [vmem:[#allocation8 + $0xc8] sm:$0xf]
    %v209 = vld [vmem:[#allocation8 + $0xcc] sm:$0xff]
    %v210 = vld [vmem:[#allocation8 + $0xd4] sm:$0xf]
    %v211 = vld [vmem:[#allocation8 + $0xd8] sm:$0xff]
    %v212 = vld [vmem:[#allocation8 + $0xe0] sm:$0xf]
    %v213 = vld [vmem:[#allocation8 + $0xe4] sm:$0xff]
    %v214 = vld [vmem:[#allocation8 + $0xec] sm:$0xf]
    %v215 = vld [vmem:[#allocation8 + $0xf0] sm:$0xff]
    %v216 = vld [vmem:[#allocation8 + $0xf8] sm:$0xf]
    %v217 = vld [vmem:[#allocation8 + $0xfc] sm:$0xff]
    %v218 = vld [vmem:[#allocation8 + $0x104] sm:$0xf]
    %v219 = vld [vmem:[#allocation8 + $0x108] sm:$0xff]
    %v220 = vld [vmem:[#allocation8 + $0x110] sm:$0xf]
    %v221 = vld [vmem:[#allocation8 + $0x114] sm:$0xff]
    %v222 = vld [vmem:[#allocation8 + $0x11c] sm:$0xf]
    %v223 = vld [vmem:[#allocation8 + $0x120] sm:$0xff]
    %v224 = vld [vmem:[#allocation8 + $0x128] sm:$0xf]
    %v225 = vld [vmem:[#allocation8 + $0x12c] sm:$0xff]
    %v226 = vld [vmem:[#allocation8 + $0x134] sm:$0xf]
    %v227 = vld [vmem:[#allocation8 + $0x138] sm:$0xff]
    %v228 = vld [vmem:[#allocation8 + $0x140] sm:$0xf]
    %v229 = vld [vmem:[#allocation8 + $0x144] sm:$0xff]
    %v230 = vld [vmem:[#allocation8 + $0x14c] sm:$0xf]
    %v231 = vld [vmem:[#allocation8 + $0x150] sm:$0xff]
    %v232 = vld [vmem:[#allocation8 + $0x158] sm:$0xf]
    %v233 = vld [vmem:[#allocation8 + $0x15c] sm:$0xff]
    %v234 = vld [vmem:[#allocation8 + $0x164] sm:$0xf]
    %v235 = vld [vmem:[#allocation8 + $0x168] sm:$0xff]
    %v236 = vld [vmem:[#allocation8 + $0x170] sm:$0xf]
    %v237 = vld [vmem:[#allocation8 + $0x174] sm:$0xff]
    %v238 = vld [vmem:[#allocation8 + $0x17c] sm:$0xf]
    %v239 = vld [vmem:[#allocation8 + $0x180] sm:$0xff]
    %v240 = vld [vmem:[#allocation8 + $0x188] sm:$0xf]
    %v241 = vld [vmem:[#allocation8 + $0x18c] sm:$0xff]
    %v242 = vld [vmem:[#allocation8 + $0x194] sm:$0xf]
    %v243 = vld [vmem:[#allocation8 + $0x198] sm:$0xff]
    %v244 = vld [vmem:[#allocation8 + $0x1a0] sm:$0xf]
    %v245 = vld [vmem:[#allocation8 + $0x1a4] sm:$0xff]
    %v246 = vld [vmem:[#allocation8 + $0x1ac] sm:$0xf]
    %v247 = vld [vmem:[#allocation8 + $0x1b0] sm:$0xff]
    %v248 = vld [vmem:[#allocation8 + $0x1b8] sm:$0xf]
    %v249 = vld [vmem:[#allocation8 + $0x1bc] sm:$0x33]
    %v250 = vld [vmem:[#allocation8 + $0x1c4] sm:$0x3]
    %v251 = vld [vmem:[%s4] sm:$0x7]
    %v253 = vperm.slane %v251, 0
    %v254 = vperm.slane %v251, 1
    %v255 = vperm.slane %v251, 2
    %v263 = vunpack.c.l.b16 %v171
    %v264 = vunpack.c.h.b16 %v171
    %v265 = vunpack.c.l.b16 %v172
    %v266 = vunpack.c.l.b16 %v173
    %v267 = vunpack.c.h.b16 %v173
    %v268 = vunpack.c.l.b16 %v174
    %v269 = vpack.c.b16 %v266, %v263
    %v270 = vpack.c.b16 %v267, %v264
    %v271 = vpack.c.b16 %v268, %v265
    %v350 = vunpack.c.l.b16 %v175
    %v351 = vunpack.c.h.b16 %v175
    %v352 = vunpack.c.l.b16 %v176
    %v353 = vunpack.c.l.b16 %v177
    %v354 = vunpack.c.h.b16 %v177
    %v355 = vunpack.c.l.b16 %v178
    %v356 = vunpack.c.l.b16 %v179
    %v357 = vunpack.c.h.b16 %v179
    %v358 = vunpack.c.l.b16 %v180
    %v359 = vunpack.c.l.b16 %v181
    %v360 = vunpack.c.h.b16 %v181
    %v361 = vunpack.c.l.b16 %v182
    %v362 = vunpack.c.l.b16 %v183
    %v363 = vunpack.c.h.b16 %v183
    %v364 = vunpack.c.l.b16 %v184
    %v365 = vunpack.c.l.b16 %v185
    %v366 = vunpack.c.h.b16 %v185
    %v367 = vunpack.c.l.b16 %v186
    %v368 = vunpack.c.l.b16 %v187
    %v369 = vunpack.c.h.b16 %v187
    %v370 = vunpack.c.l.b16 %v188
    %v371 = vunpack.c.l.b16 %v189
    %v372 = vunpack.c.h.b16 %v189
    %v373 = vunpack.c.l.b16 %v190
    %v374 = vunpack.c.l.b16 %v191
    %v375 = vunpack.c.h.b16 %v191
    %v376 = vunpack.c.l.b16 %v192
    %v377 = vunpack.c.l.b16 %v193
    %v378 = vunpack.c.h.b16 %v193
    %v379 = vunpack.c.l.b16 %v194
    %v380 = vunpack.c.l.b16 %v195
    %v381 = vunpack.c.h.b16 %v195
    %v382 = vunpack.c.l.b16 %v196
    %v383 = vunpack.c.l.b16 %v197
    %v384 = vunpack.c.h.b16 %v197
    %v385 = vunpack.c.l.b16 %v198
    %v386 = vunpack.c.l.b16 %v199
    %v387 = vunpack.c.h.b16 %v199
    %v388 = vunpack.c.l.b16 %v200
    %v389 = vunpack.c.l.b16 %v201
    %v390 = vunpack.c.h.b16 %v201
    %v391 = vunpack.c.l.b16 %v202
    %v392 = vunpack.c.l.b16 %v203
    %v393 = vunpack.c.h.b16 %v203
    %v394 = vunpack.c.l.b16 %v204
    %v395 = vunpack.c.l.b16 %v205
    %v396 = vunpack.c.h.b16 %v205
    %v397 = vunpack.c.l.b16 %v206
    %v398 = vunpack.c.l.b16 %v207
    %v399 = vunpack.c.h.b16 %v207
    %v400 = vunpack.c.l.b16 %v208
    %v401 = vunpack.c.l.b16 %v209
    %v402 = vunpack.c.h.b16 %v209
    %v403 = vunpack.c.l.b16 %v210
    %v404 = vunpack.c.l.b16 %v211
    %v405 = vunpack.c.h.b16 %v211
    %v406 = vunpack.c.l.b16 %v212
    %v407 = vunpack.c.l.b16 %v213
    %v408 = vunpack.c.h.b16 %v213
    %v409 = vunpack.c.l.b16 %v214
    %v410 = vunpack.c.l.b16 %v215
    %v411 = vunpack.c.h.b16 %v215
    %v412 = vunpack.c.l.b16 %v216
    %v413 = vunpack.c.l.b16 %v217
    %v414 = vunpack.c.h.b16 %v217
    %v415 = vunpack.c.l.b16 %v218
    %v416 = vunpack.c.l.b16 %v219
    %v417 = vunpack.c.h.b16 %v219
    %v418 = vunpack.c.l.b16 %v220
    %v419 = vunpack.c.l.b16 %v221
    %v420 = vunpack.c.h.b16 %v221
    %v421 = vunpack.c.l.b16 %v222
    %v422 = vunpack.c.l.b16 %v223
    %v423 = vunpack.c.h.b16 %v223
    %v424 = vunpack.c.l.b16 %v224
    %v425 = vunpack.c.l.b16 %v225
    %v426 = vunpack.c.h.b16 %v225
    %v427 = vunpack.c.l.b16 %v226
    %v428 = vunpack.c.l.b16 %v227
    %v429 = vunpack.c.h.b16 %v227
    %v430 = vunpack.c.l.b16 %v228
    %v431 = vunpack.c.l.b16 %v229
    %v432 = vunpack.c.h.b16 %v229
    %v433 = vunpack.c.l.b16 %v230
    %v434 = vunpack.c.l.b16 %v231
    %v435 = vunpack.c.h.b16 %v231
    %v436 = vunpack.c.l.b16 %v232
    %v437 = vunpack.c.l.b16 %v233
    %v438 = vunpack.c.h.b16 %v233
    %v439 = vunpack.c.l.b16 %v234
    %v440 = vunpack.c.l.b16 %v235
    %v441 = vunpack.c.h.b16 %v235
    %v442 = vunpack.c.l.b16 %v236
    %v443 = vunpack.c.l.b16 %v237
    %v444 = vunpack.c.h.b16 %v237
    %v445 = vunpack.c.l.b16 %v238
    %v446 = vunpack.c.l.b16 %v239
    %v447 = vunpack.c.h.b16 %v239
    %v448 = vunpack.c.l.b16 %v240
    %v449 = vunpack.c.l.b16 %v241
    %v450 = vunpack.c.h.b16 %v241
    %v451 = vunpack.c.l.b16 %v242
    %v452 = vunpack.c.l.b16 %v243
    %v453 = vunpack.c.h.b16 %v243
    %v454 = vunpack.c.l.b16 %v244
    %v455 = vunpack.c.l.b16 %v245
    %v456 = vunpack.c.h.b16 %v245
    %v457 = vunpack.c.l.b16 %v246
    %v458 = vunpack.c.l.b16 %v247
    %v459 = vunpack.c.h.b16 %v247
    %v460 = vunpack.c.l.b16 %v248
    %v461 = vunpack.c.l.b16 %v249
    %v462 = vunpack.c.h.b16 %v249
    %v463 = vunpack.c.l.b16 %v250
    %v464 = vpack.c.b16 %v353, %v350
    %v465 = vpack.c.b16 %v354, %v351
    %v466 = vpack.c.b16 %v355, %v352
    %v467 = vpack.c.b16 %v359, %v356
    %v468 = vpack.c.b16 %v360, %v357
    %v469 = vpack.c.b16 %v361, %v358
    %v470 = vpack.c.b16 %v365, %v362
    %v471 = vpack.c.b16 %v366, %v363
    %v472 = vpack.c.b16 %v367, %v364
    %v473 = vpack.c.b16 %v371, %v368
    %v474 = vpack.c.b16 %v372, %v369
    %v475 = vpack.c.b16 %v373, %v370
    %v476 = vpack.c.b16 %v377, %v374
    %v477 = vpack.c.b16 %v378, %v375
    %v478 = vpack.c.b16 %v379, %v376
    %v479 = vpack.c.b16 %v383, %v380
    %v480 = vpack.c.b16 %v384, %v381
    %v481 = vpack.c.b16 %v385, %v382
    %v482 = vpack.c.b16 %v389, %v386
    %v483 = vpack.c.b16 %v390, %v387
    %v484 = vpack.c.b16 %v391, %v388
    %v485 = vpack.c.b16 %v395, %v392
    %v486 = vpack.c.b16 %v396, %v393
    %v487 = vpack.c.b16 %v397, %v394
    %v488 = vpack.c.b16 %v401, %v398
    %v489 = vpack.c.b16 %v402, %v399
    %v490 = vpack.c.b16 %v403, %v400
    %v491 = vpack.c.b16 %v407, %v404
    %v492 = vpack.c.b16 %v408, %v405
    %v493 = vpack.c.b16 %v409, %v406
    %v494 = vpack.c.b16 %v413, %v410
    %v495 = vpack.c.b16 %v414, %v411
    %v496 = vpack.c.b16 %v415, %v412
    %v497 = vpack.c.b16 %v419, %v416
    %v498 = vpack.c.b16 %v420, %v417
    %v499 = vpack.c.b16 %v421, %v418
    %v500 = vpack.c.b16 %v425, %v422
    %v501 = vpack.c.b16 %v426, %v423
    %v502 = vpack.c.b16 %v427, %v424
    %v503 = vpack.c.b16 %v431, %v428
    %v504 = vpack.c.b16 %v432, %v429
    %v505 = vpack.c.b16 %v433, %v430
    %v506 = vpack.c.b16 %v437, %v434
    %v507 = vpack.c.b16 %v438, %v435
    %v508 = vpack.c.b16 %v439, %v436
    %v509 = vpack.c.b16 %v443, %v440
    %v510 = vpack.c.b16 %v444, %v441
    %v511 = vpack.c.b16 %v445, %v442
    %v512 = vpack.c.b16 %v449, %v446
    %v513 = vpack.c.b16 %v450, %v447
    %v514 = vpack.c.b16 %v451, %v448
    %v515 = vpack.c.b16 %v455, %v452
    %v516 = vpack.c.b16 %v456, %v453
    %v517 = vpack.c.b16 %v457, %v454
    %v518 = vpack.c.b16 %v461, %v458
    %v519 = vpack.c.b16 %v462, %v459
    %v520 = vpack.c.b16 %v463, %v460
    %vm575 = vcmask 359424
    %v577 = vsel %vm575, %v271, 0
    %vm579 = vcmask 1045504
    %v581 = vsel %vm579, %v518, 0
    %v584 = vsel %vm579, %v519, 0
    %v587 = vsel %vm579, %v520, 0
    %589 = vmatpush.bf16.msra.mxu0 %v485
    %590 = vmatpush.bf16.msra.mxu0 %v482
    %591 = vmatpush.bf16.msra.mxu0 %v479
    %592 = vmatpush.bf16.msra.mxu0 %v476
    %593 = vmatpush.bf16.msra.mxu0 %v473
    %594 = vmatpush.bf16.msra.mxu0 %v470
    %595 = vmatpush.bf16.msra.mxu0 %v467
    %596 = vmatpush.bf16.msra.mxu0 %v464
    %597 = vmatmul.bf16.gmra.mxu0 %v269
    %v598 = vpop.f32.mrf.mxu0
    %v599 = vadd.f32 %v253, %v598
    %v600 = vpop.f32.mrf.mxu0
    %v601 = vadd.f32 %v253, %v600
    %602 = vdwg.mxu0
    %603 = vmatpush.bf16.msra.mxu0 %v509
    %604 = vmatpush.bf16.msra.mxu0 %v506
    %605 = vmatpush.bf16.msra.mxu0 %v503
    %606 = vmatpush.bf16.msra.mxu0 %v500
    %607 = vmatpush.bf16.msra.mxu0 %v497
    %608 = vmatpush.bf16.msra.mxu0 %v494
    %609 = vmatpush.bf16.msra.mxu0 %v491
    %610 = vmatpush.bf16.msra.mxu0 %v488
    %611 = vmatmul.bf16.gmra.mxu0 %v270
    %v612 = vpop.f32.mrf.mxu0
    %v613 = vadd.f32 %v599, %v612
    %v614 = vpop.f32.mrf.mxu0
    %v615 = vadd.f32 %v601, %v614
    %616 = vdwg.mxu0
    %617 = vmatpush.bf16.msra.mxu0 0
    %618 = vmatpush.bf16.msra.mxu0 0
    %619 = vmatpush.bf16.msra.mxu0 0
    %620 = vmatpush.bf16.msra.mxu0 0
    %621 = vmatpush.bf16.msra.mxu0 0
    %622 = vmatpush.bf16.msra.mxu0 %v581
    %623 = vmatpush.bf16.msra.mxu0 %v515
    %624 = vmatpush.bf16.msra.mxu0 %v512
    %625 = vmatmul.bf16.gmra.mxu0 %v577
    %v626 = vpop.f32.mrf.mxu0
    %v627 = vadd.f32 %v613, %v626
    %v628 = vpop.f32.mrf.mxu0
    %v629 = vadd.f32 %v615, %v628
    %630 = vdwg.mxu0
    %631 = vmatpush.bf16.msra.mxu0 %v486
    %632 = vmatpush.bf16.msra.mxu0 %v483
    %633 = vmatpush.bf16.msra.mxu0 %v480
    %634 = vmatpush.bf16.msra.mxu0 %v477
    %635 = vmatpush.bf16.msra.mxu0 %v474
    %636 = vmatpush.bf16.msra.mxu0 %v471
    %637 = vmatpush.bf16.msra.mxu0 %v468
    %638 = vmatpush.bf16.msra.mxu0 %v465
    %639 = vmatmul.bf16.gmra.mxu0 %v269
    %v640 = vpop.f32.mrf.mxu0
    %v641 = vadd.f32 %v254, %v640
    %v642 = vpop.f32.mrf.mxu0
    %v643 = vadd.f32 %v254, %v642
    %644 = vdwg.mxu0
    %645 = vmatpush.bf16.msra.mxu0 %v510
    %646 = vmatpush.bf16.msra.mxu0 %v507
    %647 = vmatpush.bf16.msra.mxu0 %v504
    %648 = vmatpush.bf16.msra.mxu0 %v501
    %649 = vmatpush.bf16.msra.mxu0 %v498
    %650 = vmatpush.bf16.msra.mxu0 %v495
    %651 = vmatpush.bf16.msra.mxu0 %v492
    %652 = vmatpush.bf16.msra.mxu0 %v489
    %653 = vmatmul.bf16.gmra.mxu0 %v270
    %v654 = vpop.f32.mrf.mxu0
    %v655 = vadd.f32 %v641, %v654
    %v656 = vpop.f32.mrf.mxu0
    %v657 = vadd.f32 %v643, %v656
    %658 = vdwg.mxu0
    %659 = vmatpush.bf16.msra.mxu0 0
    %660 = vmatpush.bf16.msra.mxu0 0
    %661 = vmatpush.bf16.msra.mxu0 0
    %662 = vmatpush.bf16.msra.mxu0 0
    %663 = vmatpush.bf16.msra.mxu0 0
    %664 = vmatpush.bf16.msra.mxu0 %v584
    %665 = vmatpush.bf16.msra.mxu0 %v516
    %666 = vmatpush.bf16.msra.mxu0 %v513
    %667 = vmatmul.bf16.gmra.mxu0 %v577
    %v668 = vpop.f32.mrf.mxu0
    %v669 = vadd.f32 %v655, %v668
    %v670 = vpop.f32.mrf.mxu0
    %v671 = vadd.f32 %v657, %v670
    %672 = vdwg.mxu0
    %673 = vmatpush.bf16.msra.mxu0 %v487
    %674 = vmatpush.bf16.msra.mxu0 %v484
    %675 = vmatpush.bf16.msra.mxu0 %v481
    %676 = vmatpush.bf16.msra.mxu0 %v478
    %677 = vmatpush.bf16.msra.mxu0 %v475
    %678 = vmatpush.bf16.msra.mxu0 %v472
    %679 = vmatpush.bf16.msra.mxu0 %v469
    %680 = vmatpush.bf16.msra.mxu0 %v466
    %681 = vmatmul.bf16.gmra.mxu0 %v269
    %v682 = vpop.f32.mrf.mxu0
    %v683 = vadd.f32 %v255, %v682
    %v684 = vpop.f32.mrf.mxu0
    %v685 = vadd.f32 %v255, %v684
    %686 = vdwg.mxu0
    %687 = vmatpush.bf16.msra.mxu0 %v511
    %688 = vmatpush.bf16.msra.mxu0 %v508
    %689 = vmatpush.bf16.msra.mxu0 %v505
    %690 = vmatpush.bf16.msra.mxu0 %v502
    %691 = vmatpush.bf16.msra.mxu0 %v499
    %692 = vmatpush.bf16.msra.mxu0 %v496
    %693 = vmatpush.bf16.msra.mxu0 %v493
    %694 = vmatpush.bf16.msra.mxu0 %v490
    %695 = vmatmul.bf16.gmra.mxu0 %v270
    %v696 = vpop.f32.mrf.mxu0
    %v697 = vadd.f32 %v683, %v696
    %v698 = vpop.f32.mrf.mxu0
    %v699 = vadd.f32 %v685, %v698
    %700 = vdwg.mxu0
    %701 = vmatpush.bf16.msra.mxu0 0
    %702 = vmatpush.bf16.msra.mxu0 0
    %703 = vmatpush.bf16.msra.mxu0 0
    %704 = vmatpush.bf16.msra.mxu0 0
    %705 = vmatpush.bf16.msra.mxu0 0
    %706 = vmatpush.bf16.msra.mxu0 %v587
    %707 = vmatpush.bf16.msra.mxu0 %v517
    %708 = vmatpush.bf16.msra.mxu0 %v514
    %709 = vmatmul.bf16.gmra.mxu0 %v577
    %v710 = vpop.f32.mrf.mxu0
    %v711 = vadd.f32 %v697, %v710
    %v712 = vpop.f32.mrf.mxu0
    %v713 = vadd.f32 %v699, %v712
    %714 = vdwg.mxu0
    %v715 = vadd.f32 %v627, %v669
    %v716 = vsel %vm575, %v711, 0.0
    %v717 = vadd.f32 %v715, %v716
    %718 = vadd.xlane.f32.xlu0 %v717
    %v719 = vpop.xlane.xlu0 %718
    %v720 = vadd.f32 %v629, %v671
    %v721 = vsel %vm575, %v713, 0.0
    %v722 = vadd.f32 %v720, %v721
    %723 = vadd.xlane.f32.xlu0 %v722
    %v724 = vpop.xlane.xlu0 %723
    %v725 = vrcp.pop 300.0
    %v726 = vmul.f32 300.0, %v725
    %v727 = vsub.f32 1.0, %v726
    %v728 = vmul.f32 %v725, %v727
    %v729 = vadd.f32 %v725, %v728
    %vm730 = vweird.f32 %v725
    %v731 = vsel %vm730, %v725, %v729
    %v732 = vmul.f32 %v719, %v731
    %v733 = vmul.f32 %v724, %v731
    %v734 = vsub.f32 %v627, %v732
    %v735 = vsub.f32 %v669, %v732
    %v736 = vsub.f32 %v711, %v732
    %v737 = vsub.f32 %v629, %v733
    %v738 = vsub.f32 %v671, %v733
    %v739 = vsub.f32 %v713, %v733
    %v740 = vmul.f32 %v734, %v734
    %v741 = vmul.f32 %v735, %v735
    %v742 = vmul.f32 %v736, %v736
    %v743 = vmul.f32 %v737, %v737
    %v744 = vmul.f32 %v738, %v738
    %v745 = vmul.f32 %v739, %v739
    %v746 = vadd.f32 %v740, %v741
    %v747 = vsel %vm575, %v742, 0.0
    %v748 = vadd.f32 %v746, %v747
    %749 = vadd.xlane.f32.xlu0 %v748
    %v750 = vpop.xlane.xlu0 %749
    %v751 = vadd.f32 %v743, %v744
    %v752 = vsel %vm575, %v745, 0.0
    %v753 = vadd.f32 %v751, %v752
    %754 = vadd.xlane.f32.xlu0 %v753
    %v755 = vpop.xlane.xlu0 %754
    %v756 = vmul.f32 %v750, %v731
    %v757 = vmul.f32 %v755, %v731
    %v758 = vadd.f32 %v756, 1e-05
    %v759 = vadd.f32 %v757, 1e-05
    %v760 = vrsqrt.pop %v758
    %v761 = vmul.f32 %v760, %v758
    %v762 = vmul.f32 %v761, %v760
    %v763 = vmul.f32 0.5, %v762
    %v764 = vsub.f32 1.5, %v763
    %v765 = vmul.f32 %v760, %v764
    %vm766 = vweird.f32 %v758
    %vm767 = vweird.f32 %v760
    %vm768 = vmor %vm766, %vm767
    %v769 = vsel %vm768, %v760, %v765
    %v770 = vrsqrt.pop %v759
    %v771 = vmul.f32 %v770, %v759
    %v772 = vmul.f32 %v771, %v770
    %v773 = vmul.f32 0.5, %v772
    %v774 = vsub.f32 1.5, %v773
    %v775 = vmul.f32 %v770, %v774
    %vm776 = vweird.f32 %v759
    %vm777 = vweird.f32 %v770
    %vm778 = vmor %vm776, %vm777
    %v779 = vsel %vm778, %v770, %v775
    %v780 = vmul.f32 %v734, %v769
    %v781 = vmul.f32 %v735, %v769
    %v782 = vmul.f32 %v736, %v769
    %v783 = vmul.f32 %v737, %v779
    %v784 = vmul.f32 %v738, %v779
    %v785 = vmul.f32 %v739, %v779
    %v786 = vld [vmem:[#allocation10] sm:$0x7]
    %v788 = vperm.slane %v786, 0
    %v789 = vperm.slane %v786, 1
    %v790 = vperm.slane %v786, 2
    %v794 = vmul.f32 %v780, %v788
    %v795 = vmul.f32 %v781, %v789
    %v796 = vmul.f32 %v782, %v790
    %v797 = vmul.f32 %v783, %v788
    %v798 = vmul.f32 %v784, %v789
    %v799 = vmul.f32 %v785, %v790
    %v800 = vld [vmem:[#allocation11] sm:$0x7]
    %v802 = vperm.slane %v800, 0
    %v803 = vperm.slane %v800, 1
    %v804 = vperm.slane %v800, 2
    %v808 = vadd.f32 %v794, %v802
    %v809 = vadd.f32 %v795, %v803
    %v810 = vadd.f32 %v796, %v804
    %v811 = vadd.f32 %v797, %v802
    %v812 = vadd.f32 %v798, %v803
    %v813 = vadd.f32 %v799, %v804
    %v814 = vld [vmem:[#allocation5] sm:$0xff]
    %v815 = vld [vmem:[#allocation5 + $0x8] sm:$0xf]
    %v816 = vld [vmem:[#allocation5 + $0xc] sm:$0xff]
    %v817 = vld [vmem:[#allocation5 + $0x14] sm:$0xf]
    %v818 = vunpack.c.l.bf16 %v814
    %v819 = vunpack.c.h.bf16 %v814
    %v820 = vunpack.c.l.bf16 %v815
    %v821 = vunpack.c.l.bf16 %v816
    %v822 = vunpack.c.h.bf16 %v816
    %v823 = vunpack.c.l.bf16 %v817
    %v824 = vmul.f32 %v808, %v818
    %v825 = vmul.f32 %v809, %v819
    %v826 = vmul.f32 %v810, %v820
    %v827 = vmul.f32 %v811, %v821
    %v828 = vmul.f32 %v812, %v822
    %v829 = vmul.f32 %v813, %v823
    %v830 = vpack.c.bf16 %v811, %v808
    %v831 = vpack.c.bf16 %v812, %v809
    %v832 = vpack.c.bf16 %v813, %v810
    %v833 = vld [vmem:[#allocation13] sm:$0xff]
    %v834 = vld [vmem:[#allocation13 + $0x8] sm:$0xff]
    %v835 = vld [vmem:[#allocation13 + $0x10] sm:$0xff]
    %v836 = vld [vmem:[#allocation13 + $0x18] sm:$0xff]
    %v837 = vld [vmem:[#allocation13 + $0x20] sm:$0xff]
    %v838 = vld [vmem:[#allocation13 + $0x28] sm:$0xff]
    %v839 = vld [vmem:[#allocation13 + $0x30] sm:$0xff]
    %v840 = vld [vmem:[#allocation13 + $0x38] sm:$0xff]
    %v841 = vld [vmem:[#allocation13 + $0x40] sm:$0xff]
    %v842 = vld [vmem:[#allocation13 + $0x48] sm:$0xff]
    %v843 = vld [vmem:[#allocation13 + $0x50] sm:$0xff]
    %v844 = vld [vmem:[#allocation13 + $0x58] sm:$0xff]
    %v845 = vld [vmem:[#allocation13 + $0x60] sm:$0xff]
    %v846 = vld [vmem:[#allocation13 + $0x68] sm:$0xff]
    %v847 = vld [vmem:[#allocation13 + $0x70] sm:$0xff]
    %v848 = vld [vmem:[#allocation13 + $0x78] sm:$0xff]
    %v849 = vld [vmem:[#allocation13 + $0x80] sm:$0xff]
    %v850 = vld [vmem:[#allocation13 + $0x88] sm:$0xff]
    %v851 = vld [vmem:[#allocation13 + $0x90] sm:$0xff]
    %v852 = vld [vmem:[#allocation13 + $0x98] sm:$0xff]
    %v853 = vld [vmem:[#allocation13 + $0xa0] sm:$0xff]
    %v854 = vld [vmem:[#allocation13 + $0xa8] sm:$0xff]
    %v855 = vld [vmem:[#allocation13 + $0xb0] sm:$0xff]
    %v856 = vld [vmem:[#allocation13 + $0xb8] sm:$0xff]
    %v857 = vld [vmem:[#allocation13 + $0xc0] sm:$0xff]
    %v858 = vld [vmem:[#allocation13 + $0xc8] sm:$0xff]
    %v859 = vld [vmem:[#allocation13 + $0xd0] sm:$0xff]
    %v860 = vld [vmem:[#allocation13 + $0xd8] sm:$0xff]
    %v861 = vld [vmem:[#allocation13 + $0xe0] sm:$0xff]
    %v862 = vld [vmem:[#allocation13 + $0xe8] sm:$0xff]
    %v863 = vld [vmem:[#allocation13 + $0xf0] sm:$0xff]
    %v864 = vld [vmem:[#allocation13 + $0xf8] sm:$0xff]
    %v865 = vld [vmem:[#allocation13 + $0x100] sm:$0xff]
    %v866 = vld [vmem:[#allocation13 + $0x108] sm:$0xff]
    %v867 = vld [vmem:[#allocation13 + $0x110] sm:$0xff]
    %v868 = vld [vmem:[#allocation13 + $0x118] sm:$0xff]
    %v869 = vld [vmem:[#allocation13 + $0x120] sm:$0xff]
    %v870 = vld [vmem:[#allocation13 + $0x128] sm:$0xff]
    %v871 = vld [vmem:[#allocation13 + $0x130] sm:$0xff]
    %v872 = vld [vmem:[#allocation13 + $0x138] sm:$0xff]
    %v873 = vld [vmem:[#allocation13 + $0x140] sm:$0xff]
    %v874 = vld [vmem:[#allocation13 + $0x148] sm:$0xff]
    %v875 = vld [vmem:[#allocation13 + $0x150] sm:$0xff]
    %v876 = vld [vmem:[#allocation13 + $0x158] sm:$0xff]
    %v877 = vld [vmem:[#allocation13 + $0x160] sm:$0xff]
    %v878 = vld [vmem:[#allocation13 + $0x168] sm:$0xff]
    %v879 = vld [vmem:[#allocation13 + $0x170] sm:$0xff]
    %v880 = vld [vmem:[#allocation13 + $0x178] sm:$0xff]
    %v881 = vld [vmem:[#allocation13 + $0x180] sm:$0xff]
    %v882 = vld [vmem:[#allocation13 + $0x188] sm:$0xff]
    %v883 = vld [vmem:[#allocation13 + $0x190] sm:$0xff]
    %v884 = vld [vmem:[#allocation13 + $0x198] sm:$0xff]
    %v885 = vld [vmem:[#allocation13 + $0x1a0] sm:$0xff]
    %v886 = vld [vmem:[#allocation13 + $0x1a8] sm:$0xff]
    %v887 = vld [vmem:[#allocation13 + $0x1b0] sm:$0xff]
    %v888 = vld [vmem:[#allocation13 + $0x1b8] sm:$0xff]
    %v889 = vld [vmem:[#allocation13 + $0x1c0] sm:$0xff]
    %v890 = vld [vmem:[#allocation13 + $0x1c8] sm:$0xff]
    %v891 = vld [vmem:[#allocation13 + $0x1d0] sm:$0xff]
    %v892 = vld [vmem:[#allocation13 + $0x1d8] sm:$0xff]
    %v893 = vld [vmem:[#allocation13 + $0x1e0] sm:$0xff]
    %v894 = vld [vmem:[#allocation13 + $0x1e8] sm:$0xff]
    %v895 = vld [vmem:[#allocation13 + $0x1f0] sm:$0xff]
    %v896 = vld [vmem:[#allocation13 + $0x1f8] sm:$0xff]
    %v897 = vld [vmem:[#allocation13 + $0x200] sm:$0xff]
    %v898 = vld [vmem:[#allocation13 + $0x208] sm:$0xff]
    %v899 = vld [vmem:[#allocation13 + $0x210] sm:$0xff]
    %v900 = vld [vmem:[#allocation13 + $0x218] sm:$0xff]
    %v901 = vld [vmem:[#allocation13 + $0x220] sm:$0xff]
    %v902 = vld [vmem:[#allocation13 + $0x228] sm:$0xff]
    %v903 = vld [vmem:[#allocation13 + $0x230] sm:$0xff]
    %v904 = vld [vmem:[#allocation13 + $0x238] sm:$0xff]
    %v905 = vld [vmem:[#allocation13 + $0x240] sm:$0xff]
    %v906 = vld [vmem:[#allocation13 + $0x248] sm:$0xff]
    %v907 = vld [vmem:[#allocation13 + $0x250] sm:$0xff]
    %v908 = vld [vmem:[#allocation13 + $0x258] sm:$0xff]
    %v909 = vld [vmem:[#allocation13 + $0x260] sm:$0xff]
    %v910 = vld [vmem:[#allocation13 + $0x268] sm:$0xff]
    %v911 = vld [vmem:[#allocation13 + $0x270] sm:$0xff]
    %v912 = vld [vmem:[#allocation13 + $0x278] sm:$0xff]
    %v913 = vld [vmem:[#allocation13 + $0x280] sm:$0xff]
    %v914 = vld [vmem:[#allocation13 + $0x288] sm:$0xff]
    %v915 = vld [vmem:[#allocation13 + $0x290] sm:$0xff]
    %v916 = vld [vmem:[#allocation13 + $0x298] sm:$0xff]
    %v917 = vld [vmem:[#allocation13 + $0x2a0] sm:$0xff]
    %v918 = vld [vmem:[#allocation13 + $0x2a8] sm:$0xff]
    %v919 = vld [vmem:[#allocation13 + $0x2b0] sm:$0xff]
    %v920 = vld [vmem:[#allocation13 + $0x2b8] sm:$0xff]
    %v921 = vld [vmem:[#allocation13 + $0x2c0] sm:$0xff]
    %v922 = vld [vmem:[#allocation13 + $0x2c8] sm:$0xff]
    %v923 = vld [vmem:[#allocation13 + $0x2d0] sm:$0xff]
    %v924 = vld [vmem:[#allocation13 + $0x2d8] sm:$0xff]
    %v925 = vld [vmem:[#allocation13 + $0x2e0] sm:$0xff]
    %v926 = vld [vmem:[#allocation13 + $0x2e8] sm:$0xff]
    %v927 = vld [vmem:[#allocation13 + $0x2f0] sm:$0xff]
    %v928 = vld [vmem:[#allocation13 + $0x2f8] sm:$0xff]
    %v929 = vld [vmem:[#allocation13 + $0x300] sm:$0xff]
    %v930 = vld [vmem:[#allocation13 + $0x308] sm:$0xff]
    %v931 = vld [vmem:[#allocation13 + $0x310] sm:$0xff]
    %v932 = vld [vmem:[#allocation13 + $0x318] sm:$0xff]
    %v933 = vld [vmem:[#allocation13 + $0x320] sm:$0xff]
    %v934 = vld [vmem:[#allocation13 + $0x328] sm:$0xff]
    %v935 = vld [vmem:[#allocation13 + $0x330] sm:$0xff]
    %v936 = vld [vmem:[#allocation13 + $0x338] sm:$0xff]
    %v937 = vld [vmem:[#allocation13 + $0x340] sm:$0xff]
    %v938 = vld [vmem:[#allocation13 + $0x348] sm:$0xff]
    %v939 = vld [vmem:[#allocation13 + $0x350] sm:$0xff]
    %v940 = vld [vmem:[#allocation13 + $0x358] sm:$0xff]
    %v941 = vld [vmem:[#allocation13 + $0x360] sm:$0xff]
    %v942 = vld [vmem:[#allocation13 + $0x368] sm:$0xff]
    %v943 = vld [vmem:[#allocation13 + $0x370] sm:$0xff]
    %v944 = vld [vmem:[#allocation13 + $0x378] sm:$0xff]
    %v945 = vld [vmem:[#allocation13 + $0x380] sm:$0xff]
    %v946 = vld [vmem:[#allocation13 + $0x388] sm:$0xff]
    %v947 = vld [vmem:[#allocation13 + $0x390] sm:$0xff]
    %v948 = vld [vmem:[#allocation13 + $0x398] sm:$0xff]
    %v949 = vld [vmem:[#allocation13 + $0x3a0] sm:$0xff]
    %v950 = vld [vmem:[#allocation13 + $0x3a8] sm:$0xff]
    %v951 = vld [vmem:[#allocation13 + $0x3b0] sm:$0xff]
    %v952 = vld [vmem:[#allocation13 + $0x3b8] sm:$0xff]
    %v953 = vld [vmem:[#allocation13 + $0x3c0] sm:$0xff]
    %v954 = vld [vmem:[#allocation13 + $0x3c8] sm:$0xff]
    %v955 = vld [vmem:[#allocation13 + $0x3d0] sm:$0xff]
    %v956 = vld [vmem:[#allocation13 + $0x3d8] sm:$0xff]
    %v957 = vld [vmem:[#allocation13 + $0x3e0] sm:$0xff]
    %v958 = vld [vmem:[#allocation13 + $0x3e8] sm:$0xff]
    %v959 = vld [vmem:[#allocation13 + $0x3f0] sm:$0xff]
    %v960 = vld [vmem:[#allocation13 + $0x3f8] sm:$0xff]
    %v961 = vld [vmem:[#allocation13 + $0x400] sm:$0xff]
    %v962 = vld [vmem:[#allocation13 + $0x408] sm:$0xff]
    %v963 = vld [vmem:[#allocation13 + $0x410] sm:$0xff]
    %v964 = vld [vmem:[#allocation13 + $0x418] sm:$0xff]
    %v965 = vld [vmem:[#allocation13 + $0x420] sm:$0xff]
    %v966 = vld [vmem:[#allocation13 + $0x428] sm:$0xff]
    %v967 = vld [vmem:[#allocation13 + $0x430] sm:$0xff]
    %v968 = vld [vmem:[#allocation13 + $0x438] sm:$0xff]
    %v969 = vld [vmem:[#allocation13 + $0x440] sm:$0xff]
    %v970 = vld [vmem:[#allocation13 + $0x448] sm:$0xff]
    %v971 = vld [vmem:[#allocation13 + $0x450] sm:$0xff]
    %v972 = vld [vmem:[#allocation13 + $0x458] sm:$0xff]
    %v973 = vld [vmem:[#allocation13 + $0x460] sm:$0xff]
    %v974 = vld [vmem:[#allocation13 + $0x468] sm:$0xff]
    %v975 = vld [vmem:[#allocation13 + $0x470] sm:$0xff]
    %v976 = vld [vmem:[#allocation13 + $0x478] sm:$0xff]
    %v977 = vld [vmem:[#allocation13 + $0x480] sm:$0xff]
    %v978 = vld [vmem:[#allocation13 + $0x488] sm:$0xff]
    %v979 = vld [vmem:[#allocation13 + $0x490] sm:$0xff]
    %v980 = vld [vmem:[#allocation13 + $0x498] sm:$0xff]
    %v981 = vld [vmem:[#allocation13 + $0x4a0] sm:$0xff]
    %v982 = vld [vmem:[#allocation13 + $0x4a8] sm:$0xff]
    %v983 = vld [vmem:[#allocation13 + $0x4b0] sm:$0xff]
    %v984 = vld [vmem:[#allocation13 + $0x4b8] sm:$0xff]
    %v985 = vld [vmem:[#allocation13 + $0x4c0] sm:$0xff]
    %v986 = vld [vmem:[#allocation13 + $0x4c8] sm:$0xff]
    %v987 = vld [vmem:[#allocation13 + $0x4d0] sm:$0xff]
    %v988 = vld [vmem:[#allocation13 + $0x4d8] sm:$0xff]
    %v989 = vld [vmem:[#allocation13 + $0x4e0] sm:$0xff]
    %v990 = vld [vmem:[#allocation13 + $0x4e8] sm:$0xff]
    %v991 = vld [vmem:[#allocation13 + $0x4f0] sm:$0xff]
    %v992 = vld [vmem:[#allocation13 + $0x4f8] sm:$0xff]
    %v993 = vld [vmem:[#allocation13 + $0x500] sm:$0xff]
    %v994 = vld [vmem:[#allocation13 + $0x508] sm:$0xff]
    %v995 = vld [vmem:[#allocation13 + $0x510] sm:$0xff]
    %v996 = vld [vmem:[#allocation13 + $0x518] sm:$0xff]
    %v997 = vld [vmem:[#allocation13 + $0x520] sm:$0xff]
    %v998 = vld [vmem:[#allocation13 + $0x528] sm:$0xff]
    %v999 = vld [vmem:[#allocation13 + $0x530] sm:$0xff]
    %v1000 = vld [vmem:[#allocation13 + $0x538] sm:$0xff]
    %v1001 = vld [vmem:[#allocation13 + $0x540] sm:$0xff]
    %v1002 = vld [vmem:[#allocation13 + $0x548] sm:$0xff]
    %v1003 = vld [vmem:[#allocation13 + $0x550] sm:$0xff]
    %v1004 = vld [vmem:[#allocation13 + $0x558] sm:$0xff]
    %v1005 = vld [vmem:[#allocation13 + $0x560] sm:$0xff]
    %v1006 = vld [vmem:[#allocation13 + $0x568] sm:$0xff]
    %v1007 = vld [vmem:[#allocation13 + $0x570] sm:$0xff]
    %v1008 = vld [vmem:[#allocation13 + $0x578] sm:$0xff]
    %v1009 = vld [vmem:[#allocation13 + $0x580] sm:$0xff]
    %v1010 = vld [vmem:[#allocation13 + $0x588] sm:$0xff]
    %v1011 = vld [vmem:[#allocation13 + $0x590] sm:$0xff]
    %v1012 = vld [vmem:[#allocation13 + $0x598] sm:$0xff]
    %v1013 = vld [vmem:[#allocation13 + $0x5a0] sm:$0xff]
    %v1014 = vld [vmem:[#allocation13 + $0x5a8] sm:$0xff]
    %v1015 = vld [vmem:[#allocation13 + $0x5b0] sm:$0xff]
    %v1016 = vld [vmem:[#allocation13 + $0x5b8] sm:$0xff]
    %v1017 = vld [vmem:[#allocation13 + $0x5c0] sm:$0xff]
    %v1018 = vld [vmem:[#allocation13 + $0x5c8] sm:$0x33]
    %v1019 = vld [vmem:[#allocation13 + $0x5d0] sm:$0x33]
    %v1020 = vld [vmem:[#allocation13 + $0x5d8] sm:$0x33]
    %v1021 = vld [vmem:[#allocation13 + $0x5e0] sm:$0x33]
    %v1022 = vld [vmem:[#allocation13 + $0x5e8] sm:$0x33]
    %v1023 = vpack.c.bf16 %v827, %v824
    %v1024 = vpack.c.bf16 %v828, %v825
    %v1025 = vpack.c.bf16 %v829, %v826
    %v1026 = vld [vmem:[#allocation14] sm:$0xff]
    %v1027 = vld [vmem:[#allocation14 + $0x8] sm:$0xff]
    %v1028 = vld [vmem:[#allocation14 + $0x10] sm:$0xff]
    %v1029 = vld [vmem:[#allocation14 + $0x18] sm:$0xff]
    %v1030 = vld [vmem:[#allocation14 + $0x20] sm:$0xff]
    %v1031 = vld [vmem:[#allocation14 + $0x28] sm:$0xff]
    %v1032 = vld [vmem:[#allocation14 + $0x30] sm:$0xff]
    %v1033 = vld [vmem:[#allocation14 + $0x38] sm:$0xff]
    %v1034 = vld [vmem:[#allocation14 + $0x40] sm:$0xff]
    %v1035 = vld [vmem:[#allocation14 + $0x48] sm:$0xff]
    %v1036 = vld [vmem:[#allocation14 + $0x50] sm:$0xff]
    %v1037 = vld [vmem:[#allocation14 + $0x58] sm:$0xff]
    %v1038 = vld [vmem:[#allocation14 + $0x60] sm:$0xff]
    %v1039 = vld [vmem:[#allocation14 + $0x68] sm:$0xff]
    %v1040 = vld [vmem:[#allocation14 + $0x70] sm:$0xff]
    %v1041 = vld [vmem:[#allocation14 + $0x78] sm:$0xff]
    %v1042 = vld [vmem:[#allocation14 + $0x80] sm:$0xff]
    %v1043 = vld [vmem:[#allocation14 + $0x88] sm:$0xff]
    %v1044 = vld [vmem:[#allocation14 + $0x90] sm:$0xff]
    %v1045 = vld [vmem:[#allocation14 + $0x98] sm:$0xff]
    %v1046 = vld [vmem:[#allocation14 + $0xa0] sm:$0xff]
    %v1047 = vld [vmem:[#allocation14 + $0xa8] sm:$0xff]
    %v1048 = vld [vmem:[#allocation14 + $0xb0] sm:$0xff]
    %v1049 = vld [vmem:[#allocation14 + $0xb8] sm:$0xff]
    %v1050 = vld [vmem:[#allocation14 + $0xc0] sm:$0xff]
    %v1051 = vld [vmem:[#allocation14 + $0xc8] sm:$0xff]
    %v1052 = vld [vmem:[#allocation14 + $0xd0] sm:$0xff]
    %v1053 = vld [vmem:[#allocation14 + $0xd8] sm:$0xff]
    %v1054 = vld [vmem:[#allocation14 + $0xe0] sm:$0xff]
    %v1055 = vld [vmem:[#allocation14 + $0xe8] sm:$0xff]
    %v1056 = vld [vmem:[#allocation14 + $0xf0] sm:$0xff]
    %v1057 = vld [vmem:[#allocation14 + $0xf8] sm:$0xff]
    %v1058 = vld [vmem:[#allocation14 + $0x100] sm:$0xff]
    %v1059 = vld [vmem:[#allocation14 + $0x108] sm:$0xff]
    %v1060 = vld [vmem:[#allocation14 + $0x110] sm:$0xff]
    %v1061 = vld [vmem:[#allocation14 + $0x118] sm:$0xff]
    %v1062 = vld [vmem:[#allocation14 + $0x120] sm:$0xff]
    %v1063 = vld [vmem:[#allocation14 + $0x128] sm:$0xff]
    %v1064 = vld [vmem:[#allocation14 + $0x130] sm:$0xff]
    %v1065 = vld [vmem:[#allocation14 + $0x138] sm:$0xff]
    %v1066 = vld [vmem:[#allocation14 + $0x140] sm:$0xff]
    %v1067 = vld [vmem:[#allocation14 + $0x148] sm:$0xff]
    %v1068 = vld [vmem:[#allocation14 + $0x150] sm:$0xff]
    %v1069 = vld [vmem:[#allocation14 + $0x158] sm:$0xff]
    %v1070 = vld [vmem:[#allocation14 + $0x160] sm:$0xff]
    %v1071 = vld [vmem:[#allocation14 + $0x168] sm:$0xff]
    %v1072 = vld [vmem:[#allocation14 + $0x170] sm:$0xff]
    %v1073 = vld [vmem:[#allocation14 + $0x178] sm:$0xff]
    %v1074 = vld [vmem:[#allocation14 + $0x180] sm:$0xff]
    %v1075 = vld [vmem:[#allocation14 + $0x188] sm:$0xff]
    %v1076 = vld [vmem:[#allocation14 + $0x190] sm:$0xff]
    %v1077 = vld [vmem:[#allocation14 + $0x198] sm:$0xff]
    %v1078 = vld [vmem:[#allocation14 + $0x1a0] sm:$0xff]
    %v1079 = vld [vmem:[#allocation14 + $0x1a8] sm:$0xff]
    %v1080 = vld [vmem:[#allocation14 + $0x1b0] sm:$0xff]
    %v1081 = vld [vmem:[#allocation14 + $0x1b8] sm:$0xff]
    %v1082 = vld [vmem:[#allocation14 + $0x1c0] sm:$0xff]
    %v1083 = vld [vmem:[#allocation14 + $0x1c8] sm:$0xff]
    %v1084 = vld [vmem:[#allocation14 + $0x1d0] sm:$0xff]
    %v1085 = vld [vmem:[#allocation14 + $0x1d8] sm:$0xff]
    %v1086 = vld [vmem:[#allocation14 + $0x1e0] sm:$0xff]
    %v1087 = vld [vmem:[#allocation14 + $0x1e8] sm:$0xff]
    %v1088 = vld [vmem:[#allocation14 + $0x1f0] sm:$0xff]
    %v1089 = vld [vmem:[#allocation14 + $0x1f8] sm:$0xff]
    %v1090 = vld [vmem:[#allocation14 + $0x200] sm:$0xff]
    %v1091 = vld [vmem:[#allocation14 + $0x208] sm:$0xff]
    %v1092 = vld [vmem:[#allocation14 + $0x210] sm:$0xff]
    %v1093 = vld [vmem:[#allocation14 + $0x218] sm:$0xff]
    %v1094 = vld [vmem:[#allocation14 + $0x220] sm:$0xff]
    %v1095 = vld [vmem:[#allocation14 + $0x228] sm:$0xff]
    %v1096 = vld [vmem:[#allocation14 + $0x230] sm:$0xff]
    %v1097 = vld [vmem:[#allocation14 + $0x238] sm:$0xff]
    %v1098 = vld [vmem:[#allocation14 + $0x240] sm:$0xff]
    %v1099 = vld [vmem:[#allocation14 + $0x248] sm:$0xff]
    %v1100 = vld [vmem:[#allocation14 + $0x250] sm:$0xff]
    %v1101 = vld [vmem:[#allocation14 + $0x258] sm:$0xff]
    %v1102 = vld [vmem:[#allocation14 + $0x260] sm:$0xff]
    %v1103 = vld [vmem:[#allocation14 + $0x268] sm:$0xff]
    %v1104 = vld [vmem:[#allocation14 + $0x270] sm:$0xff]
    %v1105 = vld [vmem:[#allocation14 + $0x278] sm:$0xff]
    %v1106 = vld [vmem:[#allocation14 + $0x280] sm:$0xff]
    %v1107 = vld [vmem:[#allocation14 + $0x288] sm:$0xff]
    %v1108 = vld [vmem:[#allocation14 + $0x290] sm:$0xff]
    %v1109 = vld [vmem:[#allocation14 + $0x298] sm:$0xff]
    %v1110 = vld [vmem:[#allocation14 + $0x2a0] sm:$0xff]
    %v1111 = vld [vmem:[#allocation14 + $0x2a8] sm:$0xff]
    %v1112 = vld [vmem:[#allocation14 + $0x2b0] sm:$0xff]
    %v1113 = vld [vmem:[#allocation14 + $0x2b8] sm:$0xff]
    %v1114 = vld [vmem:[#allocation14 + $0x2c0] sm:$0xff]
    %v1115 = vld [vmem:[#allocation14 + $0x2c8] sm:$0xff]
    %v1116 = vld [vmem:[#allocation14 + $0x2d0] sm:$0xff]
    %v1117 = vld [vmem:[#allocation14 + $0x2d8] sm:$0xff]
    %v1118 = vld [vmem:[#allocation14 + $0x2e0] sm:$0xff]
    %v1119 = vld [vmem:[#allocation14 + $0x2e8] sm:$0xff]
    %v1120 = vld [vmem:[#allocation14 + $0x2f0] sm:$0xff]
    %v1121 = vld [vmem:[#allocation14 + $0x2f8] sm:$0xff]
    %v1122 = vld [vmem:[#allocation14 + $0x300] sm:$0xff]
    %v1123 = vld [vmem:[#allocation14 + $0x308] sm:$0xff]
    %v1124 = vld [vmem:[#allocation14 + $0x310] sm:$0xff]
    %v1125 = vld [vmem:[#allocation14 + $0x318] sm:$0xff]
    %v1126 = vld [vmem:[#allocation14 + $0x320] sm:$0xff]
    %v1127 = vld [vmem:[#allocation14 + $0x328] sm:$0xff]
    %v1128 = vld [vmem:[#allocation14 + $0x330] sm:$0xff]
    %v1129 = vld [vmem:[#allocation14 + $0x338] sm:$0xff]
    %v1130 = vld [vmem:[#allocation14 + $0x340] sm:$0xff]
    %v1131 = vld [vmem:[#allocation14 + $0x348] sm:$0xff]
    %v1132 = vld [vmem:[#allocation14 + $0x350] sm:$0xff]
    %v1133 = vld [vmem:[#allocation14 + $0x358] sm:$0xff]
    %v1134 = vld [vmem:[#allocation14 + $0x360] sm:$0xff]
    %v1135 = vld [vmem:[#allocation14 + $0x368] sm:$0xff]
    %v1136 = vld [vmem:[#allocation14 + $0x370] sm:$0xff]
    %v1137 = vld [vmem:[#allocation14 + $0x378] sm:$0xff]
    %v1138 = vld [vmem:[#allocation14 + $0x380] sm:$0xff]
    %v1139 = vld [vmem:[#allocation14 + $0x388] sm:$0xff]
    %v1140 = vld [vmem:[#allocation14 + $0x390] sm:$0xff]
    %v1141 = vld [vmem:[#allocation14 + $0x398] sm:$0xff]
    %v1142 = vld [vmem:[#allocation14 + $0x3a0] sm:$0xff]
    %v1143 = vld [vmem:[#allocation14 + $0x3a8] sm:$0xff]
    %v1144 = vld [vmem:[#allocation14 + $0x3b0] sm:$0xff]
    %v1145 = vld [vmem:[#allocation14 + $0x3b8] sm:$0xff]
    %v1146 = vld [vmem:[#allocation14 + $0x3c0] sm:$0xff]
    %v1147 = vld [vmem:[#allocation14 + $0x3c8] sm:$0xff]
    %v1148 = vld [vmem:[#allocation14 + $0x3d0] sm:$0xff]
    %v1149 = vld [vmem:[#allocation14 + $0x3d8] sm:$0xff]
    %v1150 = vld [vmem:[#allocation14 + $0x3e0] sm:$0xff]
    %v1151 = vld [vmem:[#allocation14 + $0x3e8] sm:$0xff]
    %v1152 = vld [vmem:[#allocation14 + $0x3f0] sm:$0xff]
    %v1153 = vld [vmem:[#allocation14 + $0x3f8] sm:$0xff]
    %v1154 = vld [vmem:[#allocation14 + $0x400] sm:$0xff]
    %v1155 = vld [vmem:[#allocation14 + $0x408] sm:$0xff]
    %v1156 = vld [vmem:[#allocation14 + $0x410] sm:$0xff]
    %v1157 = vld [vmem:[#allocation14 + $0x418] sm:$0xff]
    %v1158 = vld [vmem:[#allocation14 + $0x420] sm:$0xff]
    %v1159 = vld [vmem:[#allocation14 + $0x428] sm:$0xff]
    %v1160 = vld [vmem:[#allocation14 + $0x430] sm:$0xff]
    %v1161 = vld [vmem:[#allocation14 + $0x438] sm:$0xff]
    %v1162 = vld [vmem:[#allocation14 + $0x440] sm:$0xff]
    %v1163 = vld [vmem:[#allocation14 + $0x448] sm:$0xff]
    %v1164 = vld [vmem:[#allocation14 + $0x450] sm:$0xff]
    %v1165 = vld [vmem:[#allocation14 + $0x458] sm:$0xff]
    %v1166 = vld [vmem:[#allocation14 + $0x460] sm:$0xff]
    %v1167 = vld [vmem:[#allocation14 + $0x468] sm:$0xff]
    %v1168 = vld [vmem:[#allocation14 + $0x470] sm:$0xff]
    %v1169 = vld [vmem:[#allocation14 + $0x478] sm:$0xff]
    %v1170 = vld [vmem:[#allocation14 + $0x480] sm:$0xff]
    %v1171 = vld [vmem:[#allocation14 + $0x488] sm:$0xff]
    %v1172 = vld [vmem:[#allocation14 + $0x490] sm:$0xff]
    %v1173 = vld [vmem:[#allocation14 + $0x498] sm:$0xff]
    %v1174 = vld [vmem:[#allocation14 + $0x4a0] sm:$0xff]
    %v1175 = vld [vmem:[#allocation14 + $0x4a8] sm:$0xff]
    %v1176 = vld [vmem:[#allocation14 + $0x4b0] sm:$0xff]
    %v1177 = vld [vmem:[#allocation14 + $0x4b8] sm:$0xff]
    %v1178 = vld [vmem:[#allocation14 + $0x4c0] sm:$0xff]
    %v1179 = vld [vmem:[#allocation14 + $0x4c8] sm:$0xff]
    %v1180 = vld [vmem:[#allocation14 + $0x4d0] sm:$0xff]
    %v1181 = vld [vmem:[#allocation14 + $0x4d8] sm:$0xff]
    %v1182 = vld [vmem:[#allocation14 + $0x4e0] sm:$0xff]
    %v1183 = vld [vmem:[#allocation14 + $0x4e8] sm:$0xff]
    %v1184 = vld [vmem:[#allocation14 + $0x4f0] sm:$0xff]
    %v1185 = vld [vmem:[#allocation14 + $0x4f8] sm:$0xff]
    %v1186 = vld [vmem:[#allocation14 + $0x500] sm:$0xff]
    %v1187 = vld [vmem:[#allocation14 + $0x508] sm:$0xff]
    %v1188 = vld [vmem:[#allocation14 + $0x510] sm:$0xff]
    %v1189 = vld [vmem:[#allocation14 + $0x518] sm:$0xff]
    %v1190 = vld [vmem:[#allocation14 + $0x520] sm:$0xff]
    %v1191 = vld [vmem:[#allocation14 + $0x528] sm:$0xff]
    %v1192 = vld [vmem:[#allocation14 + $0x530] sm:$0xff]
    %v1193 = vld [vmem:[#allocation14 + $0x538] sm:$0xff]
    %v1194 = vld [vmem:[#allocation14 + $0x540] sm:$0xff]
    %v1195 = vld [vmem:[#allocation14 + $0x548] sm:$0xff]
    %v1196 = vld [vmem:[#allocation14 + $0x550] sm:$0xff]
    %v1197 = vld [vmem:[#allocation14 + $0x558] sm:$0xff]
    %v1198 = vld [vmem:[#allocation14 + $0x560] sm:$0xff]
    %v1199 = vld [vmem:[#allocation14 + $0x568] sm:$0xff]
    %v1200 = vld [vmem:[#allocation14 + $0x570] sm:$0xff]
    %v1201 = vld [vmem:[#allocation14 + $0x578] sm:$0xff]
    %v1202 = vld [vmem:[#allocation14 + $0x580] sm:$0xff]
    %v1203 = vld [vmem:[#allocation14 + $0x588] sm:$0xff]
    %v1204 = vld [vmem:[#allocation14 + $0x590] sm:$0xff]
    %v1205 = vld [vmem:[#allocation14 + $0x598] sm:$0xff]
    %v1206 = vld [vmem:[#allocation14 + $0x5a0] sm:$0xff]
    %v1207 = vld [vmem:[#allocation14 + $0x5a8] sm:$0xff]
    %v1208 = vld [vmem:[#allocation14 + $0x5b0] sm:$0xff]
    %v1209 = vld [vmem:[#allocation14 + $0x5b8] sm:$0xff]
    %v1210 = vld [vmem:[#allocation14 + $0x5c0] sm:$0xff]
    %v1211 = vld [vmem:[#allocation14 + $0x5c8] sm:$0x33]
    %v1212 = vld [vmem:[#allocation14 + $0x5d0] sm:$0x33]
    %v1213 = vld [vmem:[#allocation14 + $0x5d8] sm:$0x33]
    %v1214 = vld [vmem:[#allocation14 + $0x5e0] sm:$0x33]
    %v1215 = vld [vmem:[#allocation14 + $0x5e8] sm:$0x33]
    %v1406 = vunpack.c.l.b16 %v1026
    %v1407 = vunpack.c.h.b16 %v1026
    %v1408 = vunpack.c.l.b16 %v1027
    %v1409 = vunpack.c.h.b16 %v1027
    %v1410 = vunpack.c.l.b16 %v1028
    %v1411 = vunpack.c.h.b16 %v1028
    %v1412 = vunpack.c.l.b16 %v1029
    %v1413 = vunpack.c.h.b16 %v1029
    %v1414 = vunpack.c.l.b16 %v1030
    %v1415 = vunpack.c.h.b16 %v1030
    %v1416 = vunpack.c.l.b16 %v1031
    %v1417 = vunpack.c.h.b16 %v1031
    %v1418 = vunpack.c.l.b16 %v1032
    %v1419 = vunpack.c.h.b16 %v1032
    %v1420 = vunpack.c.l.b16 %v1033
    %v1421 = vunpack.c.h.b16 %v1033
    %v1422 = vunpack.c.l.b16 %v1034
    %v1423 = vunpack.c.h.b16 %v1034
    %v1424 = vunpack.c.l.b16 %v1035
    %v1425 = vunpack.c.h.b16 %v1035
    %v1426 = vunpack.c.l.b16 %v1036
    %v1427 = vunpack.c.h.b16 %v1036
    %v1428 = vunpack.c.l.b16 %v1037
    %v1429 = vunpack.c.h.b16 %v1037
    %v1430 = vunpack.c.l.b16 %v1038
    %v1431 = vunpack.c.h.b16 %v1038
    %v1432 = vunpack.c.l.b16 %v1039
    %v1433 = vunpack.c.h.b16 %v1039
    %v1434 = vunpack.c.l.b16 %v1040
    %v1435 = vunpack.c.h.b16 %v1040
    %v1436 = vunpack.c.l.b16 %v1041
    %v1437 = vunpack.c.h.b16 %v1041
    %v1438 = vunpack.c.l.b16 %v1042
    %v1439 = vunpack.c.h.b16 %v1042
    %v1440 = vunpack.c.l.b16 %v1043
    %v1441 = vunpack.c.h.b16 %v1043
    %v1442 = vunpack.c.l.b16 %v1044
    %v1443 = vunpack.c.h.b16 %v1044
    %v1444 = vunpack.c.l.b16 %v1045
    %v1445 = vunpack.c.h.b16 %v1045
    %v1446 = vunpack.c.l.b16 %v1046
    %v1447 = vunpack.c.h.b16 %v1046
    %v1448 = vunpack.c.l.b16 %v1047
    %v1449 = vunpack.c.h.b16 %v1047
    %v1450 = vunpack.c.l.b16 %v1048
    %v1451 = vunpack.c.h.b16 %v1048
    %v1452 = vunpack.c.l.b16 %v1049
    %v1453 = vunpack.c.h.b16 %v1049
    %v1454 = vunpack.c.l.b16 %v1050
    %v1455 = vunpack.c.h.b16 %v1050
    %v1456 = vunpack.c.l.b16 %v1051
    %v1457 = vunpack.c.h.b16 %v1051
    %v1458 = vunpack.c.l.b16 %v1052
    %v1459 = vunpack.c.h.b16 %v1052
    %v1460 = vunpack.c.l.b16 %v1053
    %v1461 = vunpack.c.h.b16 %v1053
    %v1462 = vunpack.c.l.b16 %v1054
    %v1463 = vunpack.c.h.b16 %v1054
    %v1464 = vunpack.c.l.b16 %v1055
    %v1465 = vunpack.c.h.b16 %v1055
    %v1466 = vunpack.c.l.b16 %v1056
    %v1467 = vunpack.c.h.b16 %v1056
    %v1468 = vunpack.c.l.b16 %v1057
    %v1469 = vunpack.c.h.b16 %v1057
    %v1470 = vunpack.c.l.b16 %v1058
    %v1471 = vunpack.c.h.b16 %v1058
    %v1472 = vunpack.c.l.b16 %v1059
    %v1473 = vunpack.c.h.b16 %v1059
    %v1474 = vunpack.c.l.b16 %v1060
    %v1475 = vunpack.c.h.b16 %v1060
    %v1476 = vunpack.c.l.b16 %v1061
    %v1477 = vunpack.c.h.b16 %v1061
    %v1478 = vunpack.c.l.b16 %v1062
    %v1479 = vunpack.c.h.b16 %v1062
    %v1480 = vunpack.c.l.b16 %v1063
    %v1481 = vunpack.c.h.b16 %v1063
    %v1482 = vunpack.c.l.b16 %v1064
    %v1483 = vunpack.c.h.b16 %v1064
    %v1484 = vunpack.c.l.b16 %v1065
    %v1485 = vunpack.c.h.b16 %v1065
    %v1486 = vunpack.c.l.b16 %v1066
    %v1487 = vunpack.c.h.b16 %v1066
    %v1488 = vunpack.c.l.b16 %v1067
    %v1489 = vunpack.c.h.b16 %v1067
    %v1490 = vunpack.c.l.b16 %v1068
    %v1491 = vunpack.c.h.b16 %v1068
    %v1492 = vunpack.c.l.b16 %v1069
    %v1493 = vunpack.c.h.b16 %v1069
    %v1494 = vunpack.c.l.b16 %v1070
    %v1495 = vunpack.c.h.b16 %v1070
    %v1496 = vunpack.c.l.b16 %v1071
    %v1497 = vunpack.c.h.b16 %v1071
    %v1498 = vunpack.c.l.b16 %v1072
    %v1499 = vunpack.c.h.b16 %v1072
    %v1500 = vunpack.c.l.b16 %v1073
    %v1501 = vunpack.c.h.b16 %v1073
    %v1502 = vunpack.c.l.b16 %v1074
    %v1503 = vunpack.c.h.b16 %v1074
    %v1504 = vunpack.c.l.b16 %v1075
    %v1505 = vunpack.c.h.b16 %v1075
    %v1506 = vunpack.c.l.b16 %v1076
    %v1507 = vunpack.c.h.b16 %v1076
    %v1508 = vunpack.c.l.b16 %v1077
    %v1509 = vunpack.c.h.b16 %v1077
    %v1510 = vunpack.c.l.b16 %v1078
    %v1511 = vunpack.c.h.b16 %v1078
    %v1512 = vunpack.c.l.b16 %v1079
    %v1513 = vunpack.c.h.b16 %v1079
    %v1514 = vunpack.c.l.b16 %v1080
    %v1515 = vunpack.c.h.b16 %v1080
    %v1516 = vunpack.c.l.b16 %v1081
    %v1517 = vunpack.c.h.b16 %v1081
    %v1518 = vunpack.c.l.b16 %v1082
    %v1519 = vunpack.c.h.b16 %v1082
    %v1520 = vunpack.c.l.b16 %v1083
    %v1521 = vunpack.c.h.b16 %v1083
    %v1522 = vunpack.c.l.b16 %v1084
    %v1523 = vunpack.c.h.b16 %v1084
    %v1524 = vunpack.c.l.b16 %v1085
    %v1525 = vunpack.c.h.b16 %v1085
    %v1526 = vunpack.c.l.b16 %v1086
    %v1527 = vunpack.c.h.b16 %v1086
    %v1528 = vunpack.c.l.b16 %v1087
    %v1529 = vunpack.c.h.b16 %v1087
    %v1530 = vunpack.c.l.b16 %v1088
    %v1531 = vunpack.c.h.b16 %v1088
    %v1532 = vunpack.c.l.b16 %v1089
    %v1533 = vunpack.c.h.b16 %v1089
    %v1534 = vunpack.c.l.b16 %v1090
    %v1535 = vunpack.c.h.b16 %v1090
    %v1536 = vunpack.c.l.b16 %v1091
    %v1537 = vunpack.c.h.b16 %v1091
    %v1538 = vunpack.c.l.b16 %v1092
    %v1539 = vunpack.c.h.b16 %v1092
    %v1540 = vunpack.c.l.b16 %v1093
    %v1541 = vunpack.c.h.b16 %v1093
    %v1542 = vunpack.c.l.b16 %v1094
    %v1543 = vunpack.c.h.b16 %v1094
    %v1544 = vunpack.c.l.b16 %v1095
    %v1545 = vunpack.c.h.b16 %v1095
    %v1546 = vunpack.c.l.b16 %v1096
    %v1547 = vunpack.c.h.b16 %v1096
    %v1548 = vunpack.c.l.b16 %v1097
    %v1549 = vunpack.c.h.b16 %v1097
    %v1550 = vunpack.c.l.b16 %v1098
    %v1551 = vunpack.c.h.b16 %v1098
    %v1552 = vunpack.c.l.b16 %v1099
    %v1553 = vunpack.c.h.b16 %v1099
    %v1554 = vunpack.c.l.b16 %v1100
    %v1555 = vunpack.c.h.b16 %v1100
    %v1556 = vunpack.c.l.b16 %v1101
    %v1557 = vunpack.c.h.b16 %v1101
    %v1558 = vunpack.c.l.b16 %v1102
    %v1559 = vunpack.c.h.b16 %v1102
    %v1560 = vunpack.c.l.b16 %v1103
    %v1561 = vunpack.c.h.b16 %v1103
    %v1562 = vunpack.c.l.b16 %v1104
    %v1563 = vunpack.c.h.b16 %v1104
    %v1564 = vunpack.c.l.b16 %v1105
    %v1565 = vunpack.c.h.b16 %v1105
    %v1566 = vunpack.c.l.b16 %v1106
    %v1567 = vunpack.c.h.b16 %v1106
    %v1568 = vunpack.c.l.b16 %v1107
    %v1569 = vunpack.c.h.b16 %v1107
    %v1570 = vunpack.c.l.b16 %v1108
    %v1571 = vunpack.c.h.b16 %v1108
    %v1572 = vunpack.c.l.b16 %v1109
    %v1573 = vunpack.c.h.b16 %v1109
    %v1574 = vunpack.c.l.b16 %v1110
    %v1575 = vunpack.c.h.b16 %v1110
    %v1576 = vunpack.c.l.b16 %v1111
    %v1577 = vunpack.c.h.b16 %v1111
    %v1578 = vunpack.c.l.b16 %v1112
    %v1579 = vunpack.c.h.b16 %v1112
    %v1580 = vunpack.c.l.b16 %v1113
    %v1581 = vunpack.c.h.b16 %v1113
    %v1582 = vunpack.c.l.b16 %v1114
    %v1583 = vunpack.c.h.b16 %v1114
    %v1584 = vunpack.c.l.b16 %v1115
    %v1585 = vunpack.c.h.b16 %v1115
    %v1586 = vunpack.c.l.b16 %v1116
    %v1587 = vunpack.c.h.b16 %v1116
    %v1588 = vunpack.c.l.b16 %v1117
    %v1589 = vunpack.c.h.b16 %v1117
    %v1590 = vunpack.c.l.b16 %v1118
    %v1591 = vunpack.c.h.b16 %v1118
    %v1592 = vunpack.c.l.b16 %v1119
    %v1593 = vunpack.c.h.b16 %v1119
    %v1594 = vunpack.c.l.b16 %v1120
    %v1595 = vunpack.c.h.b16 %v1120
    %v1596 = vunpack.c.l.b16 %v1121
    %v1597 = vunpack.c.h.b16 %v1121
    %v1598 = vunpack.c.l.b16 %v1122
    %v1599 = vunpack.c.h.b16 %v1122
    %v1600 = vunpack.c.l.b16 %v1123
    %v1601 = vunpack.c.h.b16 %v1123
    %v1602 = vunpack.c.l.b16 %v1124
    %v1603 = vunpack.c.h.b16 %v1124
    %v1604 = vunpack.c.l.b16 %v1125
    %v1605 = vunpack.c.h.b16 %v1125
    %v1606 = vunpack.c.l.b16 %v1126
    %v1607 = vunpack.c.h.b16 %v1126
    %v1608 = vunpack.c.l.b16 %v1127
    %v1609 = vunpack.c.h.b16 %v1127
    %v1610 = vunpack.c.l.b16 %v1128
    %v1611 = vunpack.c.h.b16 %v1128
    %v1612 = vunpack.c.l.b16 %v1129
    %v1613 = vunpack.c.h.b16 %v1129
    %v1614 = vunpack.c.l.b16 %v1130
    %v1615 = vunpack.c.h.b16 %v1130
    %v1616 = vunpack.c.l.b16 %v1131
    %v1617 = vunpack.c.h.b16 %v1131
    %v1618 = vunpack.c.l.b16 %v1132
    %v1619 = vunpack.c.h.b16 %v1132
    %v1620 = vunpack.c.l.b16 %v1133
    %v1621 = vunpack.c.h.b16 %v1133
    %v1622 = vunpack.c.l.b16 %v1134
    %v1623 = vunpack.c.h.b16 %v1134
    %v1624 = vunpack.c.l.b16 %v1135
    %v1625 = vunpack.c.h.b16 %v1135
    %v1626 = vunpack.c.l.b16 %v1136
    %v1627 = vunpack.c.h.b16 %v1136
    %v1628 = vunpack.c.l.b16 %v1137
    %v1629 = vunpack.c.h.b16 %v1137
    %v1630 = vunpack.c.l.b16 %v1138
    %v1631 = vunpack.c.h.b16 %v1138
    %v1632 = vunpack.c.l.b16 %v1139
    %v1633 = vunpack.c.h.b16 %v1139
    %v1634 = vunpack.c.l.b16 %v1140
    %v1635 = vunpack.c.h.b16 %v1140
    %v1636 = vunpack.c.l.b16 %v1141
    %v1637 = vunpack.c.h.b16 %v1141
    %v1638 = vunpack.c.l.b16 %v1142
    %v1639 = vunpack.c.h.b16 %v1142
    %v1640 = vunpack.c.l.b16 %v1143
    %v1641 = vunpack.c.h.b16 %v1143
    %v1642 = vunpack.c.l.b16 %v1144
    %v1643 = vunpack.c.h.b16 %v1144
    %v1644 = vunpack.c.l.b16 %v1145
    %v1645 = vunpack.c.h.b16 %v1145
    %v1646 = vunpack.c.l.b16 %v1146
    %v1647 = vunpack.c.h.b16 %v1146
    %v1648 = vunpack.c.l.b16 %v1147
    %v1649 = vunpack.c.h.b16 %v1147
    %v1650 = vunpack.c.l.b16 %v1148
    %v1651 = vunpack.c.h.b16 %v1148
    %v1652 = vunpack.c.l.b16 %v1149
    %v1653 = vunpack.c.h.b16 %v1149
    %v1654 = vunpack.c.l.b16 %v1150
    %v1655 = vunpack.c.h.b16 %v1150
    %v1656 = vunpack.c.l.b16 %v1151
    %v1657 = vunpack.c.h.b16 %v1151
    %v1658 = vunpack.c.l.b16 %v1152
    %v1659 = vunpack.c.h.b16 %v1152
    %v1660 = vunpack.c.l.b16 %v1153
    %v1661 = vunpack.c.h.b16 %v1153
    %v1662 = vunpack.c.l.b16 %v1154
    %v1663 = vunpack.c.h.b16 %v1154
    %v1664 = vunpack.c.l.b16 %v1155
    %v1665 = vunpack.c.h.b16 %v1155
    %v1666 = vunpack.c.l.b16 %v1156
    %v1667 = vunpack.c.h.b16 %v1156
    %v1668 = vunpack.c.l.b16 %v1157
    %v1669 = vunpack.c.h.b16 %v1157
    %v1670 = vunpack.c.l.b16 %v1158
    %v1671 = vunpack.c.h.b16 %v1158
    %v1672 = vunpack.c.l.b16 %v1159
    %v1673 = vunpack.c.h.b16 %v1159
    %v1674 = vunpack.c.l.b16 %v1160
    %v1675 = vunpack.c.h.b16 %v1160
    %v1676 = vunpack.c.l.b16 %v1161
    %v1677 = vunpack.c.h.b16 %v1161
    %v1678 = vunpack.c.l.b16 %v1162
    %v1679 = vunpack.c.h.b16 %v1162
    %v1680 = vunpack.c.l.b16 %v1163
    %v1681 = vunpack.c.h.b16 %v1163
    %v1682 = vunpack.c.l.b16 %v1164
    %v1683 = vunpack.c.h.b16 %v1164
    %v1684 = vunpack.c.l.b16 %v1165
    %v1685 = vunpack.c.h.b16 %v1165
    %v1686 = vunpack.c.l.b16 %v1166
    %v1687 = vunpack.c.h.b16 %v1166
    %v1688 = vunpack.c.l.b16 %v1167
    %v1689 = vunpack.c.h.b16 %v1167
    %v1690 = vunpack.c.l.b16 %v1168
    %v1691 = vunpack.c.h.b16 %v1168
    %v1692 = vunpack.c.l.b16 %v1169
    %v1693 = vunpack.c.h.b16 %v1169
    %v1694 = vunpack.c.l.b16 %v1170
    %v1695 = vunpack.c.h.b16 %v1170
    %v1696 = vunpack.c.l.b16 %v1171
    %v1697 = vunpack.c.h.b16 %v1171
    %v1698 = vunpack.c.l.b16 %v1172
    %v1699 = vunpack.c.h.b16 %v1172
    %v1700 = vunpack.c.l.b16 %v1173
    %v1701 = vunpack.c.h.b16 %v1173
    %v1702 = vunpack.c.l.b16 %v1174
    %v1703 = vunpack.c.h.b16 %v1174
    %v1704 = vunpack.c.l.b16 %v1175
    %v1705 = vunpack.c.h.b16 %v1175
    %v1706 = vunpack.c.l.b16 %v1176
    %v1707 = vunpack.c.h.b16 %v1176
    %v1708 = vunpack.c.l.b16 %v1177
    %v1709 = vunpack.c.h.b16 %v1177
    %v1710 = vunpack.c.l.b16 %v1178
    %v1711 = vunpack.c.h.b16 %v1178
    %v1712 = vunpack.c.l.b16 %v1179
    %v1713 = vunpack.c.h.b16 %v1179
    %v1714 = vunpack.c.l.b16 %v1180
    %v1715 = vunpack.c.h.b16 %v1180
    %v1716 = vunpack.c.l.b16 %v1181
    %v1717 = vunpack.c.h.b16 %v1181
    %v1718 = vunpack.c.l.b16 %v1182
    %v1719 = vunpack.c.h.b16 %v1182
    %v1720 = vunpack.c.l.b16 %v1183
    %v1721 = vunpack.c.h.b16 %v1183
    %v1722 = vunpack.c.l.b16 %v1184
    %v1723 = vunpack.c.h.b16 %v1184
    %v1724 = vunpack.c.l.b16 %v1185
    %v1725 = vunpack.c.h.b16 %v1185
    %v1726 = vunpack.c.l.b16 %v1186
    %v1727 = vunpack.c.h.b16 %v1186
    %v1728 = vunpack.c.l.b16 %v1187
    %v1729 = vunpack.c.h.b16 %v1187
    %v1730 = vunpack.c.l.b16 %v1188
    %v1731 = vunpack.c.h.b16 %v1188
    %v1732 = vunpack.c.l.b16 %v1189
    %v1733 = vunpack.c.h.b16 %v1189
    %v1734 = vunpack.c.l.b16 %v1190
    %v1735 = vunpack.c.h.b16 %v1190
    %v1736 = vunpack.c.l.b16 %v1191
    %v1737 = vunpack.c.h.b16 %v1191
    %v1738 = vunpack.c.l.b16 %v1192
    %v1739 = vunpack.c.h.b16 %v1192
    %v1740 = vunpack.c.l.b16 %v1193
    %v1741 = vunpack.c.h.b16 %v1193
    %v1742 = vunpack.c.l.b16 %v1194
    %v1743 = vunpack.c.h.b16 %v1194
    %v1744 = vunpack.c.l.b16 %v1195
    %v1745 = vunpack.c.h.b16 %v1195
    %v1746 = vunpack.c.l.b16 %v1196
    %v1747 = vunpack.c.h.b16 %v1196
    %v1748 = vunpack.c.l.b16 %v1197
    %v1749 = vunpack.c.h.b16 %v1197
    %v1750 = vunpack.c.l.b16 %v1198
    %v1751 = vunpack.c.h.b16 %v1198
    %v1752 = vunpack.c.l.b16 %v1199
    %v1753 = vunpack.c.h.b16 %v1199
    %v1754 = vunpack.c.l.b16 %v1200
    %v1755 = vunpack.c.h.b16 %v1200
    %v1756 = vunpack.c.l.b16 %v1201
    %v1757 = vunpack.c.h.b16 %v1201
    %v1758 = vunpack.c.l.b16 %v1202
    %v1759 = vunpack.c.h.b16 %v1202
    %v1760 = vunpack.c.l.b16 %v1203
    %v1761 = vunpack.c.h.b16 %v1203
    %v1762 = vunpack.c.l.b16 %v1204
    %v1763 = vunpack.c.h.b16 %v1204
    %v1764 = vunpack.c.l.b16 %v1205
    %v1765 = vunpack.c.h.b16 %v1205
    %v1766 = vunpack.c.l.b16 %v1206
    %v1767 = vunpack.c.h.b16 %v1206
    %v1768 = vunpack.c.l.b16 %v1207
    %v1769 = vunpack.c.h.b16 %v1207
    %v1770 = vunpack.c.l.b16 %v1208
    %v1771 = vunpack.c.h.b16 %v1208
    %v1772 = vunpack.c.l.b16 %v1209
    %v1773 = vunpack.c.h.b16 %v1209
    %v1774 = vunpack.c.l.b16 %v1210
    %v1775 = vunpack.c.h.b16 %v1210
    %v1776 = vunpack.c.l.b16 %v1211
    %v1777 = vunpack.c.h.b16 %v1211
    %v1778 = vunpack.c.l.b16 %v1212
    %v1779 = vunpack.c.h.b16 %v1212
    %v1780 = vunpack.c.l.b16 %v1213
    %v1781 = vunpack.c.h.b16 %v1213
    %v1782 = vunpack.c.l.b16 %v1214
    %v1783 = vunpack.c.h.b16 %v1214
    %v1784 = vunpack.c.l.b16 %v1215
    %v1785 = vunpack.c.h.b16 %v1215
    %v1786 = vpack.c.b16 %v1416, %v1406
    %v1787 = vpack.c.b16 %v1417, %v1407
    %v1788 = vpack.c.b16 %v1418, %v1408
    %v1789 = vpack.c.b16 %v1419, %v1409
    %v1790 = vpack.c.b16 %v1420, %v1410
    %v1791 = vpack.c.b16 %v1421, %v1411
    %v1792 = vpack.c.b16 %v1422, %v1412
    %v1793 = vpack.c.b16 %v1423, %v1413
    %v1794 = vpack.c.b16 %v1424, %v1414
    %v1795 = vpack.c.b16 %v1425, %v1415
    %v1796 = vpack.c.b16 %v1436, %v1426
    %v1797 = vpack.c.b16 %v1437, %v1427
    %v1798 = vpack.c.b16 %v1438, %v1428
    %v1799 = vpack.c.b16 %v1439, %v1429
    %v1800 = vpack.c.b16 %v1440, %v1430
    %v1801 = vpack.c.b16 %v1441, %v1431
    %v1802 = vpack.c.b16 %v1442, %v1432
    %v1803 = vpack.c.b16 %v1443, %v1433
    %v1804 = vpack.c.b16 %v1444, %v1434
    %v1805 = vpack.c.b16 %v1445, %v1435
    %v1806 = vpack.c.b16 %v1456, %v1446
    %v1807 = vpack.c.b16 %v1457, %v1447
    %v1808 = vpack.c.b16 %v1458, %v1448
    %v1809 = vpack.c.b16 %v1459, %v1449
    %v1810 = vpack.c.b16 %v1460, %v1450
    %v1811 = vpack.c.b16 %v1461, %v1451
    %v1812 = vpack.c.b16 %v1462, %v1452
    %v1813 = vpack.c.b16 %v1463, %v1453
    %v1814 = vpack.c.b16 %v1464, %v1454
    %v1815 = vpack.c.b16 %v1465, %v1455
    %v1816 = vpack.c.b16 %v1476, %v1466
    %v1817 = vpack.c.b16 %v1477, %v1467
    %v1818 = vpack.c.b16 %v1478, %v1468
    %v1819 = vpack.c.b16 %v1479, %v1469
    %v1820 = vpack.c.b16 %v1480, %v1470
    %v1821 = vpack.c.b16 %v1481, %v1471
    %v1822 = vpack.c.b16 %v1482, %v1472
    %v1823 = vpack.c.b16 %v1483, %v1473
    %v1824 = vpack.c.b16 %v1484, %v1474
    %v1825 = vpack.c.b16 %v1485, %v1475
    %v1826 = vpack.c.b16 %v1496, %v1486
    %v1827 = vpack.c.b16 %v1497, %v1487
    %v1828 = vpack.c.b16 %v1498, %v1488
    %v1829 = vpack.c.b16 %v1499, %v1489
    %v1830 = vpack.c.b16 %v1500, %v1490
    %v1831 = vpack.c.b16 %v1501, %v1491
    %v1832 = vpack.c.b16 %v1502, %v1492
    %v1833 = vpack.c.b16 %v1503, %v1493
    %v1834 = vpack.c.b16 %v1504, %v1494
    %v1835 = vpack.c.b16 %v1505, %v1495
    %v1836 = vpack.c.b16 %v1516, %v1506
    %v1837 = vpack.c.b16 %v1517, %v1507
    %v1838 = vpack.c.b16 %v1518, %v1508
    %v1839 = vpack.c.b16 %v1519, %v1509
    %v1840 = vpack.c.b16 %v1520, %v1510
    %v1841 = vpack.c.b16 %v1521, %v1511
    %v1842 = vpack.c.b16 %v1522, %v1512
    %v1843 = vpack.c.b16 %v1523, %v1513
    %v1844 = vpack.c.b16 %v1524, %v1514
    %v1845 = vpack.c.b16 %v1525, %v1515
    %v1846 = vpack.c.b16 %v1536, %v1526
    %v1847 = vpack.c.b16 %v1537, %v1527
    %v1848 = vpack.c.b16 %v1538, %v1528
    %v1849 = vpack.c.b16 %v1539, %v1529
    %v1850 = vpack.c.b16 %v1540, %v1530
    %v1851 = vpack.c.b16 %v1541, %v1531
    %v1852 = vpack.c.b16 %v1542, %v1532
    %v1853 = vpack.c.b16 %v1543, %v1533
    %v1854 = vpack.c.b16 %v1544, %v1534
    %v1855 = vpack.c.b16 %v1545, %v1535
    %v1856 = vpack.c.b16 %v1556, %v1546
    %v1857 = vpack.c.b16 %v1557, %v1547
    %v1858 = vpack.c.b16 %v1558, %v1548
    %v1859 = vpack.c.b16 %v1559, %v1549
    %v1860 = vpack.c.b16 %v1560, %v1550
    %v1861 = vpack.c.b16 %v1561, %v1551
    %v1862 = vpack.c.b16 %v1562, %v1552
    %v1863 = vpack.c.b16 %v1563, %v1553
    %v1864 = vpack.c.b16 %v1564, %v1554
    %v1865 = vpack.c.b16 %v1565, %v1555
    %v1866 = vpack.c.b16 %v1576, %v1566
    %v1867 = vpack.c.b16 %v1577, %v1567
    %v1868 = vpack.c.b16 %v1578, %v1568
    %v1869 = vpack.c.b16 %v1579, %v1569
    %v1870 = vpack.c.b16 %v1580, %v1570
    %v1871 = vpack.c.b16 %v1581, %v1571
    %v1872 = vpack.c.b16 %v1582, %v1572
    %v1873 = vpack.c.b16 %v1583, %v1573
    %v1874 = vpack.c.b16 %v1584, %v1574
    %v1875 = vpack.c.b16 %v1585, %v1575
    %v1876 = vpack.c.b16 %v1596, %v1586
    %v1877 = vpack.c.b16 %v1597, %v1587
    %v1878 = vpack.c.b16 %v1598, %v1588
    %v1879 = vpack.c.b16 %v1599, %v1589
    %v1880 = vpack.c.b16 %v1600, %v1590
    %v1881 = vpack.c.b16 %v1601, %v1591
    %v1882 = vpack.c.b16 %v1602, %v1592
    %v1883 = vpack.c.b16 %v1603, %v1593
    %v1884 = vpack.c.b16 %v1604, %v1594
    %v1885 = vpack.c.b16 %v1605, %v1595
    %v1886 = vpack.c.b16 %v1616, %v1606
    %v1887 = vpack.c.b16 %v1617, %v1607
    %v1888 = vpack.c.b16 %v1618, %v1608
    %v1889 = vpack.c.b16 %v1619, %v1609
    %v1890 = vpack.c.b16 %v1620, %v1610
    %v1891 = vpack.c.b16 %v1621, %v1611
    %v1892 = vpack.c.b16 %v1622, %v1612
    %v1893 = vpack.c.b16 %v1623, %v1613
    %v1894 = vpack.c.b16 %v1624, %v1614
    %v1895 = vpack.c.b16 %v1625, %v1615
    %v1896 = vpack.c.b16 %v1636, %v1626
    %v1897 = vpack.c.b16 %v1637, %v1627
    %v1898 = vpack.c.b16 %v1638, %v1628
    %v1899 = vpack.c.b16 %v1639, %v1629
    %v1900 = vpack.c.b16 %v1640, %v1630
    %v1901 = vpack.c.b16 %v1641, %v1631
    %v1902 = vpack.c.b16 %v1642, %v1632
    %v1903 = vpack.c.b16 %v1643, %v1633
    %v1904 = vpack.c.b16 %v1644, %v1634
    %v1905 = vpack.c.b16 %v1645, %v1635
    %v1906 = vpack.c.b16 %v1656, %v1646
    %v1907 = vpack.c.b16 %v1657, %v1647
    %v1908 = vpack.c.b16 %v1658, %v1648
    %v1909 = vpack.c.b16 %v1659, %v1649
    %v1910 = vpack.c.b16 %v1660, %v1650
    %v1911 = vpack.c.b16 %v1661, %v1651
    %v1912 = vpack.c.b16 %v1662, %v1652
    %v1913 = vpack.c.b16 %v1663, %v1653
    %v1914 = vpack.c.b16 %v1664, %v1654
    %v1915 = vpack.c.b16 %v1665, %v1655
    %v1916 = vpack.c.b16 %v1676, %v1666
    %v1917 = vpack.c.b16 %v1677, %v1667
    %v1918 = vpack.c.b16 %v1678, %v1668
    %v1919 = vpack.c.b16 %v1679, %v1669
    %v1920 = vpack.c.b16 %v1680, %v1670
    %v1921 = vpack.c.b16 %v1681, %v1671
    %v1922 = vpack.c.b16 %v1682, %v1672
    %v1923 = vpack.c.b16 %v1683, %v1673
    %v1924 = vpack.c.b16 %v1684, %v1674
    %v1925 = vpack.c.b16 %v1685, %v1675
    %v1926 = vpack.c.b16 %v1696, %v1686
    %v1927 = vpack.c.b16 %v1697, %v1687
    %v1928 = vpack.c.b16 %v1698, %v1688
    %v1929 = vpack.c.b16 %v1699, %v1689
    %v1930 = vpack.c.b16 %v1700, %v1690
    %v1931 = vpack.c.b16 %v1701, %v1691
    %v1932 = vpack.c.b16 %v1702, %v1692
    %v1933 = vpack.c.b16 %v1703, %v1693
    %v1934 = vpack.c.b16 %v1704, %v1694
    %v1935 = vpack.c.b16 %v1705, %v1695
    %v1936 = vpack.c.b16 %v1716, %v1706
    %v1937 = vpack.c.b16 %v1717, %v1707
    %v1938 = vpack.c.b16 %v1718, %v1708
    %v1939 = vpack.c.b16 %v1719, %v1709
    %v1940 = vpack.c.b16 %v1720, %v1710
    %v1941 = vpack.c.b16 %v1721, %v1711
    %v1942 = vpack.c.b16 %v1722, %v1712
    %v1943 = vpack.c.b16 %v1723, %v1713
    %v1944 = vpack.c.b16 %v1724, %v1714
    %v1945 = vpack.c.b16 %v1725, %v1715
    %v1946 = vpack.c.b16 %v1736, %v1726
    %v1947 = vpack.c.b16 %v1737, %v1727
    %v1948 = vpack.c.b16 %v1738, %v1728
    %v1949 = vpack.c.b16 %v1739, %v1729
    %v1950 = vpack.c.b16 %v1740, %v1730
    %v1951 = vpack.c.b16 %v1741, %v1731
    %v1952 = vpack.c.b16 %v1742, %v1732
    %v1953 = vpack.c.b16 %v1743, %v1733
    %v1954 = vpack.c.b16 %v1744, %v1734
    %v1955 = vpack.c.b16 %v1745, %v1735
    %v1956 = vpack.c.b16 %v1756, %v1746
    %v1957 = vpack.c.b16 %v1757, %v1747
    %v1958 = vpack.c.b16 %v1758, %v1748
    %v1959 = vpack.c.b16 %v1759, %v1749
    %v1960 = vpack.c.b16 %v1760, %v1750
    %v1961 = vpack.c.b16 %v1761, %v1751
    %v1962 = vpack.c.b16 %v1762, %v1752
    %v1963 = vpack.c.b16 %v1763, %v1753
    %v1964 = vpack.c.b16 %v1764, %v1754
    %v1965 = vpack.c.b16 %v1765, %v1755
    %v1966 = vpack.c.b16 %v1776, %v1766
    %v1967 = vpack.c.b16 %v1777, %v1767
    %v1968 = vpack.c.b16 %v1778, %v1768
    %v1969 = vpack.c.b16 %v1779, %v1769
    %v1970 = vpack.c.b16 %v1780, %v1770
    %v1971 = vpack.c.b16 %v1781, %v1771
    %v1972 = vpack.c.b16 %v1782, %v1772
    %v1973 = vpack.c.b16 %v1783, %v1773
    %v1974 = vpack.c.b16 %v1784, %v1774
    %v1975 = vpack.c.b16 %v1785, %v1775
    %v2157 = vsel %vm575, %v1025, 0
    %v2160 = vsel %vm579, %v1966, 0
    %v2163 = vsel %vm579, %v1967, 0
    %v2166 = vsel %vm579, %v1968, 0
    %v2169 = vsel %vm579, %v1969, 0
    %v2172 = vsel %vm579, %v1970, 0
    %v2175 = vsel %vm579, %v1971, 0
    %v2178 = vsel %vm579, %v1972, 0
    %v2181 = vsel %vm579, %v1973, 0
    %v2184 = vsel %vm579, %v1974, 0
    %v2187 = vsel %vm579, %v1975, 0
    %2189 = vmatpush.bf16.msra.mxu0 %v1856
    %2190 = vmatpush.bf16.msra.mxu0 %v1846
    %2191 = vmatpush.bf16.msra.mxu0 %v1836
    %2192 = vmatpush.bf16.msra.mxu0 %v1826
    %2193 = vmatpush.bf16.msra.mxu0 %v1816
    %2194 = vmatpush.bf16.msra.mxu0 %v1806
    %2195 = vmatpush.bf16.msra.mxu0 %v1796
    %2196 = vmatpush.bf16.msra.mxu0 %v1786
    %2197 = vmatmul.bf16.gmra.mxu0 %v1023
    %v2198 = vpop.f32.mrf.mxu0
    %v2199 = vadd.f32 0.0, %v2198
    %v2200 = vpop.f32.mrf.mxu0
    %v2201 = vadd.f32 0.0, %v2200
    %2202 = vdwg.mxu0
    %2203 = vmatpush.bf16.msra.mxu0 %v1936
    %2204 = vmatpush.bf16.msra.mxu0 %v1926
    %2205 = vmatpush.bf16.msra.mxu0 %v1916
    %2206 = vmatpush.bf16.msra.mxu0 %v1906
    %2207 = vmatpush.bf16.msra.mxu0 %v1896
    %2208 = vmatpush.bf16.msra.mxu0 %v1886
    %2209 = vmatpush.bf16.msra.mxu0 %v1876
    %2210 = vmatpush.bf16.msra.mxu0 %v1866
    %2211 = vmatmul.bf16.gmra.mxu0 %v1024
    %v2212 = vpop.f32.mrf.mxu0
    %v2213 = vadd.f32 %v2199, %v2212
    %v2214 = vpop.f32.mrf.mxu0
    %v2215 = vadd.f32 %v2201, %v2214
    %2216 = vdwg.mxu0
    %2217 = vmatpush.bf16.msra.mxu0 0
    %2218 = vmatpush.bf16.msra.mxu0 0
    %2219 = vmatpush.bf16.msra.mxu0 0
    %2220 = vmatpush.bf16.msra.mxu0 0
    %2221 = vmatpush.bf16.msra.mxu0 0
    %2222 = vmatpush.bf16.msra.mxu0 %v2160
    %2223 = vmatpush.bf16.msra.mxu0 %v1956
    %2224 = vmatpush.bf16.msra.mxu0 %v1946
    %2225 = vmatmul.bf16.gmra.mxu0 %v2157
    %v2226 = vpop.f32.mrf.mxu0
    %v2227 = vadd.f32 %v2213, %v2226
    %v2228 = vpop.f32.mrf.mxu0
    %v2229 = vadd.f32 %v2215, %v2228
    %2230 = vdwg.mxu0
    %2231 = vmatpush.bf16.msra.mxu0 %v1857
    %2232 = vmatpush.bf16.msra.mxu0 %v1847
    %2233 = vmatpush.bf16.msra.mxu0 %v1837
    %2234 = vmatpush.bf16.msra.mxu0 %v1827
    %2235 = vmatpush.bf16.msra.mxu0 %v1817
    %2236 = vmatpush.bf16.msra.mxu0 %v1807
    %2237 = vmatpush.bf16.msra.mxu0 %v1797
    %2238 = vmatpush.bf16.msra.mxu0 %v1787
    %2239 = vmatmul.bf16.gmra.mxu0 %v1023
    %v2240 = vpop.f32.mrf.mxu0
    %v2241 = vadd.f32 0.0, %v2240
    %v2242 = vpop.f32.mrf.mxu0
    %v2243 = vadd.f32 0.0, %v2242
    %2244 = vdwg.mxu0
    %2245 = vmatpush.bf16.msra.mxu0 %v1937
    %2246 = vmatpush.bf16.msra.mxu0 %v1927
    %2247 = vmatpush.bf16.msra.mxu0 %v1917
    %2248 = vmatpush.bf16.msra.mxu0 %v1907
    %2249 = vmatpush.bf16.msra.mxu0 %v1897
    %2250 = vmatpush.bf16.msra.mxu0 %v1887
    %2251 = vmatpush.bf16.msra.mxu0 %v1877
    %2252 = vmatpush.bf16.msra.mxu0 %v1867
    %2253 = vmatmul.bf16.gmra.mxu0 %v1024
    %v2254 = vpop.f32.mrf.mxu0
    %v2255 = vadd.f32 %v2241, %v2254
    %v2256 = vpop.f32.mrf.mxu0
    %v2257 = vadd.f32 %v2243, %v2256
    %2258 = vdwg.mxu0
    %2259 = vmatpush.bf16.msra.mxu0 0
    %2260 = vmatpush.bf16.msra.mxu0 0
    %2261 = vmatpush.bf16.msra.mxu0 0
    %2262 = vmatpush.bf16.msra.mxu0 0
    %2263 = vmatpush.bf16.msra.mxu0 0
    %2264 = vmatpush.bf16.msra.mxu0 %v2163
    %2265 = vmatpush.bf16.msra.mxu0 %v1957
    %2266 = vmatpush.bf16.msra.mxu0 %v1947
    %2267 = vmatmul.bf16.gmra.mxu0 %v2157
    %v2268 = vpop.f32.mrf.mxu0
    %v2269 = vadd.f32 %v2255, %v2268
    %v2270 = vpop.f32.mrf.mxu0
    %v2271 = vadd.f32 %v2257, %v2270
    %2272 = vdwg.mxu0
    %2273 = vmatpush.bf16.msra.mxu0 %v1858
    %2274 = vmatpush.bf16.msra.mxu0 %v1848
    %2275 = vmatpush.bf16.msra.mxu0 %v1838
    %2276 = vmatpush.bf16.msra.mxu0 %v1828
    %2277 = vmatpush.bf16.msra.mxu0 %v1818
    %2278 = vmatpush.bf16.msra.mxu0 %v1808
    %2279 = vmatpush.bf16.msra.mxu0 %v1798
    %2280 = vmatpush.bf16.msra.mxu0 %v1788
    %2281 = vmatmul.bf16.gmra.mxu0 %v1023
    %v2282 = vpop.f32.mrf.mxu0
    %v2283 = vadd.f32 0.0, %v2282
    %v2284 = vpop.f32.mrf.mxu0
    %v2285 = vadd.f32 0.0, %v2284
    %2286 = vdwg.mxu0
    %2287 = vmatpush.bf16.msra.mxu0 %v1938
    %2288 = vmatpush.bf16.msra.mxu0 %v1928
    %2289 = vmatpush.bf16.msra.mxu0 %v1918
    %2290 = vmatpush.bf16.msra.mxu0 %v1908
    %2291 = vmatpush.bf16.msra.mxu0 %v1898
    %2292 = vmatpush.bf16.msra.mxu0 %v1888
    %2293 = vmatpush.bf16.msra.mxu0 %v1878
    %2294 = vmatpush.bf16.msra.mxu0 %v1868
    %2295 = vmatmul.bf16.gmra.mxu0 %v1024
    %v2296 = vpop.f32.mrf.mxu0
    %v2297 = vadd.f32 %v2283, %v2296
    %v2298 = vpop.f32.mrf.mxu0
    %v2299 = vadd.f32 %v2285, %v2298
    %2300 = vdwg.mxu0
    %2301 = vmatpush.bf16.msra.mxu0 0
    %2302 = vmatpush.bf16.msra.mxu0 0
    %2303 = vmatpush.bf16.msra.mxu0 0
    %2304 = vmatpush.bf16.msra.mxu0 0
    %2305 = vmatpush.bf16.msra.mxu0 0
    %2306 = vmatpush.bf16.msra.mxu0 %v2166
    %2307 = vmatpush.bf16.msra.mxu0 %v1958
    %2308 = vmatpush.bf16.msra.mxu0 %v1948
    %2309 = vmatmul.bf16.gmra.mxu0 %v2157
    %v2310 = vpop.f32.mrf.mxu0
    %v2311 = vadd.f32 %v2297, %v2310
    %v2312 = vpop.f32.mrf.mxu0
    %v2313 = vadd.f32 %v2299, %v2312
    %2314 = vdwg.mxu0
    %2315 = vmatpush.bf16.msra.mxu0 %v1859
    %2316 = vmatpush.bf16.msra.mxu0 %v1849
    %2317 = vmatpush.bf16.msra.mxu0 %v1839
    %2318 = vmatpush.bf16.msra.mxu0 %v1829
    %2319 = vmatpush.bf16.msra.mxu0 %v1819
    %2320 = vmatpush.bf16.msra.mxu0 %v1809
    %2321 = vmatpush.bf16.msra.mxu0 %v1799
    %2322 = vmatpush.bf16.msra.mxu0 %v1789
    %2323 = vmatmul.bf16.gmra.mxu0 %v1023
    %v2324 = vpop.f32.mrf.mxu0
    %v2325 = vadd.f32 0.0, %v2324
    %v2326 = vpop.f32.mrf.mxu0
    %v2327 = vadd.f32 0.0, %v2326
    %2328 = vdwg.mxu0
    %2329 = vmatpush.bf16.msra.mxu0 %v1939
    %2330 = vmatpush.bf16.msra.mxu0 %v1929
    %2331 = vmatpush.bf16.msra.mxu0 %v1919
    %2332 = vmatpush.bf16.msra.mxu0 %v1909
    %2333 = vmatpush.bf16.msra.mxu0 %v1899
    %2334 = vmatpush.bf16.msra.mxu0 %v1889
    %2335 = vmatpush.bf16.msra.mxu0 %v1879
    %2336 = vmatpush.bf16.msra.mxu0 %v1869
    %2337 = vmatmul.bf16.gmra.mxu0 %v1024
    %v2338 = vpop.f32.mrf.mxu0
    %v2339 = vadd.f32 %v2325, %v2338
    %v2340 = vpop.f32.mrf.mxu0
    %v2341 = vadd.f32 %v2327, %v2340
    %2342 = vdwg.mxu0
    %2343 = vmatpush.bf16.msra.mxu0 0
    %2344 = vmatpush.bf16.msra.mxu0 0
    %2345 = vmatpush.bf16.msra.mxu0 0
    %2346 = vmatpush.bf16.msra.mxu0 0
    %2347 = vmatpush.bf16.msra.mxu0 0
    %2348 = vmatpush.bf16.msra.mxu0 %v2169
    %2349 = vmatpush.bf16.msra.mxu0 %v1959
    %2350 = vmatpush.bf16.msra.mxu0 %v1949
    %2351 = vmatmul.bf16.gmra.mxu0 %v2157
    %v2352 = vpop.f32.mrf.mxu0
    %v2353 = vadd.f32 %v2339, %v2352
    %v2354 = vpop.f32.mrf.mxu0
    %v2355 = vadd.f32 %v2341, %v2354
    %2356 = vdwg.mxu0
    %2357 = vmatpush.bf16.msra.mxu0 %v1860
    %2358 = vmatpush.bf16.msra.mxu0 %v1850
    %2359 = vmatpush.bf16.msra.mxu0 %v1840
    %2360 = vmatpush.bf16.msra.mxu0 %v1830
    %2361 = vmatpush.bf16.msra.mxu0 %v1820
    %2362 = vmatpush.bf16.msra.mxu0 %v1810
    %2363 = vmatpush.bf16.msra.mxu0 %v1800
    %2364 = vmatpush.bf16.msra.mxu0 %v1790
    %2365 = vmatmul.bf16.gmra.mxu0 %v1023
    %v2366 = vpop.f32.mrf.mxu0
    %v2367 = vadd.f32 0.0, %v2366
    %v2368 = vpop.f32.mrf.mxu0
    %v2369 = vadd.f32 0.0, %v2368
    %2370 = vdwg.mxu0
    %2371 = vmatpush.bf16.msra.mxu0 %v1940
    %2372 = vmatpush.bf16.msra.mxu0 %v1930
    %2373 = vmatpush.bf16.msra.mxu0 %v1920
    %2374 = vmatpush.bf16.msra.mxu0 %v1910
    %2375 = vmatpush.bf16.msra.mxu0 %v1900
    %2376 = vmatpush.bf16.msra.mxu0 %v1890
    %2377 = vmatpush.bf16.msra.mxu0 %v1880
    %2378 = vmatpush.bf16.msra.mxu0 %v1870
    %2379 = vmatmul.bf16.gmra.mxu0 %v1024
    %v2380 = vpop.f32.mrf.mxu0
    %v2381 = vadd.f32 %v2367, %v2380
    %v2382 = vpop.f32.mrf.mxu0
    %v2383 = vadd.f32 %v2369, %v2382
    %2384 = vdwg.mxu0
    %2385 = vmatpush.bf16.msra.mxu0 0
    %2386 = vmatpush.bf16.msra.mxu0 0
    %2387 = vmatpush.bf16.msra.mxu0 0
    %2388 = vmatpush.bf16.msra.mxu0 0
    %2389 = vmatpush.bf16.msra.mxu0 0
    %2390 = vmatpush.bf16.msra.mxu0 %v2172
    %2391 = vmatpush.bf16.msra.mxu0 %v1960
    %2392 = vmatpush.bf16.msra.mxu0 %v1950
    %2393 = vmatmul.bf16.gmra.mxu0 %v2157
    %v2394 = vpop.f32.mrf.mxu0
    %v2395 = vadd.f32 %v2381, %v2394
    %v2396 = vpop.f32.mrf.mxu0
    %v2397 = vadd.f32 %v2383, %v2396
    %2398 = vdwg.mxu0
    %2399 = vmatpush.bf16.msra.mxu0 %v1861
    %2400 = vmatpush.bf16.msra.mxu0 %v1851
    %2401 = vmatpush.bf16.msra.mxu0 %v1841
    %2402 = vmatpush.bf16.msra.mxu0 %v1831
    %2403 = vmatpush.bf16.msra.mxu0 %v1821
    %2404 = vmatpush.bf16.msra.mxu0 %v1811
    %2405 = vmatpush.bf16.msra.mxu0 %v1801
    %2406 = vmatpush.bf16.msra.mxu0 %v1791
    %2407 = vmatmul.bf16.gmra.mxu0 %v1023
    %v2408 = vpop.f32.mrf.mxu0
    %v2409 = vadd.f32 0.0, %v2408
    %v2410 = vpop.f32.mrf.mxu0
    %v2411 = vadd.f32 0.0, %v2410
    %2412 = vdwg.mxu0
    %2413 = vmatpush.bf16.msra.mxu0 %v1941
    %2414 = vmatpush.bf16.msra.mxu0 %v1931
    %2415 = vmatpush.bf16.msra.mxu0 %v1921
    %2416 = vmatpush.bf16.msra.mxu0 %v1911
    %2417 = vmatpush.bf16.msra.mxu0 %v1901
    %2418 = vmatpush.bf16.msra.mxu0 %v1891
    %2419 = vmatpush.bf16.msra.mxu0 %v1881
    %2420 = vmatpush.bf16.msra.mxu0 %v1871
    %2421 = vmatmul.bf16.gmra.mxu0 %v1024
    %v2422 = vpop.f32.mrf.mxu0
    %v2423 = vadd.f32 %v2409, %v2422
    %v2424 = vpop.f32.mrf.mxu0
    %v2425 = vadd.f32 %v2411, %v2424
    %2426 = vdwg.mxu0
    %2427 = vmatpush.bf16.msra.mxu0 0
    %2428 = vmatpush.bf16.msra.mxu0 0
    %2429 = vmatpush.bf16.msra.mxu0 0
    %2430 = vmatpush.bf16.msra.mxu0 0
    %2431 = vmatpush.bf16.msra.mxu0 0
    %2432 = vmatpush.bf16.msra.mxu0 %v2175
    %2433 = vmatpush.bf16.msra.mxu0 %v1961
    %2434 = vmatpush.bf16.msra.mxu0 %v1951
    %2435 = vmatmul.bf16.gmra.mxu0 %v2157
    %v2436 = vpop.f32.mrf.mxu0
    %v2437 = vadd.f32 %v2423, %v2436
    %v2438 = vpop.f32.mrf.mxu0
    %v2439 = vadd.f32 %v2425, %v2438
    %2440 = vdwg.mxu0
    %2441 = vmatpush.bf16.msra.mxu0 %v1862
    %2442 = vmatpush.bf16.msra.mxu0 %v1852
    %2443 = vmatpush.bf16.msra.mxu0 %v1842
    %2444 = vmatpush.bf16.msra.mxu0 %v1832
    %2445 = vmatpush.bf16.msra.mxu0 %v1822
    %2446 = vmatpush.bf16.msra.mxu0 %v1812
    %2447 = vmatpush.bf16.msra.mxu0 %v1802
    %2448 = vmatpush.bf16.msra.mxu0 %v1792
    %2449 = vmatmul.bf16.gmra.mxu0 %v1023
    %v2450 = vpop.f32.mrf.mxu0
    %v2451 = vadd.f32 0.0, %v2450
    %v2452 = vpop.f32.mrf.mxu0
    %v2453 = vadd.f32 0.0, %v2452
    %2454 = vdwg.mxu0
    %2455 = vmatpush.bf16.msra.mxu0 %v1942
    %2456 = vmatpush.bf16.msra.mxu0 %v1932
    %2457 = vmatpush.bf16.msra.mxu0 %v1922
    %2458 = vmatpush.bf16.msra.mxu0 %v1912
    %2459 = vmatpush.bf16.msra.mxu0 %v1902
    %2460 = vmatpush.bf16.msra.mxu0 %v1892
    %2461 = vmatpush.bf16.msra.mxu0 %v1882
    %2462 = vmatpush.bf16.msra.mxu0 %v1872
    %2463 = vmatmul.bf16.gmra.mxu0 %v1024
    %v2464 = vpop.f32.mrf.mxu0
    %v2465 = vadd.f32 %v2451, %v2464
    %v2466 = vpop.f32.mrf.mxu0
    %v2467 = vadd.f32 %v2453, %v2466
    %2468 = vdwg.mxu0
    %2469 = vmatpush.bf16.msra.mxu0 0
    %2470 = vmatpush.bf16.msra.mxu0 0
    %2471 = vmatpush.bf16.msra.mxu0 0
    %2472 = vmatpush.bf16.msra.mxu0 0
    %2473 = vmatpush.bf16.msra.mxu0 0
    %2474 = vmatpush.bf16.msra.mxu0 %v2178
    %2475 = vmatpush.bf16.msra.mxu0 %v1962
    %2476 = vmatpush.bf16.msra.mxu0 %v1952
    %2477 = vmatmul.bf16.gmra.mxu0 %v2157
    %v2478 = vpop.f32.mrf.mxu0
    %v2479 = vadd.f32 %v2465, %v2478
    %v2480 = vpop.f32.mrf.mxu0
    %v2481 = vadd.f32 %v2467, %v2480
    %2482 = vdwg.mxu0
    %2483 = vmatpush.bf16.msra.mxu0 %v1863
    %2484 = vmatpush.bf16.msra.mxu0 %v1853
    %2485 = vmatpush.bf16.msra.mxu0 %v1843
    %2486 = vmatpush.bf16.msra.mxu0 %v1833
    %2487 = vmatpush.bf16.msra.mxu0 %v1823
    %2488 = vmatpush.bf16.msra.mxu0 %v1813
    %2489 = vmatpush.bf16.msra.mxu0 %v1803
    %2490 = vmatpush.bf16.msra.mxu0 %v1793
    %2491 = vmatmul.bf16.gmra.mxu0 %v1023
    %v2492 = vpop.f32.mrf.mxu0
    %v2493 = vadd.f32 0.0, %v2492
    %v2494 = vpop.f32.mrf.mxu0
    %v2495 = vadd.f32 0.0, %v2494
    %2496 = vdwg.mxu0
    %2497 = vmatpush.bf16.msra.mxu0 %v1943
    %2498 = vmatpush.bf16.msra.mxu0 %v1933
    %2499 = vmatpush.bf16.msra.mxu0 %v1923
    %2500 = vmatpush.bf16.msra.mxu0 %v1913
    %2501 = vmatpush.bf16.msra.mxu0 %v1903
    %2502 = vmatpush.bf16.msra.mxu0 %v1893
    %2503 = vmatpush.bf16.msra.mxu0 %v1883
    %2504 = vmatpush.bf16.msra.mxu0 %v1873
    %2505 = vmatmul.bf16.gmra.mxu0 %v1024
    %v2506 = vpop.f32.mrf.mxu0
    %v2507 = vadd.f32 %v2493, %v2506
    %v2508 = vpop.f32.mrf.mxu0
    %v2509 = vadd.f32 %v2495, %v2508
    %2510 = vdwg.mxu0
    %2511 = vmatpush.bf16.msra.mxu0 0
    %2512 = vmatpush.bf16.msra.mxu0 0
    %2513 = vmatpush.bf16.msra.mxu0 0
    %2514 = vmatpush.bf16.msra.mxu0 0
    %2515 = vmatpush.bf16.msra.mxu0 0
    %2516 = vmatpush.bf16.msra.mxu0 %v2181
    %2517 = vmatpush.bf16.msra.mxu0 %v1963
    %2518 = vmatpush.bf16.msra.mxu0 %v1953
    %2519 = vmatmul.bf16.gmra.mxu0 %v2157
    %v2520 = vpop.f32.mrf.mxu0
    %v2521 = vadd.f32 %v2507, %v2520
    %v2522 = vpop.f32.mrf.mxu0
    %v2523 = vadd.f32 %v2509, %v2522
    %2524 = vdwg.mxu0
    %2525 = vmatpush.bf16.msra.mxu0 %v1864
    %2526 = vmatpush.bf16.msra.mxu0 %v1854
    %2527 = vmatpush.bf16.msra.mxu0 %v1844
    %2528 = vmatpush.bf16.msra.mxu0 %v1834
    %2529 = vmatpush.bf16.msra.mxu0 %v1824
    %2530 = vmatpush.bf16.msra.mxu0 %v1814
    %2531 = vmatpush.bf16.msra.mxu0 %v1804
    %2532 = vmatpush.bf16.msra.mxu0 %v1794
    %2533 = vmatmul.bf16.gmra.mxu0 %v1023
    %v2534 = vpop.f32.mrf.mxu0
    %v2535 = vadd.f32 0.0, %v2534
    %v2536 = vpop.f32.mrf.mxu0
    %v2537 = vadd.f32 0.0, %v2536
    %2538 = vdwg.mxu0
    %2539 = vmatpush.bf16.msra.mxu0 %v1944
    %2540 = vmatpush.bf16.msra.mxu0 %v1934
    %2541 = vmatpush.bf16.msra.mxu0 %v1924
    %2542 = vmatpush.bf16.msra.mxu0 %v1914
    %2543 = vmatpush.bf16.msra.mxu0 %v1904
    %2544 = vmatpush.bf16.msra.mxu0 %v1894
    %2545 = vmatpush.bf16.msra.mxu0 %v1884
    %2546 = vmatpush.bf16.msra.mxu0 %v1874
    %2547 = vmatmul.bf16.gmra.mxu0 %v1024
    %v2548 = vpop.f32.mrf.mxu0
    %v2549 = vadd.f32 %v2535, %v2548
    %v2550 = vpop.f32.mrf.mxu0
    %v2551 = vadd.f32 %v2537, %v2550
    %2552 = vdwg.mxu0
    %2553 = vmatpush.bf16.msra.mxu0 0
    %2554 = vmatpush.bf16.msra.mxu0 0
    %2555 = vmatpush.bf16.msra.mxu0 0
    %2556 = vmatpush.bf16.msra.mxu0 0
    %2557 = vmatpush.bf16.msra.mxu0 0
    %2558 = vmatpush.bf16.msra.mxu0 %v2184
    %2559 = vmatpush.bf16.msra.mxu0 %v1964
    %2560 = vmatpush.bf16.msra.mxu0 %v1954
    %2561 = vmatmul.bf16.gmra.mxu0 %v2157
    %v2562 = vpop.f32.mrf.mxu0
    %v2563 = vadd.f32 %v2549, %v2562
    %v2564 = vpop.f32.mrf.mxu0
    %v2565 = vadd.f32 %v2551, %v2564
    %2566 = vdwg.mxu0
    %2567 = vmatpush.bf16.msra.mxu0 %v1865
    %2568 = vmatpush.bf16.msra.mxu0 %v1855
    %2569 = vmatpush.bf16.msra.mxu0 %v1845
    %2570 = vmatpush.bf16.msra.mxu0 %v1835
    %2571 = vmatpush.bf16.msra.mxu0 %v1825
    %2572 = vmatpush.bf16.msra.mxu0 %v1815
    %2573 = vmatpush.bf16.msra.mxu0 %v1805
    %2574 = vmatpush.bf16.msra.mxu0 %v1795
    %2575 = vmatmul.bf16.gmra.mxu0 %v1023
    %v2576 = vpop.f32.mrf.mxu0
    %v2577 = vadd.f32 0.0, %v2576
    %v2578 = vpop.f32.mrf.mxu0
    %v2579 = vadd.f32 0.0, %v2578
    %2580 = vdwg.mxu0
    %2581 = vmatpush.bf16.msra.mxu0 %v1945
    %2582 = vmatpush.bf16.msra.mxu0 %v1935
    %2583 = vmatpush.bf16.msra.mxu0 %v1925
    %2584 = vmatpush.bf16.msra.mxu0 %v1915
    %2585 = vmatpush.bf16.msra.mxu0 %v1905
    %2586 = vmatpush.bf16.msra.mxu0 %v1895
    %2587 = vmatpush.bf16.msra.mxu0 %v1885
    %2588 = vmatpush.bf16.msra.mxu0 %v1875
    %2589 = vmatmul.bf16.gmra.mxu0 %v1024
    %v2590 = vpop.f32.mrf.mxu0
    %v2591 = vadd.f32 %v2577, %v2590
    %v2592 = vpop.f32.mrf.mxu0
    %v2593 = vadd.f32 %v2579, %v2592
    %2594 = vdwg.mxu0
    %2595 = vmatpush.bf16.msra.mxu0 0
    %2596 = vmatpush.bf16.msra.mxu0 0
    %2597 = vmatpush.bf16.msra.mxu0 0
    %2598 = vmatpush.bf16.msra.mxu0 0
    %2599 = vmatpush.bf16.msra.mxu0 0
    %2600 = vmatpush.bf16.msra.mxu0 %v2187
    %2601 = vmatpush.bf16.msra.mxu0 %v1965
    %2602 = vmatpush.bf16.msra.mxu0 %v1955
    %2603 = vmatmul.bf16.gmra.mxu0 %v2157
    %v2604 = vpop.f32.mrf.mxu0
    %v2605 = vadd.f32 %v2591, %v2604
    %v2606 = vpop.f32.mrf.mxu0
    %v2607 = vadd.f32 %v2593, %v2606
    %2608 = vdwg.mxu0
    %v2799 = vunpack.c.l.b16 %v833
    %v2800 = vunpack.c.h.b16 %v833
    %v2801 = vunpack.c.l.b16 %v834
    %v2802 = vunpack.c.h.b16 %v834
    %v2803 = vunpack.c.l.b16 %v835
    %v2804 = vunpack.c.h.b16 %v835
    %v2805 = vunpack.c.l.b16 %v836
    %v2806 = vunpack.c.h.b16 %v836
    %v2807 = vunpack.c.l.b16 %v837
    %v2808 = vunpack.c.h.b16 %v837
    %v2809 = vunpack.c.l.b16 %v838
    %v2810 = vunpack.c.h.b16 %v838
    %v2811 = vunpack.c.l.b16 %v839
    %v2812 = vunpack.c.h.b16 %v839
    %v2813 = vunpack.c.l.b16 %v840
    %v2814 = vunpack.c.h.b16 %v840
    %v2815 = vunpack.c.l.b16 %v841
    %v2816 = vunpack.c.h.b16 %v841
    %v2817 = vunpack.c.l.b16 %v842
    %v2818 = vunpack.c.h.b16 %v842
    %v2819 = vunpack.c.l.b16 %v843
    %v2820 = vunpack.c.h.b16 %v843
    %v2821 = vunpack.c.l.b16 %v844
    %v2822 = vunpack.c.h.b16 %v844
    %v2823 = vunpack.c.l.b16 %v845
    %v2824 = vunpack.c.h.b16 %v845
    %v2825 = vunpack.c.l.b16 %v846
    %v2826 = vunpack.c.h.b16 %v846
    %v2827 = vunpack.c.l.b16 %v847
    %v2828 = vunpack.c.h.b16 %v847
    %v2829 = vunpack.c.l.b16 %v848
    %v2830 = vunpack.c.h.b16 %v848
    %v2831 = vunpack.c.l.b16 %v849
    %v2832 = vunpack.c.h.b16 %v849
    %v2833 = vunpack.c.l.b16 %v850
    %v2834 = vunpack.c.h.b16 %v850
    %v2835 = vunpack.c.l.b16 %v851
    %v2836 = vunpack.c.h.b16 %v851
    %v2837 = vunpack.c.l.b16 %v852
    %v2838 = vunpack.c.h.b16 %v852
    %v2839 = vunpack.c.l.b16 %v853
    %v2840 = vunpack.c.h.b16 %v853
    %v2841 = vunpack.c.l.b16 %v854
    %v2842 = vunpack.c.h.b16 %v854
    %v2843 = vunpack.c.l.b16 %v855
    %v2844 = vunpack.c.h.b16 %v855
    %v2845 = vunpack.c.l.b16 %v856
    %v2846 = vunpack.c.h.b16 %v856
    %v2847 = vunpack.c.l.b16 %v857
    %v2848 = vunpack.c.h.b16 %v857
    %v2849 = vunpack.c.l.b16 %v858
    %v2850 = vunpack.c.h.b16 %v858
    %v2851 = vunpack.c.l.b16 %v859
    %v2852 = vunpack.c.h.b16 %v859
    %v2853 = vunpack.c.l.b16 %v860
    %v2854 = vunpack.c.h.b16 %v860
    %v2855 = vunpack.c.l.b16 %v861
    %v2856 = vunpack.c.h.b16 %v861
    %v2857 = vunpack.c.l.b16 %v862
    %v2858 = vunpack.c.h.b16 %v862
    %v2859 = vunpack.c.l.b16 %v863
    %v2860 = vunpack.c.h.b16 %v863
    %v2861 = vunpack.c.l.b16 %v864
    %v2862 = vunpack.c.h.b16 %v864
    %v2863 = vunpack.c.l.b16 %v865
    %v2864 = vunpack.c.h.b16 %v865
    %v2865 = vunpack.c.l.b16 %v866
    %v2866 = vunpack.c.h.b16 %v866
    %v2867 = vunpack.c.l.b16 %v867
    %v2868 = vunpack.c.h.b16 %v867
    %v2869 = vunpack.c.l.b16 %v868
    %v2870 = vunpack.c.h.b16 %v868
    %v2871 = vunpack.c.l.b16 %v869
    %v2872 = vunpack.c.h.b16 %v869
    %v2873 = vunpack.c.l.b16 %v870
    %v2874 = vunpack.c.h.b16 %v870
    %v2875 = vunpack.c.l.b16 %v871
    %v2876 = vunpack.c.h.b16 %v871
    %v2877 = vunpack.c.l.b16 %v872
    %v2878 = vunpack.c.h.b16 %v872
    %v2879 = vunpack.c.l.b16 %v873
    %v2880 = vunpack.c.h.b16 %v873
    %v2881 = vunpack.c.l.b16 %v874
    %v2882 = vunpack.c.h.b16 %v874
    %v2883 = vunpack.c.l.b16 %v875
    %v2884 = vunpack.c.h.b16 %v875
    %v2885 = vunpack.c.l.b16 %v876
    %v2886 = vunpack.c.h.b16 %v876
    %v2887 = vunpack.c.l.b16 %v877
    %v2888 = vunpack.c.h.b16 %v877
    %v2889 = vunpack.c.l.b16 %v878
    %v2890 = vunpack.c.h.b16 %v878
    %v2891 = vunpack.c.l.b16 %v879
    %v2892 = vunpack.c.h.b16 %v879
    %v2893 = vunpack.c.l.b16 %v880
    %v2894 = vunpack.c.h.b16 %v880
    %v2895 = vunpack.c.l.b16 %v881
    %v2896 = vunpack.c.h.b16 %v881
    %v2897 = vunpack.c.l.b16 %v882
    %v2898 = vunpack.c.h.b16 %v882
    %v2899 = vunpack.c.l.b16 %v883
    %v2900 = vunpack.c.h.b16 %v883
    %v2901 = vunpack.c.l.b16 %v884
    %v2902 = vunpack.c.h.b16 %v884
    %v2903 = vunpack.c.l.b16 %v885
    %v2904 = vunpack.c.h.b16 %v885
    %v2905 = vunpack.c.l.b16 %v886
    %v2906 = vunpack.c.h.b16 %v886
    %v2907 = vunpack.c.l.b16 %v887
    %v2908 = vunpack.c.h.b16 %v887
    %v2909 = vunpack.c.l.b16 %v888
    %v2910 = vunpack.c.h.b16 %v888
    %v2911 = vunpack.c.l.b16 %v889
    %v2912 = vunpack.c.h.b16 %v889
    %v2913 = vunpack.c.l.b16 %v890
    %v2914 = vunpack.c.h.b16 %v890
    %v2915 = vunpack.c.l.b16 %v891
    %v2916 = vunpack.c.h.b16 %v891
    %v2917 = vunpack.c.l.b16 %v892
    %v2918 = vunpack.c.h.b16 %v892
    %v2919 = vunpack.c.l.b16 %v893
    %v2920 = vunpack.c.h.b16 %v893
    %v2921 = vunpack.c.l.b16 %v894
    %v2922 = vunpack.c.h.b16 %v894
    %v2923 = vunpack.c.l.b16 %v895
    %v2924 = vunpack.c.h.b16 %v895
    %v2925 = vunpack.c.l.b16 %v896
    %v2926 = vunpack.c.h.b16 %v896
    %v2927 = vunpack.c.l.b16 %v897
    %v2928 = vunpack.c.h.b16 %v897
    %v2929 = vunpack.c.l.b16 %v898
    %v2930 = vunpack.c.h.b16 %v898
    %v2931 = vunpack.c.l.b16 %v899
    %v2932 = vunpack.c.h.b16 %v899
    %v2933 = vunpack.c.l.b16 %v900
    %v2934 = vunpack.c.h.b16 %v900
    %v2935 = vunpack.c.l.b16 %v901
    %v2936 = vunpack.c.h.b16 %v901
    %v2937 = vunpack.c.l.b16 %v902
    %v2938 = vunpack.c.h.b16 %v902
    %v2939 = vunpack.c.l.b16 %v903
    %v2940 = vunpack.c.h.b16 %v903
    %v2941 = vunpack.c.l.b16 %v904
    %v2942 = vunpack.c.h.b16 %v904
    %v2943 = vunpack.c.l.b16 %v905
    %v2944 = vunpack.c.h.b16 %v905
    %v2945 = vunpack.c.l.b16 %v906
    %v2946 = vunpack.c.h.b16 %v906
    %v2947 = vunpack.c.l.b16 %v907
    %v2948 = vunpack.c.h.b16 %v907
    %v2949 = vunpack.c.l.b16 %v908
    %v2950 = vunpack.c.h.b16 %v908
    %v2951 = vunpack.c.l.b16 %v909
    %v2952 = vunpack.c.h.b16 %v909
    %v2953 = vunpack.c.l.b16 %v910
    %v2954 = vunpack.c.h.b16 %v910
    %v2955 = vunpack.c.l.b16 %v911
    %v2956 = vunpack.c.h.b16 %v911
    %v2957 = vunpack.c.l.b16 %v912
    %v2958 = vunpack.c.h.b16 %v912
    %v2959 = vunpack.c.l.b16 %v913
    %v2960 = vunpack.c.h.b16 %v913
    %v2961 = vunpack.c.l.b16 %v914
    %v2962 = vunpack.c.h.b16 %v914
    %v2963 = vunpack.c.l.b16 %v915
    %v2964 = vunpack.c.h.b16 %v915
    %v2965 = vunpack.c.l.b16 %v916
    %v2966 = vunpack.c.h.b16 %v916
    %v2967 = vunpack.c.l.b16 %v917
    %v2968 = vunpack.c.h.b16 %v917
    %v2969 = vunpack.c.l.b16 %v918
    %v2970 = vunpack.c.h.b16 %v918
    %v2971 = vunpack.c.l.b16 %v919
    %v2972 = vunpack.c.h.b16 %v919
    %v2973 = vunpack.c.l.b16 %v920
    %v2974 = vunpack.c.h.b16 %v920
    %v2975 = vunpack.c.l.b16 %v921
    %v2976 = vunpack.c.h.b16 %v921
    %v2977 = vunpack.c.l.b16 %v922
    %v2978 = vunpack.c.h.b16 %v922
    %v2979 = vunpack.c.l.b16 %v923
    %v2980 = vunpack.c.h.b16 %v923
    %v2981 = vunpack.c.l.b16 %v924
    %v2982 = vunpack.c.h.b16 %v924
    %v2983 = vunpack.c.l.b16 %v925
    %v2984 = vunpack.c.h.b16 %v925
    %v2985 = vunpack.c.l.b16 %v926
    %v2986 = vunpack.c.h.b16 %v926
    %v2987 = vunpack.c.l.b16 %v927
    %v2988 = vunpack.c.h.b16 %v927
    %v2989 = vunpack.c.l.b16 %v928
    %v2990 = vunpack.c.h.b16 %v928
    %v2991 = vunpack.c.l.b16 %v929
    %v2992 = vunpack.c.h.b16 %v929
    %v2993 = vunpack.c.l.b16 %v930
    %v2994 = vunpack.c.h.b16 %v930
    %v2995 = vunpack.c.l.b16 %v931
    %v2996 = vunpack.c.h.b16 %v931
    %v2997 = vunpack.c.l.b16 %v932
    %v2998 = vunpack.c.h.b16 %v932
    %v2999 = vunpack.c.l.b16 %v933
    %v3000 = vunpack.c.h.b16 %v933
    %v3001 = vunpack.c.l.b16 %v934
    %v3002 = vunpack.c.h.b16 %v934
    %v3003 = vunpack.c.l.b16 %v935
    %v3004 = vunpack.c.h.b16 %v935
    %v3005 = vunpack.c.l.b16 %v936
    %v3006 = vunpack.c.h.b16 %v936
    %v3007 = vunpack.c.l.b16 %v937
    %v3008 = vunpack.c.h.b16 %v937
    %v3009 = vunpack.c.l.b16 %v938
    %v3010 = vunpack.c.h.b16 %v938
    %v3011 = vunpack.c.l.b16 %v939
    %v3012 = vunpack.c.h.b16 %v939
    %v3013 = vunpack.c.l.b16 %v940
    %v3014 = vunpack.c.h.b16 %v940
    %v3015 = vunpack.c.l.b16 %v941
    %v3016 = vunpack.c.h.b16 %v941
    %v3017 = vunpack.c.l.b16 %v942
    %v3018 = vunpack.c.h.b16 %v942
    %v3019 = vunpack.c.l.b16 %v943
    %v3020 = vunpack.c.h.b16 %v943
    %v3021 = vunpack.c.l.b16 %v944
    %v3022 = vunpack.c.h.b16 %v944
    %v3023 = vunpack.c.l.b16 %v945
    %v3024 = vunpack.c.h.b16 %v945
    %v3025 = vunpack.c.l.b16 %v946
    %v3026 = vunpack.c.h.b16 %v946
    %v3027 = vunpack.c.l.b16 %v947
    %v3028 = vunpack.c.h.b16 %v947
    %v3029 = vunpack.c.l.b16 %v948
    %v3030 = vunpack.c.h.b16 %v948
    %v3031 = vunpack.c.l.b16 %v949
    %v3032 = vunpack.c.h.b16 %v949
    %v3033 = vunpack.c.l.b16 %v950
    %v3034 = vunpack.c.h.b16 %v950
    %v3035 = vunpack.c.l.b16 %v951
    %v3036 = vunpack.c.h.b16 %v951
    %v3037 = vunpack.c.l.b16 %v952
    %v3038 = vunpack.c.h.b16 %v952
    %v3039 = vunpack.c.l.b16 %v953
    %v3040 = vunpack.c.h.b16 %v953
    %v3041 = vunpack.c.l.b16 %v954
    %v3042 = vunpack.c.h.b16 %v954
    %v3043 = vunpack.c.l.b16 %v955
    %v3044 = vunpack.c.h.b16 %v955
    %v3045 = vunpack.c.l.b16 %v956
    %v3046 = vunpack.c.h.b16 %v956
    %v3047 = vunpack.c.l.b16 %v957
    %v3048 = vunpack.c.h.b16 %v957
    %v3049 = vunpack.c.l.b16 %v958
    %v3050 = vunpack.c.h.b16 %v958
    %v3051 = vunpack.c.l.b16 %v959
    %v3052 = vunpack.c.h.b16 %v959
    %v3053 = vunpack.c.l.b16 %v960
    %v3054 = vunpack.c.h.b16 %v960
    %v3055 = vunpack.c.l.b16 %v961
    %v3056 = vunpack.c.h.b16 %v961
    %v3057 = vunpack.c.l.b16 %v962
    %v3058 = vunpack.c.h.b16 %v962
    %v3059 = vunpack.c.l.b16 %v963
    %v3060 = vunpack.c.h.b16 %v963
    %v3061 = vunpack.c.l.b16 %v964
    %v3062 = vunpack.c.h.b16 %v964
    %v3063 = vunpack.c.l.b16 %v965
    %v3064 = vunpack.c.h.b16 %v965
    %v3065 = vunpack.c.l.b16 %v966
    %v3066 = vunpack.c.h.b16 %v966
    %v3067 = vunpack.c.l.b16 %v967
    %v3068 = vunpack.c.h.b16 %v967
    %v3069 = vunpack.c.l.b16 %v968
    %v3070 = vunpack.c.h.b16 %v968
    %v3071 = vunpack.c.l.b16 %v969
    %v3072 = vunpack.c.h.b16 %v969
    %v3073 = vunpack.c.l.b16 %v970
    %v3074 = vunpack.c.h.b16 %v970
    %v3075 = vunpack.c.l.b16 %v971
    %v3076 = vunpack.c.h.b16 %v971
    %v3077 = vunpack.c.l.b16 %v972
    %v3078 = vunpack.c.h.b16 %v972
    %v3079 = vunpack.c.l.b16 %v973
    %v3080 = vunpack.c.h.b16 %v973
    %v3081 = vunpack.c.l.b16 %v974
    %v3082 = vunpack.c.h.b16 %v974
    %v3083 = vunpack.c.l.b16 %v975
    %v3084 = vunpack.c.h.b16 %v975
    %v3085 = vunpack.c.l.b16 %v976
    %v3086 = vunpack.c.h.b16 %v976
    %v3087 = vunpack.c.l.b16 %v977
    %v3088 = vunpack.c.h.b16 %v977
    %v3089 = vunpack.c.l.b16 %v978
    %v3090 = vunpack.c.h.b16 %v978
    %v3091 = vunpack.c.l.b16 %v979
    %v3092 = vunpack.c.h.b16 %v979
    %v3093 = vunpack.c.l.b16 %v980
    %v3094 = vunpack.c.h.b16 %v980
    %v3095 = vunpack.c.l.b16 %v981
    %v3096 = vunpack.c.h.b16 %v981
    %v3097 = vunpack.c.l.b16 %v982
    %v3098 = vunpack.c.h.b16 %v982
    %v3099 = vunpack.c.l.b16 %v983
    %v3100 = vunpack.c.h.b16 %v983
    %v3101 = vunpack.c.l.b16 %v984
    %v3102 = vunpack.c.h.b16 %v984
    %v3103 = vunpack.c.l.b16 %v985
    %v3104 = vunpack.c.h.b16 %v985
    %v3105 = vunpack.c.l.b16 %v986
    %v3106 = vunpack.c.h.b16 %v986
    %v3107 = vunpack.c.l.b16 %v987
    %v3108 = vunpack.c.h.b16 %v987
    %v3109 = vunpack.c.l.b16 %v988
    %v3110 = vunpack.c.h.b16 %v988
    %v3111 = vunpack.c.l.b16 %v989
    %v3112 = vunpack.c.h.b16 %v989
    %v3113 = vunpack.c.l.b16 %v990
    %v3114 = vunpack.c.h.b16 %v990
    %v3115 = vunpack.c.l.b16 %v991
    %v3116 = vunpack.c.h.b16 %v991
    %v3117 = vunpack.c.l.b16 %v992
    %v3118 = vunpack.c.h.b16 %v992
    %v3119 = vunpack.c.l.b16 %v993
    %v3120 = vunpack.c.h.b16 %v993
    %v3121 = vunpack.c.l.b16 %v994
    %v3122 = vunpack.c.h.b16 %v994
    %v3123 = vunpack.c.l.b16 %v995
    %v3124 = vunpack.c.h.b16 %v995
    %v3125 = vunpack.c.l.b16 %v996
    %v3126 = vunpack.c.h.b16 %v996
    %v3127 = vunpack.c.l.b16 %v997
    %v3128 = vunpack.c.h.b16 %v997
    %v3129 = vunpack.c.l.b16 %v998
    %v3130 = vunpack.c.h.b16 %v998
    %v3131 = vunpack.c.l.b16 %v999
    %v3132 = vunpack.c.h.b16 %v999
    %v3133 = vunpack.c.l.b16 %v1000
    %v3134 = vunpack.c.h.b16 %v1000
    %v3135 = vunpack.c.l.b16 %v1001
    %v3136 = vunpack.c.h.b16 %v1001
    %v3137 = vunpack.c.l.b16 %v1002
    %v3138 = vunpack.c.h.b16 %v1002
    %v3139 = vunpack.c.l.b16 %v1003
    %v3140 = vunpack.c.h.b16 %v1003
    %v3141 = vunpack.c.l.b16 %v1004
    %v3142 = vunpack.c.h.b16 %v1004
    %v3143 = vunpack.c.l.b16 %v1005
    %v3144 = vunpack.c.h.b16 %v1005
    %v3145 = vunpack.c.l.b16 %v1006
    %v3146 = vunpack.c.h.b16 %v1006
    %v3147 = vunpack.c.l.b16 %v1007
    %v3148 = vunpack.c.h.b16 %v1007
    %v3149 = vunpack.c.l.b16 %v1008
    %v3150 = vunpack.c.h.b16 %v1008
    %v3151 = vunpack.c.l.b16 %v1009
    %v3152 = vunpack.c.h.b16 %v1009
    %v3153 = vunpack.c.l.b16 %v1010
    %v3154 = vunpack.c.h.b16 %v1010
    %v3155 = vunpack.c.l.b16 %v1011
    %v3156 = vunpack.c.h.b16 %v1011
    %v3157 = vunpack.c.l.b16 %v1012
    %v3158 = vunpack.c.h.b16 %v1012
    %v3159 = vunpack.c.l.b16 %v1013
    %v3160 = vunpack.c.h.b16 %v1013
    %v3161 = vunpack.c.l.b16 %v1014
    %v3162 = vunpack.c.h.b16 %v1014
    %v3163 = vunpack.c.l.b16 %v1015
    %v3164 = vunpack.c.h.b16 %v1015
    %v3165 = vunpack.c.l.b16 %v1016
    %v3166 = vunpack.c.h.b16 %v1016
    %v3167 = vunpack.c.l.b16 %v1017
    %v3168 = vunpack.c.h.b16 %v1017
    %v3169 = vunpack.c.l.b16 %v1018
    %v3170 = vunpack.c.h.b16 %v1018
    %v3171 = vunpack.c.l.b16 %v1019
    %v3172 = vunpack.c.h.b16 %v1019
    %v3173 = vunpack.c.l.b16 %v1020
    %v3174 = vunpack.c.h.b16 %v1020
    %v3175 = vunpack.c.l.b16 %v1021
    %v3176 = vunpack.c.h.b16 %v1021
    %v3177 = vunpack.c.l.b16 %v1022
    %v3178 = vunpack.c.h.b16 %v1022
    %v3179 = vpack.c.b16 %v2809, %v2799
    %v3180 = vpack.c.b16 %v2810, %v2800
    %v3181 = vpack.c.b16 %v2811, %v2801
    %v3182 = vpack.c.b16 %v2812, %v2802
    %v3183 = vpack.c.b16 %v2813, %v2803
    %v3184 = vpack.c.b16 %v2814, %v2804
    %v3185 = vpack.c.b16 %v2815, %v2805
    %v3186 = vpack.c.b16 %v2816, %v2806
    %v3187 = vpack.c.b16 %v2817, %v2807
    %v3188 = vpack.c.b16 %v2818, %v2808
    %v3189 = vpack.c.b16 %v2829, %v2819
    %v3190 = vpack.c.b16 %v2830, %v2820
    %v3191 = vpack.c.b16 %v2831, %v2821
    %v3192 = vpack.c.b16 %v2832, %v2822
    %v3193 = vpack.c.b16 %v2833, %v2823
    %v3194 = vpack.c.b16 %v2834, %v2824
    %v3195 = vpack.c.b16 %v2835, %v2825
    %v3196 = vpack.c.b16 %v2836, %v2826
    %v3197 = vpack.c.b16 %v2837, %v2827
    %v3198 = vpack.c.b16 %v2838, %v2828
    %v3199 = vpack.c.b16 %v2849, %v2839
    %v3200 = vpack.c.b16 %v2850, %v2840
    %v3201 = vpack.c.b16 %v2851, %v2841
    %v3202 = vpack.c.b16 %v2852, %v2842
    %v3203 = vpack.c.b16 %v2853, %v2843
    %v3204 = vpack.c.b16 %v2854, %v2844
    %v3205 = vpack.c.b16 %v2855, %v2845
    %v3206 = vpack.c.b16 %v2856, %v2846
    %v3207 = vpack.c.b16 %v2857, %v2847
    %v3208 = vpack.c.b16 %v2858, %v2848
    %v3209 = vpack.c.b16 %v2869, %v2859
    %v3210 = vpack.c.b16 %v2870, %v2860
    %v3211 = vpack.c.b16 %v2871, %v2861
    %v3212 = vpack.c.b16 %v2872, %v2862
    %v3213 = vpack.c.b16 %v2873, %v2863
    %v3214 = vpack.c.b16 %v2874, %v2864
    %v3215 = vpack.c.b16 %v2875, %v2865
    %v3216 = vpack.c.b16 %v2876, %v2866
    %v3217 = vpack.c.b16 %v2877, %v2867
    %v3218 = vpack.c.b16 %v2878, %v2868
    %v3219 = vpack.c.b16 %v2889, %v2879
    %v3220 = vpack.c.b16 %v2890, %v2880
    %v3221 = vpack.c.b16 %v2891, %v2881
    %v3222 = vpack.c.b16 %v2892, %v2882
    %v3223 = vpack.c.b16 %v2893, %v2883
    %v3224 = vpack.c.b16 %v2894, %v2884
    %v3225 = vpack.c.b16 %v2895, %v2885
    %v3226 = vpack.c.b16 %v2896, %v2886
    %v3227 = vpack.c.b16 %v2897, %v2887
    %v3228 = vpack.c.b16 %v2898, %v2888
    %v3229 = vpack.c.b16 %v2909, %v2899
    %v3230 = vpack.c.b16 %v2910, %v2900
    %v3231 = vpack.c.b16 %v2911, %v2901
    %v3232 = vpack.c.b16 %v2912, %v2902
    %v3233 = vpack.c.b16 %v2913, %v2903
    %v3234 = vpack.c.b16 %v2914, %v2904
    %v3235 = vpack.c.b16 %v2915, %v2905
    %v3236 = vpack.c.b16 %v2916, %v2906
    %v3237 = vpack.c.b16 %v2917, %v2907
    %v3238 = vpack.c.b16 %v2918, %v2908
    %v3239 = vpack.c.b16 %v2929, %v2919
    %v3240 = vpack.c.b16 %v2930, %v2920
    %v3241 = vpack.c.b16 %v2931, %v2921
    %v3242 = vpack.c.b16 %v2932, %v2922
    %v3243 = vpack.c.b16 %v2933, %v2923
    %v3244 = vpack.c.b16 %v2934, %v2924
    %v3245 = vpack.c.b16 %v2935, %v2925
    %v3246 = vpack.c.b16 %v2936, %v2926
    %v3247 = vpack.c.b16 %v2937, %v2927
    %v3248 = vpack.c.b16 %v2938, %v2928
    %v3249 = vpack.c.b16 %v2949, %v2939
    %v3250 = vpack.c.b16 %v2950, %v2940
    %v3251 = vpack.c.b16 %v2951, %v2941
    %v3252 = vpack.c.b16 %v2952, %v2942
    %v3253 = vpack.c.b16 %v2953, %v2943
    %v3254 = vpack.c.b16 %v2954, %v2944
    %v3255 = vpack.c.b16 %v2955, %v2945
    %v3256 = vpack.c.b16 %v2956, %v2946
    %v3257 = vpack.c.b16 %v2957, %v2947
    %v3258 = vpack.c.b16 %v2958, %v2948
    %v3259 = vpack.c.b16 %v2969, %v2959
    %v3260 = vpack.c.b16 %v2970, %v2960
    %v3261 = vpack.c.b16 %v2971, %v2961
    %v3262 = vpack.c.b16 %v2972, %v2962
    %v3263 = vpack.c.b16 %v2973, %v2963
    %v3264 = vpack.c.b16 %v2974, %v2964
    %v3265 = vpack.c.b16 %v2975, %v2965
    %v3266 = vpack.c.b16 %v2976, %v2966
    %v3267 = vpack.c.b16 %v2977, %v2967
    %v3268 = vpack.c.b16 %v2978, %v2968
    %v3269 = vpack.c.b16 %v2989, %v2979
    %v3270 = vpack.c.b16 %v2990, %v2980
    %v3271 = vpack.c.b16 %v2991, %v2981
    %v3272 = vpack.c.b16 %v2992, %v2982
    %v3273 = vpack.c.b16 %v2993, %v2983
    %v3274 = vpack.c.b16 %v2994, %v2984
    %v3275 = vpack.c.b16 %v2995, %v2985
    %v3276 = vpack.c.b16 %v2996, %v2986
    %v3277 = vpack.c.b16 %v2997, %v2987
    %v3278 = vpack.c.b16 %v2998, %v2988
    %v3279 = vpack.c.b16 %v3009, %v2999
    %v3280 = vpack.c.b16 %v3010, %v3000
    %v3281 = vpack.c.b16 %v3011, %v3001
    %v3282 = vpack.c.b16 %v3012, %v3002
    %v3283 = vpack.c.b16 %v3013, %v3003
    %v3284 = vpack.c.b16 %v3014, %v3004
    %v3285 = vpack.c.b16 %v3015, %v3005
    %v3286 = vpack.c.b16 %v3016, %v3006
    %v3287 = vpack.c.b16 %v3017, %v3007
    %v3288 = vpack.c.b16 %v3018, %v3008
    %v3289 = vpack.c.b16 %v3029, %v3019
    %v3290 = vpack.c.b16 %v3030, %v3020
    %v3291 = vpack.c.b16 %v3031, %v3021
    %v3292 = vpack.c.b16 %v3032, %v3022
    %v3293 = vpack.c.b16 %v3033, %v3023
    %v3294 = vpack.c.b16 %v3034, %v3024
    %v3295 = vpack.c.b16 %v3035, %v3025
    %v3296 = vpack.c.b16 %v3036, %v3026
    %v3297 = vpack.c.b16 %v3037, %v3027
    %v3298 = vpack.c.b16 %v3038, %v3028
    %v3299 = vpack.c.b16 %v3049, %v3039
    %v3300 = vpack.c.b16 %v3050, %v3040
    %v3301 = vpack.c.b16 %v3051, %v3041
    %v3302 = vpack.c.b16 %v3052, %v3042
    %v3303 = vpack.c.b16 %v3053, %v3043
    %v3304 = vpack.c.b16 %v3054, %v3044
    %v3305 = vpack.c.b16 %v3055, %v3045
    %v3306 = vpack.c.b16 %v3056, %v3046
    %v3307 = vpack.c.b16 %v3057, %v3047
    %v3308 = vpack.c.b16 %v3058, %v3048
    %v3309 = vpack.c.b16 %v3069, %v3059
    %v3310 = vpack.c.b16 %v3070, %v3060
    %v3311 = vpack.c.b16 %v3071, %v3061
    %v3312 = vpack.c.b16 %v3072, %v3062
    %v3313 = vpack.c.b16 %v3073, %v3063
    %v3314 = vpack.c.b16 %v3074, %v3064
    %v3315 = vpack.c.b16 %v3075, %v3065
    %v3316 = vpack.c.b16 %v3076, %v3066
    %v3317 = vpack.c.b16 %v3077, %v3067
    %v3318 = vpack.c.b16 %v3078, %v3068
    %v3319 = vpack.c.b16 %v3089, %v3079
    %v3320 = vpack.c.b16 %v3090, %v3080
    %v3321 = vpack.c.b16 %v3091, %v3081
    %v3322 = vpack.c.b16 %v3092, %v3082
    %v3323 = vpack.c.b16 %v3093, %v3083
    %v3324 = vpack.c.b16 %v3094, %v3084
    %v3325 = vpack.c.b16 %v3095, %v3085
    %v3326 = vpack.c.b16 %v3096, %v3086
    %v3327 = vpack.c.b16 %v3097, %v3087
    %v3328 = vpack.c.b16 %v3098, %v3088
    %v3329 = vpack.c.b16 %v3109, %v3099
    %v3330 = vpack.c.b16 %v3110, %v3100
    %v3331 = vpack.c.b16 %v3111, %v3101
    %v3332 = vpack.c.b16 %v3112, %v3102
    %v3333 = vpack.c.b16 %v3113, %v3103
    %v3334 = vpack.c.b16 %v3114, %v3104
    %v3335 = vpack.c.b16 %v3115, %v3105
    %v3336 = vpack.c.b16 %v3116, %v3106
    %v3337 = vpack.c.b16 %v3117, %v3107
    %v3338 = vpack.c.b16 %v3118, %v3108
    %v3339 = vpack.c.b16 %v3129, %v3119
    %v3340 = vpack.c.b16 %v3130, %v3120
    %v3341 = vpack.c.b16 %v3131, %v3121
    %v3342 = vpack.c.b16 %v3132, %v3122
    %v3343 = vpack.c.b16 %v3133, %v3123
    %v3344 = vpack.c.b16 %v3134, %v3124
    %v3345 = vpack.c.b16 %v3135, %v3125
    %v3346 = vpack.c.b16 %v3136, %v3126
    %v3347 = vpack.c.b16 %v3137, %v3127
    %v3348 = vpack.c.b16 %v3138, %v3128
    %v3349 = vpack.c.b16 %v3149, %v3139
    %v3350 = vpack.c.b16 %v3150, %v3140
    %v3351 = vpack.c.b16 %v3151, %v3141
    %v3352 = vpack.c.b16 %v3152, %v3142
    %v3353 = vpack.c.b16 %v3153, %v3143
    %v3354 = vpack.c.b16 %v3154, %v3144
    %v3355 = vpack.c.b16 %v3155, %v3145
    %v3356 = vpack.c.b16 %v3156, %v3146
    %v3357 = vpack.c.b16 %v3157, %v3147
    %v3358 = vpack.c.b16 %v3158, %v3148
    %v3359 = vpack.c.b16 %v3169, %v3159
    %v3360 = vpack.c.b16 %v3170, %v3160
    %v3361 = vpack.c.b16 %v3171, %v3161
    %v3362 = vpack.c.b16 %v3172, %v3162
    %v3363 = vpack.c.b16 %v3173, %v3163
    %v3364 = vpack.c.b16 %v3174, %v3164
    %v3365 = vpack.c.b16 %v3175, %v3165
    %v3366 = vpack.c.b16 %v3176, %v3166
    %v3367 = vpack.c.b16 %v3177, %v3167
    %v3368 = vpack.c.b16 %v3178, %v3168
    %v3550 = vsel %vm575, %v832, 0
    %v3553 = vsel %vm579, %v3359, 0
    %v3556 = vsel %vm579, %v3360, 0
    %v3559 = vsel %vm579, %v3361, 0
    %v3562 = vsel %vm579, %v3362, 0
    %v3565 = vsel %vm579, %v3363, 0
    %v3568 = vsel %vm579, %v3364, 0
    %v3571 = vsel %vm579, %v3365, 0
    %v3574 = vsel %vm579, %v3366, 0
    %v3577 = vsel %vm579, %v3367, 0
    %v3580 = vsel %vm579, %v3368, 0
    %3582 = vmatpush.bf16.msra.mxu0 %v3249
    %3583 = vmatpush.bf16.msra.mxu0 %v3239
    %3584 = vmatpush.bf16.msra.mxu0 %v3229
    %3585 = vmatpush.bf16.msra.mxu0 %v3219
    %3586 = vmatpush.bf16.msra.mxu0 %v3209
    %3587 = vmatpush.bf16.msra.mxu0 %v3199
    %3588 = vmatpush.bf16.msra.mxu0 %v3189
    %3589 = vmatpush.bf16.msra.mxu0 %v3179
    %3590 = vmatmul.bf16.gmra.mxu0 %v830
    %v3591 = vpop.f32.mrf.mxu0
    %v3592 = vadd.f32 %v2227, %v3591
    %v3593 = vpop.f32.mrf.mxu0
    %v3594 = vadd.f32 %v2229, %v3593
    %3595 = vdwg.mxu0
    %3596 = vmatpush.bf16.msra.mxu0 %v3329
    %3597 = vmatpush.bf16.msra.mxu0 %v3319
    %3598 = vmatpush.bf16.msra.mxu0 %v3309
    %3599 = vmatpush.bf16.msra.mxu0 %v3299
    %3600 = vmatpush.bf16.msra.mxu0 %v3289
    %3601 = vmatpush.bf16.msra.mxu0 %v3279
    %3602 = vmatpush.bf16.msra.mxu0 %v3269
    %3603 = vmatpush.bf16.msra.mxu0 %v3259
    %3604 = vmatmul.bf16.gmra.mxu0 %v831
    %v3605 = vpop.f32.mrf.mxu0
    %v3606 = vadd.f32 %v3592, %v3605
    %v3607 = vpop.f32.mrf.mxu0
    %v3608 = vadd.f32 %v3594, %v3607
    %3609 = vdwg.mxu0
    %3610 = vmatpush.bf16.msra.mxu0 0
    %3611 = vmatpush.bf16.msra.mxu0 0
    %3612 = vmatpush.bf16.msra.mxu0 0
    %3613 = vmatpush.bf16.msra.mxu0 0
    %3614 = vmatpush.bf16.msra.mxu0 0
    %3615 = vmatpush.bf16.msra.mxu0 %v3553
    %3616 = vmatpush.bf16.msra.mxu0 %v3349
    %3617 = vmatpush.bf16.msra.mxu0 %v3339
    %3618 = vmatmul.bf16.gmra.mxu0 %v3550
    %v3619 = vpop.f32.mrf.mxu0
    %v3620 = vadd.f32 %v3606, %v3619
    %v3621 = vpop.f32.mrf.mxu0
    %v3622 = vadd.f32 %v3608, %v3621
    %3623 = vdwg.mxu0
    %3624 = vmatpush.bf16.msra.mxu0 %v3250
    %3625 = vmatpush.bf16.msra.mxu0 %v3240
    %3626 = vmatpush.bf16.msra.mxu0 %v3230
    %3627 = vmatpush.bf16.msra.mxu0 %v3220
    %3628 = vmatpush.bf16.msra.mxu0 %v3210
    %3629 = vmatpush.bf16.msra.mxu0 %v3200
    %3630 = vmatpush.bf16.msra.mxu0 %v3190
    %3631 = vmatpush.bf16.msra.mxu0 %v3180
    %3632 = vmatmul.bf16.gmra.mxu0 %v830
    %v3633 = vpop.f32.mrf.mxu0
    %v3634 = vadd.f32 %v2269, %v3633
    %v3635 = vpop.f32.mrf.mxu0
    %v3636 = vadd.f32 %v2271, %v3635
    %3637 = vdwg.mxu0
    %3638 = vmatpush.bf16.msra.mxu0 %v3330
    %3639 = vmatpush.bf16.msra.mxu0 %v3320
    %3640 = vmatpush.bf16.msra.mxu0 %v3310
    %3641 = vmatpush.bf16.msra.mxu0 %v3300
    %3642 = vmatpush.bf16.msra.mxu0 %v3290
    %3643 = vmatpush.bf16.msra.mxu0 %v3280
    %3644 = vmatpush.bf16.msra.mxu0 %v3270
    %3645 = vmatpush.bf16.msra.mxu0 %v3260
    %3646 = vmatmul.bf16.gmra.mxu0 %v831
    %v3647 = vpop.f32.mrf.mxu0
    %v3648 = vadd.f32 %v3634, %v3647
    %v3649 = vpop.f32.mrf.mxu0
    %v3650 = vadd.f32 %v3636, %v3649
    %3651 = vdwg.mxu0
    %3652 = vmatpush.bf16.msra.mxu0 0
    %3653 = vmatpush.bf16.msra.mxu0 0
    %3654 = vmatpush.bf16.msra.mxu0 0
    %3655 = vmatpush.bf16.msra.mxu0 0
    %3656 = vmatpush.bf16.msra.mxu0 0
    %3657 = vmatpush.bf16.msra.mxu0 %v3556
    %3658 = vmatpush.bf16.msra.mxu0 %v3350
    %3659 = vmatpush.bf16.msra.mxu0 %v3340
    %3660 = vmatmul.bf16.gmra.mxu0 %v3550
    %v3661 = vpop.f32.mrf.mxu0
    %v3662 = vadd.f32 %v3648, %v3661
    %v3663 = vpop.f32.mrf.mxu0
    %v3664 = vadd.f32 %v3650, %v3663
    %3665 = vdwg.mxu0
    %3666 = vmatpush.bf16.msra.mxu0 %v3251
    %3667 = vmatpush.bf16.msra.mxu0 %v3241
    %3668 = vmatpush.bf16.msra.mxu0 %v3231
    %3669 = vmatpush.bf16.msra.mxu0 %v3221
    %3670 = vmatpush.bf16.msra.mxu0 %v3211
    %3671 = vmatpush.bf16.msra.mxu0 %v3201
    %3672 = vmatpush.bf16.msra.mxu0 %v3191
    %3673 = vmatpush.bf16.msra.mxu0 %v3181
    %3674 = vmatmul.bf16.gmra.mxu0 %v830
    %v3675 = vpop.f32.mrf.mxu0
    %v3676 = vadd.f32 %v2311, %v3675
    %v3677 = vpop.f32.mrf.mxu0
    %v3678 = vadd.f32 %v2313, %v3677
    %3679 = vdwg.mxu0
    %3680 = vmatpush.bf16.msra.mxu0 %v3331
    %3681 = vmatpush.bf16.msra.mxu0 %v3321
    %3682 = vmatpush.bf16.msra.mxu0 %v3311
    %3683 = vmatpush.bf16.msra.mxu0 %v3301
    %3684 = vmatpush.bf16.msra.mxu0 %v3291
    %3685 = vmatpush.bf16.msra.mxu0 %v3281
    %3686 = vmatpush.bf16.msra.mxu0 %v3271
    %3687 = vmatpush.bf16.msra.mxu0 %v3261
    %3688 = vmatmul.bf16.gmra.mxu0 %v831
    %v3689 = vpop.f32.mrf.mxu0
    %v3690 = vadd.f32 %v3676, %v3689
    %v3691 = vpop.f32.mrf.mxu0
    %v3692 = vadd.f32 %v3678, %v3691
    %3693 = vdwg.mxu0
    %3694 = vmatpush.bf16.msra.mxu0 0
    %3695 = vmatpush.bf16.msra.mxu0 0
    %3696 = vmatpush.bf16.msra.mxu0 0
    %3697 = vmatpush.bf16.msra.mxu0 0
    %3698 = vmatpush.bf16.msra.mxu0 0
    %3699 = vmatpush.bf16.msra.mxu0 %v3559
    %3700 = vmatpush.bf16.msra.mxu0 %v3351
    %3701 = vmatpush.bf16.msra.mxu0 %v3341
    %3702 = vmatmul.bf16.gmra.mxu0 %v3550
    %v3703 = vpop.f32.mrf.mxu0
    %v3704 = vadd.f32 %v3690, %v3703
    %v3705 = vpop.f32.mrf.mxu0
    %v3706 = vadd.f32 %v3692, %v3705
    %3707 = vdwg.mxu0
    %3708 = vmatpush.bf16.msra.mxu0 %v3252
    %3709 = vmatpush.bf16.msra.mxu0 %v3242
    %3710 = vmatpush.bf16.msra.mxu0 %v3232
    %3711 = vmatpush.bf16.msra.mxu0 %v3222
    %3712 = vmatpush.bf16.msra.mxu0 %v3212
    %3713 = vmatpush.bf16.msra.mxu0 %v3202
    %3714 = vmatpush.bf16.msra.mxu0 %v3192
    %3715 = vmatpush.bf16.msra.mxu0 %v3182
    %3716 = vmatmul.bf16.gmra.mxu0 %v830
    %v3717 = vpop.f32.mrf.mxu0
    %v3718 = vadd.f32 %v2353, %v3717
    %v3719 = vpop.f32.mrf.mxu0
    %v3720 = vadd.f32 %v2355, %v3719
    %3721 = vdwg.mxu0
    %3722 = vmatpush.bf16.msra.mxu0 %v3332
    %3723 = vmatpush.bf16.msra.mxu0 %v3322
    %3724 = vmatpush.bf16.msra.mxu0 %v3312
    %3725 = vmatpush.bf16.msra.mxu0 %v3302
    %3726 = vmatpush.bf16.msra.mxu0 %v3292
    %3727 = vmatpush.bf16.msra.mxu0 %v3282
    %3728 = vmatpush.bf16.msra.mxu0 %v3272
    %3729 = vmatpush.bf16.msra.mxu0 %v3262
    %3730 = vmatmul.bf16.gmra.mxu0 %v831
    %v3731 = vpop.f32.mrf.mxu0
    %v3732 = vadd.f32 %v3718, %v3731
    %v3733 = vpop.f32.mrf.mxu0
    %v3734 = vadd.f32 %v3720, %v3733
    %3735 = vdwg.mxu0
    %3736 = vmatpush.bf16.msra.mxu0 0
    %3737 = vmatpush.bf16.msra.mxu0 0
    %3738 = vmatpush.bf16.msra.mxu0 0
    %3739 = vmatpush.bf16.msra.mxu0 0
    %3740 = vmatpush.bf16.msra.mxu0 0
    %3741 = vmatpush.bf16.msra.mxu0 %v3562
    %3742 = vmatpush.bf16.msra.mxu0 %v3352
    %3743 = vmatpush.bf16.msra.mxu0 %v3342
    %3744 = vmatmul.bf16.gmra.mxu0 %v3550
    %v3745 = vpop.f32.mrf.mxu0
    %v3746 = vadd.f32 %v3732, %v3745
    %v3747 = vpop.f32.mrf.mxu0
    %v3748 = vadd.f32 %v3734, %v3747
    %3749 = vdwg.mxu0
    %3750 = vmatpush.bf16.msra.mxu0 %v3253
    %3751 = vmatpush.bf16.msra.mxu0 %v3243
    %3752 = vmatpush.bf16.msra.mxu0 %v3233
    %3753 = vmatpush.bf16.msra.mxu0 %v3223
    %3754 = vmatpush.bf16.msra.mxu0 %v3213
    %3755 = vmatpush.bf16.msra.mxu0 %v3203
    %3756 = vmatpush.bf16.msra.mxu0 %v3193
    %3757 = vmatpush.bf16.msra.mxu0 %v3183
    %3758 = vmatmul.bf16.gmra.mxu0 %v830
    %v3759 = vpop.f32.mrf.mxu0
    %v3760 = vadd.f32 %v2395, %v3759
    %v3761 = vpop.f32.mrf.mxu0
    %v3762 = vadd.f32 %v2397, %v3761
    %3763 = vdwg.mxu0
    %3764 = vmatpush.bf16.msra.mxu0 %v3333
    %3765 = vmatpush.bf16.msra.mxu0 %v3323
    %3766 = vmatpush.bf16.msra.mxu0 %v3313
    %3767 = vmatpush.bf16.msra.mxu0 %v3303
    %3768 = vmatpush.bf16.msra.mxu0 %v3293
    %3769 = vmatpush.bf16.msra.mxu0 %v3283
    %3770 = vmatpush.bf16.msra.mxu0 %v3273
    %3771 = vmatpush.bf16.msra.mxu0 %v3263
    %3772 = vmatmul.bf16.gmra.mxu0 %v831
    %v3773 = vpop.f32.mrf.mxu0
    %v3774 = vadd.f32 %v3760, %v3773
    %v3775 = vpop.f32.mrf.mxu0
    %v3776 = vadd.f32 %v3762, %v3775
    %3777 = vdwg.mxu0
    %3778 = vmatpush.bf16.msra.mxu0 0
    %3779 = vmatpush.bf16.msra.mxu0 0
    %3780 = vmatpush.bf16.msra.mxu0 0
    %3781 = vmatpush.bf16.msra.mxu0 0
    %3782 = vmatpush.bf16.msra.mxu0 0
    %3783 = vmatpush.bf16.msra.mxu0 %v3565
    %3784 = vmatpush.bf16.msra.mxu0 %v3353
    %3785 = vmatpush.bf16.msra.mxu0 %v3343
    %3786 = vmatmul.bf16.gmra.mxu0 %v3550
    %v3787 = vpop.f32.mrf.mxu0
    %v3788 = vadd.f32 %v3774, %v3787
    %v3789 = vpop.f32.mrf.mxu0
    %v3790 = vadd.f32 %v3776, %v3789
    %3791 = vdwg.mxu0
    %3792 = vmatpush.bf16.msra.mxu0 %v3254
    %3793 = vmatpush.bf16.msra.mxu0 %v3244
    %3794 = vmatpush.bf16.msra.mxu0 %v3234
    %3795 = vmatpush.bf16.msra.mxu0 %v3224
    %3796 = vmatpush.bf16.msra.mxu0 %v3214
    %3797 = vmatpush.bf16.msra.mxu0 %v3204
    %3798 = vmatpush.bf16.msra.mxu0 %v3194
    %3799 = vmatpush.bf16.msra.mxu0 %v3184
    %3800 = vmatmul.bf16.gmra.mxu0 %v830
    %v3801 = vpop.f32.mrf.mxu0
    %v3802 = vadd.f32 %v2437, %v3801
    %v3803 = vpop.f32.mrf.mxu0
    %v3804 = vadd.f32 %v2439, %v3803
    %3805 = vdwg.mxu0
    %3806 = vmatpush.bf16.msra.mxu0 %v3334
    %3807 = vmatpush.bf16.msra.mxu0 %v3324
    %3808 = vmatpush.bf16.msra.mxu0 %v3314
    %3809 = vmatpush.bf16.msra.mxu0 %v3304
    %3810 = vmatpush.bf16.msra.mxu0 %v3294
    %3811 = vmatpush.bf16.msra.mxu0 %v3284
    %3812 = vmatpush.bf16.msra.mxu0 %v3274
    %3813 = vmatpush.bf16.msra.mxu0 %v3264
    %3814 = vmatmul.bf16.gmra.mxu0 %v831
    %v3815 = vpop.f32.mrf.mxu0
    %v3816 = vadd.f32 %v3802, %v3815
    %v3817 = vpop.f32.mrf.mxu0
    %v3818 = vadd.f32 %v3804, %v3817
    %3819 = vdwg.mxu0
    %3820 = vmatpush.bf16.msra.mxu0 0
    %3821 = vmatpush.bf16.msra.mxu0 0
    %3822 = vmatpush.bf16.msra.mxu0 0
    %3823 = vmatpush.bf16.msra.mxu0 0
    %3824 = vmatpush.bf16.msra.mxu0 0
    %3825 = vmatpush.bf16.msra.mxu0 %v3568
    %3826 = vmatpush.bf16.msra.mxu0 %v3354
    %3827 = vmatpush.bf16.msra.mxu0 %v3344
    %3828 = vmatmul.bf16.gmra.mxu0 %v3550
    %v3829 = vpop.f32.mrf.mxu0
    %v3830 = vadd.f32 %v3816, %v3829
    %v3831 = vpop.f32.mrf.mxu0
    %v3832 = vadd.f32 %v3818, %v3831
    %3833 = vdwg.mxu0
    %3834 = vmatpush.bf16.msra.mxu0 %v3255
    %3835 = vmatpush.bf16.msra.mxu0 %v3245
    %3836 = vmatpush.bf16.msra.mxu0 %v3235
    %3837 = vmatpush.bf16.msra.mxu0 %v3225
    %3838 = vmatpush.bf16.msra.mxu0 %v3215
    %3839 = vmatpush.bf16.msra.mxu0 %v3205
    %3840 = vmatpush.bf16.msra.mxu0 %v3195
    %3841 = vmatpush.bf16.msra.mxu0 %v3185
    %3842 = vmatmul.bf16.gmra.mxu0 %v830
    %v3843 = vpop.f32.mrf.mxu0
    %v3844 = vadd.f32 %v2479, %v3843
    %v3845 = vpop.f32.mrf.mxu0
    %v3846 = vadd.f32 %v2481, %v3845
    %3847 = vdwg.mxu0
    %3848 = vmatpush.bf16.msra.mxu0 %v3335
    %3849 = vmatpush.bf16.msra.mxu0 %v3325
    %3850 = vmatpush.bf16.msra.mxu0 %v3315
    %3851 = vmatpush.bf16.msra.mxu0 %v3305
    %3852 = vmatpush.bf16.msra.mxu0 %v3295
    %3853 = vmatpush.bf16.msra.mxu0 %v3285
    %3854 = vmatpush.bf16.msra.mxu0 %v3275
    %3855 = vmatpush.bf16.msra.mxu0 %v3265
    %3856 = vmatmul.bf16.gmra.mxu0 %v831
    %v3857 = vpop.f32.mrf.mxu0
    %v3858 = vadd.f32 %v3844, %v3857
    %v3859 = vpop.f32.mrf.mxu0
    %v3860 = vadd.f32 %v3846, %v3859
    %3861 = vdwg.mxu0
    %3862 = vmatpush.bf16.msra.mxu0 0
    %3863 = vmatpush.bf16.msra.mxu0 0
    %3864 = vmatpush.bf16.msra.mxu0 0
    %3865 = vmatpush.bf16.msra.mxu0 0
    %3866 = vmatpush.bf16.msra.mxu0 0
    %3867 = vmatpush.bf16.msra.mxu0 %v3571
    %3868 = vmatpush.bf16.msra.mxu0 %v3355
    %3869 = vmatpush.bf16.msra.mxu0 %v3345
    %3870 = vmatmul.bf16.gmra.mxu0 %v3550
    %v3871 = vpop.f32.mrf.mxu0
    %v3872 = vadd.f32 %v3858, %v3871
    %v3873 = vpop.f32.mrf.mxu0
    %v3874 = vadd.f32 %v3860, %v3873
    %3875 = vdwg.mxu0
    %3876 = vmatpush.bf16.msra.mxu0 %v3256
    %3877 = vmatpush.bf16.msra.mxu0 %v3246
    %3878 = vmatpush.bf16.msra.mxu0 %v3236
    %3879 = vmatpush.bf16.msra.mxu0 %v3226
    %3880 = vmatpush.bf16.msra.mxu0 %v3216
    %3881 = vmatpush.bf16.msra.mxu0 %v3206
    %3882 = vmatpush.bf16.msra.mxu0 %v3196
    %3883 = vmatpush.bf16.msra.mxu0 %v3186
    %3884 = vmatmul.bf16.gmra.mxu0 %v830
    %v3885 = vpop.f32.mrf.mxu0
    %v3886 = vadd.f32 %v2521, %v3885
    %v3887 = vpop.f32.mrf.mxu0
    %v3888 = vadd.f32 %v2523, %v3887
    %3889 = vdwg.mxu0
    %3890 = vmatpush.bf16.msra.mxu0 %v3336
    %3891 = vmatpush.bf16.msra.mxu0 %v3326
    %3892 = vmatpush.bf16.msra.mxu0 %v3316
    %3893 = vmatpush.bf16.msra.mxu0 %v3306
    %3894 = vmatpush.bf16.msra.mxu0 %v3296
    %3895 = vmatpush.bf16.msra.mxu0 %v3286
    %3896 = vmatpush.bf16.msra.mxu0 %v3276
    %3897 = vmatpush.bf16.msra.mxu0 %v3266
    %3898 = vmatmul.bf16.gmra.mxu0 %v831
    %v3899 = vpop.f32.mrf.mxu0
    %v3900 = vadd.f32 %v3886, %v3899
    %v3901 = vpop.f32.mrf.mxu0
    %v3902 = vadd.f32 %v3888, %v3901
    %3903 = vdwg.mxu0
    %3904 = vmatpush.bf16.msra.mxu0 0
    %3905 = vmatpush.bf16.msra.mxu0 0
    %3906 = vmatpush.bf16.msra.mxu0 0
    %3907 = vmatpush.bf16.msra.mxu0 0
    %3908 = vmatpush.bf16.msra.mxu0 0
    %3909 = vmatpush.bf16.msra.mxu0 %v3574
    %3910 = vmatpush.bf16.msra.mxu0 %v3356
    %3911 = vmatpush.bf16.msra.mxu0 %v3346
    %3912 = vmatmul.bf16.gmra.mxu0 %v3550
    %v3913 = vpop.f32.mrf.mxu0
    %v3914 = vadd.f32 %v3900, %v3913
    %v3915 = vpop.f32.mrf.mxu0
    %v3916 = vadd.f32 %v3902, %v3915
    %3917 = vdwg.mxu0
    %3918 = vmatpush.bf16.msra.mxu0 %v3257
    %3919 = vmatpush.bf16.msra.mxu0 %v3247
    %3920 = vmatpush.bf16.msra.mxu0 %v3237
    %3921 = vmatpush.bf16.msra.mxu0 %v3227
    %3922 = vmatpush.bf16.msra.mxu0 %v3217
    %3923 = vmatpush.bf16.msra.mxu0 %v3207
    %3924 = vmatpush.bf16.msra.mxu0 %v3197
    %3925 = vmatpush.bf16.msra.mxu0 %v3187
    %3926 = vmatmul.bf16.gmra.mxu0 %v830
    %v3927 = vpop.f32.mrf.mxu0
    %v3928 = vadd.f32 %v2563, %v3927
    %v3929 = vpop.f32.mrf.mxu0
    %v3930 = vadd.f32 %v2565, %v3929
    %3931 = vdwg.mxu0
    %3932 = vmatpush.bf16.msra.mxu0 %v3337
    %3933 = vmatpush.bf16.msra.mxu0 %v3327
    %3934 = vmatpush.bf16.msra.mxu0 %v3317
    %3935 = vmatpush.bf16.msra.mxu0 %v3307
    %3936 = vmatpush.bf16.msra.mxu0 %v3297
    %3937 = vmatpush.bf16.msra.mxu0 %v3287
    %3938 = vmatpush.bf16.msra.mxu0 %v3277
    %3939 = vmatpush.bf16.msra.mxu0 %v3267
    %3940 = vmatmul.bf16.gmra.mxu0 %v831
    %v3941 = vpop.f32.mrf.mxu0
    %v3942 = vadd.f32 %v3928, %v3941
    %v3943 = vpop.f32.mrf.mxu0
    %v3944 = vadd.f32 %v3930, %v3943
    %3945 = vdwg.mxu0
    %3946 = vmatpush.bf16.msra.mxu0 0
    %3947 = vmatpush.bf16.msra.mxu0 0
    %3948 = vmatpush.bf16.msra.mxu0 0
    %3949 = vmatpush.bf16.msra.mxu0 0
    %3950 = vmatpush.bf16.msra.mxu0 0
    %3951 = vmatpush.bf16.msra.mxu0 %v3577
    %3952 = vmatpush.bf16.msra.mxu0 %v3357
    %3953 = vmatpush.bf16.msra.mxu0 %v3347
    %3954 = vmatmul.bf16.gmra.mxu0 %v3550
    %v3955 = vpop.f32.mrf.mxu0
    %v3956 = vadd.f32 %v3942, %v3955
    %v3957 = vpop.f32.mrf.mxu0
    %v3958 = vadd.f32 %v3944, %v3957
    %3959 = vdwg.mxu0
    %3960 = vmatpush.bf16.msra.mxu0 %v3258
    %3961 = vmatpush.bf16.msra.mxu0 %v3248
    %3962 = vmatpush.bf16.msra.mxu0 %v3238
    %3963 = vmatpush.bf16.msra.mxu0 %v3228
    %3964 = vmatpush.bf16.msra.mxu0 %v3218
    %3965 = vmatpush.bf16.msra.mxu0 %v3208
    %3966 = vmatpush.bf16.msra.mxu0 %v3198
    %3967 = vmatpush.bf16.msra.mxu0 %v3188
    %3968 = vmatmul.bf16.gmra.mxu0 %v830
    %v3969 = vpop.f32.mrf.mxu0
    %v3970 = vadd.f32 %v2605, %v3969
    %v3971 = vpop.f32.mrf.mxu0
    %v3972 = vadd.f32 %v2607, %v3971
    %3973 = vdwg.mxu0
    %3974 = vmatpush.bf16.msra.mxu0 %v3338
    %3975 = vmatpush.bf16.msra.mxu0 %v3328
    %3976 = vmatpush.bf16.msra.mxu0 %v3318
    %3977 = vmatpush.bf16.msra.mxu0 %v3308
    %3978 = vmatpush.bf16.msra.mxu0 %v3298
    %3979 = vmatpush.bf16.msra.mxu0 %v3288
    %3980 = vmatpush.bf16.msra.mxu0 %v3278
    %3981 = vmatpush.bf16.msra.mxu0 %v3268
    %3982 = vmatmul.bf16.gmra.mxu0 %v831
    %v3983 = vpop.f32.mrf.mxu0
    %v3984 = vadd.f32 %v3970, %v3983
    %v3985 = vpop.f32.mrf.mxu0
    %v3986 = vadd.f32 %v3972, %v3985
    %3987 = vdwg.mxu0
    %3988 = vmatpush.bf16.msra.mxu0 0
    %3989 = vmatpush.bf16.msra.mxu0 0
    %3990 = vmatpush.bf16.msra.mxu0 0
    %3991 = vmatpush.bf16.msra.mxu0 0
    %3992 = vmatpush.bf16.msra.mxu0 0
    %3993 = vmatpush.bf16.msra.mxu0 %v3580
    %3994 = vmatpush.bf16.msra.mxu0 %v3358
    %3995 = vmatpush.bf16.msra.mxu0 %v3348
    %3996 = vmatmul.bf16.gmra.mxu0 %v3550
    %v3997 = vpop.f32.mrf.mxu0
    %v3998 = vadd.f32 %v3984, %v3997
    %v3999 = vpop.f32.mrf.mxu0
    %v4000 = vadd.f32 %v3986, %v3999
    %4001 = vdwg.mxu0
    %v4002 = vld [vmem:[#allocation16] sm:$0xff]
    %v4003 = vld [vmem:[#allocation16 + $0x8] sm:$0x3]
    %v4006 = vperm.slane %v4002, 0
    %v4007 = vperm.slane %v4002, 1
    %v4008 = vperm.slane %v4002, 2
    %v4009 = vperm.slane %v4002, 3
    %v4010 = vperm.slane %v4002, 4
    %v4011 = vperm.slane %v4002, 5
    %v4012 = vperm.slane %v4002, 6
    %v4013 = vperm.slane %v4002, 7
    %v4014 = vperm.slane %v4003, 0
    %v4015 = vperm.slane %v4003, 1
    %v4026 = vadd.f32 %v3620, %v4006
    %v4027 = vadd.f32 %v3662, %v4007
    %v4028 = vadd.f32 %v3704, %v4008
    %v4029 = vadd.f32 %v3746, %v4009
    %v4030 = vadd.f32 %v3788, %v4010
    %v4031 = vadd.f32 %v3830, %v4011
    %v4032 = vadd.f32 %v3872, %v4012
    %v4033 = vadd.f32 %v3914, %v4013
    %v4034 = vadd.f32 %v3956, %v4014
    %v4035 = vadd.f32 %v3998, %v4015
    %v4036 = vadd.f32 %v3622, %v4006
    %v4037 = vadd.f32 %v3664, %v4007
    %v4038 = vadd.f32 %v3706, %v4008
    %v4039 = vadd.f32 %v3748, %v4009
    %v4040 = vadd.f32 %v3790, %v4010
    %v4041 = vadd.f32 %v3832, %v4011
    %v4042 = vadd.f32 %v3874, %v4012
    %v4043 = vadd.f32 %v3916, %v4013
    %v4044 = vadd.f32 %v3958, %v4014
    %v4045 = vadd.f32 %v4000, %v4015
    %v4046 = vld [vmem:[#allocation7] sm:$0xff]
    %v4047 = vld [vmem:[#allocation7 + $0x8] sm:$0x3]
    %v4048 = vld [vmem:[#allocation7 + $0xa] sm:$0xff]
    %v4049 = vld [vmem:[#allocation7 + $0x12] sm:$0x3]
    %v4054 = vperm.slane %v4046, 0
    %v4055 = vperm.slane %v4046, 1
    %v4056 = vperm.slane %v4046, 2
    %v4057 = vperm.slane %v4046, 3
    %v4058 = vperm.slane %v4046, 4
    %v4059 = vperm.slane %v4046, 5
    %v4060 = vperm.slane %v4046, 6
    %v4061 = vperm.slane %v4046, 7
    %v4062 = vperm.slane %v4047, 0
    %v4063 = vperm.slane %v4047, 1
    %v4064 = vperm.slane %v4048, 0
    %v4065 = vperm.slane %v4048, 1
    %v4066 = vperm.slane %v4048, 2
    %v4067 = vperm.slane %v4048, 3
    %v4068 = vperm.slane %v4048, 4
    %v4069 = vperm.slane %v4048, 5
    %v4070 = vperm.slane %v4048, 6
    %v4071 = vperm.slane %v4048, 7
    %v4072 = vperm.slane %v4049, 0
    %v4073 = vperm.slane %v4049, 1
    %v4094 = vadd.f32 %v4026, %v4054
    %v4095 = vadd.f32 %v4027, %v4055
    %v4096 = vadd.f32 %v4028, %v4056
    %v4097 = vadd.f32 %v4029, %v4057
    %v4098 = vadd.f32 %v4030, %v4058
    %v4099 = vadd.f32 %v4031, %v4059
    %v4100 = vadd.f32 %v4032, %v4060
    %v4101 = vadd.f32 %v4033, %v4061
    %v4102 = vadd.f32 %v4034, %v4062
    %v4103 = vadd.f32 %v4035, %v4063
    %v4104 = vadd.f32 %v4036, %v4064
    %v4105 = vadd.f32 %v4037, %v4065
    %v4106 = vadd.f32 %v4038, %v4066
    %v4107 = vadd.f32 %v4039, %v4067
    %v4108 = vadd.f32 %v4040, %v4068
    %v4109 = vadd.f32 %v4041, %v4069
    %v4110 = vadd.f32 %v4042, %v4070
    %v4111 = vadd.f32 %v4043, %v4071
    %v4112 = vadd.f32 %v4044, %v4072
    %v4113 = vadd.f32 %v4045, %v4073
    %v4114 = vtanh.pop %v4094
    %v4115 = vtanh.pop %v4095
    %v4116 = vtanh.pop %v4096
    %v4117 = vtanh.pop %v4097
    %v4118 = vtanh.pop %v4098
    %v4119 = vtanh.pop %v4099
    %v4120 = vtanh.pop %v4100
    %v4121 = vtanh.pop %v4101
    %v4122 = vtanh.pop %v4102
    %v4123 = vtanh.pop %v4103
    %v4124 = vtanh.pop %v4104
    %v4125 = vtanh.pop %v4105
    %v4126 = vtanh.pop %v4106
    %v4127 = vtanh.pop %v4107
    %v4128 = vtanh.pop %v4108
    %v4129 = vtanh.pop %v4109
    %v4130 = vtanh.pop %v4110
    %v4131 = vtanh.pop %v4111
    %v4132 = vtanh.pop %v4112
    %v4133 = vtanh.pop %v4113
    %v4134 = vrot.slane %v4114, 4
    %v4135 = vmax.f32 %v4114, %v4134
    %v4136 = vrot.slane %v4135, 2
    %v4137 = vmax.f32 %v4135, %v4136
    %v4138 = vrot.slane %v4137, 1
    %v4139 = vmax.f32 %v4137, %v4138
    %v4140 = vrot.slane %v4115, 4
    %v4141 = vmax.f32 %v4115, %v4140
    %v4142 = vrot.slane %v4141, 2
    %v4143 = vmax.f32 %v4141, %v4142
    %v4144 = vrot.slane %v4143, 1
    %v4145 = vmax.f32 %v4143, %v4144
    %v4146 = vrot.slane %v4116, 4
    %v4147 = vmax.f32 %v4116, %v4146
    %v4148 = vrot.slane %v4147, 2
    %v4149 = vmax.f32 %v4147, %v4148
    %v4150 = vrot.slane %v4149, 1
    %v4151 = vmax.f32 %v4149, %v4150
    %v4152 = vrot.slane %v4117, 4
    %v4153 = vmax.f32 %v4117, %v4152
    %v4154 = vrot.slane %v4153, 2
    %v4155 = vmax.f32 %v4153, %v4154
    %v4156 = vrot.slane %v4155, 1
    %v4157 = vmax.f32 %v4155, %v4156
    %v4158 = vrot.slane %v4118, 4
    %v4159 = vmax.f32 %v4118, %v4158
    %v4160 = vrot.slane %v4159, 2
    %v4161 = vmax.f32 %v4159, %v4160
    %v4162 = vrot.slane %v4161, 1
    %v4163 = vmax.f32 %v4161, %v4162
    %v4164 = vrot.slane %v4119, 4
    %v4165 = vmax.f32 %v4119, %v4164
    %v4166 = vrot.slane %v4165, 2
    %v4167 = vmax.f32 %v4165, %v4166
    %v4168 = vrot.slane %v4167, 1
    %v4169 = vmax.f32 %v4167, %v4168
    %v4170 = vrot.slane %v4120, 4
    %v4171 = vmax.f32 %v4120, %v4170
    %v4172 = vrot.slane %v4171, 2
    %v4173 = vmax.f32 %v4171, %v4172
    %v4174 = vrot.slane %v4173, 1
    %v4175 = vmax.f32 %v4173, %v4174
    %v4176 = vrot.slane %v4121, 4
    %v4177 = vmax.f32 %v4121, %v4176
    %v4178 = vrot.slane %v4177, 2
    %v4179 = vmax.f32 %v4177, %v4178
    %v4180 = vrot.slane %v4179, 1
    %v4181 = vmax.f32 %v4179, %v4180
    %v4182 = vrot.slane %v4122, 4
    %v4183 = vmax.f32 %v4122, %v4182
    %v4184 = vrot.slane %v4183, 2
    %v4185 = vmax.f32 %v4183, %v4184
    %v4186 = vrot.slane %v4185, 1
    %v4187 = vmax.f32 %v4185, %v4186
    %vm4188 = vcmask 392192
    %v4189 = vsel %vm4188, %v4123, -inf
    %v4190 = vrot.slane %v4189, 4
    %v4191 = vmax.f32 %v4189, %v4190
    %v4192 = vrot.slane %v4191, 2
    %v4193 = vmax.f32 %v4191, %v4192
    %v4194 = vrot.slane %v4193, 1
    %v4195 = vmax.f32 %v4193, %v4194
    %v4196 = vrot.slane %v4124, 4
    %v4197 = vmax.f32 %v4124, %v4196
    %v4198 = vrot.slane %v4197, 2
    %v4199 = vmax.f32 %v4197, %v4198
    %v4200 = vrot.slane %v4199, 1
    %v4201 = vmax.f32 %v4199, %v4200
    %v4202 = vrot.slane %v4125, 4
    %v4203 = vmax.f32 %v4125, %v4202
    %v4204 = vrot.slane %v4203, 2
    %v4205 = vmax.f32 %v4203, %v4204
    %v4206 = vrot.slane %v4205, 1
    %v4207 = vmax.f32 %v4205, %v4206
    %v4208 = vrot.slane %v4126, 4
    %v4209 = vmax.f32 %v4126, %v4208
    %v4210 = vrot.slane %v4209, 2
    %v4211 = vmax.f32 %v4209, %v4210
    %v4212 = vrot.slane %v4211, 1
    %v4213 = vmax.f32 %v4211, %v4212
    %v4214 = vrot.slane %v4127, 4
    %v4215 = vmax.f32 %v4127, %v4214
    %v4216 = vrot.slane %v4215, 2
    %v4217 = vmax.f32 %v4215, %v4216
    %v4218 = vrot.slane %v4217, 1
    %v4219 = vmax.f32 %v4217, %v4218
    %v4220 = vrot.slane %v4128, 4
    %v4221 = vmax.f32 %v4128, %v4220
    %v4222 = vrot.slane %v4221, 2
    %v4223 = vmax.f32 %v4221, %v4222
    %v4224 = vrot.slane %v4223, 1
    %v4225 = vmax.f32 %v4223, %v4224
    %v4226 = vrot.slane %v4129, 4
    %v4227 = vmax.f32 %v4129, %v4226
    %v4228 = vrot.slane %v4227, 2
    %v4229 = vmax.f32 %v4227, %v4228
    %v4230 = vrot.slane %v4229, 1
    %v4231 = vmax.f32 %v4229, %v4230
    %v4232 = vrot.slane %v4130, 4
    %v4233 = vmax.f32 %v4130, %v4232
    %v4234 = vrot.slane %v4233, 2
    %v4235 = vmax.f32 %v4233, %v4234
    %v4236 = vrot.slane %v4235, 1
    %v4237 = vmax.f32 %v4235, %v4236
    %v4238 = vrot.slane %v4131, 4
    %v4239 = vmax.f32 %v4131, %v4238
    %v4240 = vrot.slane %v4239, 2
    %v4241 = vmax.f32 %v4239, %v4240
    %v4242 = vrot.slane %v4241, 1
    %v4243 = vmax.f32 %v4241, %v4242
    %v4244 = vrot.slane %v4132, 4
    %v4245 = vmax.f32 %v4132, %v4244
    %v4246 = vrot.slane %v4245, 2
    %v4247 = vmax.f32 %v4245, %v4246
    %v4248 = vrot.slane %v4247, 1
    %v4249 = vmax.f32 %v4247, %v4248
    %v4250 = vsel %vm4188, %v4133, -inf
    %v4251 = vrot.slane %v4250, 4
    %v4252 = vmax.f32 %v4250, %v4251
    %v4253 = vrot.slane %v4252, 2
    %v4254 = vmax.f32 %v4252, %v4253
    %v4255 = vrot.slane %v4254, 1
    %v4256 = vmax.f32 %v4254, %v4255
    %v4277 = vrot.slane %v4145, 6
    %v4278 = vrot.slane %v4151, 4
    %v4279 = vrot.slane %v4157, 2
    %v4280 = vrot.slane %v4169, 6
    %v4281 = vrot.slane %v4175, 4
    %v4282 = vrot.slane %v4181, 2
    %v4283 = vrot.slane %v4195, 6
    %v4284 = vrot.slane %v4207, 6
    %v4285 = vrot.slane %v4213, 4
    %v4286 = vrot.slane %v4219, 2
    %v4287 = vrot.slane %v4231, 6
    %v4288 = vrot.slane %v4237, 4
    %v4289 = vrot.slane %v4243, 2
    %v4290 = vrot.slane %v4256, 6
    %vm4291 = vcmask 1041408
    %v4292 = vsel %vm4291, %v4139, %v4277
    %vm4293 = vcmask 1045508
    %v4294 = vsel %vm4293, %v4278, %v4279
    %vm4295 = vcmask 1043456
    %v4296 = vsel %vm4295, %v4292, %v4294
    %v4297 = vsel %vm4291, %v4163, %v4280
    %v4298 = vsel %vm4293, %v4281, %v4282
    %v4299 = vsel %vm4295, %v4297, %v4298
    %v4300 = vsel %vm4291, %v4187, %v4283
    %v4301 = vsel %vm4291, %v4201, %v4284
    %v4302 = vsel %vm4293, %v4285, %v4286
    %v4303 = vsel %vm4295, %v4301, %v4302
    %v4304 = vsel %vm4291, %v4225, %v4287
    %v4305 = vsel %vm4293, %v4288, %v4289
    %v4306 = vsel %vm4295, %v4304, %v4305
    %v4307 = vsel %vm4291, %v4249, %v4290
    %vm4308 = vcmask 1044484
    %v4309 = vsel %vm4308, %v4296, %v4296
    %vm4310 = vcmask 1046534
    %v4311 = vsel %vm4310, %v4296, %v4309
    %v4312 = vrot.slane %v4303, 7
    %vm4313 = vcmask 1041409
    %v4314 = vsel %vm4313, %v4312, %v4311
    %vm4315 = vcmask 1043459
    %v4316 = vsel %vm4315, %v4312, %v4314
    %vm4317 = vcmask 1045509
    %v4318 = vsel %vm4317, %v4312, %v4316
    %vm4319 = vcmask 1047559
    %v4320 = vsel %vm4319, %v4312, %v4318
    %v4321 = vsel %vm4308, %v4299, %v4299
    %v4322 = vsel %vm4310, %v4299, %v4321
    %v4323 = vrot.slane %v4306, 7
    %v4324 = vsel %vm4313, %v4323, %v4322
    %v4325 = vsel %vm4315, %v4323, %v4324
    %v4326 = vsel %vm4317, %v4323, %v4325
    %v4327 = vsel %vm4319, %v4323, %v4326
    %v4328 = vsel %vm4308, %v4300, %v4300
    %v4329 = vsel %vm4310, %v4300, %v4328
    %v4330 = vrot.slane %v4307, 7
    %v4331 = vsel %vm4313, %v4330, %v4329
    %v4332 = vsel %vm4315, %v4330, %v4331
    %v4333 = vsel %vm4317, %v4330, %v4332
    %v4334 = vsel %vm4319, %v4330, %v4333
    %4338 = vst [vmem:[#allocation17] sm:$0xff] %v4320
    %4339 = vst [vmem:[#allocation17 + $0x8] sm:$0xff] %v4327
    %vm4340 = vcmask 388098
    %vm4341 = vmor %vm4340, %vm4291
    %4342 = vst.msk [vmem:[#allocation17 + $0x10] sm:$0xf] %vm4341, %v4334
    // Predicated region
    $region78: #{tpu_custom_call.1} parent=1 // pred_check
      _
    $region79: #{tpu_custom_call.1} parent=1 // pred_check_branch
      %4344 = sbr.rel (0) target = $region81
    $region80: #{tpu_custom_call.1} parent=1 // pred_region
      %4346 = vsyncadd [#allocation4], 0
      %s4348 = sshll.u32 [#allocation17], 4
      %s4349 = int_to_ptr.vmem [resolvable:$true] %s4348
      %s4350 = sshll.u32 %s10, 4
      %s4351 = int_to_ptr.hbm [resolvable:$true] %s4350
      %4353 = dma.vmem_to_hbm [thread:$0]  %s4349, 320, %s4351, [#allocation4]
    $region81: #{tpu_custom_call.1} parent=1 // pred_fallthru
      _
    // Predicated region
    $region82: #{tpu_custom_call.1} parent=1 // pred_check
      _
    $region83: #{tpu_custom_call.1} parent=1 // pred_check_branch
      %4355 = sbr.rel (0) target = $region85
    $region84: #{tpu_custom_call.1} parent=1 // pred_region
      %4357 = dma.done [#allocation4], 320
    $region85: #{tpu_custom_call.1} parent=1 // pred_fallthru
      _
    %4358 = vsyncpa [#allocation3], 1
    %4359 = vsyncpa [#allocation6], 1
    %4360 = vsyncpa [#allocation9], 1
    %4361 = vsyncpa [#allocation12], 1
    %4362 = vsyncpa [#allocation15], 1
    %4363 = vsyncpa [#allocation4], 1

</llo_original>
